<compile_context>
chip_gen: v6e
topology: v6e:2x2x1
jax: 0.10.0
libtpu: 0.0.40
codegen_flags: <defaults>
</compile_context>

<pallas_src>
import jax
import jax.numpy as jnp
from jax.experimental import pallas as pl
from jax.experimental.pallas import tpu as pltpu


CHANNELS = (3, 8, 16, 32, 32, 32)                 # synthetic VGG-style extractor
VGG_LOSS_WEIGHTS = (1.0 / 32, 1.0 / 16, 1.0 / 8, 1.0 / 4, 1.0)
N_STAGES = len(CHANNELS) - 1


# ---------------------------------------------------------------------------
# Synthetic VGG parameters (stand-in for the wrapped `network`)
# ---------------------------------------------------------------------------
def init_vgg_params(key):
    # TODO(synk): the reference uses an externally supplied pretrained VGG;
    # here we build a deterministic synthetic 5-stage extractor instead.
    params = []
    for i in range(N_STAGES):
        cin, cout = CHANNELS[i], CHANNELS[i + 1]
        key, kw, kb = jax.random.split(key, 3)
        std = jnp.sqrt(2.0 / (9.0 * cin)).astype(jnp.float32)
        w = jax.random.normal(kw, (3, 3, cin, cout), jnp.float32) * std
        b = 0.01 * jax.random.normal(kb, (cout,), jnp.float32)
        params.append((w, b))
    return params


def pack_vgg_params(params):
    # (3,3,Cin,Cout) -> (9*Cin, Cout) bf16 for the single-contraction conv;
    # biases -> (1, Cout) f32.
    packed = []
    for w, b in params:
        cin, cout = w.shape[2], w.shape[3]
        packed.append((w.reshape(9 * cin, cout).astype(jnp.bfloat16),
                       b.reshape(1, cout).astype(jnp.float32)))
    return packed


# ---------------------------------------------------------------------------
# Fused VGGLoss kernel
# ---------------------------------------------------------------------------
def _stage_sizes(H, W):
    sizes, h, w = [], H, W
    for _ in range(N_STAGES):
        sizes.append((h, w))
        h, w = h // 2, w // 2
    return sizes


def _make_vgg_loss_kernel(batch, H, W):
    sizes = _stage_sizes(H, W)
    # weight_i / count_i for nn.L1Loss(reduction='mean'); each grid step
    # contributes one batch element's partial |x_i - y_i| sum.
    scales = [VGG_LOSS_WEIGHTS[s] /
              float(batch * sizes[s][0] * sizes[s][1] * CHANNELS[s + 1])
              for s in range(N_STAGES)]

    def kernel(*refs):
        x_ref, y_ref = refs[0], refs[1]
        wb_refs = refs[2:2 + 2 * N_STAGES]
        out_ref = refs[2 + 2 * N_STAGES]
        pad_refs = refs[3 + 2 * N_STAGES:3 + 3 * N_STAGES]
        slab_refs = refs[3 + 3 * N_STAGES:3 + 4 * N_STAGES]
        act_ref = refs[3 + 4 * N_STAGES]

        # ---- stage-0 input: zero-pad x/y into the first conv input buffer --
        # (whole-buffer zero every step keeps the "parallel" batch axis free of
        #  cross-iteration scratch dependence; the buffers are tiny.)
        h0, w0 = sizes[0]
        c0 = CHANNELS[0]
        pad_refs[0][...] = jnp.zeros((2, h0 + 2, w0 + 2, c0), jnp.float32)
        pad_refs[0][0:1, 1:h0 + 1, 1:w0 + 1, :] = x_ref[...]
        pad_refs[0][1:2, 1:h0 + 1, 1:w0 + 1, :] = y_ref[...]

        total = jnp.zeros((), jnp.float32)

        for s in range(N_STAGES):
            hs, ws = sizes[s]
            cin, cout = CHANNELS[s], CHANNELS[s + 1]
            m = 2 * hs * ws
            pad = pad_refs[s]
            slab = slab_refs[s]

            # im2col: pack the 9 taps (already bf16) -> ONE MXU contraction.
            for dy in range(3):
                for dx in range(3):
                    t = dy * 3 + dx
                    slab[:, t * cin:(t + 1) * cin] = (
                        pad[:, dy:dy + hs, dx:dx + ws, :]
                        .reshape(m, cin).astype(jnp.bfloat16))
            acc = jnp.dot(slab[...], wb_refs[2 * s][...],
                          preferred_element_type=jnp.float32)        # (M, Cout)
            act = jnp.maximum(acc + wb_refs[2 * s + 1][...], 0.0)    # bias+ReLU

            # weighted L1 partial for this stage (x rows vs y rows).
            xy = act.reshape(2, hs * ws, cout)
            total = total + scales[s] * jnp.sum(jnp.abs(xy[0] - xy[1]))

            # 2x2 max-pool (stride 2) + zero-pad into the next conv input.
            if s + 1 < N_STAGES:
                hh, wh = hs // 2, ws // 2
                act_ref[0:m, 0:cout] = act
                # W-pool: even/odd-w rows are adjacent sublanes -> strided reads.
                wp = jnp.maximum(act_ref[pl.ds(0, m // 2, stride=2), 0:cout],
                                 act_ref[pl.ds(1, m // 2, stride=2), 0:cout])
                # H-pool: pairs of wh-row blocks.
                r = wp.reshape(2, hh, 2, wh, cout)
                pooled = jnp.maximum(r[:, :, 0, :, :], r[:, :, 1, :, :])
                nxt = pad_refs[s + 1]
                nxt[...] = jnp.zeros((2, hh + 2, wh + 2, cout), jnp.float32)
                nxt[:, 1:hh + 1, 1:wh + 1, :] = pooled

        # lane-broadcast scalar -> full 128-lane store; wrapper reads [:,0,0].
        out_ref[...] = total * jnp.ones((1, 1, 128), jnp.float32)

    return kernel, sizes


def vgg_loss_pallas(x_nhwc, y_nhwc, packed):
    n, H, W, c0 = x_nhwc.shape
    assert c0 == CHANNELS[0]
    assert H % (1 << (N_STAGES - 1)) == 0 and W % (1 << (N_STAGES - 1)) == 0
    kernel, sizes = _make_vgg_loss_kernel(n, H, W)

    in_specs = [pl.BlockSpec((1, H, W, c0), lambda i: (i, 0, 0, 0)),
                pl.BlockSpec((1, H, W, c0), lambda i: (i, 0, 0, 0))]
    args = [x_nhwc, y_nhwc]
    for wq, bq in packed:
        in_specs.append(pl.BlockSpec(wq.shape, lambda i: (0, 0)))
        in_specs.append(pl.BlockSpec(bq.shape, lambda i: (0, 0)))
        args.extend([wq, bq])

    pad_scratch = [
        pltpu.VMEM((2, sizes[s][0] + 2, sizes[s][1] + 2, CHANNELS[s]), jnp.float32)
        for s in range(N_STAGES)
    ]
    slab_scratch = [                                   # per-stage bf16 im2col slabs
        pltpu.VMEM((2 * sizes[s][0] * sizes[s][1], 9 * CHANNELS[s]), jnp.bfloat16)
        for s in range(N_STAGES)
    ]
    act_scratch = [pltpu.VMEM((2 * sizes[0][0] * sizes[0][1], max(CHANNELS[1:])),
                              jnp.float32)]            # shared pooling staging buf

    partial = pl.pallas_call(
        kernel,
        out_shape=jax.ShapeDtypeStruct((n, 1, 128), jnp.float32),
        grid=(n,),
        in_specs=in_specs,
        out_specs=pl.BlockSpec((1, 1, 128), lambda i: (i, 0, 0)),
        scratch_shapes=pad_scratch + slab_scratch + act_scratch,
        compiler_params=pltpu.CompilerParams(
            dimension_semantics=("parallel",)),
    )(*args)
    return jnp.sum(partial[:, 0, 0])


@jax.jit
def vgg_loss(x_nchw, y_nchw, packed):
    # PyTorch inputs are NCHW -> kernel layout is NHWC (channels on lanes).
    x = jnp.transpose(x_nchw, (0, 2, 3, 1)).astype(jnp.float32)
    # `.detach()` on the y branch in the reference -> block grads through y.
    y = jax.lax.stop_gradient(
        jnp.transpose(y_nchw, (0, 2, 3, 1)).astype(jnp.float32))
    return vgg_loss_pallas(x, y, packed)


# ---------------------------------------------------------------------------
# Pure-XLA reference (same bf16-rounded weights) for validation
# ---------------------------------------------------------------------------
def reference_vgg_loss(x_nchw, y_nchw, params):
    def features(img):
        feats, h = [], img
        for i, (w, b) in enumerate(params):
            wq = w.astype(jnp.bfloat16).astype(jnp.float32)
            h = jax.lax.conv_general_dilated(
                h, wq, window_strides=(1, 1), padding="SAME",
                dimension_numbers=("NHWC", "HWIO", "NHWC"))
            h = jnp.maximum(h + b, 0.0)
            feats.append(h)
            if i < len(params) - 1:
                h = jax.lax.reduce_window(h, -jnp.inf, jax.lax.max,
                                          (1, 2, 2, 1), (1, 2, 2, 1), "VALID")
        return feats

    x = jnp.transpose(x_nchw, (0, 2, 3, 1)).astype(jnp.float32)
    y = jnp.transpose(y_nchw, (0, 2, 3, 1)).astype(jnp.float32)
    xf, yf = features(x), features(y)
    loss = jnp.zeros((), jnp.float32)
    for i in range(len(xf)):
        loss = loss + VGG_LOSS_WEIGHTS[i] * jnp.mean(jnp.abs(xf[i] - yf[i]))
    return loss


if __name__ == "__main__":
    key = jax.random.PRNGKey(0)
    kp, kx, ky = jax.random.split(key, 3)

    params = init_vgg_params(kp)
    packed = pack_vgg_params(params)

    x = jax.random.normal(kx, (2, 3, 16, 16), jnp.float32)
    y = jax.random.normal(ky, (2, 3, 16, 16), jnp.float32)

    loss = jax.block_until_ready(vgg_loss(x, y, packed))
    ref = jax.block_until_ready(jax.jit(reference_vgg_loss)(x, y, params))

    assert jnp.isfinite(loss), f"non-finite loss: {loss}"
    # kernel matmuls run with bf16 operands (f32 accumulation) -> loose rtol.
    assert abs(float(loss) - float(ref)) <= 0.08 * abs(float(ref)) + 1e-4, (loss, ref)
    print("KERNEL_OK")
</pallas_src>

<mosaic_0001>
module attributes {stable_mosaic.version = 11 : i64} {
  func.func @kernel(%arg0: i32, %arg1: memref<1x16x16x3xf32, #tpu.memory_space<vmem>>, %arg2: memref<1x16x16x3xf32, #tpu.memory_space<vmem>>, %arg3: memref<27x8xbf16, #tpu.memory_space<vmem>>, %arg4: memref<1x8xf32, #tpu.memory_space<vmem>>, %arg5: memref<72x16xbf16, #tpu.memory_space<vmem>>, %arg6: memref<1x16xf32, #tpu.memory_space<vmem>>, %arg7: memref<144x32xbf16, #tpu.memory_space<vmem>>, %arg8: memref<1x32xf32, #tpu.memory_space<vmem>>, %arg9: memref<288x32xbf16, #tpu.memory_space<vmem>>, %arg10: memref<1x32xf32, #tpu.memory_space<vmem>>, %arg11: memref<288x32xbf16, #tpu.memory_space<vmem>>, %arg12: memref<1x32xf32, #tpu.memory_space<vmem>>, %arg13: memref<1x1x128xf32, #tpu.memory_space<vmem>>, %arg14: memref<2x18x18x3xf32, #tpu.memory_space<vmem>>, %arg15: memref<2x10x10x8xf32, #tpu.memory_space<vmem>>, %arg16: memref<2x6x6x16xf32, #tpu.memory_space<vmem>>, %arg17: memref<2x4x4x32xf32, #tpu.memory_space<vmem>>, %arg18: memref<2x3x3x32xf32, #tpu.memory_space<vmem>>, %arg19: memref<512x27xbf16, #tpu.memory_space<vmem>>, %arg20: memref<128x72xbf16, #tpu.memory_space<vmem>>, %arg21: memref<32x144xbf16, #tpu.memory_space<vmem>>, %arg22: memref<8x288xbf16, #tpu.memory_space<vmem>>, %arg23: memref<2x288xbf16, #tpu.memory_space<vmem>>, %arg24: memref<512x32xf32, #tpu.memory_space<vmem>>) attributes {dimension_semantics = [#tpu.dimension_semantics<parallel>], iteration_bounds = array<i64: 2>, scalar_prefetch = 0 : i64, scratch_operands = 11 : i64, tpu.core_type = #tpu.core_type<tc>, window_params = [{transform_indices = @transform_0, window_bounds = array<i64: 1, 16, 16, 3>}, {transform_indices = @transform_1, window_bounds = array<i64: 1, 16, 16, 3>}, {pipeline_mode = #tpu.pipeline_mode<synchronous>, transform_indices = @transform_2, window_bounds = array<i64: 27, 8>}, {pipeline_mode = #tpu.pipeline_mode<synchronous>, transform_indices = @transform_3, window_bounds = array<i64: 1, 8>}, {pipeline_mode = #tpu.pipeline_mode<synchronous>, transform_indices = @transform_4, window_bounds = array<i64: 72, 16>}, {pipeline_mode = #tpu.pipeline_mode<synchronous>, transform_indices = @transform_5, window_bounds = array<i64: 1, 16>}, {pipeline_mode = #tpu.pipeline_mode<synchronous>, transform_indices = @transform_6, window_bounds = array<i64: 144, 32>}, {pipeline_mode = #tpu.pipeline_mode<synchronous>, transform_indices = @transform_7, window_bounds = array<i64: 1, 32>}, {pipeline_mode = #tpu.pipeline_mode<synchronous>, transform_indices = @transform_8, window_bounds = array<i64: 288, 32>}, {pipeline_mode = #tpu.pipeline_mode<synchronous>, transform_indices = @transform_9, window_bounds = array<i64: 1, 32>}, {pipeline_mode = #tpu.pipeline_mode<synchronous>, transform_indices = @transform_10, window_bounds = array<i64: 288, 32>}, {pipeline_mode = #tpu.pipeline_mode<synchronous>, transform_indices = @transform_11, window_bounds = array<i64: 1, 32>}, {transform_indices = @transform_12, window_bounds = array<i64: 1, 1, 128>}]} {
    %cst = arith.constant 0.000000e+00 : f32
    %0 = vector.broadcast %cst : f32 to vector<2x18x18x3xf32>
    %c0 = arith.constant 0 : index
    %c0_0 = arith.constant 0 : index
    %c0_1 = arith.constant 0 : index
    %c0_2 = arith.constant 0 : index
    %1 = vector.load %arg14[%c0, %c0_0, %c0_1, %c0_2] : memref<2x18x18x3xf32, #tpu.memory_space<vmem>>, vector<2x18x18x3xf32>
    tpu.vector_store %arg14[%c0, %c0_0, %c0_1, %c0_2], %0 {strides = array<i32>} : memref<2x18x18x3xf32, #tpu.memory_space<vmem>>, vector<2x18x18x3xf32>,
    %c0_3 = arith.constant 0 : index
    %c0_4 = arith.constant 0 : index
    %c0_5 = arith.constant 0 : index
    %c0_6 = arith.constant 0 : index
    %2 = vector.load %arg1[%c0_3, %c0_4, %c0_5, %c0_6] : memref<1x16x16x3xf32, #tpu.memory_space<vmem>>, vector<1x16x16x3xf32>
    %c0_7 = arith.constant 0 : index
    %c1 = arith.constant 1 : index
    %c1_8 = arith.constant 1 : index
    %c0_9 = arith.constant 0 : index
    %3 = vector.load %arg14[%c0_7, %c1, %c1_8, %c0_9] : memref<2x18x18x3xf32, #tpu.memory_space<vmem>>, vector<1x16x16x3xf32>
    tpu.vector_store %arg14[%c0_7, %c1, %c1_8, %c0_9], %2 {strides = array<i32>} : memref<2x18x18x3xf32, #tpu.memory_space<vmem>>, vector<1x16x16x3xf32>,
    %c0_10 = arith.constant 0 : index
    %c0_11 = arith.constant 0 : index
    %c0_12 = arith.constant 0 : index
    %c0_13 = arith.constant 0 : index
    %4 = vector.load %arg2[%c0_10, %c0_11, %c0_12, %c0_13] : memref<1x16x16x3xf32, #tpu.memory_space<vmem>>, vector<1x16x16x3xf32>
    %c1_14 = arith.constant 1 : index
    %c1_15 = arith.constant 1 : index
    %c1_16 = arith.constant 1 : index
    %c0_17 = arith.constant 0 : index
    %5 = vector.load %arg14[%c1_14, %c1_15, %c1_16, %c0_17] : memref<2x18x18x3xf32, #tpu.memory_space<vmem>>, vector<1x16x16x3xf32>
    tpu.vector_store %arg14[%c1_14, %c1_15, %c1_16, %c0_17], %4 {strides = array<i32>} : memref<2x18x18x3xf32, #tpu.memory_space<vmem>>, vector<1x16x16x3xf32>,
    %c0_18 = arith.constant 0 : index
    %c0_19 = arith.constant 0 : index
    %c0_20 = arith.constant 0 : index
    %c0_21 = arith.constant 0 : index
    %6 = vector.load %arg14[%c0_18, %c0_19, %c0_20, %c0_21] : memref<2x18x18x3xf32, #tpu.memory_space<vmem>>, vector<2x16x16x3xf32>
    %7 = vector.shape_cast %6 : vector<2x16x16x3xf32> to vector<512x3xf32>
    %8 = arith.truncf %7 : vector<512x3xf32> to vector<512x3xbf16>
    %c0_22 = arith.constant 0 : index
    %c0_23 = arith.constant 0 : index
    %9 = vector.load %arg19[%c0_22, %c0_23] : memref<512x27xbf16, #tpu.memory_space<vmem>>, vector<512x3xbf16>
    tpu.vector_store %arg19[%c0_22, %c0_23], %8 {strides = array<i32>} : memref<512x27xbf16, #tpu.memory_space<vmem>>, vector<512x3xbf16>,
    %c0_24 = arith.constant 0 : index
    %c0_25 = arith.constant 0 : index
    %c1_26 = arith.constant 1 : index
    %c0_27 = arith.constant 0 : index
    %10 = vector.load %arg14[%c0_24, %c0_25, %c1_26, %c0_27] : memref<2x18x18x3xf32, #tpu.memory_space<vmem>>, vector<2x16x16x3xf32>
    %11 = vector.shape_cast %10 : vector<2x16x16x3xf32> to vector<512x3xf32>
    %12 = arith.truncf %11 : vector<512x3xf32> to vector<512x3xbf16>
    %c0_28 = arith.constant 0 : index
    %c3 = arith.constant 3 : index
    %13 = vector.load %arg19[%c0_28, %c3] : memref<512x27xbf16, #tpu.memory_space<vmem>>, vector<512x3xbf16>
    tpu.vector_store %arg19[%c0_28, %c3], %12 {strides = array<i32>} : memref<512x27xbf16, #tpu.memory_space<vmem>>, vector<512x3xbf16>,
    %c0_29 = arith.constant 0 : index
    %c0_30 = arith.constant 0 : index
    %c2 = arith.constant 2 : index
    %c0_31 = arith.constant 0 : index
    %14 = vector.load %arg14[%c0_29, %c0_30, %c2, %c0_31] : memref<2x18x18x3xf32, #tpu.memory_space<vmem>>, vector<2x16x16x3xf32>
    %15 = vector.shape_cast %14 : vector<2x16x16x3xf32> to vector<512x3xf32>
    %16 = arith.truncf %15 : vector<512x3xf32> to vector<512x3xbf16>
    %c0_32 = arith.constant 0 : index
    %c6 = arith.constant 6 : index
    %17 = vector.load %arg19[%c0_32, %c6] : memref<512x27xbf16, #tpu.memory_space<vmem>>, vector<512x3xbf16>
    tpu.vector_store %arg19[%c0_32, %c6], %16 {strides = array<i32>} : memref<512x27xbf16, #tpu.memory_space<vmem>>, vector<512x3xbf16>,
    %c0_33 = arith.constant 0 : index
    %c1_34 = arith.constant 1 : index
    %c0_35 = arith.constant 0 : index
    %c0_36 = arith.constant 0 : index
    %18 = vector.load %arg14[%c0_33, %c1_34, %c0_35, %c0_36] : memref<2x18x18x3xf32, #tpu.memory_space<vmem>>, vector<2x16x16x3xf32>
    %19 = vector.shape_cast %18 : vector<2x16x16x3xf32> to vector<512x3xf32>
    %20 = arith.truncf %19 : vector<512x3xf32> to vector<512x3xbf16>
    %c0_37 = arith.constant 0 : index
    %c9 = arith.constant 9 : index
    %21 = vector.load %arg19[%c0_37, %c9] : memref<512x27xbf16, #tpu.memory_space<vmem>>, vector<512x3xbf16>
    tpu.vector_store %arg19[%c0_37, %c9], %20 {strides = array<i32>} : memref<512x27xbf16, #tpu.memory_space<vmem>>, vector<512x3xbf16>,
    %c0_38 = arith.constant 0 : index
    %c1_39 = arith.constant 1 : index
    %c1_40 = arith.constant 1 : index
    %c0_41 = arith.constant 0 : index
    %22 = vector.load %arg14[%c0_38, %c1_39, %c1_40, %c0_41] : memref<2x18x18x3xf32, #tpu.memory_space<vmem>>, vector<2x16x16x3xf32>
    %23 = vector.shape_cast %22 : vector<2x16x16x3xf32> to vector<512x3xf32>
    %24 = arith.truncf %23 : vector<512x3xf32> to vector<512x3xbf16>
    %c0_42 = arith.constant 0 : index
    %c12 = arith.constant 12 : index
    %25 = vector.load %arg19[%c0_42, %c12] : memref<512x27xbf16, #tpu.memory_space<vmem>>, vector<512x3xbf16>
    tpu.vector_store %arg19[%c0_42, %c12], %24 {strides = array<i32>} : memref<512x27xbf16, #tpu.memory_space<vmem>>, vector<512x3xbf16>,
    %c0_43 = arith.constant 0 : index
    %c1_44 = arith.constant 1 : index
    %c2_45 = arith.constant 2 : index
    %c0_46 = arith.constant 0 : index
    %26 = vector.load %arg14[%c0_43, %c1_44, %c2_45, %c0_46] : memref<2x18x18x3xf32, #tpu.memory_space<vmem>>, vector<2x16x16x3xf32>
    %27 = vector.shape_cast %26 : vector<2x16x16x3xf32> to vector<512x3xf32>
    %28 = arith.truncf %27 : vector<512x3xf32> to vector<512x3xbf16>
    %c0_47 = arith.constant 0 : index
    %c15 = arith.constant 15 : index
    %29 = vector.load %arg19[%c0_47, %c15] : memref<512x27xbf16, #tpu.memory_space<vmem>>, vector<512x3xbf16>
    tpu.vector_store %arg19[%c0_47, %c15], %28 {strides = array<i32>} : memref<512x27xbf16, #tpu.memory_space<vmem>>, vector<512x3xbf16>,
    %c0_48 = arith.constant 0 : index
    %c2_49 = arith.constant 2 : index
    %c0_50 = arith.constant 0 : index
    %c0_51 = arith.constant 0 : index
    %30 = vector.load %arg14[%c0_48, %c2_49, %c0_50, %c0_51] : memref<2x18x18x3xf32, #tpu.memory_space<vmem>>, vector<2x16x16x3xf32>
    %31 = vector.shape_cast %30 : vector<2x16x16x3xf32> to vector<512x3xf32>
    %32 = arith.truncf %31 : vector<512x3xf32> to vector<512x3xbf16>
    %c0_52 = arith.constant 0 : index
    %c18 = arith.constant 18 : index
    %33 = vector.load %arg19[%c0_52, %c18] : memref<512x27xbf16, #tpu.memory_space<vmem>>, vector<512x3xbf16>
    tpu.vector_store %arg19[%c0_52, %c18], %32 {strides = array<i32>} : memref<512x27xbf16, #tpu.memory_space<vmem>>, vector<512x3xbf16>,
    %c0_53 = arith.constant 0 : index
    %c2_54 = arith.constant 2 : index
    %c1_55 = arith.constant 1 : index
    %c0_56 = arith.constant 0 : index
    %34 = vector.load %arg14[%c0_53, %c2_54, %c1_55, %c0_56] : memref<2x18x18x3xf32, #tpu.memory_space<vmem>>, vector<2x16x16x3xf32>
    %35 = vector.shape_cast %34 : vector<2x16x16x3xf32> to vector<512x3xf32>
    %36 = arith.truncf %35 : vector<512x3xf32> to vector<512x3xbf16>
    %c0_57 = arith.constant 0 : index
    %c21 = arith.constant 21 : index
    %37 = vector.load %arg19[%c0_57, %c21] : memref<512x27xbf16, #tpu.memory_space<vmem>>, vector<512x3xbf16>
    tpu.vector_store %arg19[%c0_57, %c21], %36 {strides = array<i32>} : memref<512x27xbf16, #tpu.memory_space<vmem>>, vector<512x3xbf16>,
    %c0_58 = arith.constant 0 : index
    %c2_59 = arith.constant 2 : index
    %c2_60 = arith.constant 2 : index
    %c0_61 = arith.constant 0 : index
    %38 = vector.load %arg14[%c0_58, %c2_59, %c2_60, %c0_61] : memref<2x18x18x3xf32, #tpu.memory_space<vmem>>, vector<2x16x16x3xf32>
    %39 = vector.shape_cast %38 : vector<2x16x16x3xf32> to vector<512x3xf32>
    %40 = arith.truncf %39 : vector<512x3xf32> to vector<512x3xbf16>
    %c0_62 = arith.constant 0 : index
    %c24 = arith.constant 24 : index
    %41 = vector.load %arg19[%c0_62, %c24] : memref<512x27xbf16, #tpu.memory_space<vmem>>, vector<512x3xbf16>
    tpu.vector_store %arg19[%c0_62, %c24], %40 {strides = array<i32>} : memref<512x27xbf16, #tpu.memory_space<vmem>>, vector<512x3xbf16>,
    %c0_63 = arith.constant 0 : index
    %c0_64 = arith.constant 0 : index
    %42 = vector.load %arg19[%c0_63, %c0_64] : memref<512x27xbf16, #tpu.memory_space<vmem>>, vector<512x27xbf16>
    %c0_65 = arith.constant 0 : index
    %c0_66 = arith.constant 0 : index
    %43 = vector.load %arg3[%c0_65, %c0_66] : memref<27x8xbf16, #tpu.memory_space<vmem>>, vector<27x8xbf16>
    %cst_67 = arith.constant dense<0.000000e+00> : vector<512x8xf32>
    %44 = tpu.matmul %42, %43, %cst_67 {dimension_numbers = #tpu.dot_dimension_numbers<[1], [0], [0], [1], [0, 0, 1, 1], [], []>} : vector<512x27xbf16>, vector<27x8xbf16>, vector<512x8xf32> -> vector<512x8xf32>
    %c0_68 = arith.constant 0 : index
    %c0_69 = arith.constant 0 : index
    %45 = vector.load %arg4[%c0_68, %c0_69] : memref<1x8xf32, #tpu.memory_space<vmem>>, vector<1x8xf32>
    %46 = vector.broadcast %45 : vector<1x8xf32> to vector<512x8xf32>
    %47 = arith.addf %44, %46 : vector<512x8xf32>
    %cst_70 = arith.constant 0.000000e+00 : f32
    %48 = vector.broadcast %cst_70 : f32 to vector<512x8xf32>
    %49 = arith.maximumf %47, %48 : vector<512x8xf32>
    %50 = vector.shape_cast %49 : vector<512x8xf32> to vector<2x256x8xf32>
    %51 = vector.extract_strided_slice %50 {offsets = [0, 0, 0], sizes = [1, 256, 8], strides = [1, 1, 1]} : vector<2x256x8xf32> to vector<1x256x8xf32>
    %52 = vector.shape_cast %51 : vector<1x256x8xf32> to vector<256x8xf32>
    %53 = vector.extract_strided_slice %50 {offsets = [1, 0, 0], sizes = [1, 256, 8], strides = [1, 1, 1]} : vector<2x256x8xf32> to vector<1x256x8xf32>
    %54 = vector.shape_cast %53 : vector<1x256x8xf32> to vector<256x8xf32>
    %55 = arith.subf %52, %54 : vector<256x8xf32>
    %56 = math.absf %55 : vector<256x8xf32>
    %57 = vector.shape_cast %56 : vector<256x8xf32> to vector<1x256x8xf32>
    %cst_71 = arith.constant dense<0.000000e+00> : vector<1xf32>
    %58 = vector.multi_reduction <add>, %57, %cst_71 [1, 2] : vector<1x256x8xf32> to vector<1xf32>
    %59 = vector.shape_cast %58 : vector<1xf32> to vector<1x1x1xf32>
    %60 = vector.extract %59[0, 0, 0] : f32 from vector<1x1x1xf32>
    %cst_72 = arith.constant 7.62939453E-6 : f32
    %61 = arith.mulf %cst_72, %60 : f32
    %cst_73 = arith.constant 0.000000e+00 : f32
    %62 = arith.addf %cst_73, %61 : f32
    %c0_74 = arith.constant 0 : index
    %c0_75 = arith.constant 0 : index
    %63 = vector.load %arg24[%c0_74, %c0_75] : memref<512x32xf32, #tpu.memory_space<vmem>>, vector<512x8xf32>
    tpu.vector_store %arg24[%c0_74, %c0_75], %49 {strides = array<i32>} : memref<512x32xf32, #tpu.memory_space<vmem>>, vector<512x8xf32>,
    %c0_76 = arith.constant 0 : index
    %c0_77 = arith.constant 0 : index
    %64 = tpu.strided_load %arg24[%c0_76, %c0_77] {strides = array<i32: 2, 1>} : memref<512x32xf32, #tpu.memory_space<vmem>>, vector<256x8xf32>
    %c1_78 = arith.constant 1 : index
    %c0_79 = arith.constant 0 : index
    %65 = tpu.strided_load %arg24[%c1_78, %c0_79] {strides = array<i32: 2, 1>} : memref<512x32xf32, #tpu.memory_space<vmem>>, vector<256x8xf32>
    %66 = arith.maximumf %64, %65 : vector<256x8xf32>
    %67 = vector.shape_cast %66 : vector<256x8xf32> to vector<2x8x2x8x8xf32>
    %68 = vector.extract_strided_slice %67 {offsets = [0, 0, 0, 0, 0], sizes = [2, 8, 1, 8, 8], strides = [1, 1, 1, 1, 1]} : vector<2x8x2x8x8xf32> to vector<2x8x1x8x8xf32>
    %69 = vector.shape_cast %68 : vector<2x8x1x8x8xf32> to vector<2x8x8x8xf32>
    %70 = vector.extract_strided_slice %67 {offsets = [0, 0, 1, 0, 0], sizes = [2, 8, 1, 8, 8], strides = [1, 1, 1, 1, 1]} : vector<2x8x2x8x8xf32> to vector<2x8x1x8x8xf32>
    %71 = vector.shape_cast %70 : vector<2x8x1x8x8xf32> to vector<2x8x8x8xf32>
    %72 = arith.maximumf %69, %71 : vector<2x8x8x8xf32>
    %cst_80 = arith.constant 0.000000e+00 : f32
    %73 = vector.broadcast %cst_80 : f32 to vector<2x10x10x8xf32>
    %c0_81 = arith.constant 0 : index
    %c0_82 = arith.constant 0 : index
    %c0_83 = arith.constant 0 : index
    %c0_84 = arith.constant 0 : index
    %74 = vector.load %arg15[%c0_81, %c0_82, %c0_83, %c0_84] : memref<2x10x10x8xf32, #tpu.memory_space<vmem>>, vector<2x10x10x8xf32>
    tpu.vector_store %arg15[%c0_81, %c0_82, %c0_83, %c0_84], %73 {strides = array<i32>} : memref<2x10x10x8xf32, #tpu.memory_space<vmem>>, vector<2x10x10x8xf32>,
    %c0_85 = arith.constant 0 : index
    %c1_86 = arith.constant 1 : index
    %c1_87 = arith.constant 1 : index
    %c0_88 = arith.constant 0 : index
    %75 = vector.load %arg15[%c0_85, %c1_86, %c1_87, %c0_88] : memref<2x10x10x8xf32, #tpu.memory_space<vmem>>, vector<2x8x8x8xf32>
    tpu.vector_store %arg15[%c0_85, %c1_86, %c1_87, %c0_88], %72 {strides = array<i32>} : memref<2x10x10x8xf32, #tpu.memory_space<vmem>>, vector<2x8x8x8xf32>,
    %c0_89 = arith.constant 0 : index
    %c0_90 = arith.constant 0 : index
    %c0_91 = arith.constant 0 : index
    %c0_92 = arith.constant 0 : index
    %76 = vector.load %arg15[%c0_89, %c0_90, %c0_91, %c0_92] : memref<2x10x10x8xf32, #tpu.memory_space<vmem>>, vector<2x8x8x8xf32>
    %77 = vector.shape_cast %76 : vector<2x8x8x8xf32> to vector<128x8xf32>
    %78 = arith.truncf %77 : vector<128x8xf32> to vector<128x8xbf16>
    %c0_93 = arith.constant 0 : index
    %c0_94 = arith.constant 0 : index
    %79 = vector.load %arg20[%c0_93, %c0_94] : memref<128x72xbf16, #tpu.memory_space<vmem>>, vector<128x8xbf16>
    tpu.vector_store %arg20[%c0_93, %c0_94], %78 {strides = array<i32>} : memref<128x72xbf16, #tpu.memory_space<vmem>>, vector<128x8xbf16>,
    %c0_95 = arith.constant 0 : index
    %c0_96 = arith.constant 0 : index
    %c1_97 = arith.constant 1 : index
    %c0_98 = arith.constant 0 : index
    %80 = vector.load %arg15[%c0_95, %c0_96, %c1_97, %c0_98] : memref<2x10x10x8xf32, #tpu.memory_space<vmem>>, vector<2x8x8x8xf32>
    %81 = vector.shape_cast %80 : vector<2x8x8x8xf32> to vector<128x8xf32>
    %82 = arith.truncf %81 : vector<128x8xf32> to vector<128x8xbf16>
    %c0_99 = arith.constant 0 : index
    %c8 = arith.constant 8 : index
    %83 = vector.load %arg20[%c0_99, %c8] : memref<128x72xbf16, #tpu.memory_space<vmem>>, vector<128x8xbf16>
    tpu.vector_store %arg20[%c0_99, %c8], %82 {strides = array<i32>} : memref<128x72xbf16, #tpu.memory_space<vmem>>, vector<128x8xbf16>,
    %c0_100 = arith.constant 0 : index
    %c0_101 = arith.constant 0 : index
    %c2_102 = arith.constant 2 : index
    %c0_103 = arith.constant 0 : index
    %84 = vector.load %arg15[%c0_100, %c0_101, %c2_102, %c0_103] : memref<2x10x10x8xf32, #tpu.memory_space<vmem>>, vector<2x8x8x8xf32>
    %85 = vector.shape_cast %84 : vector<2x8x8x8xf32> to vector<128x8xf32>
    %86 = arith.truncf %85 : vector<128x8xf32> to vector<128x8xbf16>
    %c0_104 = arith.constant 0 : index
    %c16 = arith.constant 16 : index
    %87 = vector.load %arg20[%c0_104, %c16] : memref<128x72xbf16, #tpu.memory_space<vmem>>, vector<128x8xbf16>
    tpu.vector_store %arg20[%c0_104, %c16], %86 {strides = array<i32>} : memref<128x72xbf16, #tpu.memory_space<vmem>>, vector<128x8xbf16>,
    %c0_105 = arith.constant 0 : index
    %c1_106 = arith.constant 1 : index
    %c0_107 = arith.constant 0 : index
    %c0_108 = arith.constant 0 : index
    %88 = vector.load %arg15[%c0_105, %c1_106, %c0_107, %c0_108] : memref<2x10x10x8xf32, #tpu.memory_space<vmem>>, vector<2x8x8x8xf32>
    %89 = vector.shape_cast %88 : vector<2x8x8x8xf32> to vector<128x8xf32>
    %90 = arith.truncf %89 : vector<128x8xf32> to vector<128x8xbf16>
    %c0_109 = arith.constant 0 : index
    %c24_110 = arith.constant 24 : index
    %91 = vector.load %arg20[%c0_109, %c24_110] : memref<128x72xbf16, #tpu.memory_space<vmem>>, vector<128x8xbf16>
    tpu.vector_store %arg20[%c0_109, %c24_110], %90 {strides = array<i32>} : memref<128x72xbf16, #tpu.memory_space<vmem>>, vector<128x8xbf16>,
    %c0_111 = arith.constant 0 : index
    %c1_112 = arith.constant 1 : index
    %c1_113 = arith.constant 1 : index
    %c0_114 = arith.constant 0 : index
    %92 = vector.load %arg15[%c0_111, %c1_112, %c1_113, %c0_114] : memref<2x10x10x8xf32, #tpu.memory_space<vmem>>, vector<2x8x8x8xf32>
    %93 = vector.shape_cast %92 : vector<2x8x8x8xf32> to vector<128x8xf32>
    %94 = arith.truncf %93 : vector<128x8xf32> to vector<128x8xbf16>
    %c0_115 = arith.constant 0 : index
    %c32 = arith.constant 32 : index
    %95 = vector.load %arg20[%c0_115, %c32] : memref<128x72xbf16, #tpu.memory_space<vmem>>, vector<128x8xbf16>
    tpu.vector_store %arg20[%c0_115, %c32], %94 {strides = array<i32>} : memref<128x72xbf16, #tpu.memory_space<vmem>>, vector<128x8xbf16>,
    %c0_116 = arith.constant 0 : index
    %c1_117 = arith.constant 1 : index
    %c2_118 = arith.constant 2 : index
    %c0_119 = arith.constant 0 : index
    %96 = vector.load %arg15[%c0_116, %c1_117, %c2_118, %c0_119] : memref<2x10x10x8xf32, #tpu.memory_space<vmem>>, vector<2x8x8x8xf32>
    %97 = vector.shape_cast %96 : vector<2x8x8x8xf32> to vector<128x8xf32>
    %98 = arith.truncf %97 : vector<128x8xf32> to vector<128x8xbf16>
    %c0_120 = arith.constant 0 : index
    %c40 = arith.constant 40 : index
    %99 = vector.load %arg20[%c0_120, %c40] : memref<128x72xbf16, #tpu.memory_space<vmem>>, vector<128x8xbf16>
    tpu.vector_store %arg20[%c0_120, %c40], %98 {strides = array<i32>} : memref<128x72xbf16, #tpu.memory_space<vmem>>, vector<128x8xbf16>,
    %c0_121 = arith.constant 0 : index
    %c2_122 = arith.constant 2 : index
    %c0_123 = arith.constant 0 : index
    %c0_124 = arith.constant 0 : index
    %100 = vector.load %arg15[%c0_121, %c2_122, %c0_123, %c0_124] : memref<2x10x10x8xf32, #tpu.memory_space<vmem>>, vector<2x8x8x8xf32>
    %101 = vector.shape_cast %100 : vector<2x8x8x8xf32> to vector<128x8xf32>
    %102 = arith.truncf %101 : vector<128x8xf32> to vector<128x8xbf16>
    %c0_125 = arith.constant 0 : index
    %c48 = arith.constant 48 : index
    %103 = vector.load %arg20[%c0_125, %c48] : memref<128x72xbf16, #tpu.memory_space<vmem>>, vector<128x8xbf16>
    tpu.vector_store %arg20[%c0_125, %c48], %102 {strides = array<i32>} : memref<128x72xbf16, #tpu.memory_space<vmem>>, vector<128x8xbf16>,
    %c0_126 = arith.constant 0 : index
    %c2_127 = arith.constant 2 : index
    %c1_128 = arith.constant 1 : index
    %c0_129 = arith.constant 0 : index
    %104 = vector.load %arg15[%c0_126, %c2_127, %c1_128, %c0_129] : memref<2x10x10x8xf32, #tpu.memory_space<vmem>>, vector<2x8x8x8xf32>
    %105 = vector.shape_cast %104 : vector<2x8x8x8xf32> to vector<128x8xf32>
    %106 = arith.truncf %105 : vector<128x8xf32> to vector<128x8xbf16>
    %c0_130 = arith.constant 0 : index
    %c56 = arith.constant 56 : index
    %107 = vector.load %arg20[%c0_130, %c56] : memref<128x72xbf16, #tpu.memory_space<vmem>>, vector<128x8xbf16>
    tpu.vector_store %arg20[%c0_130, %c56], %106 {strides = array<i32>} : memref<128x72xbf16, #tpu.memory_space<vmem>>, vector<128x8xbf16>,
    %c0_131 = arith.constant 0 : index
    %c2_132 = arith.constant 2 : index
    %c2_133 = arith.constant 2 : index
    %c0_134 = arith.constant 0 : index
    %108 = vector.load %arg15[%c0_131, %c2_132, %c2_133, %c0_134] : memref<2x10x10x8xf32, #tpu.memory_space<vmem>>, vector<2x8x8x8xf32>
    %109 = vector.shape_cast %108 : vector<2x8x8x8xf32> to vector<128x8xf32>
    %110 = arith.truncf %109 : vector<128x8xf32> to vector<128x8xbf16>
    %c0_135 = arith.constant 0 : index
    %c64 = arith.constant 64 : index
    %111 = vector.load %arg20[%c0_135, %c64] : memref<128x72xbf16, #tpu.memory_space<vmem>>, vector<128x8xbf16>
    tpu.vector_store %arg20[%c0_135, %c64], %110 {strides = array<i32>} : memref<128x72xbf16, #tpu.memory_space<vmem>>, vector<128x8xbf16>,
    %c0_136 = arith.constant 0 : index
    %c0_137 = arith.constant 0 : index
    %112 = vector.load %arg20[%c0_136, %c0_137] : memref<128x72xbf16, #tpu.memory_space<vmem>>, vector<128x72xbf16>
    %c0_138 = arith.constant 0 : index
    %c0_139 = arith.constant 0 : index
    %113 = vector.load %arg5[%c0_138, %c0_139] : memref<72x16xbf16, #tpu.memory_space<vmem>>, vector<72x16xbf16>
    %cst_140 = arith.constant dense<0.000000e+00> : vector<128x16xf32>
    %114 = tpu.matmul %112, %113, %cst_140 {dimension_numbers = #tpu.dot_dimension_numbers<[1], [0], [0], [1], [0, 0, 1, 1], [], []>} : vector<128x72xbf16>, vector<72x16xbf16>, vector<128x16xf32> -> vector<128x16xf32>
    %c0_141 = arith.constant 0 : index
    %c0_142 = arith.constant 0 : index
    %115 = vector.load %arg6[%c0_141, %c0_142] : memref<1x16xf32, #tpu.memory_space<vmem>>, vector<1x16xf32>
    %116 = vector.broadcast %115 : vector<1x16xf32> to vector<128x16xf32>
    %117 = arith.addf %114, %116 : vector<128x16xf32>
    %cst_143 = arith.constant 0.000000e+00 : f32
    %118 = vector.broadcast %cst_143 : f32 to vector<128x16xf32>
    %119 = arith.maximumf %117, %118 : vector<128x16xf32>
    %120 = vector.shape_cast %119 : vector<128x16xf32> to vector<2x64x16xf32>
    %121 = vector.extract_strided_slice %120 {offsets = [0, 0, 0], sizes = [1, 64, 16], strides = [1, 1, 1]} : vector<2x64x16xf32> to vector<1x64x16xf32>
    %122 = vector.shape_cast %121 : vector<1x64x16xf32> to vector<64x16xf32>
    %123 = vector.extract_strided_slice %120 {offsets = [1, 0, 0], sizes = [1, 64, 16], strides = [1, 1, 1]} : vector<2x64x16xf32> to vector<1x64x16xf32>
    %124 = vector.shape_cast %123 : vector<1x64x16xf32> to vector<64x16xf32>
    %125 = arith.subf %122, %124 : vector<64x16xf32>
    %126 = math.absf %125 : vector<64x16xf32>
    %127 = vector.shape_cast %126 : vector<64x16xf32> to vector<1x64x16xf32>
    %cst_144 = arith.constant dense<0.000000e+00> : vector<1xf32>
    %128 = vector.multi_reduction <add>, %127, %cst_144 [1, 2] : vector<1x64x16xf32> to vector<1xf32>
    %129 = vector.shape_cast %128 : vector<1xf32> to vector<1x1x1xf32>
    %130 = vector.extract %129[0, 0, 0] : f32 from vector<1x1x1xf32>
    %cst_145 = arith.constant 3.05175781E-5 : f32
    %131 = arith.mulf %cst_145, %130 : f32
    %132 = arith.addf %62, %131 : f32
    %c0_146 = arith.constant 0 : index
    %c0_147 = arith.constant 0 : index
    %133 = vector.load %arg24[%c0_146, %c0_147] : memref<512x32xf32, #tpu.memory_space<vmem>>, vector<128x16xf32>
    tpu.vector_store %arg24[%c0_146, %c0_147], %119 {strides = array<i32>} : memref<512x32xf32, #tpu.memory_space<vmem>>, vector<128x16xf32>,
    %c0_148 = arith.constant 0 : index
    %c0_149 = arith.constant 0 : index
    %134 = tpu.strided_load %arg24[%c0_148, %c0_149] {strides = array<i32: 2, 1>} : memref<512x32xf32, #tpu.memory_space<vmem>>, vector<64x16xf32>
    %c1_150 = arith.constant 1 : index
    %c0_151 = arith.constant 0 : index
    %135 = tpu.strided_load %arg24[%c1_150, %c0_151] {strides = array<i32: 2, 1>} : memref<512x32xf32, #tpu.memory_space<vmem>>, vector<64x16xf32>
    %136 = arith.maximumf %134, %135 : vector<64x16xf32>
    %137 = vector.shape_cast %136 : vector<64x16xf32> to vector<2x4x2x4x16xf32>
    %138 = vector.extract_strided_slice %137 {offsets = [0, 0, 0, 0, 0], sizes = [2, 4, 1, 4, 16], strides = [1, 1, 1, 1, 1]} : vector<2x4x2x4x16xf32> to vector<2x4x1x4x16xf32>
    %139 = vector.shape_cast %138 : vector<2x4x1x4x16xf32> to vector<2x4x4x16xf32>
    %140 = vector.extract_strided_slice %137 {offsets = [0, 0, 1, 0, 0], sizes = [2, 4, 1, 4, 16], strides = [1, 1, 1, 1, 1]} : vector<2x4x2x4x16xf32> to vector<2x4x1x4x16xf32>
    %141 = vector.shape_cast %140 : vector<2x4x1x4x16xf32> to vector<2x4x4x16xf32>
    %142 = arith.maximumf %139, %141 : vector<2x4x4x16xf32>
    %cst_152 = arith.constant 0.000000e+00 : f32
    %143 = vector.broadcast %cst_152 : f32 to vector<2x6x6x16xf32>
    %c0_153 = arith.constant 0 : index
    %c0_154 = arith.constant 0 : index
    %c0_155 = arith.constant 0 : index
    %c0_156 = arith.constant 0 : index
    %144 = vector.load %arg16[%c0_153, %c0_154, %c0_155, %c0_156] : memref<2x6x6x16xf32, #tpu.memory_space<vmem>>, vector<2x6x6x16xf32>
    tpu.vector_store %arg16[%c0_153, %c0_154, %c0_155, %c0_156], %143 {strides = array<i32>} : memref<2x6x6x16xf32, #tpu.memory_space<vmem>>, vector<2x6x6x16xf32>,
    %c0_157 = arith.constant 0 : index
    %c1_158 = arith.constant 1 : index
    %c1_159 = arith.constant 1 : index
    %c0_160 = arith.constant 0 : index
    %145 = vector.load %arg16[%c0_157, %c1_158, %c1_159, %c0_160] : memref<2x6x6x16xf32, #tpu.memory_space<vmem>>, vector<2x4x4x16xf32>
    tpu.vector_store %arg16[%c0_157, %c1_158, %c1_159, %c0_160], %142 {strides = array<i32>} : memref<2x6x6x16xf32, #tpu.memory_space<vmem>>, vector<2x4x4x16xf32>,
    %c0_161 = arith.constant 0 : index
    %c0_162 = arith.constant 0 : index
    %c0_163 = arith.constant 0 : index
    %c0_164 = arith.constant 0 : index
    %146 = vector.load %arg16[%c0_161, %c0_162, %c0_163, %c0_164] : memref<2x6x6x16xf32, #tpu.memory_space<vmem>>, vector<2x4x4x16xf32>
    %147 = vector.shape_cast %146 : vector<2x4x4x16xf32> to vector<32x16xf32>
    %148 = arith.truncf %147 : vector<32x16xf32> to vector<32x16xbf16>
    %c0_165 = arith.constant 0 : index
    %c0_166 = arith.constant 0 : index
    %149 = vector.load %arg21[%c0_165, %c0_166] : memref<32x144xbf16, #tpu.memory_space<vmem>>, vector<32x16xbf16>
    tpu.vector_store %arg21[%c0_165, %c0_166], %148 {strides = array<i32>} : memref<32x144xbf16, #tpu.memory_space<vmem>>, vector<32x16xbf16>,
    %c0_167 = arith.constant 0 : index
    %c0_168 = arith.constant 0 : index
    %c1_169 = arith.constant 1 : index
    %c0_170 = arith.constant 0 : index
    %150 = vector.load %arg16[%c0_167, %c0_168, %c1_169, %c0_170] : memref<2x6x6x16xf32, #tpu.memory_space<vmem>>, vector<2x4x4x16xf32>
    %151 = vector.shape_cast %150 : vector<2x4x4x16xf32> to vector<32x16xf32>
    %152 = arith.truncf %151 : vector<32x16xf32> to vector<32x16xbf16>
    %c0_171 = arith.constant 0 : index
    %c16_172 = arith.constant 16 : index
    %153 = vector.load %arg21[%c0_171, %c16_172] : memref<32x144xbf16, #tpu.memory_space<vmem>>, vector<32x16xbf16>
    tpu.vector_store %arg21[%c0_171, %c16_172], %152 {strides = array<i32>} : memref<32x144xbf16, #tpu.memory_space<vmem>>, vector<32x16xbf16>,
    %c0_173 = arith.constant 0 : index
    %c0_174 = arith.constant 0 : index
    %c2_175 = arith.constant 2 : index
    %c0_176 = arith.constant 0 : index
    %154 = vector.load %arg16[%c0_173, %c0_174, %c2_175, %c0_176] : memref<2x6x6x16xf32, #tpu.memory_space<vmem>>, vector<2x4x4x16xf32>
    %155 = vector.shape_cast %154 : vector<2x4x4x16xf32> to vector<32x16xf32>
    %156 = arith.truncf %155 : vector<32x16xf32> to vector<32x16xbf16>
    %c0_177 = arith.constant 0 : index
    %c32_178 = arith.constant 32 : index
    %157 = vector.load %arg21[%c0_177, %c32_178] : memref<32x144xbf16, #tpu.memory_space<vmem>>, vector<32x16xbf16>
    tpu.vector_store %arg21[%c0_177, %c32_178], %156 {strides = array<i32>} : memref<32x144xbf16, #tpu.memory_space<vmem>>, vector<32x16xbf16>,
    %c0_179 = arith.constant 0 : index
    %c1_180 = arith.constant 1 : index
    %c0_181 = arith.constant 0 : index
    %c0_182 = arith.constant 0 : index
    %158 = vector.load %arg16[%c0_179, %c1_180, %c0_181, %c0_182] : memref<2x6x6x16xf32, #tpu.memory_space<vmem>>, vector<2x4x4x16xf32>
    %159 = vector.shape_cast %158 : vector<2x4x4x16xf32> to vector<32x16xf32>
    %160 = arith.truncf %159 : vector<32x16xf32> to vector<32x16xbf16>
    %c0_183 = arith.constant 0 : index
    %c48_184 = arith.constant 48 : index
    %161 = vector.load %arg21[%c0_183, %c48_184] : memref<32x144xbf16, #tpu.memory_space<vmem>>, vector<32x16xbf16>
    tpu.vector_store %arg21[%c0_183, %c48_184], %160 {strides = array<i32>} : memref<32x144xbf16, #tpu.memory_space<vmem>>, vector<32x16xbf16>,
    %c0_185 = arith.constant 0 : index
    %c1_186 = arith.constant 1 : index
    %c1_187 = arith.constant 1 : index
    %c0_188 = arith.constant 0 : index
    %162 = vector.load %arg16[%c0_185, %c1_186, %c1_187, %c0_188] : memref<2x6x6x16xf32, #tpu.memory_space<vmem>>, vector<2x4x4x16xf32>
    %163 = vector.shape_cast %162 : vector<2x4x4x16xf32> to vector<32x16xf32>
    %164 = arith.truncf %163 : vector<32x16xf32> to vector<32x16xbf16>
    %c0_189 = arith.constant 0 : index
    %c64_190 = arith.constant 64 : index
    %165 = vector.load %arg21[%c0_189, %c64_190] : memref<32x144xbf16, #tpu.memory_space<vmem>>, vector<32x16xbf16>
    tpu.vector_store %arg21[%c0_189, %c64_190], %164 {strides = array<i32>} : memref<32x144xbf16, #tpu.memory_space<vmem>>, vector<32x16xbf16>,
    %c0_191 = arith.constant 0 : index
    %c1_192 = arith.constant 1 : index
    %c2_193 = arith.constant 2 : index
    %c0_194 = arith.constant 0 : index
    %166 = vector.load %arg16[%c0_191, %c1_192, %c2_193, %c0_194] : memref<2x6x6x16xf32, #tpu.memory_space<vmem>>, vector<2x4x4x16xf32>
    %167 = vector.shape_cast %166 : vector<2x4x4x16xf32> to vector<32x16xf32>
    %168 = arith.truncf %167 : vector<32x16xf32> to vector<32x16xbf16>
    %c0_195 = arith.constant 0 : index
    %c80 = arith.constant 80 : index
    %169 = vector.load %arg21[%c0_195, %c80] : memref<32x144xbf16, #tpu.memory_space<vmem>>, vector<32x16xbf16>
    tpu.vector_store %arg21[%c0_195, %c80], %168 {strides = array<i32>} : memref<32x144xbf16, #tpu.memory_space<vmem>>, vector<32x16xbf16>,
    %c0_196 = arith.constant 0 : index
    %c2_197 = arith.constant 2 : index
    %c0_198 = arith.constant 0 : index
    %c0_199 = arith.constant 0 : index
    %170 = vector.load %arg16[%c0_196, %c2_197, %c0_198, %c0_199] : memref<2x6x6x16xf32, #tpu.memory_space<vmem>>, vector<2x4x4x16xf32>
    %171 = vector.shape_cast %170 : vector<2x4x4x16xf32> to vector<32x16xf32>
    %172 = arith.truncf %171 : vector<32x16xf32> to vector<32x16xbf16>
    %c0_200 = arith.constant 0 : index
    %c96 = arith.constant 96 : index
    %173 = vector.load %arg21[%c0_200, %c96] : memref<32x144xbf16, #tpu.memory_space<vmem>>, vector<32x16xbf16>
    tpu.vector_store %arg21[%c0_200, %c96], %172 {strides = array<i32>} : memref<32x144xbf16, #tpu.memory_space<vmem>>, vector<32x16xbf16>,
    %c0_201 = arith.constant 0 : index
    %c2_202 = arith.constant 2 : index
    %c1_203 = arith.constant 1 : index
    %c0_204 = arith.constant 0 : index
    %174 = vector.load %arg16[%c0_201, %c2_202, %c1_203, %c0_204] : memref<2x6x6x16xf32, #tpu.memory_space<vmem>>, vector<2x4x4x16xf32>
    %175 = vector.shape_cast %174 : vector<2x4x4x16xf32> to vector<32x16xf32>
    %176 = arith.truncf %175 : vector<32x16xf32> to vector<32x16xbf16>
    %c0_205 = arith.constant 0 : index
    %c112 = arith.constant 112 : index
    %177 = vector.load %arg21[%c0_205, %c112] : memref<32x144xbf16, #tpu.memory_space<vmem>>, vector<32x16xbf16>
    tpu.vector_store %arg21[%c0_205, %c112], %176 {strides = array<i32>} : memref<32x144xbf16, #tpu.memory_space<vmem>>, vector<32x16xbf16>,
    %c0_206 = arith.constant 0 : index
    %c2_207 = arith.constant 2 : index
    %c2_208 = arith.constant 2 : index
    %c0_209 = arith.constant 0 : index
    %178 = vector.load %arg16[%c0_206, %c2_207, %c2_208, %c0_209] : memref<2x6x6x16xf32, #tpu.memory_space<vmem>>, vector<2x4x4x16xf32>
    %179 = vector.shape_cast %178 : vector<2x4x4x16xf32> to vector<32x16xf32>
    %180 = arith.truncf %179 : vector<32x16xf32> to vector<32x16xbf16>
    %c0_210 = arith.constant 0 : index
    %c128 = arith.constant 128 : index
    %181 = vector.load %arg21[%c0_210, %c128] : memref<32x144xbf16, #tpu.memory_space<vmem>>, vector<32x16xbf16>
    tpu.vector_store %arg21[%c0_210, %c128], %180 {strides = array<i32>} : memref<32x144xbf16, #tpu.memory_space<vmem>>, vector<32x16xbf16>,
    %c0_211 = arith.constant 0 : index
    %c0_212 = arith.constant 0 : index
    %182 = vector.load %arg21[%c0_211, %c0_212] : memref<32x144xbf16, #tpu.memory_space<vmem>>, vector<32x144xbf16>
    %c0_213 = arith.constant 0 : index
    %c0_214 = arith.constant 0 : index
    %183 = vector.load %arg7[%c0_213, %c0_214] : memref<144x32xbf16, #tpu.memory_space<vmem>>, vector<144x32xbf16>
    %cst_215 = arith.constant dense<0.000000e+00> : vector<32x32xf32>
    %184 = tpu.matmul %182, %183, %cst_215 {dimension_numbers = #tpu.dot_dimension_numbers<[1], [0], [0], [1], [0, 0, 1, 1], [], []>} : vector<32x144xbf16>, vector<144x32xbf16>, vector<32x32xf32> -> vector<32x32xf32>
    %c0_216 = arith.constant 0 : index
    %c0_217 = arith.constant 0 : index
    %185 = vector.load %arg8[%c0_216, %c0_217] : memref<1x32xf32, #tpu.memory_space<vmem>>, vector<1x32xf32>
    %186 = vector.broadcast %185 : vector<1x32xf32> to vector<32x32xf32>
    %187 = arith.addf %184, %186 : vector<32x32xf32>
    %cst_218 = arith.constant 0.000000e+00 : f32
    %188 = vector.broadcast %cst_218 : f32 to vector<32x32xf32>
    %189 = arith.maximumf %187, %188 : vector<32x32xf32>
    %190 = vector.shape_cast %189 : vector<32x32xf32> to vector<2x16x32xf32>
    %191 = vector.extract_strided_slice %190 {offsets = [0, 0, 0], sizes = [1, 16, 32], strides = [1, 1, 1]} : vector<2x16x32xf32> to vector<1x16x32xf32>
    %192 = vector.shape_cast %191 : vector<1x16x32xf32> to vector<16x32xf32>
    %193 = vector.extract_strided_slice %190 {offsets = [1, 0, 0], sizes = [1, 16, 32], strides = [1, 1, 1]} : vector<2x16x32xf32> to vector<1x16x32xf32>
    %194 = vector.shape_cast %193 : vector<1x16x32xf32> to vector<16x32xf32>
    %195 = arith.subf %192, %194 : vector<16x32xf32>
    %196 = math.absf %195 : vector<16x32xf32>
    %197 = vector.shape_cast %196 : vector<16x32xf32> to vector<1x16x32xf32>
    %cst_219 = arith.constant dense<0.000000e+00> : vector<1xf32>
    %198 = vector.multi_reduction <add>, %197, %cst_219 [1, 2] : vector<1x16x32xf32> to vector<1xf32>
    %199 = vector.shape_cast %198 : vector<1xf32> to vector<1x1x1xf32>
    %200 = vector.extract %199[0, 0, 0] : f32 from vector<1x1x1xf32>
    %cst_220 = arith.constant 1.22070313E-4 : f32
    %201 = arith.mulf %cst_220, %200 : f32
    %202 = arith.addf %132, %201 : f32
    %c0_221 = arith.constant 0 : index
    %c0_222 = arith.constant 0 : index
    %203 = vector.load %arg24[%c0_221, %c0_222] : memref<512x32xf32, #tpu.memory_space<vmem>>, vector<32x32xf32>
    tpu.vector_store %arg24[%c0_221, %c0_222], %189 {strides = array<i32>} : memref<512x32xf32, #tpu.memory_space<vmem>>, vector<32x32xf32>,
    %c0_223 = arith.constant 0 : index
    %c0_224 = arith.constant 0 : index
    %204 = tpu.strided_load %arg24[%c0_223, %c0_224] {strides = array<i32: 2, 1>} : memref<512x32xf32, #tpu.memory_space<vmem>>, vector<16x32xf32>
    %c1_225 = arith.constant 1 : index
    %c0_226 = arith.constant 0 : index
    %205 = tpu.strided_load %arg24[%c1_225, %c0_226] {strides = array<i32: 2, 1>} : memref<512x32xf32, #tpu.memory_space<vmem>>, vector<16x32xf32>
    %206 = arith.maximumf %204, %205 : vector<16x32xf32>
    %207 = vector.shape_cast %206 : vector<16x32xf32> to vector<2x2x2x2x32xf32>
    %208 = vector.extract_strided_slice %207 {offsets = [0, 0, 0, 0, 0], sizes = [2, 2, 1, 2, 32], strides = [1, 1, 1, 1, 1]} : vector<2x2x2x2x32xf32> to vector<2x2x1x2x32xf32>
    %209 = vector.shape_cast %208 : vector<2x2x1x2x32xf32> to vector<2x2x2x32xf32>
    %210 = vector.extract_strided_slice %207 {offsets = [0, 0, 1, 0, 0], sizes = [2, 2, 1, 2, 32], strides = [1, 1, 1, 1, 1]} : vector<2x2x2x2x32xf32> to vector<2x2x1x2x32xf32>
    %211 = vector.shape_cast %210 : vector<2x2x1x2x32xf32> to vector<2x2x2x32xf32>
    %212 = arith.maximumf %209, %211 : vector<2x2x2x32xf32>
    %cst_227 = arith.constant 0.000000e+00 : f32
    %213 = vector.broadcast %cst_227 : f32 to vector<2x4x4x32xf32>
    %c0_228 = arith.constant 0 : index
    %c0_229 = arith.constant 0 : index
    %c0_230 = arith.constant 0 : index
    %c0_231 = arith.constant 0 : index
    %214 = vector.load %arg17[%c0_228, %c0_229, %c0_230, %c0_231] : memref<2x4x4x32xf32, #tpu.memory_space<vmem>>, vector<2x4x4x32xf32>
    tpu.vector_store %arg17[%c0_228, %c0_229, %c0_230, %c0_231], %213 {strides = array<i32>} : memref<2x4x4x32xf32, #tpu.memory_space<vmem>>, vector<2x4x4x32xf32>,
    %c0_232 = arith.constant 0 : index
    %c1_233 = arith.constant 1 : index
    %c1_234 = arith.constant 1 : index
    %c0_235 = arith.constant 0 : index
    %215 = vector.load %arg17[%c0_232, %c1_233, %c1_234, %c0_235] : memref<2x4x4x32xf32, #tpu.memory_space<vmem>>, vector<2x2x2x32xf32>
    tpu.vector_store %arg17[%c0_232, %c1_233, %c1_234, %c0_235], %212 {strides = array<i32>} : memref<2x4x4x32xf32, #tpu.memory_space<vmem>>, vector<2x2x2x32xf32>,
    %c0_236 = arith.constant 0 : index
    %c0_237 = arith.constant 0 : index
    %c0_238 = arith.constant 0 : index
    %c0_239 = arith.constant 0 : index
    %216 = vector.load %arg17[%c0_236, %c0_237, %c0_238, %c0_239] : memref<2x4x4x32xf32, #tpu.memory_space<vmem>>, vector<2x2x2x32xf32>
    %217 = vector.shape_cast %216 : vector<2x2x2x32xf32> to vector<8x32xf32>
    %218 = arith.truncf %217 : vector<8x32xf32> to vector<8x32xbf16>
    %c0_240 = arith.constant 0 : index
    %c0_241 = arith.constant 0 : index
    %219 = vector.load %arg22[%c0_240, %c0_241] : memref<8x288xbf16, #tpu.memory_space<vmem>>, vector<8x32xbf16>
    tpu.vector_store %arg22[%c0_240, %c0_241], %218 {strides = array<i32>} : memref<8x288xbf16, #tpu.memory_space<vmem>>, vector<8x32xbf16>,
    %c0_242 = arith.constant 0 : index
    %c0_243 = arith.constant 0 : index
    %c1_244 = arith.constant 1 : index
    %c0_245 = arith.constant 0 : index
    %220 = vector.load %arg17[%c0_242, %c0_243, %c1_244, %c0_245] : memref<2x4x4x32xf32, #tpu.memory_space<vmem>>, vector<2x2x2x32xf32>
    %221 = vector.shape_cast %220 : vector<2x2x2x32xf32> to vector<8x32xf32>
    %222 = arith.truncf %221 : vector<8x32xf32> to vector<8x32xbf16>
    %c0_246 = arith.constant 0 : index
    %c32_247 = arith.constant 32 : index
    %223 = vector.load %arg22[%c0_246, %c32_247] : memref<8x288xbf16, #tpu.memory_space<vmem>>, vector<8x32xbf16>
    tpu.vector_store %arg22[%c0_246, %c32_247], %222 {strides = array<i32>} : memref<8x288xbf16, #tpu.memory_space<vmem>>, vector<8x32xbf16>,
    %c0_248 = arith.constant 0 : index
    %c0_249 = arith.constant 0 : index
    %c2_250 = arith.constant 2 : index
    %c0_251 = arith.constant 0 : index
    %224 = vector.load %arg17[%c0_248, %c0_249, %c2_250, %c0_251] : memref<2x4x4x32xf32, #tpu.memory_space<vmem>>, vector<2x2x2x32xf32>
    %225 = vector.shape_cast %224 : vector<2x2x2x32xf32> to vector<8x32xf32>
    %226 = arith.truncf %225 : vector<8x32xf32> to vector<8x32xbf16>
    %c0_252 = arith.constant 0 : index
    %c64_253 = arith.constant 64 : index
    %227 = vector.load %arg22[%c0_252, %c64_253] : memref<8x288xbf16, #tpu.memory_space<vmem>>, vector<8x32xbf16>
    tpu.vector_store %arg22[%c0_252, %c64_253], %226 {strides = array<i32>} : memref<8x288xbf16, #tpu.memory_space<vmem>>, vector<8x32xbf16>,
    %c0_254 = arith.constant 0 : index
    %c1_255 = arith.constant 1 : index
    %c0_256 = arith.constant 0 : index
    %c0_257 = arith.constant 0 : index
    %228 = vector.load %arg17[%c0_254, %c1_255, %c0_256, %c0_257] : memref<2x4x4x32xf32, #tpu.memory_space<vmem>>, vector<2x2x2x32xf32>
    %229 = vector.shape_cast %228 : vector<2x2x2x32xf32> to vector<8x32xf32>
    %230 = arith.truncf %229 : vector<8x32xf32> to vector<8x32xbf16>
    %c0_258 = arith.constant 0 : index
    %c96_259 = arith.constant 96 : index
    %231 = vector.load %arg22[%c0_258, %c96_259] : memref<8x288xbf16, #tpu.memory_space<vmem>>, vector<8x32xbf16>
    tpu.vector_store %arg22[%c0_258, %c96_259], %230 {strides = array<i32>} : memref<8x288xbf16, #tpu.memory_space<vmem>>, vector<8x32xbf16>,
    %c0_260 = arith.constant 0 : index
    %c1_261 = arith.constant 1 : index
    %c1_262 = arith.constant 1 : index
    %c0_263 = arith.constant 0 : index
    %232 = vector.load %arg17[%c0_260, %c1_261, %c1_262, %c0_263] : memref<2x4x4x32xf32, #tpu.memory_space<vmem>>, vector<2x2x2x32xf32>
    %233 = vector.shape_cast %232 : vector<2x2x2x32xf32> to vector<8x32xf32>
    %234 = arith.truncf %233 : vector<8x32xf32> to vector<8x32xbf16>
    %c0_264 = arith.constant 0 : index
    %c128_265 = arith.constant 128 : index
    %235 = vector.load %arg22[%c0_264, %c128_265] : memref<8x288xbf16, #tpu.memory_space<vmem>>, vector<8x32xbf16>
    tpu.vector_store %arg22[%c0_264, %c128_265], %234 {strides = array<i32>} : memref<8x288xbf16, #tpu.memory_space<vmem>>, vector<8x32xbf16>,
    %c0_266 = arith.constant 0 : index
    %c1_267 = arith.constant 1 : index
    %c2_268 = arith.constant 2 : index
    %c0_269 = arith.constant 0 : index
    %236 = vector.load %arg17[%c0_266, %c1_267, %c2_268, %c0_269] : memref<2x4x4x32xf32, #tpu.memory_space<vmem>>, vector<2x2x2x32xf32>
    %237 = vector.shape_cast %236 : vector<2x2x2x32xf32> to vector<8x32xf32>
    %238 = arith.truncf %237 : vector<8x32xf32> to vector<8x32xbf16>
    %c0_270 = arith.constant 0 : index
    %c160 = arith.constant 160 : index
    %239 = vector.load %arg22[%c0_270, %c160] : memref<8x288xbf16, #tpu.memory_space<vmem>>, vector<8x32xbf16>
    tpu.vector_store %arg22[%c0_270, %c160], %238 {strides = array<i32>} : memref<8x288xbf16, #tpu.memory_space<vmem>>, vector<8x32xbf16>,
    %c0_271 = arith.constant 0 : index
    %c2_272 = arith.constant 2 : index
    %c0_273 = arith.constant 0 : index
    %c0_274 = arith.constant 0 : index
    %240 = vector.load %arg17[%c0_271, %c2_272, %c0_273, %c0_274] : memref<2x4x4x32xf32, #tpu.memory_space<vmem>>, vector<2x2x2x32xf32>
    %241 = vector.shape_cast %240 : vector<2x2x2x32xf32> to vector<8x32xf32>
    %242 = arith.truncf %241 : vector<8x32xf32> to vector<8x32xbf16>
    %c0_275 = arith.constant 0 : index
    %c192 = arith.constant 192 : index
    %243 = vector.load %arg22[%c0_275, %c192] : memref<8x288xbf16, #tpu.memory_space<vmem>>, vector<8x32xbf16>
    tpu.vector_store %arg22[%c0_275, %c192], %242 {strides = array<i32>} : memref<8x288xbf16, #tpu.memory_space<vmem>>, vector<8x32xbf16>,
    %c0_276 = arith.constant 0 : index
    %c2_277 = arith.constant 2 : index
    %c1_278 = arith.constant 1 : index
    %c0_279 = arith.constant 0 : index
    %244 = vector.load %arg17[%c0_276, %c2_277, %c1_278, %c0_279] : memref<2x4x4x32xf32, #tpu.memory_space<vmem>>, vector<2x2x2x32xf32>
    %245 = vector.shape_cast %244 : vector<2x2x2x32xf32> to vector<8x32xf32>
    %246 = arith.truncf %245 : vector<8x32xf32> to vector<8x32xbf16>
    %c0_280 = arith.constant 0 : index
    %c224 = arith.constant 224 : index
    %247 = vector.load %arg22[%c0_280, %c224] : memref<8x288xbf16, #tpu.memory_space<vmem>>, vector<8x32xbf16>
    tpu.vector_store %arg22[%c0_280, %c224], %246 {strides = array<i32>} : memref<8x288xbf16, #tpu.memory_space<vmem>>, vector<8x32xbf16>,
    %c0_281 = arith.constant 0 : index
    %c2_282 = arith.constant 2 : index
    %c2_283 = arith.constant 2 : index
    %c0_284 = arith.constant 0 : index
    %248 = vector.load %arg17[%c0_281, %c2_282, %c2_283, %c0_284] : memref<2x4x4x32xf32, #tpu.memory_space<vmem>>, vector<2x2x2x32xf32>
    %249 = vector.shape_cast %248 : vector<2x2x2x32xf32> to vector<8x32xf32>
    %250 = arith.truncf %249 : vector<8x32xf32> to vector<8x32xbf16>
    %c0_285 = arith.constant 0 : index
    %c256 = arith.constant 256 : index
    %251 = vector.load %arg22[%c0_285, %c256] : memref<8x288xbf16, #tpu.memory_space<vmem>>, vector<8x32xbf16>
    tpu.vector_store %arg22[%c0_285, %c256], %250 {strides = array<i32>} : memref<8x288xbf16, #tpu.memory_space<vmem>>, vector<8x32xbf16>,
    %c0_286 = arith.constant 0 : index
    %c0_287 = arith.constant 0 : index
    %252 = vector.load %arg22[%c0_286, %c0_287] : memref<8x288xbf16, #tpu.memory_space<vmem>>, vector<8x288xbf16>
    %c0_288 = arith.constant 0 : index
    %c0_289 = arith.constant 0 : index
    %253 = vector.load %arg9[%c0_288, %c0_289] : memref<288x32xbf16, #tpu.memory_space<vmem>>, vector<288x32xbf16>
    %cst_290 = arith.constant dense<0.000000e+00> : vector<8x32xf32>
    %254 = tpu.matmul %252, %253, %cst_290 {dimension_numbers = #tpu.dot_dimension_numbers<[1], [0], [0], [1], [0, 0, 1, 1], [], []>} : vector<8x288xbf16>, vector<288x32xbf16>, vector<8x32xf32> -> vector<8x32xf32>
    %c0_291 = arith.constant 0 : index
    %c0_292 = arith.constant 0 : index
    %255 = vector.load %arg10[%c0_291, %c0_292] : memref<1x32xf32, #tpu.memory_space<vmem>>, vector<1x32xf32>
    %256 = vector.broadcast %255 : vector<1x32xf32> to vector<8x32xf32>
    %257 = arith.addf %254, %256 : vector<8x32xf32>
    %cst_293 = arith.constant 0.000000e+00 : f32
    %258 = vector.broadcast %cst_293 : f32 to vector<8x32xf32>
    %259 = arith.maximumf %257, %258 : vector<8x32xf32>
    %260 = vector.shape_cast %259 : vector<8x32xf32> to vector<2x4x32xf32>
    %261 = vector.extract_strided_slice %260 {offsets = [0, 0, 0], sizes = [1, 4, 32], strides = [1, 1, 1]} : vector<2x4x32xf32> to vector<1x4x32xf32>
    %262 = vector.shape_cast %261 : vector<1x4x32xf32> to vector<4x32xf32>
    %263 = vector.extract_strided_slice %260 {offsets = [1, 0, 0], sizes = [1, 4, 32], strides = [1, 1, 1]} : vector<2x4x32xf32> to vector<1x4x32xf32>
    %264 = vector.shape_cast %263 : vector<1x4x32xf32> to vector<4x32xf32>
    %265 = arith.subf %262, %264 : vector<4x32xf32>
    %266 = math.absf %265 : vector<4x32xf32>
    %267 = vector.shape_cast %266 : vector<4x32xf32> to vector<1x4x32xf32>
    %cst_294 = arith.constant dense<0.000000e+00> : vector<1xf32>
    %268 = vector.multi_reduction <add>, %267, %cst_294 [1, 2] : vector<1x4x32xf32> to vector<1xf32>
    %269 = vector.shape_cast %268 : vector<1xf32> to vector<1x1x1xf32>
    %270 = vector.extract %269[0, 0, 0] : f32 from vector<1x1x1xf32>
    %cst_295 = arith.constant 9.765625E-4 : f32
    %271 = arith.mulf %cst_295, %270 : f32
    %272 = arith.addf %202, %271 : f32
    %c0_296 = arith.constant 0 : index
    %c0_297 = arith.constant 0 : index
    %273 = vector.load %arg24[%c0_296, %c0_297] : memref<512x32xf32, #tpu.memory_space<vmem>>, vector<8x32xf32>
    tpu.vector_store %arg24[%c0_296, %c0_297], %259 {strides = array<i32>} : memref<512x32xf32, #tpu.memory_space<vmem>>, vector<8x32xf32>,
    %c0_298 = arith.constant 0 : index
    %c0_299 = arith.constant 0 : index
    %274 = tpu.strided_load %arg24[%c0_298, %c0_299] {strides = array<i32: 2, 1>} : memref<512x32xf32, #tpu.memory_space<vmem>>, vector<4x32xf32>
    %c1_300 = arith.constant 1 : index
    %c0_301 = arith.constant 0 : index
    %275 = tpu.strided_load %arg24[%c1_300, %c0_301] {strides = array<i32: 2, 1>} : memref<512x32xf32, #tpu.memory_space<vmem>>, vector<4x32xf32>
    %276 = arith.maximumf %274, %275 : vector<4x32xf32>
    %277 = vector.shape_cast %276 : vector<4x32xf32> to vector<2x1x2x1x32xf32>
    %278 = vector.extract_strided_slice %277 {offsets = [0, 0, 0, 0, 0], sizes = [2, 1, 1, 1, 32], strides = [1, 1, 1, 1, 1]} : vector<2x1x2x1x32xf32> to vector<2x1x1x1x32xf32>
    %279 = vector.shape_cast %278 : vector<2x1x1x1x32xf32> to vector<2x1x1x32xf32>
    %280 = vector.extract_strided_slice %277 {offsets = [0, 0, 1, 0, 0], sizes = [2, 1, 1, 1, 32], strides = [1, 1, 1, 1, 1]} : vector<2x1x2x1x32xf32> to vector<2x1x1x1x32xf32>
    %281 = vector.shape_cast %280 : vector<2x1x1x1x32xf32> to vector<2x1x1x32xf32>
    %282 = arith.maximumf %279, %281 : vector<2x1x1x32xf32>
    %cst_302 = arith.constant 0.000000e+00 : f32
    %283 = vector.broadcast %cst_302 : f32 to vector<2x3x3x32xf32>
    %c0_303 = arith.constant 0 : index
    %c0_304 = arith.constant 0 : index
    %c0_305 = arith.constant 0 : index
    %c0_306 = arith.constant 0 : index
    %284 = vector.load %arg18[%c0_303, %c0_304, %c0_305, %c0_306] : memref<2x3x3x32xf32, #tpu.memory_space<vmem>>, vector<2x3x3x32xf32>
    tpu.vector_store %arg18[%c0_303, %c0_304, %c0_305, %c0_306], %283 {strides = array<i32>} : memref<2x3x3x32xf32, #tpu.memory_space<vmem>>, vector<2x3x3x32xf32>,
    %c0_307 = arith.constant 0 : index
    %c1_308 = arith.constant 1 : index
    %c1_309 = arith.constant 1 : index
    %c0_310 = arith.constant 0 : index
    %285 = vector.load %arg18[%c0_307, %c1_308, %c1_309, %c0_310] : memref<2x3x3x32xf32, #tpu.memory_space<vmem>>, vector<2x1x1x32xf32>
    tpu.vector_store %arg18[%c0_307, %c1_308, %c1_309, %c0_310], %282 {strides = array<i32>} : memref<2x3x3x32xf32, #tpu.memory_space<vmem>>, vector<2x1x1x32xf32>,
    %c0_311 = arith.constant 0 : index
    %c0_312 = arith.constant 0 : index
    %c0_313 = arith.constant 0 : index
    %c0_314 = arith.constant 0 : index
    %286 = vector.load %arg18[%c0_311, %c0_312, %c0_313, %c0_314] : memref<2x3x3x32xf32, #tpu.memory_space<vmem>>, vector<2x1x1x32xf32>
    %287 = vector.shape_cast %286 : vector<2x1x1x32xf32> to vector<2x32xf32>
    %288 = arith.truncf %287 : vector<2x32xf32> to vector<2x32xbf16>
    %c0_315 = arith.constant 0 : index
    %c0_316 = arith.constant 0 : index
    %289 = vector.load %arg23[%c0_315, %c0_316] : memref<2x288xbf16, #tpu.memory_space<vmem>>, vector<2x32xbf16>
    tpu.vector_store %arg23[%c0_315, %c0_316], %288 {strides = array<i32>} : memref<2x288xbf16, #tpu.memory_space<vmem>>, vector<2x32xbf16>,
    %c0_317 = arith.constant 0 : index
    %c0_318 = arith.constant 0 : index
    %c1_319 = arith.constant 1 : index
    %c0_320 = arith.constant 0 : index
    %290 = vector.load %arg18[%c0_317, %c0_318, %c1_319, %c0_320] : memref<2x3x3x32xf32, #tpu.memory_space<vmem>>, vector<2x1x1x32xf32>
    %291 = vector.shape_cast %290 : vector<2x1x1x32xf32> to vector<2x32xf32>
    %292 = arith.truncf %291 : vector<2x32xf32> to vector<2x32xbf16>
    %c0_321 = arith.constant 0 : index
    %c32_322 = arith.constant 32 : index
    %293 = vector.load %arg23[%c0_321, %c32_322] : memref<2x288xbf16, #tpu.memory_space<vmem>>, vector<2x32xbf16>
    tpu.vector_store %arg23[%c0_321, %c32_322], %292 {strides = array<i32>} : memref<2x288xbf16, #tpu.memory_space<vmem>>, vector<2x32xbf16>,
    %c0_323 = arith.constant 0 : index
    %c0_324 = arith.constant 0 : index
    %c2_325 = arith.constant 2 : index
    %c0_326 = arith.constant 0 : index
    %294 = vector.load %arg18[%c0_323, %c0_324, %c2_325, %c0_326] : memref<2x3x3x32xf32, #tpu.memory_space<vmem>>, vector<2x1x1x32xf32>
    %295 = vector.shape_cast %294 : vector<2x1x1x32xf32> to vector<2x32xf32>
    %296 = arith.truncf %295 : vector<2x32xf32> to vector<2x32xbf16>
    %c0_327 = arith.constant 0 : index
    %c64_328 = arith.constant 64 : index
    %297 = vector.load %arg23[%c0_327, %c64_328] : memref<2x288xbf16, #tpu.memory_space<vmem>>, vector<2x32xbf16>
    tpu.vector_store %arg23[%c0_327, %c64_328], %296 {strides = array<i32>} : memref<2x288xbf16, #tpu.memory_space<vmem>>, vector<2x32xbf16>,
    %c0_329 = arith.constant 0 : index
    %c1_330 = arith.constant 1 : index
    %c0_331 = arith.constant 0 : index
    %c0_332 = arith.constant 0 : index
    %298 = vector.load %arg18[%c0_329, %c1_330, %c0_331, %c0_332] : memref<2x3x3x32xf32, #tpu.memory_space<vmem>>, vector<2x1x1x32xf32>
    %299 = vector.shape_cast %298 : vector<2x1x1x32xf32> to vector<2x32xf32>
    %300 = arith.truncf %299 : vector<2x32xf32> to vector<2x32xbf16>
    %c0_333 = arith.constant 0 : index
    %c96_334 = arith.constant 96 : index
    %301 = vector.load %arg23[%c0_333, %c96_334] : memref<2x288xbf16, #tpu.memory_space<vmem>>, vector<2x32xbf16>
    tpu.vector_store %arg23[%c0_333, %c96_334], %300 {strides = array<i32>} : memref<2x288xbf16, #tpu.memory_space<vmem>>, vector<2x32xbf16>,
    %c0_335 = arith.constant 0 : index
    %c1_336 = arith.constant 1 : index
    %c1_337 = arith.constant 1 : index
    %c0_338 = arith.constant 0 : index
    %302 = vector.load %arg18[%c0_335, %c1_336, %c1_337, %c0_338] : memref<2x3x3x32xf32, #tpu.memory_space<vmem>>, vector<2x1x1x32xf32>
    %303 = vector.shape_cast %302 : vector<2x1x1x32xf32> to vector<2x32xf32>
    %304 = arith.truncf %303 : vector<2x32xf32> to vector<2x32xbf16>
    %c0_339 = arith.constant 0 : index
    %c128_340 = arith.constant 128 : index
    %305 = vector.load %arg23[%c0_339, %c128_340] : memref<2x288xbf16, #tpu.memory_space<vmem>>, vector<2x32xbf16>
    tpu.vector_store %arg23[%c0_339, %c128_340], %304 {strides = array<i32>} : memref<2x288xbf16, #tpu.memory_space<vmem>>, vector<2x32xbf16>,
    %c0_341 = arith.constant 0 : index
    %c1_342 = arith.constant 1 : index
    %c2_343 = arith.constant 2 : index
    %c0_344 = arith.constant 0 : index
    %306 = vector.load %arg18[%c0_341, %c1_342, %c2_343, %c0_344] : memref<2x3x3x32xf32, #tpu.memory_space<vmem>>, vector<2x1x1x32xf32>
    %307 = vector.shape_cast %306 : vector<2x1x1x32xf32> to vector<2x32xf32>
    %308 = arith.truncf %307 : vector<2x32xf32> to vector<2x32xbf16>
    %c0_345 = arith.constant 0 : index
    %c160_346 = arith.constant 160 : index
    %309 = vector.load %arg23[%c0_345, %c160_346] : memref<2x288xbf16, #tpu.memory_space<vmem>>, vector<2x32xbf16>
    tpu.vector_store %arg23[%c0_345, %c160_346], %308 {strides = array<i32>} : memref<2x288xbf16, #tpu.memory_space<vmem>>, vector<2x32xbf16>,
    %c0_347 = arith.constant 0 : index
    %c2_348 = arith.constant 2 : index
    %c0_349 = arith.constant 0 : index
    %c0_350 = arith.constant 0 : index
    %310 = vector.load %arg18[%c0_347, %c2_348, %c0_349, %c0_350] : memref<2x3x3x32xf32, #tpu.memory_space<vmem>>, vector<2x1x1x32xf32>
    %311 = vector.shape_cast %310 : vector<2x1x1x32xf32> to vector<2x32xf32>
    %312 = arith.truncf %311 : vector<2x32xf32> to vector<2x32xbf16>
    %c0_351 = arith.constant 0 : index
    %c192_352 = arith.constant 192 : index
    %313 = vector.load %arg23[%c0_351, %c192_352] : memref<2x288xbf16, #tpu.memory_space<vmem>>, vector<2x32xbf16>
    tpu.vector_store %arg23[%c0_351, %c192_352], %312 {strides = array<i32>} : memref<2x288xbf16, #tpu.memory_space<vmem>>, vector<2x32xbf16>,
    %c0_353 = arith.constant 0 : index
    %c2_354 = arith.constant 2 : index
    %c1_355 = arith.constant 1 : index
    %c0_356 = arith.constant 0 : index
    %314 = vector.load %arg18[%c0_353, %c2_354, %c1_355, %c0_356] : memref<2x3x3x32xf32, #tpu.memory_space<vmem>>, vector<2x1x1x32xf32>
    %315 = vector.shape_cast %314 : vector<2x1x1x32xf32> to vector<2x32xf32>
    %316 = arith.truncf %315 : vector<2x32xf32> to vector<2x32xbf16>
    %c0_357 = arith.constant 0 : index
    %c224_358 = arith.constant 224 : index
    %317 = vector.load %arg23[%c0_357, %c224_358] : memref<2x288xbf16, #tpu.memory_space<vmem>>, vector<2x32xbf16>
    tpu.vector_store %arg23[%c0_357, %c224_358], %316 {strides = array<i32>} : memref<2x288xbf16, #tpu.memory_space<vmem>>, vector<2x32xbf16>,
    %c0_359 = arith.constant 0 : index
    %c2_360 = arith.constant 2 : index
    %c2_361 = arith.constant 2 : index
    %c0_362 = arith.constant 0 : index
    %318 = vector.load %arg18[%c0_359, %c2_360, %c2_361, %c0_362] : memref<2x3x3x32xf32, #tpu.memory_space<vmem>>, vector<2x1x1x32xf32>
    %319 = vector.shape_cast %318 : vector<2x1x1x32xf32> to vector<2x32xf32>
    %320 = arith.truncf %319 : vector<2x32xf32> to vector<2x32xbf16>
    %c0_363 = arith.constant 0 : index
    %c256_364 = arith.constant 256 : index
    %321 = vector.load %arg23[%c0_363, %c256_364] : memref<2x288xbf16, #tpu.memory_space<vmem>>, vector<2x32xbf16>
    tpu.vector_store %arg23[%c0_363, %c256_364], %320 {strides = array<i32>} : memref<2x288xbf16, #tpu.memory_space<vmem>>, vector<2x32xbf16>,
    %c0_365 = arith.constant 0 : index
    %c0_366 = arith.constant 0 : index
    %322 = vector.load %arg23[%c0_365, %c0_366] : memref<2x288xbf16, #tpu.memory_space<vmem>>, vector<2x288xbf16>
    %c0_367 = arith.constant 0 : index
    %c0_368 = arith.constant 0 : index
    %323 = vector.load %arg11[%c0_367, %c0_368] : memref<288x32xbf16, #tpu.memory_space<vmem>>, vector<288x32xbf16>
    %cst_369 = arith.constant dense<0.000000e+00> : vector<2x32xf32>
    %324 = tpu.matmul %322, %323, %cst_369 {dimension_numbers = #tpu.dot_dimension_numbers<[1], [0], [0], [1], [0, 0, 1, 1], [], []>} : vector<2x288xbf16>, vector<288x32xbf16>, vector<2x32xf32> -> vector<2x32xf32>
    %c0_370 = arith.constant 0 : index
    %c0_371 = arith.constant 0 : index
    %325 = vector.load %arg12[%c0_370, %c0_371] : memref<1x32xf32, #tpu.memory_space<vmem>>, vector<1x32xf32>
    %326 = vector.broadcast %325 : vector<1x32xf32> to vector<2x32xf32>
    %327 = arith.addf %324, %326 : vector<2x32xf32>
    %cst_372 = arith.constant 0.000000e+00 : f32
    %328 = vector.broadcast %cst_372 : f32 to vector<2x32xf32>
    %329 = arith.maximumf %327, %328 : vector<2x32xf32>
    %330 = vector.shape_cast %329 : vector<2x32xf32> to vector<2x1x32xf32>
    %331 = vector.extract_strided_slice %330 {offsets = [0, 0, 0], sizes = [1, 1, 32], strides = [1, 1, 1]} : vector<2x1x32xf32> to vector<1x1x32xf32>
    %332 = vector.shape_cast %331 : vector<1x1x32xf32> to vector<1x32xf32>
    %333 = vector.extract_strided_slice %330 {offsets = [1, 0, 0], sizes = [1, 1, 32], strides = [1, 1, 1]} : vector<2x1x32xf32> to vector<1x1x32xf32>
    %334 = vector.shape_cast %333 : vector<1x1x32xf32> to vector<1x32xf32>
    %335 = arith.subf %332, %334 : vector<1x32xf32>
    %336 = math.absf %335 : vector<1x32xf32>
    %337 = vector.shape_cast %336 : vector<1x32xf32> to vector<1x1x32xf32>
    %cst_373 = arith.constant dense<0.000000e+00> : vector<1xf32>
    %338 = vector.multi_reduction <add>, %337, %cst_373 [1, 2] : vector<1x1x32xf32> to vector<1xf32>
    %339 = vector.shape_cast %338 : vector<1xf32> to vector<1x1x1xf32>
    %340 = vector.extract %339[0, 0, 0] : f32 from vector<1x1x1xf32>
    %cst_374 = arith.constant 1.562500e-02 : f32
    %341 = arith.mulf %cst_374, %340 : f32
    %342 = arith.addf %272, %341 : f32
    %cst_375 = arith.constant 1.000000e+00 : f32
    %343 = vector.broadcast %cst_375 : f32 to vector<1x1x128xf32>
    %344 = vector.broadcast %342 : f32 to vector<1x1x128xf32>
    %345 = arith.mulf %344, %343 : vector<1x1x128xf32>
    %c0_376 = arith.constant 0 : index
    %c0_377 = arith.constant 0 : index
    %c0_378 = arith.constant 0 : index
    %346 = vector.load %arg13[%c0_376, %c0_377, %c0_378] : memref<1x1x128xf32, #tpu.memory_space<vmem>>, vector<1x1x128xf32>
    tpu.vector_store %arg13[%c0_376, %c0_377, %c0_378], %345 {strides = array<i32>} : memref<1x1x128xf32, #tpu.memory_space<vmem>>, vector<1x1x128xf32>,
    return
  }
  func.func @transform_0(%arg0: i32) -> (i32, i32, i32, i32) {
    %c0_i32 = arith.constant 0 : i32
    %c0_i32_0 = arith.constant 0 : i32
    %c0_i32_1 = arith.constant 0 : i32
    %c0_i32_2 = arith.constant 0 : i32
    return %arg0, %c0_i32, %c0_i32_0, %c0_i32_1 : i32, i32, i32, i32
  }
  func.func @transform_1(%arg0: i32) -> (i32, i32, i32, i32) {
    %c0_i32 = arith.constant 0 : i32
    %c0_i32_0 = arith.constant 0 : i32
    %c0_i32_1 = arith.constant 0 : i32
    %c0_i32_2 = arith.constant 0 : i32
    return %arg0, %c0_i32, %c0_i32_0, %c0_i32_1 : i32, i32, i32, i32
  }
  func.func @transform_2(%arg0: i32) -> (i32, i32) {
    %c0_i32 = arith.constant 0 : i32
    %c0_i32_0 = arith.constant 0 : i32
    %c0_i32_1 = arith.constant 0 : i32
    return %c0_i32, %c0_i32_0 : i32, i32
  }
  func.func @transform_3(%arg0: i32) -> (i32, i32) {
    %c0_i32 = arith.constant 0 : i32
    %c0_i32_0 = arith.constant 0 : i32
    %c0_i32_1 = arith.constant 0 : i32
    return %c0_i32, %c0_i32_0 : i32, i32
  }
  func.func @transform_4(%arg0: i32) -> (i32, i32) {
    %c0_i32 = arith.constant 0 : i32
    %c0_i32_0 = arith.constant 0 : i32
    %c0_i32_1 = arith.constant 0 : i32
    return %c0_i32, %c0_i32_0 : i32, i32
  }
  func.func @transform_5(%arg0: i32) -> (i32, i32) {
    %c0_i32 = arith.constant 0 : i32
    %c0_i32_0 = arith.constant 0 : i32
    %c0_i32_1 = arith.constant 0 : i32
    return %c0_i32, %c0_i32_0 : i32, i32
  }
  func.func @transform_6(%arg0: i32) -> (i32, i32) {
    %c0_i32 = arith.constant 0 : i32
    %c0_i32_0 = arith.constant 0 : i32
    %c0_i32_1 = arith.constant 0 : i32
    return %c0_i32, %c0_i32_0 : i32, i32
  }
  func.func @transform_7(%arg0: i32) -> (i32, i32) {
    %c0_i32 = arith.constant 0 : i32
    %c0_i32_0 = arith.constant 0 : i32
    %c0_i32_1 = arith.constant 0 : i32
    return %c0_i32, %c0_i32_0 : i32, i32
  }
  func.func @transform_8(%arg0: i32) -> (i32, i32) {
    %c0_i32 = arith.constant 0 : i32
    %c0_i32_0 = arith.constant 0 : i32
    %c0_i32_1 = arith.constant 0 : i32
    return %c0_i32, %c0_i32_0 : i32, i32
  }
  func.func @transform_9(%arg0: i32) -> (i32, i32) {
    %c0_i32 = arith.constant 0 : i32
    %c0_i32_0 = arith.constant 0 : i32
    %c0_i32_1 = arith.constant 0 : i32
    return %c0_i32, %c0_i32_0 : i32, i32
  }
  func.func @transform_10(%arg0: i32) -> (i32, i32) {
    %c0_i32 = arith.constant 0 : i32
    %c0_i32_0 = arith.constant 0 : i32
    %c0_i32_1 = arith.constant 0 : i32
    return %c0_i32, %c0_i32_0 : i32, i32
  }
  func.func @transform_11(%arg0: i32) -> (i32, i32) {
    %c0_i32 = arith.constant 0 : i32
    %c0_i32_0 = arith.constant 0 : i32
    %c0_i32_1 = arith.constant 0 : i32
    return %c0_i32, %c0_i32_0 : i32, i32
  }
  func.func @transform_12(%arg0: i32) -> (i32, i32, i32) {
    %c0_i32 = arith.constant 0 : i32
    %c0_i32_0 = arith.constant 0 : i32
    %c0_i32_1 = arith.constant 0 : i32
    return %arg0, %c0_i32, %c0_i32_0 : i32, i32, i32
  }
}

</mosaic_0001>

<llo_original>
// kernel: vgg_loss.1
$region0: #{vgg_loss.1}
  #allocation0 [shape = 'u32[]', space=smem, size = 0x4, offset = 0x4, fixed_abs, tag = 'smem constant byte address 0x4 - core index']
  #allocation1 [shape = 'u32[144,128]{1,0:T(1,128)}', space=vmem, size = 0x12000, scoped, tag = 'internal scratch']
  #allocation2 [shape = 'f32[2,18,18,3]{3,2,1,0:T(8,128)}', space=vmem, size = 0x6c000, scoped, tag = 'scratch operand']
  #allocation3 [shape = 'f32[2,10,10,8]{3,2,1,0:T(8,128)}', space=vmem, size = 0x28000, scoped, tag = 'scratch operand']
  #allocation4 [shape = 'f32[2,6,6,16]{3,2,1,0:T(8,128)}', space=vmem, size = 0xc000, scoped, tag = 'scratch operand']
  #allocation5 [shape = 'f32[2,4,4,32]{3,2,1,0:T(4,128)}', space=vmem, size = 0x4000, scoped, tag = 'scratch operand']
  #allocation6 [shape = 'f32[2,3,3,32]{3,2,1,0:T(4,128)}', space=vmem, size = 0x3000, scoped, tag = 'scratch operand']
  #allocation7 [shape = 'bf16[512,27]{1,0:T(8,128)(2,1)}', space=vmem, size = 0x20000, scoped, tag = 'scratch operand']
  #allocation8 [shape = 'bf16[128,72]{1,0:T(8,128)(2,1)}', space=vmem, size = 0x8000, scoped, tag = 'scratch operand']
  #allocation9 [shape = 'bf16[32,144]{1,0:T(8,128)(2,1)}', space=vmem, size = 0x4000, scoped, tag = 'scratch operand']
  #allocation10 [shape = 'bf16[8,288]{1,0:T(8,128)(2,1)}', space=vmem, size = 0x1800, scoped, tag = 'scratch operand']
  #allocation11 [shape = 'bf16[2,288]{1,0:T(2,128)(2,1)}', space=vmem, size = 0x600, scoped, tag = 'scratch operand']
  #allocation12 [shape = 'f32[512,32]{1,0:T(8,128)}', space=vmem, size = 0x40000, scoped, tag = 'scratch operand']
  %s0 = inlined_call_operand.vmem [shape: f32[2,16,16,3], index: 0, kind: input, shape index: {}]
  %s1 = inlined_call_operand.vmem [shape: f32[2,16,16,3], index: 1, kind: input, shape index: {}]
  %s2 = inlined_call_operand.vmem [shape: bf16[27,8], index: 2, kind: input, shape index: {}]
  %s3 = inlined_call_operand.vmem [shape: f32[1,8], index: 3, kind: input, shape index: {}]
  %s4 = inlined_call_operand.vmem [shape: bf16[72,16], index: 4, kind: input, shape index: {}]
  %s5 = inlined_call_operand.vmem [shape: f32[1,16], index: 5, kind: input, shape index: {}]
  %s6 = inlined_call_operand.vmem [shape: bf16[144,32], index: 6, kind: input, shape index: {}]
  %s7 = inlined_call_operand.vmem [shape: f32[1,32], index: 7, kind: input, shape index: {}]
  %s8 = inlined_call_operand.vmem [shape: bf16[288,32], index: 8, kind: input, shape index: {}]
  %s9 = inlined_call_operand.vmem [shape: f32[1,32], index: 9, kind: input, shape index: {}]
  %s10 = inlined_call_operand.vmem [shape: bf16[288,32], index: 10, kind: input, shape index: {}]
  %s11 = inlined_call_operand.vmem [shape: f32[1,32], index: 11, kind: input, shape index: {}]
  %s12 = inlined_call_operand.vmem [shape: f32[2,1,128], index: 12, kind: output, shape index: {}]
  %s13 = sld [smem:[#allocation0]]
  $region81: #{vgg_loss.1} parent=0
    _
  %s15 = ssub.s32 1, %s13
  %s16 = scalar_select 0, %s15, %s13
  loop: start=0, step=1, limit=4
  $region2: #{vgg_loss.1} parent=0 // loop_pre_header
    _
  $region3: #{vgg_loss.1} parent=0 // loop_header
    %s18 = sphi 0, %s22
    %p19 = scmp.ge.s32.totalorder %s18, 4
    %s28 = sphi 0, %s30
    %s31 = sphi 0, %s28
    %s32 = sphi 0, %s31
    %s48 = sphi 0, %s32
    %s54 = sphi 0, %s56
    %s57 = sphi 0, %s54
    %s58 = sphi 0, %s57
    %s74 = sphi 0, %s58
    %s78 = sphi 0, %s78
    %s80 = sphi 0, %s78
    %s81 = sphi 0, %s80
    %s95 = sphi 0, %s81
    %s99 = sphi 0, %s99
    %s101 = sphi 0, %s99
    %s102 = sphi 0, %s101
    %s116 = sphi 0, %s102
    %s120 = sphi 0, %s120
    %s122 = sphi 0, %s120
    %s123 = sphi 0, %s122
    %s137 = sphi 0, %s123
    %s141 = sphi 0, %s141
    %s143 = sphi 0, %s141
    %s144 = sphi 0, %s143
    %s158 = sphi 0, %s144
    %s162 = sphi 0, %s162
    %s164 = sphi 0, %s162
    %s165 = sphi 0, %s164
    %s179 = sphi 0, %s165
    %s183 = sphi 0, %s183
    %s185 = sphi 0, %s183
    %s186 = sphi 0, %s185
    %s200 = sphi 0, %s186
    %s204 = sphi 0, %s204
    %s206 = sphi 0, %s204
    %s207 = sphi 0, %s206
    %s221 = sphi 0, %s207
    %s225 = sphi 0, %s225
    %s227 = sphi 0, %s225
    %s228 = sphi 0, %s227
    %s242 = sphi 0, %s228
    %s246 = sphi 0, %s246
    %s248 = sphi 0, %s246
    %s249 = sphi 0, %s248
    %s263 = sphi 0, %s249
    %s267 = sphi 0, %s267
    %s269 = sphi 0, %s267
    %s270 = sphi 0, %s269
    %s284 = sphi 0, %s270
    %s290 = sphi 0, %s292
    %s293 = sphi 0, %s290
    %s294 = sphi 0, %s293
    %s310 = sphi 0, %s294
  $region4: #{vgg_loss.1} parent=0 // loop_header_branch
    %21 = sbr.rel (%p19) target = $region8
  $region5: #{vgg_loss.1} parent=0 // loop_body
    %s23 = ssub.s32 %s18, 1
    %s24 = ssub.s32 %s18, 2
    %s25 = sadd.s32 %s18, 1
    %s26 = ssub.s32 %s18, %s25
    %p27 = scmp.eq.s32.totalorder %s26, 0
    %s29 = sadd.s32 %s28, 1
    %s30 = scalar_select %p27, %s28, %s29
    %p33 = pneg %p27
    %p34 = scmp.eq.s32.totalorder %s18, 1
    %p35 = por %p33, %p34
    %p36 = scmp.ne.s32.totalorder %s28, %s31
    %p37 = scmp.eq.s32.totalorder %s18, 0
    %p38 = por %p36, %p37
    %p39 = scmp.ne.s32.totalorder %s28, %s31
    %p40 = scmp.eq.s32.totalorder %s23, 1
    %p41 = por %p39, %p40
    %p42 = scmp.ne.s32.totalorder %s31, %s32
    %p43 = scmp.eq.s32.totalorder %s23, 0
    %p44 = por %p42, %p43
    %p45 = scmp.ne.s32.totalorder %s31, %s32
    %p46 = scmp.eq.s32.totalorder %s24, 1
    %p47 = por %p45, %p46
    %p49 = scmp.ne.s32.totalorder %s32, %s48
    %p50 = scmp.eq.s32.totalorder %s24, 0
    %p51 = por %p49, %p50
    %s52 = ssub.s32 %s18, %s25
    %p53 = scmp.eq.s32.totalorder %s52, 0
    %s55 = sadd.s32 %s54, 1
    %s56 = scalar_select %p53, %s54, %s55
    %p59 = pneg %p53
    %p60 = scmp.eq.s32.totalorder %s18, 1
    %p61 = por %p59, %p60
    %p62 = scmp.ne.s32.totalorder %s54, %s57
    %p63 = scmp.eq.s32.totalorder %s18, 0
    %p64 = por %p62, %p63
    %p65 = scmp.ne.s32.totalorder %s54, %s57
    %p66 = scmp.eq.s32.totalorder %s23, 1
    %p67 = por %p65, %p66
    %p68 = scmp.ne.s32.totalorder %s57, %s58
    %p69 = scmp.eq.s32.totalorder %s23, 0
    %p70 = por %p68, %p69
    %p71 = scmp.ne.s32.totalorder %s57, %s58
    %p72 = scmp.eq.s32.totalorder %s24, 1
    %p73 = por %p71, %p72
    %p75 = scmp.ne.s32.totalorder %s58, %s74
    %p76 = scmp.eq.s32.totalorder %s24, 0
    %p77 = por %p75, %p76
    %s79 = sadd.s32 %s78, 1
    %p82 = scmp.eq.s32.totalorder %s18, 1
    %p83 = scmp.ne.s32.totalorder %s78, %s80
    %p84 = scmp.eq.s32.totalorder %s18, 0
    %p85 = por %p83, %p84
    %p86 = scmp.ne.s32.totalorder %s78, %s80
    %p87 = scmp.eq.s32.totalorder %s23, 1
    %p88 = por %p86, %p87
    %p89 = scmp.ne.s32.totalorder %s80, %s81
    %p90 = scmp.eq.s32.totalorder %s23, 0
    %p91 = por %p89, %p90
    %p92 = scmp.ne.s32.totalorder %s80, %s81
    %p93 = scmp.eq.s32.totalorder %s24, 1
    %p94 = por %p92, %p93
    %p96 = scmp.ne.s32.totalorder %s81, %s95
    %p97 = scmp.eq.s32.totalorder %s24, 0
    %p98 = por %p96, %p97
    %s100 = sadd.s32 %s99, 1
    %p103 = scmp.eq.s32.totalorder %s18, 1
    %p104 = scmp.ne.s32.totalorder %s99, %s101
    %p105 = scmp.eq.s32.totalorder %s18, 0
    %p106 = por %p104, %p105
    %p107 = scmp.ne.s32.totalorder %s99, %s101
    %p108 = scmp.eq.s32.totalorder %s23, 1
    %p109 = por %p107, %p108
    %p110 = scmp.ne.s32.totalorder %s101, %s102
    %p111 = scmp.eq.s32.totalorder %s23, 0
    %p112 = por %p110, %p111
    %p113 = scmp.ne.s32.totalorder %s101, %s102
    %p114 = scmp.eq.s32.totalorder %s24, 1
    %p115 = por %p113, %p114
    %p117 = scmp.ne.s32.totalorder %s102, %s116
    %p118 = scmp.eq.s32.totalorder %s24, 0
    %p119 = por %p117, %p118
    %s121 = sadd.s32 %s120, 1
    %p124 = scmp.eq.s32.totalorder %s18, 1
    %p125 = scmp.ne.s32.totalorder %s120, %s122
    %p126 = scmp.eq.s32.totalorder %s18, 0
    %p127 = por %p125, %p126
    %p128 = scmp.ne.s32.totalorder %s120, %s122
    %p129 = scmp.eq.s32.totalorder %s23, 1
    %p130 = por %p128, %p129
    %p131 = scmp.ne.s32.totalorder %s122, %s123
    %p132 = scmp.eq.s32.totalorder %s23, 0
    %p133 = por %p131, %p132
    %p134 = scmp.ne.s32.totalorder %s122, %s123
    %p135 = scmp.eq.s32.totalorder %s24, 1
    %p136 = por %p134, %p135
    %p138 = scmp.ne.s32.totalorder %s123, %s137
    %p139 = scmp.eq.s32.totalorder %s24, 0
    %p140 = por %p138, %p139
    %s142 = sadd.s32 %s141, 1
    %p145 = scmp.eq.s32.totalorder %s18, 1
    %p146 = scmp.ne.s32.totalorder %s141, %s143
    %p147 = scmp.eq.s32.totalorder %s18, 0
    %p148 = por %p146, %p147
    %p149 = scmp.ne.s32.totalorder %s141, %s143
    %p150 = scmp.eq.s32.totalorder %s23, 1
    %p151 = por %p149, %p150
    %p152 = scmp.ne.s32.totalorder %s143, %s144
    %p153 = scmp.eq.s32.totalorder %s23, 0
    %p154 = por %p152, %p153
    %p155 = scmp.ne.s32.totalorder %s143, %s144
    %p156 = scmp.eq.s32.totalorder %s24, 1
    %p157 = por %p155, %p156
    %p159 = scmp.ne.s32.totalorder %s144, %s158
    %p160 = scmp.eq.s32.totalorder %s24, 0
    %p161 = por %p159, %p160
    %s163 = sadd.s32 %s162, 1
    %p166 = scmp.eq.s32.totalorder %s18, 1
    %p167 = scmp.ne.s32.totalorder %s162, %s164
    %p168 = scmp.eq.s32.totalorder %s18, 0
    %p169 = por %p167, %p168
    %p170 = scmp.ne.s32.totalorder %s162, %s164
    %p171 = scmp.eq.s32.totalorder %s23, 1
    %p172 = por %p170, %p171
    %p173 = scmp.ne.s32.totalorder %s164, %s165
    %p174 = scmp.eq.s32.totalorder %s23, 0
    %p175 = por %p173, %p174
    %p176 = scmp.ne.s32.totalorder %s164, %s165
    %p177 = scmp.eq.s32.totalorder %s24, 1
    %p178 = por %p176, %p177
    %p180 = scmp.ne.s32.totalorder %s165, %s179
    %p181 = scmp.eq.s32.totalorder %s24, 0
    %p182 = por %p180, %p181
    %s184 = sadd.s32 %s183, 1
    %p187 = scmp.eq.s32.totalorder %s18, 1
    %p188 = scmp.ne.s32.totalorder %s183, %s185
    %p189 = scmp.eq.s32.totalorder %s18, 0
    %p190 = por %p188, %p189
    %p191 = scmp.ne.s32.totalorder %s183, %s185
    %p192 = scmp.eq.s32.totalorder %s23, 1
    %p193 = por %p191, %p192
    %p194 = scmp.ne.s32.totalorder %s185, %s186
    %p195 = scmp.eq.s32.totalorder %s23, 0
    %p196 = por %p194, %p195
    %p197 = scmp.ne.s32.totalorder %s185, %s186
    %p198 = scmp.eq.s32.totalorder %s24, 1
    %p199 = por %p197, %p198
    %p201 = scmp.ne.s32.totalorder %s186, %s200
    %p202 = scmp.eq.s32.totalorder %s24, 0
    %p203 = por %p201, %p202
    %s205 = sadd.s32 %s204, 1
    %p208 = scmp.eq.s32.totalorder %s18, 1
    %p209 = scmp.ne.s32.totalorder %s204, %s206
    %p210 = scmp.eq.s32.totalorder %s18, 0
    %p211 = por %p209, %p210
    %p212 = scmp.ne.s32.totalorder %s204, %s206
    %p213 = scmp.eq.s32.totalorder %s23, 1
    %p214 = por %p212, %p213
    %p215 = scmp.ne.s32.totalorder %s206, %s207
    %p216 = scmp.eq.s32.totalorder %s23, 0
    %p217 = por %p215, %p216
    %p218 = scmp.ne.s32.totalorder %s206, %s207
    %p219 = scmp.eq.s32.totalorder %s24, 1
    %p220 = por %p218, %p219
    %p222 = scmp.ne.s32.totalorder %s207, %s221
    %p223 = scmp.eq.s32.totalorder %s24, 0
    %p224 = por %p222, %p223
    %s226 = sadd.s32 %s225, 1
    %p229 = scmp.eq.s32.totalorder %s18, 1
    %p230 = scmp.ne.s32.totalorder %s225, %s227
    %p231 = scmp.eq.s32.totalorder %s18, 0
    %p232 = por %p230, %p231
    %p233 = scmp.ne.s32.totalorder %s225, %s227
    %p234 = scmp.eq.s32.totalorder %s23, 1
    %p235 = por %p233, %p234
    %p236 = scmp.ne.s32.totalorder %s227, %s228
    %p237 = scmp.eq.s32.totalorder %s23, 0
    %p238 = por %p236, %p237
    %p239 = scmp.ne.s32.totalorder %s227, %s228
    %p240 = scmp.eq.s32.totalorder %s24, 1
    %p241 = por %p239, %p240
    %p243 = scmp.ne.s32.totalorder %s228, %s242
    %p244 = scmp.eq.s32.totalorder %s24, 0
    %p245 = por %p243, %p244
    %s247 = sadd.s32 %s246, 1
    %p250 = scmp.eq.s32.totalorder %s18, 1
    %p251 = scmp.ne.s32.totalorder %s246, %s248
    %p252 = scmp.eq.s32.totalorder %s18, 0
    %p253 = por %p251, %p252
    %p254 = scmp.ne.s32.totalorder %s246, %s248
    %p255 = scmp.eq.s32.totalorder %s23, 1
    %p256 = por %p254, %p255
    %p257 = scmp.ne.s32.totalorder %s248, %s249
    %p258 = scmp.eq.s32.totalorder %s23, 0
    %p259 = por %p257, %p258
    %p260 = scmp.ne.s32.totalorder %s248, %s249
    %p261 = scmp.eq.s32.totalorder %s24, 1
    %p262 = por %p260, %p261
    %p264 = scmp.ne.s32.totalorder %s249, %s263
    %p265 = scmp.eq.s32.totalorder %s24, 0
    %p266 = por %p264, %p265
    %s268 = sadd.s32 %s267, 1
    %p271 = scmp.eq.s32.totalorder %s18, 1
    %p272 = scmp.ne.s32.totalorder %s267, %s269
    %p273 = scmp.eq.s32.totalorder %s18, 0
    %p274 = por %p272, %p273
    %p275 = scmp.ne.s32.totalorder %s267, %s269
    %p276 = scmp.eq.s32.totalorder %s23, 1
    %p277 = por %p275, %p276
    %p278 = scmp.ne.s32.totalorder %s269, %s270
    %p279 = scmp.eq.s32.totalorder %s23, 0
    %p280 = por %p278, %p279
    %p281 = scmp.ne.s32.totalorder %s269, %s270
    %p282 = scmp.eq.s32.totalorder %s24, 1
    %p283 = por %p281, %p282
    %p285 = scmp.ne.s32.totalorder %s270, %s284
    %p286 = scmp.eq.s32.totalorder %s24, 0
    %p287 = por %p285, %p286
    %s288 = ssub.s32 %s18, %s25
    %p289 = scmp.eq.s32.totalorder %s288, 0
    %s291 = sadd.s32 %s290, 1
    %s292 = scalar_select %p289, %s290, %s291
    %p295 = pneg %p289
    %p296 = scmp.eq.s32.totalorder %s18, 1
    %p297 = por %p295, %p296
    %p298 = scmp.ne.s32.totalorder %s290, %s293
    %p299 = scmp.eq.s32.totalorder %s18, 0
    %p300 = por %p298, %p299
    %p301 = scmp.ne.s32.totalorder %s290, %s293
    %p302 = scmp.eq.s32.totalorder %s23, 1
    %p303 = por %p301, %p302
    %p304 = scmp.ne.s32.totalorder %s293, %s294
    %p305 = scmp.eq.s32.totalorder %s23, 0
    %p306 = por %p304, %p305
    %p307 = scmp.ne.s32.totalorder %s293, %s294
    %p308 = scmp.eq.s32.totalorder %s24, 1
    %p309 = por %p307, %p308
    %p311 = scmp.ne.s32.totalorder %s294, %s310
    %p312 = scmp.eq.s32.totalorder %s24, 0
    %p313 = por %p311, %p312
    %p314 = scmp.le.s32.totalorder 1, %s18
    %p315 = scmp.lt.s32.totalorder %s18, 3
    %p316 = pnand %p314, %p315
    %p317 = pneg %p316
    // Predicated region
    $region9: #{vgg_loss.1} parent=5 // pred_check
      _
    $region10: #{vgg_loss.1} parent=5 // pred_check_branch
      %319 = sbr.rel (%p316) target = $region12
    $region11: #{vgg_loss.1} parent=5 // pred_region
      %s320 = ssub.s32 %s18, 1
      // Predicated region
      $region13: #{vgg_loss.1} parent=11 // pred_check
        %p321 = pneg %p91
      $region14: #{vgg_loss.1} parent=11 // pred_check_branch
        %323 = sbr.rel (%p321) target = $region16
      $region15: #{vgg_loss.1} parent=11 // pred_region
        _
      $region16: #{vgg_loss.1} parent=11 // pred_fallthru
        _
      // Predicated region
      $region17: #{vgg_loss.1} parent=11 // pred_check
        %p324 = pneg %p112
      $region18: #{vgg_loss.1} parent=11 // pred_check_branch
        %326 = sbr.rel (%p324) target = $region20
      $region19: #{vgg_loss.1} parent=11 // pred_region
        _
      $region20: #{vgg_loss.1} parent=11 // pred_fallthru
        _
      // Predicated region
      $region21: #{vgg_loss.1} parent=11 // pred_check
        %p327 = pneg %p133
      $region22: #{vgg_loss.1} parent=11 // pred_check_branch
        %329 = sbr.rel (%p327) target = $region24
      $region23: #{vgg_loss.1} parent=11 // pred_region
        _
      $region24: #{vgg_loss.1} parent=11 // pred_fallthru
        _
      // Predicated region
      $region25: #{vgg_loss.1} parent=11 // pred_check
        %p330 = pneg %p154
      $region26: #{vgg_loss.1} parent=11 // pred_check_branch
        %332 = sbr.rel (%p330) target = $region28
      $region27: #{vgg_loss.1} parent=11 // pred_region
        _
      $region28: #{vgg_loss.1} parent=11 // pred_fallthru
        _
      // Predicated region
      $region29: #{vgg_loss.1} parent=11 // pred_check
        %p333 = pneg %p175
      $region30: #{vgg_loss.1} parent=11 // pred_check_branch
        %335 = sbr.rel (%p333) target = $region32
      $region31: #{vgg_loss.1} parent=11 // pred_region
        _
      $region32: #{vgg_loss.1} parent=11 // pred_fallthru
        _
      // Predicated region
      $region33: #{vgg_loss.1} parent=11 // pred_check
        %p336 = pneg %p196
      $region34: #{vgg_loss.1} parent=11 // pred_check_branch
        %338 = sbr.rel (%p336) target = $region36
      $region35: #{vgg_loss.1} parent=11 // pred_region
        _
      $region36: #{vgg_loss.1} parent=11 // pred_fallthru
        _
      // Predicated region
      $region37: #{vgg_loss.1} parent=11 // pred_check
        %p339 = pneg %p217
      $region38: #{vgg_loss.1} parent=11 // pred_check_branch
        %341 = sbr.rel (%p339) target = $region40
      $region39: #{vgg_loss.1} parent=11 // pred_region
        _
      $region40: #{vgg_loss.1} parent=11 // pred_fallthru
        _
      // Predicated region
      $region41: #{vgg_loss.1} parent=11 // pred_check
        %p342 = pneg %p238
      $region42: #{vgg_loss.1} parent=11 // pred_check_branch
        %344 = sbr.rel (%p342) target = $region44
      $region43: #{vgg_loss.1} parent=11 // pred_region
        _
      $region44: #{vgg_loss.1} parent=11 // pred_fallthru
        _
      // Predicated region
      $region45: #{vgg_loss.1} parent=11 // pred_check
        %p345 = pneg %p259
      $region46: #{vgg_loss.1} parent=11 // pred_check_branch
        %347 = sbr.rel (%p345) target = $region48
      $region47: #{vgg_loss.1} parent=11 // pred_region
        _
      $region48: #{vgg_loss.1} parent=11 // pred_fallthru
        _
      // Predicated region
      $region49: #{vgg_loss.1} parent=11 // pred_check
        %p348 = pneg %p280
      $region50: #{vgg_loss.1} parent=11 // pred_check_branch
        %350 = sbr.rel (%p348) target = $region52
      $region51: #{vgg_loss.1} parent=11 // pred_region
        _
      $region52: #{vgg_loss.1} parent=11 // pred_fallthru
        _
    $region12: #{vgg_loss.1} parent=5 // pred_fallthru
      _
    %p351 = scmp.lt.s32.totalorder %s18, 2
    // Predicated region
    $region53: #{vgg_loss.1} parent=5 // pred_check
      %p352 = pneg %p351
    $region54: #{vgg_loss.1} parent=5 // pred_check_branch
      %354 = sbr.rel (%p352) target = $region56
    $region55: #{vgg_loss.1} parent=5 // pred_region
      // Predicated region
      $region57: #{vgg_loss.1} parent=55 // pred_check
        %p355 = pneg %p38
      $region58: #{vgg_loss.1} parent=55 // pred_check_branch
        %357 = sbr.rel (%p355) target = $region60
      $region59: #{vgg_loss.1} parent=55 // pred_region
        %p358 = scmp.lt.s32.totalorder %s18, 1
        %s359 = scalar_select %p358, %s18, 1
        %s360 = smul.addr %s359, 32
        %s361 = smul.addr %s360, 8
        %s362 = scalar_lea.vmem %s0, %s361
      $region60: #{vgg_loss.1} parent=55 // pred_fallthru
        _
      // Predicated region
      $region61: #{vgg_loss.1} parent=55 // pred_check
        %p363 = pneg %p64
      $region62: #{vgg_loss.1} parent=55 // pred_check_branch
        %365 = sbr.rel (%p363) target = $region64
      $region63: #{vgg_loss.1} parent=55 // pred_region
        %p366 = scmp.lt.s32.totalorder %s18, 1
        %s367 = scalar_select %p366, %s18, 1
        %s368 = smul.addr %s367, 32
        %s369 = smul.addr %s368, 8
        %s370 = scalar_lea.vmem %s1, %s369
      $region64: #{vgg_loss.1} parent=55 // pred_fallthru
        _
    $region56: #{vgg_loss.1} parent=5 // pred_fallthru
      _
    %p371 = scmp.le.s32.totalorder 1, %s18
    %p372 = scmp.lt.s32.totalorder %s18, 3
    %p373 = pnand %p371, %p372
    %p374 = pneg %p373
    // Predicated region
    $region65: #{vgg_loss.1} parent=5 // pred_check
      _
    $region66: #{vgg_loss.1} parent=5 // pred_check_branch
      %376 = sbr.rel (%p373) target = $region68
    $region67: #{vgg_loss.1} parent=5 // pred_region
      %s377 = ssub.s32 %s18, 1
      %p378 = scmp.lt.s32.totalorder %s23, 1
      %s379 = scalar_select %p378, %s23, 1
      %s380 = smul.addr %s379, 32
      %s381 = smul.addr %s380, 8
      %s382 = scalar_lea.vmem %s0, %s381
      %p383 = pneg %p44
      %p384 = pneg %p41
      %p385 = scmp.lt.s32.totalorder %s23, 1
      %s386 = scalar_select %p385, %s23, 1
      %s387 = smul.addr %s386, 32
      %s388 = smul.addr %s387, 8
      %s389 = scalar_lea.vmem %s1, %s388
      %p390 = pneg %p70
      %p391 = pneg %p67
      %p392 = pneg %p91
      %p393 = pneg %p88
      %p394 = pneg %p112
      %p395 = pneg %p109
      %p396 = pneg %p133
      %p397 = pneg %p130
      %p398 = pneg %p154
      %p399 = pneg %p151
      %p400 = pneg %p175
      %p401 = pneg %p172
      %p402 = pneg %p196
      %p403 = pneg %p193
      %p404 = pneg %p217
      %p405 = pneg %p214
      %p406 = pneg %p238
      %p407 = pneg %p235
      %p408 = pneg %p259
      %p409 = pneg %p256
      %p410 = pneg %p280
      %p411 = pneg %p277
      %p412 = pneg %p306
      %p413 = pneg %p303
      %p414 = scmp.lt.s32.totalorder %s23, 1
      %s415 = scalar_select %p414, %s23, 1
      %s416 = scalar_lea.vmem %s12, %s415
      %p417 = scmp.lt.s32.totalorder %s23, 1
      %s418 = scalar_select %p417, %s23, 1
      %s419 = smul.addr %s418, 32
      %s420 = smul.addr %s419, 8
      %s421 = scalar_lea.vmem %s0, %s420
      %p422 = scmp.lt.s32.totalorder %s23, 1
      %s423 = scalar_select %p422, %s23, 1
      %s424 = smul.addr %s423, 32
      %s425 = smul.addr %s424, 8
      %s426 = scalar_lea.vmem %s1, %s425
      %p427 = scmp.lt.s32.totalorder %s23, 1
      %s428 = scalar_select %p427, %s23, 1
      %s429 = scalar_lea.vmem %s12, %s428
      %vm431 = vcmask 23552
      %432 = vst.msk [vmem:[#allocation2] sm:$0xff] %vm431, 0.0
      %433 = vst.msk [vmem:[#allocation2 + $0x8] sm:$0xff] %vm431, 0.0
      %vm434 = vcmask 17408
      %435 = vst.msk [vmem:[#allocation2 + $0x10] sm:$0x3] %vm434, 0.0
      %436 = vst.msk [vmem:[#allocation2 + $0x18] sm:$0xff] %vm431, 0.0
      %437 = vst.msk [vmem:[#allocation2 + $0x20] sm:$0xff] %vm431, 0.0
      %438 = vst.msk [vmem:[#allocation2 + $0x28] sm:$0x3] %vm434, 0.0
      %439 = vst.msk [vmem:[#allocation2 + $0x30] sm:$0xff] %vm431, 0.0
      %440 = vst.msk [vmem:[#allocation2 + $0x38] sm:$0xff] %vm431, 0.0
      %441 = vst.msk [vmem:[#allocation2 + $0x40] sm:$0x3] %vm434, 0.0
      %442 = vst.msk [vmem:[#allocation2 + $0x48] sm:$0xff] %vm431, 0.0
      %443 = vst.msk [vmem:[#allocation2 + $0x50] sm:$0xff] %vm431, 0.0
      %444 = vst.msk [vmem:[#allocation2 + $0x58] sm:$0x3] %vm434, 0.0
      %445 = vst.msk [vmem:[#allocation2 + $0x60] sm:$0xff] %vm431, 0.0
      %446 = vst.msk [vmem:[#allocation2 + $0x68] sm:$0xff] %vm431, 0.0
      %447 = vst.msk [vmem:[#allocation2 + $0x70] sm:$0x3] %vm434, 0.0
      %448 = vst.msk [vmem:[#allocation2 + $0x78] sm:$0xff] %vm431, 0.0
      %449 = vst.msk [vmem:[#allocation2 + $0x80] sm:$0xff] %vm431, 0.0
      %450 = vst.msk [vmem:[#allocation2 + $0x88] sm:$0x3] %vm434, 0.0
      %451 = vst.msk [vmem:[#allocation2 + $0x90] sm:$0xff] %vm431, 0.0
      %452 = vst.msk [vmem:[#allocation2 + $0x98] sm:$0xff] %vm431, 0.0
      %453 = vst.msk [vmem:[#allocation2 + $0xa0] sm:$0x3] %vm434, 0.0
      %454 = vst.msk [vmem:[#allocation2 + $0xa8] sm:$0xff] %vm431, 0.0
      %455 = vst.msk [vmem:[#allocation2 + $0xb0] sm:$0xff] %vm431, 0.0
      %456 = vst.msk [vmem:[#allocation2 + $0xb8] sm:$0x3] %vm434, 0.0
      %457 = vst.msk [vmem:[#allocation2 + $0xc0] sm:$0xff] %vm431, 0.0
      %458 = vst.msk [vmem:[#allocation2 + $0xc8] sm:$0xff] %vm431, 0.0
      %459 = vst.msk [vmem:[#allocation2 + $0xd0] sm:$0x3] %vm434, 0.0
      %460 = vst.msk [vmem:[#allocation2 + $0xd8] sm:$0xff] %vm431, 0.0
      %461 = vst.msk [vmem:[#allocation2 + $0xe0] sm:$0xff] %vm431, 0.0
      %462 = vst.msk [vmem:[#allocation2 + $0xe8] sm:$0x3] %vm434, 0.0
      %463 = vst.msk [vmem:[#allocation2 + $0xf0] sm:$0xff] %vm431, 0.0
      %464 = vst.msk [vmem:[#allocation2 + $0xf8] sm:$0xff] %vm431, 0.0
      %465 = vst.msk [vmem:[#allocation2 + $0x100] sm:$0x3] %vm434, 0.0
      %466 = vst.msk [vmem:[#allocation2 + $0x108] sm:$0xff] %vm431, 0.0
      %467 = vst.msk [vmem:[#allocation2 + $0x110] sm:$0xff] %vm431, 0.0
      %468 = vst.msk [vmem:[#allocation2 + $0x118] sm:$0x3] %vm434, 0.0
      %469 = vst.msk [vmem:[#allocation2 + $0x120] sm:$0xff] %vm431, 0.0
      %470 = vst.msk [vmem:[#allocation2 + $0x128] sm:$0xff] %vm431, 0.0
      %471 = vst.msk [vmem:[#allocation2 + $0x130] sm:$0x3] %vm434, 0.0
      %472 = vst.msk [vmem:[#allocation2 + $0x138] sm:$0xff] %vm431, 0.0
      %473 = vst.msk [vmem:[#allocation2 + $0x140] sm:$0xff] %vm431, 0.0
      %474 = vst.msk [vmem:[#allocation2 + $0x148] sm:$0x3] %vm434, 0.0
      %475 = vst.msk [vmem:[#allocation2 + $0x150] sm:$0xff] %vm431, 0.0
      %476 = vst.msk [vmem:[#allocation2 + $0x158] sm:$0xff] %vm431, 0.0
      %477 = vst.msk [vmem:[#allocation2 + $0x160] sm:$0x3] %vm434, 0.0
      %478 = vst.msk [vmem:[#allocation2 + $0x168] sm:$0xff] %vm431, 0.0
      %479 = vst.msk [vmem:[#allocation2 + $0x170] sm:$0xff] %vm431, 0.0
      %480 = vst.msk [vmem:[#allocation2 + $0x178] sm:$0x3] %vm434, 0.0
      %481 = vst.msk [vmem:[#allocation2 + $0x180] sm:$0xff] %vm431, 0.0
      %482 = vst.msk [vmem:[#allocation2 + $0x188] sm:$0xff] %vm431, 0.0
      %483 = vst.msk [vmem:[#allocation2 + $0x190] sm:$0x3] %vm434, 0.0
      %484 = vst.msk [vmem:[#allocation2 + $0x198] sm:$0xff] %vm431, 0.0
      %485 = vst.msk [vmem:[#allocation2 + $0x1a0] sm:$0xff] %vm431, 0.0
      %486 = vst.msk [vmem:[#allocation2 + $0x1a8] sm:$0x3] %vm434, 0.0
      %487 = vst.msk [vmem:[#allocation2 + $0x1b0] sm:$0xff] %vm431, 0.0
      %488 = vst.msk [vmem:[#allocation2 + $0x1b8] sm:$0xff] %vm431, 0.0
      %489 = vst.msk [vmem:[#allocation2 + $0x1c0] sm:$0x3] %vm434, 0.0
      %490 = vst.msk [vmem:[#allocation2 + $0x1c8] sm:$0xff] %vm431, 0.0
      %491 = vst.msk [vmem:[#allocation2 + $0x1d0] sm:$0xff] %vm431, 0.0
      %492 = vst.msk [vmem:[#allocation2 + $0x1d8] sm:$0x3] %vm434, 0.0
      %493 = vst.msk [vmem:[#allocation2 + $0x1e0] sm:$0xff] %vm431, 0.0
      %494 = vst.msk [vmem:[#allocation2 + $0x1e8] sm:$0xff] %vm431, 0.0
      %495 = vst.msk [vmem:[#allocation2 + $0x1f0] sm:$0x3] %vm434, 0.0
      %496 = vst.msk [vmem:[#allocation2 + $0x1f8] sm:$0xff] %vm431, 0.0
      %497 = vst.msk [vmem:[#allocation2 + $0x200] sm:$0xff] %vm431, 0.0
      %498 = vst.msk [vmem:[#allocation2 + $0x208] sm:$0x3] %vm434, 0.0
      %499 = vst.msk [vmem:[#allocation2 + $0x210] sm:$0xff] %vm431, 0.0
      %500 = vst.msk [vmem:[#allocation2 + $0x218] sm:$0xff] %vm431, 0.0
      %501 = vst.msk [vmem:[#allocation2 + $0x220] sm:$0x3] %vm434, 0.0
      %502 = vst.msk [vmem:[#allocation2 + $0x228] sm:$0xff] %vm431, 0.0
      %503 = vst.msk [vmem:[#allocation2 + $0x230] sm:$0xff] %vm431, 0.0
      %504 = vst.msk [vmem:[#allocation2 + $0x238] sm:$0x3] %vm434, 0.0
      %505 = vst.msk [vmem:[#allocation2 + $0x240] sm:$0xff] %vm431, 0.0
      %506 = vst.msk [vmem:[#allocation2 + $0x248] sm:$0xff] %vm431, 0.0
      %507 = vst.msk [vmem:[#allocation2 + $0x250] sm:$0x3] %vm434, 0.0
      %508 = vst.msk [vmem:[#allocation2 + $0x258] sm:$0xff] %vm431, 0.0
      %509 = vst.msk [vmem:[#allocation2 + $0x260] sm:$0xff] %vm431, 0.0
      %510 = vst.msk [vmem:[#allocation2 + $0x268] sm:$0x3] %vm434, 0.0
      %511 = vst.msk [vmem:[#allocation2 + $0x270] sm:$0xff] %vm431, 0.0
      %512 = vst.msk [vmem:[#allocation2 + $0x278] sm:$0xff] %vm431, 0.0
      %513 = vst.msk [vmem:[#allocation2 + $0x280] sm:$0x3] %vm434, 0.0
      %514 = vst.msk [vmem:[#allocation2 + $0x288] sm:$0xff] %vm431, 0.0
      %515 = vst.msk [vmem:[#allocation2 + $0x290] sm:$0xff] %vm431, 0.0
      %516 = vst.msk [vmem:[#allocation2 + $0x298] sm:$0x3] %vm434, 0.0
      %517 = vst.msk [vmem:[#allocation2 + $0x2a0] sm:$0xff] %vm431, 0.0
      %518 = vst.msk [vmem:[#allocation2 + $0x2a8] sm:$0xff] %vm431, 0.0
      %519 = vst.msk [vmem:[#allocation2 + $0x2b0] sm:$0x3] %vm434, 0.0
      %520 = vst.msk [vmem:[#allocation2 + $0x2b8] sm:$0xff] %vm431, 0.0
      %521 = vst.msk [vmem:[#allocation2 + $0x2c0] sm:$0xff] %vm431, 0.0
      %522 = vst.msk [vmem:[#allocation2 + $0x2c8] sm:$0x3] %vm434, 0.0
      %523 = vst.msk [vmem:[#allocation2 + $0x2d0] sm:$0xff] %vm431, 0.0
      %524 = vst.msk [vmem:[#allocation2 + $0x2d8] sm:$0xff] %vm431, 0.0
      %525 = vst.msk [vmem:[#allocation2 + $0x2e0] sm:$0x3] %vm434, 0.0
      %526 = vst.msk [vmem:[#allocation2 + $0x2e8] sm:$0xff] %vm431, 0.0
      %527 = vst.msk [vmem:[#allocation2 + $0x2f0] sm:$0xff] %vm431, 0.0
      %528 = vst.msk [vmem:[#allocation2 + $0x2f8] sm:$0x3] %vm434, 0.0
      %529 = vst.msk [vmem:[#allocation2 + $0x300] sm:$0xff] %vm431, 0.0
      %530 = vst.msk [vmem:[#allocation2 + $0x308] sm:$0xff] %vm431, 0.0
      %531 = vst.msk [vmem:[#allocation2 + $0x310] sm:$0x3] %vm434, 0.0
      %532 = vst.msk [vmem:[#allocation2 + $0x318] sm:$0xff] %vm431, 0.0
      %533 = vst.msk [vmem:[#allocation2 + $0x320] sm:$0xff] %vm431, 0.0
      %534 = vst.msk [vmem:[#allocation2 + $0x328] sm:$0x3] %vm434, 0.0
      %535 = vst.msk [vmem:[#allocation2 + $0x330] sm:$0xff] %vm431, 0.0
      %536 = vst.msk [vmem:[#allocation2 + $0x338] sm:$0xff] %vm431, 0.0
      %537 = vst.msk [vmem:[#allocation2 + $0x340] sm:$0x3] %vm434, 0.0
      %538 = vst.msk [vmem:[#allocation2 + $0x348] sm:$0xff] %vm431, 0.0
      %539 = vst.msk [vmem:[#allocation2 + $0x350] sm:$0xff] %vm431, 0.0
      %540 = vst.msk [vmem:[#allocation2 + $0x358] sm:$0x3] %vm434, 0.0
      %v541 = vld [vmem:[%s421] sm:$0xff]
      %v542 = vld [vmem:[%s421 + $0x8] sm:$0xff]
      %v543 = vld [vmem:[%s421 + $0x10] sm:$0xff]
      %v544 = vld [vmem:[%s421 + $0x18] sm:$0xff]
      %v545 = vld [vmem:[%s421 + $0x20] sm:$0xff]
      %v546 = vld [vmem:[%s421 + $0x28] sm:$0xff]
      %v547 = vld [vmem:[%s421 + $0x30] sm:$0xff]
      %v548 = vld [vmem:[%s421 + $0x38] sm:$0xff]
      %v549 = vld [vmem:[%s421 + $0x40] sm:$0xff]
      %v550 = vld [vmem:[%s421 + $0x48] sm:$0xff]
      %v551 = vld [vmem:[%s421 + $0x50] sm:$0xff]
      %v552 = vld [vmem:[%s421 + $0x58] sm:$0xff]
      %v553 = vld [vmem:[%s421 + $0x60] sm:$0xff]
      %v554 = vld [vmem:[%s421 + $0x68] sm:$0xff]
      %v555 = vld [vmem:[%s421 + $0x70] sm:$0xff]
      %v556 = vld [vmem:[%s421 + $0x78] sm:$0xff]
      %v557 = vld [vmem:[%s421 + $0x80] sm:$0xff]
      %v558 = vld [vmem:[%s421 + $0x88] sm:$0xff]
      %v559 = vld [vmem:[%s421 + $0x90] sm:$0xff]
      %v560 = vld [vmem:[%s421 + $0x98] sm:$0xff]
      %v561 = vld [vmem:[%s421 + $0xa0] sm:$0xff]
      %v562 = vld [vmem:[%s421 + $0xa8] sm:$0xff]
      %v563 = vld [vmem:[%s421 + $0xb0] sm:$0xff]
      %v564 = vld [vmem:[%s421 + $0xb8] sm:$0xff]
      %v565 = vld [vmem:[%s421 + $0xc0] sm:$0xff]
      %v566 = vld [vmem:[%s421 + $0xc8] sm:$0xff]
      %v567 = vld [vmem:[%s421 + $0xd0] sm:$0xff]
      %v568 = vld [vmem:[%s421 + $0xd8] sm:$0xff]
      %v569 = vld [vmem:[%s421 + $0xe0] sm:$0xff]
      %v570 = vld [vmem:[%s421 + $0xe8] sm:$0xff]
      %v571 = vld [vmem:[%s421 + $0xf0] sm:$0xff]
      %v572 = vld [vmem:[%s421 + $0xf8] sm:$0xff]
      %s573 = scalar_lea.vmem [#allocation2], 24
      %574 = vst.msk [vmem:[%s573 + $0x1] sm:$0xff] %vm431, %v541
      %575 = vst.msk [vmem:[%s573 + $0x9] sm:$0xff] %vm431, %v542
      %576 = vst.msk [vmem:[%s573 + $0x19] sm:$0xff] %vm431, %v543
      %577 = vst.msk [vmem:[%s573 + $0x21] sm:$0xff] %vm431, %v544
      %578 = vst.msk [vmem:[%s573 + $0x31] sm:$0xff] %vm431, %v545
      %579 = vst.msk [vmem:[%s573 + $0x39] sm:$0xff] %vm431, %v546
      %580 = vst.msk [vmem:[%s573 + $0x49] sm:$0xff] %vm431, %v547
      %581 = vst.msk [vmem:[%s573 + $0x51] sm:$0xff] %vm431, %v548
      %582 = vst.msk [vmem:[%s573 + $0x61] sm:$0xff] %vm431, %v549
      %583 = vst.msk [vmem:[%s573 + $0x69] sm:$0xff] %vm431, %v550
      %584 = vst.msk [vmem:[%s573 + $0x79] sm:$0xff] %vm431, %v551
      %585 = vst.msk [vmem:[%s573 + $0x81] sm:$0xff] %vm431, %v552
      %586 = vst.msk [vmem:[%s573 + $0x91] sm:$0xff] %vm431, %v553
      %587 = vst.msk [vmem:[%s573 + $0x99] sm:$0xff] %vm431, %v554
      %588 = vst.msk [vmem:[%s573 + $0xa9] sm:$0xff] %vm431, %v555
      %589 = vst.msk [vmem:[%s573 + $0xb1] sm:$0xff] %vm431, %v556
      %590 = vst.msk [vmem:[%s573 + $0xc1] sm:$0xff] %vm431, %v557
      %591 = vst.msk [vmem:[%s573 + $0xc9] sm:$0xff] %vm431, %v558
      %592 = vst.msk [vmem:[%s573 + $0xd9] sm:$0xff] %vm431, %v559
      %593 = vst.msk [vmem:[%s573 + $0xe1] sm:$0xff] %vm431, %v560
      %594 = vst.msk [vmem:[%s573 + $0xf1] sm:$0xff] %vm431, %v561
      %595 = vst.msk [vmem:[%s573 + $0xf9] sm:$0xff] %vm431, %v562
      %596 = vst.msk [vmem:[%s573 + $0x109] sm:$0xff] %vm431, %v563
      %597 = vst.msk [vmem:[%s573 + $0x111] sm:$0xff] %vm431, %v564
      %598 = vst.msk [vmem:[%s573 + $0x121] sm:$0xff] %vm431, %v565
      %599 = vst.msk [vmem:[%s573 + $0x129] sm:$0xff] %vm431, %v566
      %600 = vst.msk [vmem:[%s573 + $0x139] sm:$0xff] %vm431, %v567
      %601 = vst.msk [vmem:[%s573 + $0x141] sm:$0xff] %vm431, %v568
      %602 = vst.msk [vmem:[%s573 + $0x151] sm:$0xff] %vm431, %v569
      %603 = vst.msk [vmem:[%s573 + $0x159] sm:$0xff] %vm431, %v570
      %604 = vst.msk [vmem:[%s573 + $0x169] sm:$0xff] %vm431, %v571
      %605 = vst.msk [vmem:[%s573 + $0x171] sm:$0xff] %vm431, %v572
      %v606 = vld [vmem:[%s426] sm:$0xff]
      %v607 = vld [vmem:[%s426 + $0x8] sm:$0xff]
      %v608 = vld [vmem:[%s426 + $0x10] sm:$0xff]
      %v609 = vld [vmem:[%s426 + $0x18] sm:$0xff]
      %v610 = vld [vmem:[%s426 + $0x20] sm:$0xff]
      %v611 = vld [vmem:[%s426 + $0x28] sm:$0xff]
      %v612 = vld [vmem:[%s426 + $0x30] sm:$0xff]
      %v613 = vld [vmem:[%s426 + $0x38] sm:$0xff]
      %v614 = vld [vmem:[%s426 + $0x40] sm:$0xff]
      %v615 = vld [vmem:[%s426 + $0x48] sm:$0xff]
      %v616 = vld [vmem:[%s426 + $0x50] sm:$0xff]
      %v617 = vld [vmem:[%s426 + $0x58] sm:$0xff]
      %v618 = vld [vmem:[%s426 + $0x60] sm:$0xff]
      %v619 = vld [vmem:[%s426 + $0x68] sm:$0xff]
      %v620 = vld [vmem:[%s426 + $0x70] sm:$0xff]
      %v621 = vld [vmem:[%s426 + $0x78] sm:$0xff]
      %v622 = vld [vmem:[%s426 + $0x80] sm:$0xff]
      %v623 = vld [vmem:[%s426 + $0x88] sm:$0xff]
      %v624 = vld [vmem:[%s426 + $0x90] sm:$0xff]
      %v625 = vld [vmem:[%s426 + $0x98] sm:$0xff]
      %v626 = vld [vmem:[%s426 + $0xa0] sm:$0xff]
      %v627 = vld [vmem:[%s426 + $0xa8] sm:$0xff]
      %v628 = vld [vmem:[%s426 + $0xb0] sm:$0xff]
      %v629 = vld [vmem:[%s426 + $0xb8] sm:$0xff]
      %v630 = vld [vmem:[%s426 + $0xc0] sm:$0xff]
      %v631 = vld [vmem:[%s426 + $0xc8] sm:$0xff]
      %v632 = vld [vmem:[%s426 + $0xd0] sm:$0xff]
      %v633 = vld [vmem:[%s426 + $0xd8] sm:$0xff]
      %v634 = vld [vmem:[%s426 + $0xe0] sm:$0xff]
      %v635 = vld [vmem:[%s426 + $0xe8] sm:$0xff]
      %v636 = vld [vmem:[%s426 + $0xf0] sm:$0xff]
      %v637 = vld [vmem:[%s426 + $0xf8] sm:$0xff]
      %s638 = scalar_lea.vmem [#allocation2], 456
      %639 = vst.msk [vmem:[%s638 + $0x1] sm:$0xff] %vm431, %v606
      %640 = vst.msk [vmem:[%s638 + $0x9] sm:$0xff] %vm431, %v607
      %641 = vst.msk [vmem:[%s638 + $0x19] sm:$0xff] %vm431, %v608
      %642 = vst.msk [vmem:[%s638 + $0x21] sm:$0xff] %vm431, %v609
      %643 = vst.msk [vmem:[%s638 + $0x31] sm:$0xff] %vm431, %v610
      %644 = vst.msk [vmem:[%s638 + $0x39] sm:$0xff] %vm431, %v611
      %645 = vst.msk [vmem:[%s638 + $0x49] sm:$0xff] %vm431, %v612
      %646 = vst.msk [vmem:[%s638 + $0x51] sm:$0xff] %vm431, %v613
      %647 = vst.msk [vmem:[%s638 + $0x61] sm:$0xff] %vm431, %v614
      %648 = vst.msk [vmem:[%s638 + $0x69] sm:$0xff] %vm431, %v615
      %649 = vst.msk [vmem:[%s638 + $0x79] sm:$0xff] %vm431, %v616
      %650 = vst.msk [vmem:[%s638 + $0x81] sm:$0xff] %vm431, %v617
      %651 = vst.msk [vmem:[%s638 + $0x91] sm:$0xff] %vm431, %v618
      %652 = vst.msk [vmem:[%s638 + $0x99] sm:$0xff] %vm431, %v619
      %653 = vst.msk [vmem:[%s638 + $0xa9] sm:$0xff] %vm431, %v620
      %654 = vst.msk [vmem:[%s638 + $0xb1] sm:$0xff] %vm431, %v621
      %655 = vst.msk [vmem:[%s638 + $0xc1] sm:$0xff] %vm431, %v622
      %656 = vst.msk [vmem:[%s638 + $0xc9] sm:$0xff] %vm431, %v623
      %657 = vst.msk [vmem:[%s638 + $0xd9] sm:$0xff] %vm431, %v624
      %658 = vst.msk [vmem:[%s638 + $0xe1] sm:$0xff] %vm431, %v625
      %659 = vst.msk [vmem:[%s638 + $0xf1] sm:$0xff] %vm431, %v626
      %660 = vst.msk [vmem:[%s638 + $0xf9] sm:$0xff] %vm431, %v627
      %661 = vst.msk [vmem:[%s638 + $0x109] sm:$0xff] %vm431, %v628
      %662 = vst.msk [vmem:[%s638 + $0x111] sm:$0xff] %vm431, %v629
      %663 = vst.msk [vmem:[%s638 + $0x121] sm:$0xff] %vm431, %v630
      %664 = vst.msk [vmem:[%s638 + $0x129] sm:$0xff] %vm431, %v631
      %665 = vst.msk [vmem:[%s638 + $0x139] sm:$0xff] %vm431, %v632
      %666 = vst.msk [vmem:[%s638 + $0x141] sm:$0xff] %vm431, %v633
      %667 = vst.msk [vmem:[%s638 + $0x151] sm:$0xff] %vm431, %v634
      %668 = vst.msk [vmem:[%s638 + $0x159] sm:$0xff] %vm431, %v635
      %669 = vst.msk [vmem:[%s638 + $0x169] sm:$0xff] %vm431, %v636
      %670 = vst.msk [vmem:[%s638 + $0x171] sm:$0xff] %vm431, %v637
      %v671 = vld [vmem:[#allocation2] sm:$0xff]
      %v672 = vld [vmem:[#allocation2 + $0x8] sm:$0xff]
      %v673 = vld [vmem:[#allocation2 + $0x18] sm:$0xff]
      %v674 = vld [vmem:[#allocation2 + $0x20] sm:$0xff]
      %v675 = vld [vmem:[#allocation2 + $0x30] sm:$0xff]
      %v676 = vld [vmem:[#allocation2 + $0x38] sm:$0xff]
      %v677 = vld [vmem:[#allocation2 + $0x48] sm:$0xff]
      %v678 = vld [vmem:[#allocation2 + $0x50] sm:$0xff]
      %v679 = vld [vmem:[#allocation2 + $0x60] sm:$0xff]
      %v680 = vld [vmem:[#allocation2 + $0x68] sm:$0xff]
      %v681 = vld [vmem:[#allocation2 + $0x78] sm:$0xff]
      %v682 = vld [vmem:[#allocation2 + $0x80] sm:$0xff]
      %v683 = vld [vmem:[#allocation2 + $0x90] sm:$0xff]
      %v684 = vld [vmem:[#allocation2 + $0x98] sm:$0xff]
      %v685 = vld [vmem:[#allocation2 + $0xa8] sm:$0xff]
      %v686 = vld [vmem:[#allocation2 + $0xb0] sm:$0xff]
      %v687 = vld [vmem:[#allocation2 + $0xc0] sm:$0xff]
      %v688 = vld [vmem:[#allocation2 + $0xc8] sm:$0xff]
      %v689 = vld [vmem:[#allocation2 + $0xd8] sm:$0xff]
      %v690 = vld [vmem:[#allocation2 + $0xe0] sm:$0xff]
      %v691 = vld [vmem:[#allocation2 + $0xf0] sm:$0xff]
      %v692 = vld [vmem:[#allocation2 + $0xf8] sm:$0xff]
      %v693 = vld [vmem:[#allocation2 + $0x108] sm:$0xff]
      %v694 = vld [vmem:[#allocation2 + $0x110] sm:$0xff]
      %v695 = vld [vmem:[#allocation2 + $0x120] sm:$0xff]
      %v696 = vld [vmem:[#allocation2 + $0x128] sm:$0xff]
      %v697 = vld [vmem:[#allocation2 + $0x138] sm:$0xff]
      %v698 = vld [vmem:[#allocation2 + $0x140] sm:$0xff]
      %v699 = vld [vmem:[#allocation2 + $0x150] sm:$0xff]
      %v700 = vld [vmem:[#allocation2 + $0x158] sm:$0xff]
      %v701 = vld [vmem:[#allocation2 + $0x168] sm:$0xff]
      %v702 = vld [vmem:[#allocation2 + $0x170] sm:$0xff]
      %v703 = vld [vmem:[#allocation2 + $0x1b0] sm:$0xff]
      %v704 = vld [vmem:[#allocation2 + $0x1b8] sm:$0xff]
      %v705 = vld [vmem:[#allocation2 + $0x1c8] sm:$0xff]
      %v706 = vld [vmem:[#allocation2 + $0x1d0] sm:$0xff]
      %v707 = vld [vmem:[#allocation2 + $0x1e0] sm:$0xff]
      %v708 = vld [vmem:[#allocation2 + $0x1e8] sm:$0xff]
      %v709 = vld [vmem:[#allocation2 + $0x1f8] sm:$0xff]
      %v710 = vld [vmem:[#allocation2 + $0x200] sm:$0xff]
      %v711 = vld [vmem:[#allocation2 + $0x210] sm:$0xff]
      %v712 = vld [vmem:[#allocation2 + $0x218] sm:$0xff]
      %v713 = vld [vmem:[#allocation2 + $0x228] sm:$0xff]
      %v714 = vld [vmem:[#allocation2 + $0x230] sm:$0xff]
      %v715 = vld [vmem:[#allocation2 + $0x240] sm:$0xff]
      %v716 = vld [vmem:[#allocation2 + $0x248] sm:$0xff]
      %v717 = vld [vmem:[#allocation2 + $0x258] sm:$0xff]
      %v718 = vld [vmem:[#allocation2 + $0x260] sm:$0xff]
      %v719 = vld [vmem:[#allocation2 + $0x270] sm:$0xff]
      %v720 = vld [vmem:[#allocation2 + $0x278] sm:$0xff]
      %v721 = vld [vmem:[#allocation2 + $0x288] sm:$0xff]
      %v722 = vld [vmem:[#allocation2 + $0x290] sm:$0xff]
      %v723 = vld [vmem:[#allocation2 + $0x2a0] sm:$0xff]
      %v724 = vld [vmem:[#allocation2 + $0x2a8] sm:$0xff]
      %v725 = vld [vmem:[#allocation2 + $0x2b8] sm:$0xff]
      %v726 = vld [vmem:[#allocation2 + $0x2c0] sm:$0xff]
      %v727 = vld [vmem:[#allocation2 + $0x2d0] sm:$0xff]
      %v728 = vld [vmem:[#allocation2 + $0x2d8] sm:$0xff]
      %v729 = vld [vmem:[#allocation2 + $0x2e8] sm:$0xff]
      %v730 = vld [vmem:[#allocation2 + $0x2f0] sm:$0xff]
      %v731 = vld [vmem:[#allocation2 + $0x300] sm:$0xff]
      %v732 = vld [vmem:[#allocation2 + $0x308] sm:$0xff]
      %v733 = vld [vmem:[#allocation2 + $0x318] sm:$0xff]
      %v734 = vld [vmem:[#allocation2 + $0x320] sm:$0xff]
      %v735 = vpack.c.bf16 %v672, %v671
      %v736 = vpack.c.bf16 %v674, %v673
      %v737 = vpack.c.bf16 %v676, %v675
      %v738 = vpack.c.bf16 %v678, %v677
      %v739 = vpack.c.bf16 %v680, %v679
      %v740 = vpack.c.bf16 %v682, %v681
      %v741 = vpack.c.bf16 %v684, %v683
      %v742 = vpack.c.bf16 %v686, %v685
      %v743 = vpack.c.bf16 %v688, %v687
      %v744 = vpack.c.bf16 %v690, %v689
      %v745 = vpack.c.bf16 %v692, %v691
      %v746 = vpack.c.bf16 %v694, %v693
      %v747 = vpack.c.bf16 %v696, %v695
      %v748 = vpack.c.bf16 %v698, %v697
      %v749 = vpack.c.bf16 %v700, %v699
      %v750 = vpack.c.bf16 %v702, %v701
      %v751 = vpack.c.bf16 %v704, %v703
      %v752 = vpack.c.bf16 %v706, %v705
      %v753 = vpack.c.bf16 %v708, %v707
      %v754 = vpack.c.bf16 %v710, %v709
      %v755 = vpack.c.bf16 %v712, %v711
      %v756 = vpack.c.bf16 %v714, %v713
      %v757 = vpack.c.bf16 %v716, %v715
      %v758 = vpack.c.bf16 %v718, %v717
      %v759 = vpack.c.bf16 %v720, %v719
      %v760 = vpack.c.bf16 %v722, %v721
      %v761 = vpack.c.bf16 %v724, %v723
      %v762 = vpack.c.bf16 %v726, %v725
      %v763 = vpack.c.bf16 %v728, %v727
      %v764 = vpack.c.bf16 %v730, %v729
      %v765 = vpack.c.bf16 %v732, %v731
      %v766 = vpack.c.bf16 %v734, %v733
      %v799 = vunpack.c.l.b16 %v735
      %v800 = vunpack.c.h.b16 %v735
      %v801 = vunpack.c.l.b16 %v736
      %v802 = vunpack.c.h.b16 %v736
      %v803 = vunpack.c.l.b16 %v737
      %v804 = vunpack.c.h.b16 %v737
      %v805 = vunpack.c.l.b16 %v738
      %v806 = vunpack.c.h.b16 %v738
      %v807 = vunpack.c.l.b16 %v739
      %v808 = vunpack.c.h.b16 %v739
      %v809 = vunpack.c.l.b16 %v740
      %v810 = vunpack.c.h.b16 %v740
      %v811 = vunpack.c.l.b16 %v741
      %v812 = vunpack.c.h.b16 %v741
      %v813 = vunpack.c.l.b16 %v742
      %v814 = vunpack.c.h.b16 %v742
      %v815 = vunpack.c.l.b16 %v743
      %v816 = vunpack.c.h.b16 %v743
      %v817 = vunpack.c.l.b16 %v744
      %v818 = vunpack.c.h.b16 %v744
      %v819 = vunpack.c.l.b16 %v745
      %v820 = vunpack.c.h.b16 %v745
      %v821 = vunpack.c.l.b16 %v746
      %v822 = vunpack.c.h.b16 %v746
      %v823 = vunpack.c.l.b16 %v747
      %v824 = vunpack.c.h.b16 %v747
      %v825 = vunpack.c.l.b16 %v748
      %v826 = vunpack.c.h.b16 %v748
      %v827 = vunpack.c.l.b16 %v749
      %v828 = vunpack.c.h.b16 %v749
      %v829 = vunpack.c.l.b16 %v750
      %v830 = vunpack.c.h.b16 %v750
      %v831 = vunpack.c.l.b16 %v751
      %v832 = vunpack.c.h.b16 %v751
      %v833 = vunpack.c.l.b16 %v752
      %v834 = vunpack.c.h.b16 %v752
      %v835 = vunpack.c.l.b16 %v753
      %v836 = vunpack.c.h.b16 %v753
      %v837 = vunpack.c.l.b16 %v754
      %v838 = vunpack.c.h.b16 %v754
      %v839 = vunpack.c.l.b16 %v755
      %v840 = vunpack.c.h.b16 %v755
      %v841 = vunpack.c.l.b16 %v756
      %v842 = vunpack.c.h.b16 %v756
      %v843 = vunpack.c.l.b16 %v757
      %v844 = vunpack.c.h.b16 %v757
      %v845 = vunpack.c.l.b16 %v758
      %v846 = vunpack.c.h.b16 %v758
      %v847 = vunpack.c.l.b16 %v759
      %v848 = vunpack.c.h.b16 %v759
      %v849 = vunpack.c.l.b16 %v760
      %v850 = vunpack.c.h.b16 %v760
      %v851 = vunpack.c.l.b16 %v761
      %v852 = vunpack.c.h.b16 %v761
      %v853 = vunpack.c.l.b16 %v762
      %v854 = vunpack.c.h.b16 %v762
      %v855 = vunpack.c.l.b16 %v763
      %v856 = vunpack.c.h.b16 %v763
      %v857 = vunpack.c.l.b16 %v764
      %v858 = vunpack.c.h.b16 %v764
      %v859 = vunpack.c.l.b16 %v765
      %v860 = vunpack.c.h.b16 %v765
      %v861 = vunpack.c.l.b16 %v766
      %v862 = vunpack.c.h.b16 %v766
      %v863 = vpack.c.b16 %v799, %v799
      %v864 = vpack.c.b16 %v800, %v800
      %v865 = vpack.c.b16 %v801, %v801
      %v866 = vpack.c.b16 %v802, %v802
      %v867 = vpack.c.b16 %v803, %v803
      %v868 = vpack.c.b16 %v804, %v804
      %v869 = vpack.c.b16 %v805, %v805
      %v870 = vpack.c.b16 %v806, %v806
      %v871 = vpack.c.b16 %v807, %v807
      %v872 = vpack.c.b16 %v808, %v808
      %v873 = vpack.c.b16 %v809, %v809
      %v874 = vpack.c.b16 %v810, %v810
      %v875 = vpack.c.b16 %v811, %v811
      %v876 = vpack.c.b16 %v812, %v812
      %v877 = vpack.c.b16 %v813, %v813
      %v878 = vpack.c.b16 %v814, %v814
      %v879 = vpack.c.b16 %v815, %v815
      %v880 = vpack.c.b16 %v816, %v816
      %v881 = vpack.c.b16 %v817, %v817
      %v882 = vpack.c.b16 %v818, %v818
      %v883 = vpack.c.b16 %v819, %v819
      %v884 = vpack.c.b16 %v820, %v820
      %v885 = vpack.c.b16 %v821, %v821
      %v886 = vpack.c.b16 %v822, %v822
      %v887 = vpack.c.b16 %v823, %v823
      %v888 = vpack.c.b16 %v824, %v824
      %v889 = vpack.c.b16 %v825, %v825
      %v890 = vpack.c.b16 %v826, %v826
      %v891 = vpack.c.b16 %v827, %v827
      %v892 = vpack.c.b16 %v828, %v828
      %v893 = vpack.c.b16 %v829, %v829
      %v894 = vpack.c.b16 %v830, %v830
      %v895 = vpack.c.b16 %v831, %v831
      %v896 = vpack.c.b16 %v832, %v832
      %v897 = vpack.c.b16 %v833, %v833
      %v898 = vpack.c.b16 %v834, %v834
      %v899 = vpack.c.b16 %v835, %v835
      %v900 = vpack.c.b16 %v836, %v836
      %v901 = vpack.c.b16 %v837, %v837
      %v902 = vpack.c.b16 %v838, %v838
      %v903 = vpack.c.b16 %v839, %v839
      %v904 = vpack.c.b16 %v840, %v840
      %v905 = vpack.c.b16 %v841, %v841
      %v906 = vpack.c.b16 %v842, %v842
      %v907 = vpack.c.b16 %v843, %v843
      %v908 = vpack.c.b16 %v844, %v844
      %v909 = vpack.c.b16 %v845, %v845
      %v910 = vpack.c.b16 %v846, %v846
      %v911 = vpack.c.b16 %v847, %v847
      %v912 = vpack.c.b16 %v848, %v848
      %v913 = vpack.c.b16 %v849, %v849
      %v914 = vpack.c.b16 %v850, %v850
      %v915 = vpack.c.b16 %v851, %v851
      %v916 = vpack.c.b16 %v852, %v852
      %v917 = vpack.c.b16 %v853, %v853
      %v918 = vpack.c.b16 %v854, %v854
      %v919 = vpack.c.b16 %v855, %v855
      %v920 = vpack.c.b16 %v856, %v856
      %v921 = vpack.c.b16 %v857, %v857
      %v922 = vpack.c.b16 %v858, %v858
      %v923 = vpack.c.b16 %v859, %v859
      %v924 = vpack.c.b16 %v860, %v860
      %v925 = vpack.c.b16 %v861, %v861
      %v926 = vpack.c.b16 %v862, %v862
      %vm991 = vcmask 19456
      %992 = vst.msk [vmem:[#allocation7] sm:$0xf] %vm991, %v863
      %993 = vst.msk [vmem:[#allocation7 + $0x4] sm:$0xf] %vm991, %v864
      %994 = vst.msk [vmem:[#allocation7 + $0x8] sm:$0xf] %vm991, %v865
      %995 = vst.msk [vmem:[#allocation7 + $0xc] sm:$0xf] %vm991, %v866
      %996 = vst.msk [vmem:[#allocation7 + $0x10] sm:$0xf] %vm991, %v867
      %997 = vst.msk [vmem:[#allocation7 + $0x14] sm:$0xf] %vm991, %v868
      %998 = vst.msk [vmem:[#allocation7 + $0x18] sm:$0xf] %vm991, %v869
      %999 = vst.msk [vmem:[#allocation7 + $0x1c] sm:$0xf] %vm991, %v870
      %1000 = vst.msk [vmem:[#allocation7 + $0x20] sm:$0xf] %vm991, %v871
      %1001 = vst.msk [vmem:[#allocation7 + $0x24] sm:$0xf] %vm991, %v872
      %1002 = vst.msk [vmem:[#allocation7 + $0x28] sm:$0xf] %vm991, %v873
      %1003 = vst.msk [vmem:[#allocation7 + $0x2c] sm:$0xf] %vm991, %v874
      %1004 = vst.msk [vmem:[#allocation7 + $0x30] sm:$0xf] %vm991, %v875
      %1005 = vst.msk [vmem:[#allocation7 + $0x34] sm:$0xf] %vm991, %v876
      %1006 = vst.msk [vmem:[#allocation7 + $0x38] sm:$0xf] %vm991, %v877
      %1007 = vst.msk [vmem:[#allocation7 + $0x3c] sm:$0xf] %vm991, %v878
      %1008 = vst.msk [vmem:[#allocation7 + $0x40] sm:$0xf] %vm991, %v879
      %1009 = vst.msk [vmem:[#allocation7 + $0x44] sm:$0xf] %vm991, %v880
      %1010 = vst.msk [vmem:[#allocation7 + $0x48] sm:$0xf] %vm991, %v881
      %1011 = vst.msk [vmem:[#allocation7 + $0x4c] sm:$0xf] %vm991, %v882
      %1012 = vst.msk [vmem:[#allocation7 + $0x50] sm:$0xf] %vm991, %v883
      %1013 = vst.msk [vmem:[#allocation7 + $0x54] sm:$0xf] %vm991, %v884
      %1014 = vst.msk [vmem:[#allocation7 + $0x58] sm:$0xf] %vm991, %v885
      %1015 = vst.msk [vmem:[#allocation7 + $0x5c] sm:$0xf] %vm991, %v886
      %1016 = vst.msk [vmem:[#allocation7 + $0x60] sm:$0xf] %vm991, %v887
      %1017 = vst.msk [vmem:[#allocation7 + $0x64] sm:$0xf] %vm991, %v888
      %1018 = vst.msk [vmem:[#allocation7 + $0x68] sm:$0xf] %vm991, %v889
      %1019 = vst.msk [vmem:[#allocation7 + $0x6c] sm:$0xf] %vm991, %v890
      %1020 = vst.msk [vmem:[#allocation7 + $0x70] sm:$0xf] %vm991, %v891
      %1021 = vst.msk [vmem:[#allocation7 + $0x74] sm:$0xf] %vm991, %v892
      %1022 = vst.msk [vmem:[#allocation7 + $0x78] sm:$0xf] %vm991, %v893
      %1023 = vst.msk [vmem:[#allocation7 + $0x7c] sm:$0xf] %vm991, %v894
      %1024 = vst.msk [vmem:[#allocation7 + $0x80] sm:$0xf] %vm991, %v895
      %1025 = vst.msk [vmem:[#allocation7 + $0x84] sm:$0xf] %vm991, %v896
      %1026 = vst.msk [vmem:[#allocation7 + $0x88] sm:$0xf] %vm991, %v897
      %1027 = vst.msk [vmem:[#allocation7 + $0x8c] sm:$0xf] %vm991, %v898
      %1028 = vst.msk [vmem:[#allocation7 + $0x90] sm:$0xf] %vm991, %v899
      %1029 = vst.msk [vmem:[#allocation7 + $0x94] sm:$0xf] %vm991, %v900
      %1030 = vst.msk [vmem:[#allocation7 + $0x98] sm:$0xf] %vm991, %v901
      %1031 = vst.msk [vmem:[#allocation7 + $0x9c] sm:$0xf] %vm991, %v902
      %1032 = vst.msk [vmem:[#allocation7 + $0xa0] sm:$0xf] %vm991, %v903
      %1033 = vst.msk [vmem:[#allocation7 + $0xa4] sm:$0xf] %vm991, %v904
      %1034 = vst.msk [vmem:[#allocation7 + $0xa8] sm:$0xf] %vm991, %v905
      %1035 = vst.msk [vmem:[#allocation7 + $0xac] sm:$0xf] %vm991, %v906
      %1036 = vst.msk [vmem:[#allocation7 + $0xb0] sm:$0xf] %vm991, %v907
      %1037 = vst.msk [vmem:[#allocation7 + $0xb4] sm:$0xf] %vm991, %v908
      %1038 = vst.msk [vmem:[#allocation7 + $0xb8] sm:$0xf] %vm991, %v909
      %1039 = vst.msk [vmem:[#allocation7 + $0xbc] sm:$0xf] %vm991, %v910
      %1040 = vst.msk [vmem:[#allocation7 + $0xc0] sm:$0xf] %vm991, %v911
      %1041 = vst.msk [vmem:[#allocation7 + $0xc4] sm:$0xf] %vm991, %v912
      %1042 = vst.msk [vmem:[#allocation7 + $0xc8] sm:$0xf] %vm991, %v913
      %1043 = vst.msk [vmem:[#allocation7 + $0xcc] sm:$0xf] %vm991, %v914
      %1044 = vst.msk [vmem:[#allocation7 + $0xd0] sm:$0xf] %vm991, %v915
      %1045 = vst.msk [vmem:[#allocation7 + $0xd4] sm:$0xf] %vm991, %v916
      %1046 = vst.msk [vmem:[#allocation7 + $0xd8] sm:$0xf] %vm991, %v917
      %1047 = vst.msk [vmem:[#allocation7 + $0xdc] sm:$0xf] %vm991, %v918
      %1048 = vst.msk [vmem:[#allocation7 + $0xe0] sm:$0xf] %vm991, %v919
      %1049 = vst.msk [vmem:[#allocation7 + $0xe4] sm:$0xf] %vm991, %v920
      %1050 = vst.msk [vmem:[#allocation7 + $0xe8] sm:$0xf] %vm991, %v921
      %1051 = vst.msk [vmem:[#allocation7 + $0xec] sm:$0xf] %vm991, %v922
      %1052 = vst.msk [vmem:[#allocation7 + $0xf0] sm:$0xf] %vm991, %v923
      %1053 = vst.msk [vmem:[#allocation7 + $0xf4] sm:$0xf] %vm991, %v924
      %1054 = vst.msk [vmem:[#allocation7 + $0xf8] sm:$0xf] %vm991, %v925
      %1055 = vst.msk [vmem:[#allocation7 + $0xfc] sm:$0xf] %vm991, %v926
      %v1056 = vld [vmem:[#allocation2 + $0x1] sm:$0xff]
      %v1057 = vld [vmem:[#allocation2 + $0x9] sm:$0xff]
      %v1058 = vld [vmem:[#allocation2 + $0x19] sm:$0xff]
      %v1059 = vld [vmem:[#allocation2 + $0x21] sm:$0xff]
      %v1060 = vld [vmem:[#allocation2 + $0x31] sm:$0xff]
      %v1061 = vld [vmem:[#allocation2 + $0x39] sm:$0xff]
      %v1062 = vld [vmem:[#allocation2 + $0x49] sm:$0xff]
      %v1063 = vld [vmem:[#allocation2 + $0x51] sm:$0xff]
      %v1064 = vld [vmem:[#allocation2 + $0x61] sm:$0xff]
      %v1065 = vld [vmem:[#allocation2 + $0x69] sm:$0xff]
      %v1066 = vld [vmem:[#allocation2 + $0x79] sm:$0xff]
      %v1067 = vld [vmem:[#allocation2 + $0x81] sm:$0xff]
      %v1068 = vld [vmem:[#allocation2 + $0x91] sm:$0xff]
      %v1069 = vld [vmem:[#allocation2 + $0x99] sm:$0xff]
      %v1070 = vld [vmem:[#allocation2 + $0xa9] sm:$0xff]
      %v1071 = vld [vmem:[#allocation2 + $0xb1] sm:$0xff]
      %v1072 = vld [vmem:[#allocation2 + $0xc1] sm:$0xff]
      %v1073 = vld [vmem:[#allocation2 + $0xc9] sm:$0xff]
      %v1074 = vld [vmem:[#allocation2 + $0xd9] sm:$0xff]
      %v1075 = vld [vmem:[#allocation2 + $0xe1] sm:$0xff]
      %v1076 = vld [vmem:[#allocation2 + $0xf1] sm:$0xff]
      %v1077 = vld [vmem:[#allocation2 + $0xf9] sm:$0xff]
      %v1078 = vld [vmem:[#allocation2 + $0x109] sm:$0xff]
      %v1079 = vld [vmem:[#allocation2 + $0x111] sm:$0xff]
      %v1080 = vld [vmem:[#allocation2 + $0x121] sm:$0xff]
      %v1081 = vld [vmem:[#allocation2 + $0x129] sm:$0xff]
      %v1082 = vld [vmem:[#allocation2 + $0x139] sm:$0xff]
      %v1083 = vld [vmem:[#allocation2 + $0x141] sm:$0xff]
      %v1084 = vld [vmem:[#allocation2 + $0x151] sm:$0xff]
      %v1085 = vld [vmem:[#allocation2 + $0x159] sm:$0xff]
      %v1086 = vld [vmem:[#allocation2 + $0x169] sm:$0xff]
      %v1087 = vld [vmem:[#allocation2 + $0x171] sm:$0xff]
      %v1088 = vld [vmem:[#allocation2 + $0x1b1] sm:$0xff]
      %v1089 = vld [vmem:[#allocation2 + $0x1b9] sm:$0xff]
      %v1090 = vld [vmem:[#allocation2 + $0x1c9] sm:$0xff]
      %v1091 = vld [vmem:[#allocation2 + $0x1d1] sm:$0xff]
      %v1092 = vld [vmem:[#allocation2 + $0x1e1] sm:$0xff]
      %v1093 = vld [vmem:[#allocation2 + $0x1e9] sm:$0xff]
      %v1094 = vld [vmem:[#allocation2 + $0x1f9] sm:$0xff]
      %v1095 = vld [vmem:[#allocation2 + $0x201] sm:$0xff]
      %v1096 = vld [vmem:[#allocation2 + $0x211] sm:$0xff]
      %v1097 = vld [vmem:[#allocation2 + $0x219] sm:$0xff]
      %v1098 = vld [vmem:[#allocation2 + $0x229] sm:$0xff]
      %v1099 = vld [vmem:[#allocation2 + $0x231] sm:$0xff]
      %v1100 = vld [vmem:[#allocation2 + $0x241] sm:$0xff]
      %v1101 = vld [vmem:[#allocation2 + $0x249] sm:$0xff]
      %v1102 = vld [vmem:[#allocation2 + $0x259] sm:$0xff]
      %v1103 = vld [vmem:[#allocation2 + $0x261] sm:$0xff]
      %v1104 = vld [vmem:[#allocation2 + $0x271] sm:$0xff]
      %v1105 = vld [vmem:[#allocation2 + $0x279] sm:$0xff]
      %v1106 = vld [vmem:[#allocation2 + $0x289] sm:$0xff]
      %v1107 = vld [vmem:[#allocation2 + $0x291] sm:$0xff]
      %v1108 = vld [vmem:[#allocation2 + $0x2a1] sm:$0xff]
      %v1109 = vld [vmem:[#allocation2 + $0x2a9] sm:$0xff]
      %v1110 = vld [vmem:[#allocation2 + $0x2b9] sm:$0xff]
      %v1111 = vld [vmem:[#allocation2 + $0x2c1] sm:$0xff]
      %v1112 = vld [vmem:[#allocation2 + $0x2d1] sm:$0xff]
      %v1113 = vld [vmem:[#allocation2 + $0x2d9] sm:$0xff]
      %v1114 = vld [vmem:[#allocation2 + $0x2e9] sm:$0xff]
      %v1115 = vld [vmem:[#allocation2 + $0x2f1] sm:$0xff]
      %v1116 = vld [vmem:[#allocation2 + $0x301] sm:$0xff]
      %v1117 = vld [vmem:[#allocation2 + $0x309] sm:$0xff]
      %v1118 = vld [vmem:[#allocation2 + $0x319] sm:$0xff]
      %v1119 = vld [vmem:[#allocation2 + $0x321] sm:$0xff]
      %v1120 = vpack.c.bf16 %v1057, %v1056
      %v1121 = vpack.c.bf16 %v1059, %v1058
      %v1122 = vpack.c.bf16 %v1061, %v1060
      %v1123 = vpack.c.bf16 %v1063, %v1062
      %v1124 = vpack.c.bf16 %v1065, %v1064
      %v1125 = vpack.c.bf16 %v1067, %v1066
      %v1126 = vpack.c.bf16 %v1069, %v1068
      %v1127 = vpack.c.bf16 %v1071, %v1070
      %v1128 = vpack.c.bf16 %v1073, %v1072
      %v1129 = vpack.c.bf16 %v1075, %v1074
      %v1130 = vpack.c.bf16 %v1077, %v1076
      %v1131 = vpack.c.bf16 %v1079, %v1078
      %v1132 = vpack.c.bf16 %v1081, %v1080
      %v1133 = vpack.c.bf16 %v1083, %v1082
      %v1134 = vpack.c.bf16 %v1085, %v1084
      %v1135 = vpack.c.bf16 %v1087, %v1086
      %v1136 = vpack.c.bf16 %v1089, %v1088
      %v1137 = vpack.c.bf16 %v1091, %v1090
      %v1138 = vpack.c.bf16 %v1093, %v1092
      %v1139 = vpack.c.bf16 %v1095, %v1094
      %v1140 = vpack.c.bf16 %v1097, %v1096
      %v1141 = vpack.c.bf16 %v1099, %v1098
      %v1142 = vpack.c.bf16 %v1101, %v1100
      %v1143 = vpack.c.bf16 %v1103, %v1102
      %v1144 = vpack.c.bf16 %v1105, %v1104
      %v1145 = vpack.c.bf16 %v1107, %v1106
      %v1146 = vpack.c.bf16 %v1109, %v1108
      %v1147 = vpack.c.bf16 %v1111, %v1110
      %v1148 = vpack.c.bf16 %v1113, %v1112
      %v1149 = vpack.c.bf16 %v1115, %v1114
      %v1150 = vpack.c.bf16 %v1117, %v1116
      %v1151 = vpack.c.bf16 %v1119, %v1118
      %v1184 = vunpack.c.l.b16 %v1120
      %v1185 = vunpack.c.h.b16 %v1120
      %v1186 = vunpack.c.l.b16 %v1121
      %v1187 = vunpack.c.h.b16 %v1121
      %v1188 = vunpack.c.l.b16 %v1122
      %v1189 = vunpack.c.h.b16 %v1122
      %v1190 = vunpack.c.l.b16 %v1123
      %v1191 = vunpack.c.h.b16 %v1123
      %v1192 = vunpack.c.l.b16 %v1124
      %v1193 = vunpack.c.h.b16 %v1124
      %v1194 = vunpack.c.l.b16 %v1125
      %v1195 = vunpack.c.h.b16 %v1125
      %v1196 = vunpack.c.l.b16 %v1126
      %v1197 = vunpack.c.h.b16 %v1126
      %v1198 = vunpack.c.l.b16 %v1127
      %v1199 = vunpack.c.h.b16 %v1127
      %v1200 = vunpack.c.l.b16 %v1128
      %v1201 = vunpack.c.h.b16 %v1128
      %v1202 = vunpack.c.l.b16 %v1129
      %v1203 = vunpack.c.h.b16 %v1129
      %v1204 = vunpack.c.l.b16 %v1130
      %v1205 = vunpack.c.h.b16 %v1130
      %v1206 = vunpack.c.l.b16 %v1131
      %v1207 = vunpack.c.h.b16 %v1131
      %v1208 = vunpack.c.l.b16 %v1132
      %v1209 = vunpack.c.h.b16 %v1132
      %v1210 = vunpack.c.l.b16 %v1133
      %v1211 = vunpack.c.h.b16 %v1133
      %v1212 = vunpack.c.l.b16 %v1134
      %v1213 = vunpack.c.h.b16 %v1134
      %v1214 = vunpack.c.l.b16 %v1135
      %v1215 = vunpack.c.h.b16 %v1135
      %v1216 = vunpack.c.l.b16 %v1136
      %v1217 = vunpack.c.h.b16 %v1136
      %v1218 = vunpack.c.l.b16 %v1137
      %v1219 = vunpack.c.h.b16 %v1137
      %v1220 = vunpack.c.l.b16 %v1138
      %v1221 = vunpack.c.h.b16 %v1138
      %v1222 = vunpack.c.l.b16 %v1139
      %v1223 = vunpack.c.h.b16 %v1139
      %v1224 = vunpack.c.l.b16 %v1140
      %v1225 = vunpack.c.h.b16 %v1140
      %v1226 = vunpack.c.l.b16 %v1141
      %v1227 = vunpack.c.h.b16 %v1141
      %v1228 = vunpack.c.l.b16 %v1142
      %v1229 = vunpack.c.h.b16 %v1142
      %v1230 = vunpack.c.l.b16 %v1143
      %v1231 = vunpack.c.h.b16 %v1143
      %v1232 = vunpack.c.l.b16 %v1144
      %v1233 = vunpack.c.h.b16 %v1144
      %v1234 = vunpack.c.l.b16 %v1145
      %v1235 = vunpack.c.h.b16 %v1145
      %v1236 = vunpack.c.l.b16 %v1146
      %v1237 = vunpack.c.h.b16 %v1146
      %v1238 = vunpack.c.l.b16 %v1147
      %v1239 = vunpack.c.h.b16 %v1147
      %v1240 = vunpack.c.l.b16 %v1148
      %v1241 = vunpack.c.h.b16 %v1148
      %v1242 = vunpack.c.l.b16 %v1149
      %v1243 = vunpack.c.h.b16 %v1149
      %v1244 = vunpack.c.l.b16 %v1150
      %v1245 = vunpack.c.h.b16 %v1150
      %v1246 = vunpack.c.l.b16 %v1151
      %v1247 = vunpack.c.h.b16 %v1151
      %v1248 = vpack.c.b16 %v1184, %v1184
      %v1249 = vpack.c.b16 %v1185, %v1185
      %v1250 = vpack.c.b16 %v1186, %v1186
      %v1251 = vpack.c.b16 %v1187, %v1187
      %v1252 = vpack.c.b16 %v1188, %v1188
      %v1253 = vpack.c.b16 %v1189, %v1189
      %v1254 = vpack.c.b16 %v1190, %v1190
      %v1255 = vpack.c.b16 %v1191, %v1191
      %v1256 = vpack.c.b16 %v1192, %v1192
      %v1257 = vpack.c.b16 %v1193, %v1193
      %v1258 = vpack.c.b16 %v1194, %v1194
      %v1259 = vpack.c.b16 %v1195, %v1195
      %v1260 = vpack.c.b16 %v1196, %v1196
      %v1261 = vpack.c.b16 %v1197, %v1197
      %v1262 = vpack.c.b16 %v1198, %v1198
      %v1263 = vpack.c.b16 %v1199, %v1199
      %v1264 = vpack.c.b16 %v1200, %v1200
      %v1265 = vpack.c.b16 %v1201, %v1201
      %v1266 = vpack.c.b16 %v1202, %v1202
      %v1267 = vpack.c.b16 %v1203, %v1203
      %v1268 = vpack.c.b16 %v1204, %v1204
      %v1269 = vpack.c.b16 %v1205, %v1205
      %v1270 = vpack.c.b16 %v1206, %v1206
      %v1271 = vpack.c.b16 %v1207, %v1207
      %v1272 = vpack.c.b16 %v1208, %v1208
      %v1273 = vpack.c.b16 %v1209, %v1209
      %v1274 = vpack.c.b16 %v1210, %v1210
      %v1275 = vpack.c.b16 %v1211, %v1211
      %v1276 = vpack.c.b16 %v1212, %v1212
      %v1277 = vpack.c.b16 %v1213, %v1213
      %v1278 = vpack.c.b16 %v1214, %v1214
      %v1279 = vpack.c.b16 %v1215, %v1215
      %v1280 = vpack.c.b16 %v1216, %v1216
      %v1281 = vpack.c.b16 %v1217, %v1217
      %v1282 = vpack.c.b16 %v1218, %v1218
      %v1283 = vpack.c.b16 %v1219, %v1219
      %v1284 = vpack.c.b16 %v1220, %v1220
      %v1285 = vpack.c.b16 %v1221, %v1221
      %v1286 = vpack.c.b16 %v1222, %v1222
      %v1287 = vpack.c.b16 %v1223, %v1223
      %v1288 = vpack.c.b16 %v1224, %v1224
      %v1289 = vpack.c.b16 %v1225, %v1225
      %v1290 = vpack.c.b16 %v1226, %v1226
      %v1291 = vpack.c.b16 %v1227, %v1227
      %v1292 = vpack.c.b16 %v1228, %v1228
      %v1293 = vpack.c.b16 %v1229, %v1229
      %v1294 = vpack.c.b16 %v1230, %v1230
      %v1295 = vpack.c.b16 %v1231, %v1231
      %v1296 = vpack.c.b16 %v1232, %v1232
      %v1297 = vpack.c.b16 %v1233, %v1233
      %v1298 = vpack.c.b16 %v1234, %v1234
      %v1299 = vpack.c.b16 %v1235, %v1235
      %v1300 = vpack.c.b16 %v1236, %v1236
      %v1301 = vpack.c.b16 %v1237, %v1237
      %v1302 = vpack.c.b16 %v1238, %v1238
      %v1303 = vpack.c.b16 %v1239, %v1239
      %v1304 = vpack.c.b16 %v1240, %v1240
      %v1305 = vpack.c.b16 %v1241, %v1241
      %v1306 = vpack.c.b16 %v1242, %v1242
      %v1307 = vpack.c.b16 %v1243, %v1243
      %v1308 = vpack.c.b16 %v1244, %v1244
      %v1309 = vpack.c.b16 %v1245, %v1245
      %v1310 = vpack.c.b16 %v1246, %v1246
      %v1311 = vpack.c.b16 %v1247, %v1247
      %1312 = vrot.lane.b32.xlu0 %v1248, 3
      %v1313 = vpop.permute.xlu0 %1312
      %1314 = vrot.lane.b32.xlu0 %v1249, 3
      %v1315 = vpop.permute.xlu0 %1314
      %1316 = vrot.lane.b32.xlu0 %v1250, 3
      %v1317 = vpop.permute.xlu0 %1316
      %1318 = vrot.lane.b32.xlu0 %v1251, 3
      %v1319 = vpop.permute.xlu0 %1318
      %1320 = vrot.lane.b32.xlu0 %v1252, 3
      %v1321 = vpop.permute.xlu0 %1320
      %1322 = vrot.lane.b32.xlu0 %v1253, 3
      %v1323 = vpop.permute.xlu0 %1322
      %1324 = vrot.lane.b32.xlu0 %v1254, 3
      %v1325 = vpop.permute.xlu0 %1324
      %1326 = vrot.lane.b32.xlu0 %v1255, 3
      %v1327 = vpop.permute.xlu0 %1326
      %1328 = vrot.lane.b32.xlu0 %v1256, 3
      %v1329 = vpop.permute.xlu0 %1328
      %1330 = vrot.lane.b32.xlu0 %v1257, 3
      %v1331 = vpop.permute.xlu0 %1330
      %1332 = vrot.lane.b32.xlu0 %v1258, 3
      %v1333 = vpop.permute.xlu0 %1332
      %1334 = vrot.lane.b32.xlu0 %v1259, 3
      %v1335 = vpop.permute.xlu0 %1334
      %1336 = vrot.lane.b32.xlu0 %v1260, 3
      %v1337 = vpop.permute.xlu0 %1336
      %1338 = vrot.lane.b32.xlu0 %v1261, 3
      %v1339 = vpop.permute.xlu0 %1338
      %1340 = vrot.lane.b32.xlu0 %v1262, 3
      %v1341 = vpop.permute.xlu0 %1340
      %1342 = vrot.lane.b32.xlu0 %v1263, 3
      %v1343 = vpop.permute.xlu0 %1342
      %1344 = vrot.lane.b32.xlu0 %v1264, 3
      %v1345 = vpop.permute.xlu0 %1344
      %1346 = vrot.lane.b32.xlu0 %v1265, 3
      %v1347 = vpop.permute.xlu0 %1346
      %1348 = vrot.lane.b32.xlu0 %v1266, 3
      %v1349 = vpop.permute.xlu0 %1348
      %1350 = vrot.lane.b32.xlu0 %v1267, 3
      %v1351 = vpop.permute.xlu0 %1350
      %1352 = vrot.lane.b32.xlu0 %v1268, 3
      %v1353 = vpop.permute.xlu0 %1352
      %1354 = vrot.lane.b32.xlu0 %v1269, 3
      %v1355 = vpop.permute.xlu0 %1354
      %1356 = vrot.lane.b32.xlu0 %v1270, 3
      %v1357 = vpop.permute.xlu0 %1356
      %1358 = vrot.lane.b32.xlu0 %v1271, 3
      %v1359 = vpop.permute.xlu0 %1358
      %1360 = vrot.lane.b32.xlu0 %v1272, 3
      %v1361 = vpop.permute.xlu0 %1360
      %1362 = vrot.lane.b32.xlu0 %v1273, 3
      %v1363 = vpop.permute.xlu0 %1362
      %1364 = vrot.lane.b32.xlu0 %v1274, 3
      %v1365 = vpop.permute.xlu0 %1364
      %1366 = vrot.lane.b32.xlu0 %v1275, 3
      %v1367 = vpop.permute.xlu0 %1366
      %1368 = vrot.lane.b32.xlu0 %v1276, 3
      %v1369 = vpop.permute.xlu0 %1368
      %1370 = vrot.lane.b32.xlu0 %v1277, 3
      %v1371 = vpop.permute.xlu0 %1370
      %1372 = vrot.lane.b32.xlu0 %v1278, 3
      %v1373 = vpop.permute.xlu0 %1372
      %1374 = vrot.lane.b32.xlu0 %v1279, 3
      %v1375 = vpop.permute.xlu0 %1374
      %1376 = vrot.lane.b32.xlu0 %v1280, 3
      %v1377 = vpop.permute.xlu0 %1376
      %1378 = vrot.lane.b32.xlu0 %v1281, 3
      %v1379 = vpop.permute.xlu0 %1378
      %1380 = vrot.lane.b32.xlu0 %v1282, 3
      %v1381 = vpop.permute.xlu0 %1380
      %1382 = vrot.lane.b32.xlu0 %v1283, 3
      %v1383 = vpop.permute.xlu0 %1382
      %1384 = vrot.lane.b32.xlu0 %v1284, 3
      %v1385 = vpop.permute.xlu0 %1384
      %1386 = vrot.lane.b32.xlu0 %v1285, 3
      %v1387 = vpop.permute.xlu0 %1386
      %1388 = vrot.lane.b32.xlu0 %v1286, 3
      %v1389 = vpop.permute.xlu0 %1388
      %1390 = vrot.lane.b32.xlu0 %v1287, 3
      %v1391 = vpop.permute.xlu0 %1390
      %1392 = vrot.lane.b32.xlu0 %v1288, 3
      %v1393 = vpop.permute.xlu0 %1392
      %1394 = vrot.lane.b32.xlu0 %v1289, 3
      %v1395 = vpop.permute.xlu0 %1394
      %1396 = vrot.lane.b32.xlu0 %v1290, 3
      %v1397 = vpop.permute.xlu0 %1396
      %1398 = vrot.lane.b32.xlu0 %v1291, 3
      %v1399 = vpop.permute.xlu0 %1398
      %1400 = vrot.lane.b32.xlu0 %v1292, 3
      %v1401 = vpop.permute.xlu0 %1400
      %1402 = vrot.lane.b32.xlu0 %v1293, 3
      %v1403 = vpop.permute.xlu0 %1402
      %1404 = vrot.lane.b32.xlu0 %v1294, 3
      %v1405 = vpop.permute.xlu0 %1404
      %1406 = vrot.lane.b32.xlu0 %v1295, 3
      %v1407 = vpop.permute.xlu0 %1406
      %1408 = vrot.lane.b32.xlu0 %v1296, 3
      %v1409 = vpop.permute.xlu0 %1408
      %1410 = vrot.lane.b32.xlu0 %v1297, 3
      %v1411 = vpop.permute.xlu0 %1410
      %1412 = vrot.lane.b32.xlu0 %v1298, 3
      %v1413 = vpop.permute.xlu0 %1412
      %1414 = vrot.lane.b32.xlu0 %v1299, 3
      %v1415 = vpop.permute.xlu0 %1414
      %1416 = vrot.lane.b32.xlu0 %v1300, 3
      %v1417 = vpop.permute.xlu0 %1416
      %1418 = vrot.lane.b32.xlu0 %v1301, 3
      %v1419 = vpop.permute.xlu0 %1418
      %1420 = vrot.lane.b32.xlu0 %v1302, 3
      %v1421 = vpop.permute.xlu0 %1420
      %1422 = vrot.lane.b32.xlu0 %v1303, 3
      %v1423 = vpop.permute.xlu0 %1422
      %1424 = vrot.lane.b32.xlu0 %v1304, 3
      %v1425 = vpop.permute.xlu0 %1424
      %1426 = vrot.lane.b32.xlu0 %v1305, 3
      %v1427 = vpop.permute.xlu0 %1426
      %1428 = vrot.lane.b32.xlu0 %v1306, 3
      %v1429 = vpop.permute.xlu0 %1428
      %1430 = vrot.lane.b32.xlu0 %v1307, 3
      %v1431 = vpop.permute.xlu0 %1430
      %1432 = vrot.lane.b32.xlu0 %v1308, 3
      %v1433 = vpop.permute.xlu0 %1432
      %1434 = vrot.lane.b32.xlu0 %v1309, 3
      %v1435 = vpop.permute.xlu0 %1434
      %1436 = vrot.lane.b32.xlu0 %v1310, 3
      %v1437 = vpop.permute.xlu0 %1436
      %1438 = vrot.lane.b32.xlu0 %v1311, 3
      %v1439 = vpop.permute.xlu0 %1438
      %vm1504 = vcmask 44056
      %1505 = vst.msk [vmem:[#allocation7] sm:$0xf] %vm1504, %v1313
      %1506 = vst.msk [vmem:[#allocation7 + $0x4] sm:$0xf] %vm1504, %v1315
      %1507 = vst.msk [vmem:[#allocation7 + $0x8] sm:$0xf] %vm1504, %v1317
      %1508 = vst.msk [vmem:[#allocation7 + $0xc] sm:$0xf] %vm1504, %v1319
      %1509 = vst.msk [vmem:[#allocation7 + $0x10] sm:$0xf] %vm1504, %v1321
      %1510 = vst.msk [vmem:[#allocation7 + $0x14] sm:$0xf] %vm1504, %v1323
      %1511 = vst.msk [vmem:[#allocation7 + $0x18] sm:$0xf] %vm1504, %v1325
      %1512 = vst.msk [vmem:[#allocation7 + $0x1c] sm:$0xf] %vm1504, %v1327
      %1513 = vst.msk [vmem:[#allocation7 + $0x20] sm:$0xf] %vm1504, %v1329
      %1514 = vst.msk [vmem:[#allocation7 + $0x24] sm:$0xf] %vm1504, %v1331
      %1515 = vst.msk [vmem:[#allocation7 + $0x28] sm:$0xf] %vm1504, %v1333
      %1516 = vst.msk [vmem:[#allocation7 + $0x2c] sm:$0xf] %vm1504, %v1335
      %1517 = vst.msk [vmem:[#allocation7 + $0x30] sm:$0xf] %vm1504, %v1337
      %1518 = vst.msk [vmem:[#allocation7 + $0x34] sm:$0xf] %vm1504, %v1339
      %1519 = vst.msk [vmem:[#allocation7 + $0x38] sm:$0xf] %vm1504, %v1341
      %1520 = vst.msk [vmem:[#allocation7 + $0x3c] sm:$0xf] %vm1504, %v1343
      %1521 = vst.msk [vmem:[#allocation7 + $0x40] sm:$0xf] %vm1504, %v1345
      %1522 = vst.msk [vmem:[#allocation7 + $0x44] sm:$0xf] %vm1504, %v1347
      %1523 = vst.msk [vmem:[#allocation7 + $0x48] sm:$0xf] %vm1504, %v1349
      %1524 = vst.msk [vmem:[#allocation7 + $0x4c] sm:$0xf] %vm1504, %v1351
      %1525 = vst.msk [vmem:[#allocation7 + $0x50] sm:$0xf] %vm1504, %v1353
      %1526 = vst.msk [vmem:[#allocation7 + $0x54] sm:$0xf] %vm1504, %v1355
      %1527 = vst.msk [vmem:[#allocation7 + $0x58] sm:$0xf] %vm1504, %v1357
      %1528 = vst.msk [vmem:[#allocation7 + $0x5c] sm:$0xf] %vm1504, %v1359
      %1529 = vst.msk [vmem:[#allocation7 + $0x60] sm:$0xf] %vm1504, %v1361
      %1530 = vst.msk [vmem:[#allocation7 + $0x64] sm:$0xf] %vm1504, %v1363
      %1531 = vst.msk [vmem:[#allocation7 + $0x68] sm:$0xf] %vm1504, %v1365
      %1532 = vst.msk [vmem:[#allocation7 + $0x6c] sm:$0xf] %vm1504, %v1367
      %1533 = vst.msk [vmem:[#allocation7 + $0x70] sm:$0xf] %vm1504, %v1369
      %1534 = vst.msk [vmem:[#allocation7 + $0x74] sm:$0xf] %vm1504, %v1371
      %1535 = vst.msk [vmem:[#allocation7 + $0x78] sm:$0xf] %vm1504, %v1373
      %1536 = vst.msk [vmem:[#allocation7 + $0x7c] sm:$0xf] %vm1504, %v1375
      %1537 = vst.msk [vmem:[#allocation7 + $0x80] sm:$0xf] %vm1504, %v1377
      %1538 = vst.msk [vmem:[#allocation7 + $0x84] sm:$0xf] %vm1504, %v1379
      %1539 = vst.msk [vmem:[#allocation7 + $0x88] sm:$0xf] %vm1504, %v1381
      %1540 = vst.msk [vmem:[#allocation7 + $0x8c] sm:$0xf] %vm1504, %v1383
      %1541 = vst.msk [vmem:[#allocation7 + $0x90] sm:$0xf] %vm1504, %v1385
      %1542 = vst.msk [vmem:[#allocation7 + $0x94] sm:$0xf] %vm1504, %v1387
      %1543 = vst.msk [vmem:[#allocation7 + $0x98] sm:$0xf] %vm1504, %v1389
      %1544 = vst.msk [vmem:[#allocation7 + $0x9c] sm:$0xf] %vm1504, %v1391
      %1545 = vst.msk [vmem:[#allocation7 + $0xa0] sm:$0xf] %vm1504, %v1393
      %1546 = vst.msk [vmem:[#allocation7 + $0xa4] sm:$0xf] %vm1504, %v1395
      %1547 = vst.msk [vmem:[#allocation7 + $0xa8] sm:$0xf] %vm1504, %v1397
      %1548 = vst.msk [vmem:[#allocation7 + $0xac] sm:$0xf] %vm1504, %v1399
      %1549 = vst.msk [vmem:[#allocation7 + $0xb0] sm:$0xf] %vm1504, %v1401
      %1550 = vst.msk [vmem:[#allocation7 + $0xb4] sm:$0xf] %vm1504, %v1403
      %1551 = vst.msk [vmem:[#allocation7 + $0xb8] sm:$0xf] %vm1504, %v1405
      %1552 = vst.msk [vmem:[#allocation7 + $0xbc] sm:$0xf] %vm1504, %v1407
      %1553 = vst.msk [vmem:[#allocation7 + $0xc0] sm:$0xf] %vm1504, %v1409
      %1554 = vst.msk [vmem:[#allocation7 + $0xc4] sm:$0xf] %vm1504, %v1411
      %1555 = vst.msk [vmem:[#allocation7 + $0xc8] sm:$0xf] %vm1504, %v1413
      %1556 = vst.msk [vmem:[#allocation7 + $0xcc] sm:$0xf] %vm1504, %v1415
      %1557 = vst.msk [vmem:[#allocation7 + $0xd0] sm:$0xf] %vm1504, %v1417
      %1558 = vst.msk [vmem:[#allocation7 + $0xd4] sm:$0xf] %vm1504, %v1419
      %1559 = vst.msk [vmem:[#allocation7 + $0xd8] sm:$0xf] %vm1504, %v1421
      %1560 = vst.msk [vmem:[#allocation7 + $0xdc] sm:$0xf] %vm1504, %v1423
      %1561 = vst.msk [vmem:[#allocation7 + $0xe0] sm:$0xf] %vm1504, %v1425
      %1562 = vst.msk [vmem:[#allocation7 + $0xe4] sm:$0xf] %vm1504, %v1427
      %1563 = vst.msk [vmem:[#allocation7 + $0xe8] sm:$0xf] %vm1504, %v1429
      %1564 = vst.msk [vmem:[#allocation7 + $0xec] sm:$0xf] %vm1504, %v1431
      %1565 = vst.msk [vmem:[#allocation7 + $0xf0] sm:$0xf] %vm1504, %v1433
      %1566 = vst.msk [vmem:[#allocation7 + $0xf4] sm:$0xf] %vm1504, %v1435
      %1567 = vst.msk [vmem:[#allocation7 + $0xf8] sm:$0xf] %vm1504, %v1437
      %1568 = vst.msk [vmem:[#allocation7 + $0xfc] sm:$0xf] %vm1504, %v1439
      %v1569 = vld [vmem:[#allocation2 + $0x2] sm:$0xff]
      %v1570 = vld [vmem:[#allocation2 + $0xa] sm:$0xff]
      %v1571 = vld [vmem:[#allocation2 + $0x1a] sm:$0xff]
      %v1572 = vld [vmem:[#allocation2 + $0x22] sm:$0xff]
      %v1573 = vld [vmem:[#allocation2 + $0x32] sm:$0xff]
      %v1574 = vld [vmem:[#allocation2 + $0x3a] sm:$0xff]
      %v1575 = vld [vmem:[#allocation2 + $0x4a] sm:$0xff]
      %v1576 = vld [vmem:[#allocation2 + $0x52] sm:$0xff]
      %v1577 = vld [vmem:[#allocation2 + $0x62] sm:$0xff]
      %v1578 = vld [vmem:[#allocation2 + $0x6a] sm:$0xff]
      %v1579 = vld [vmem:[#allocation2 + $0x7a] sm:$0xff]
      %v1580 = vld [vmem:[#allocation2 + $0x82] sm:$0xff]
      %v1581 = vld [vmem:[#allocation2 + $0x92] sm:$0xff]
      %v1582 = vld [vmem:[#allocation2 + $0x9a] sm:$0xff]
      %v1583 = vld [vmem:[#allocation2 + $0xaa] sm:$0xff]
      %v1584 = vld [vmem:[#allocation2 + $0xb2] sm:$0xff]
      %v1585 = vld [vmem:[#allocation2 + $0xc2] sm:$0xff]
      %v1586 = vld [vmem:[#allocation2 + $0xca] sm:$0xff]
      %v1587 = vld [vmem:[#allocation2 + $0xda] sm:$0xff]
      %v1588 = vld [vmem:[#allocation2 + $0xe2] sm:$0xff]
      %v1589 = vld [vmem:[#allocation2 + $0xf2] sm:$0xff]
      %v1590 = vld [vmem:[#allocation2 + $0xfa] sm:$0xff]
      %v1591 = vld [vmem:[#allocation2 + $0x10a] sm:$0xff]
      %v1592 = vld [vmem:[#allocation2 + $0x112] sm:$0xff]
      %v1593 = vld [vmem:[#allocation2 + $0x122] sm:$0xff]
      %v1594 = vld [vmem:[#allocation2 + $0x12a] sm:$0xff]
      %v1595 = vld [vmem:[#allocation2 + $0x13a] sm:$0xff]
      %v1596 = vld [vmem:[#allocation2 + $0x142] sm:$0xff]
      %v1597 = vld [vmem:[#allocation2 + $0x152] sm:$0xff]
      %v1598 = vld [vmem:[#allocation2 + $0x15a] sm:$0xff]
      %v1599 = vld [vmem:[#allocation2 + $0x16a] sm:$0xff]
      %v1600 = vld [vmem:[#allocation2 + $0x172] sm:$0xff]
      %v1601 = vld [vmem:[#allocation2 + $0x1b2] sm:$0xff]
      %v1602 = vld [vmem:[#allocation2 + $0x1ba] sm:$0xff]
      %v1603 = vld [vmem:[#allocation2 + $0x1ca] sm:$0xff]
      %v1604 = vld [vmem:[#allocation2 + $0x1d2] sm:$0xff]
      %v1605 = vld [vmem:[#allocation2 + $0x1e2] sm:$0xff]
      %v1606 = vld [vmem:[#allocation2 + $0x1ea] sm:$0xff]
      %v1607 = vld [vmem:[#allocation2 + $0x1fa] sm:$0xff]
      %v1608 = vld [vmem:[#allocation2 + $0x202] sm:$0xff]
      %v1609 = vld [vmem:[#allocation2 + $0x212] sm:$0xff]
      %v1610 = vld [vmem:[#allocation2 + $0x21a] sm:$0xff]
      %v1611 = vld [vmem:[#allocation2 + $0x22a] sm:$0xff]
      %v1612 = vld [vmem:[#allocation2 + $0x232] sm:$0xff]
      %v1613 = vld [vmem:[#allocation2 + $0x242] sm:$0xff]
      %v1614 = vld [vmem:[#allocation2 + $0x24a] sm:$0xff]
      %v1615 = vld [vmem:[#allocation2 + $0x25a] sm:$0xff]
      %v1616 = vld [vmem:[#allocation2 + $0x262] sm:$0xff]
      %v1617 = vld [vmem:[#allocation2 + $0x272] sm:$0xff]
      %v1618 = vld [vmem:[#allocation2 + $0x27a] sm:$0xff]
      %v1619 = vld [vmem:[#allocation2 + $0x28a] sm:$0xff]
      %v1620 = vld [vmem:[#allocation2 + $0x292] sm:$0xff]
      %v1621 = vld [vmem:[#allocation2 + $0x2a2] sm:$0xff]
      %v1622 = vld [vmem:[#allocation2 + $0x2aa] sm:$0xff]
      %v1623 = vld [vmem:[#allocation2 + $0x2ba] sm:$0xff]
      %v1624 = vld [vmem:[#allocation2 + $0x2c2] sm:$0xff]
      %v1625 = vld [vmem:[#allocation2 + $0x2d2] sm:$0xff]
      %v1626 = vld [vmem:[#allocation2 + $0x2da] sm:$0xff]
      %v1627 = vld [vmem:[#allocation2 + $0x2ea] sm:$0xff]
      %v1628 = vld [vmem:[#allocation2 + $0x2f2] sm:$0xff]
      %v1629 = vld [vmem:[#allocation2 + $0x302] sm:$0xff]
      %v1630 = vld [vmem:[#allocation2 + $0x30a] sm:$0xff]
      %v1631 = vld [vmem:[#allocation2 + $0x31a] sm:$0xff]
      %v1632 = vld [vmem:[#allocation2 + $0x322] sm:$0xff]
      %v1633 = vpack.c.bf16 %v1570, %v1569
      %v1634 = vpack.c.bf16 %v1572, %v1571
      %v1635 = vpack.c.bf16 %v1574, %v1573
      %v1636 = vpack.c.bf16 %v1576, %v1575
      %v1637 = vpack.c.bf16 %v1578, %v1577
      %v1638 = vpack.c.bf16 %v1580, %v1579
      %v1639 = vpack.c.bf16 %v1582, %v1581
      %v1640 = vpack.c.bf16 %v1584, %v1583
      %v1641 = vpack.c.bf16 %v1586, %v1585
      %v1642 = vpack.c.bf16 %v1588, %v1587
      %v1643 = vpack.c.bf16 %v1590, %v1589
      %v1644 = vpack.c.bf16 %v1592, %v1591
      %v1645 = vpack.c.bf16 %v1594, %v1593
      %v1646 = vpack.c.bf16 %v1596, %v1595
      %v1647 = vpack.c.bf16 %v1598, %v1597
      %v1648 = vpack.c.bf16 %v1600, %v1599
      %v1649 = vpack.c.bf16 %v1602, %v1601
      %v1650 = vpack.c.bf16 %v1604, %v1603
      %v1651 = vpack.c.bf16 %v1606, %v1605
      %v1652 = vpack.c.bf16 %v1608, %v1607
      %v1653 = vpack.c.bf16 %v1610, %v1609
      %v1654 = vpack.c.bf16 %v1612, %v1611
      %v1655 = vpack.c.bf16 %v1614, %v1613
      %v1656 = vpack.c.bf16 %v1616, %v1615
      %v1657 = vpack.c.bf16 %v1618, %v1617
      %v1658 = vpack.c.bf16 %v1620, %v1619
      %v1659 = vpack.c.bf16 %v1622, %v1621
      %v1660 = vpack.c.bf16 %v1624, %v1623
      %v1661 = vpack.c.bf16 %v1626, %v1625
      %v1662 = vpack.c.bf16 %v1628, %v1627
      %v1663 = vpack.c.bf16 %v1630, %v1629
      %v1664 = vpack.c.bf16 %v1632, %v1631
      %v1697 = vunpack.c.l.b16 %v1633
      %v1698 = vunpack.c.h.b16 %v1633
      %v1699 = vunpack.c.l.b16 %v1634
      %v1700 = vunpack.c.h.b16 %v1634
      %v1701 = vunpack.c.l.b16 %v1635
      %v1702 = vunpack.c.h.b16 %v1635
      %v1703 = vunpack.c.l.b16 %v1636
      %v1704 = vunpack.c.h.b16 %v1636
      %v1705 = vunpack.c.l.b16 %v1637
      %v1706 = vunpack.c.h.b16 %v1637
      %v1707 = vunpack.c.l.b16 %v1638
      %v1708 = vunpack.c.h.b16 %v1638
      %v1709 = vunpack.c.l.b16 %v1639
      %v1710 = vunpack.c.h.b16 %v1639
      %v1711 = vunpack.c.l.b16 %v1640
      %v1712 = vunpack.c.h.b16 %v1640
      %v1713 = vunpack.c.l.b16 %v1641
      %v1714 = vunpack.c.h.b16 %v1641
      %v1715 = vunpack.c.l.b16 %v1642
      %v1716 = vunpack.c.h.b16 %v1642
      %v1717 = vunpack.c.l.b16 %v1643
      %v1718 = vunpack.c.h.b16 %v1643
      %v1719 = vunpack.c.l.b16 %v1644
      %v1720 = vunpack.c.h.b16 %v1644
      %v1721 = vunpack.c.l.b16 %v1645
      %v1722 = vunpack.c.h.b16 %v1645
      %v1723 = vunpack.c.l.b16 %v1646
      %v1724 = vunpack.c.h.b16 %v1646
      %v1725 = vunpack.c.l.b16 %v1647
      %v1726 = vunpack.c.h.b16 %v1647
      %v1727 = vunpack.c.l.b16 %v1648
      %v1728 = vunpack.c.h.b16 %v1648
      %v1729 = vunpack.c.l.b16 %v1649
      %v1730 = vunpack.c.h.b16 %v1649
      %v1731 = vunpack.c.l.b16 %v1650
      %v1732 = vunpack.c.h.b16 %v1650
      %v1733 = vunpack.c.l.b16 %v1651
      %v1734 = vunpack.c.h.b16 %v1651
      %v1735 = vunpack.c.l.b16 %v1652
      %v1736 = vunpack.c.h.b16 %v1652
      %v1737 = vunpack.c.l.b16 %v1653
      %v1738 = vunpack.c.h.b16 %v1653
      %v1739 = vunpack.c.l.b16 %v1654
      %v1740 = vunpack.c.h.b16 %v1654
      %v1741 = vunpack.c.l.b16 %v1655
      %v1742 = vunpack.c.h.b16 %v1655
      %v1743 = vunpack.c.l.b16 %v1656
      %v1744 = vunpack.c.h.b16 %v1656
      %v1745 = vunpack.c.l.b16 %v1657
      %v1746 = vunpack.c.h.b16 %v1657
      %v1747 = vunpack.c.l.b16 %v1658
      %v1748 = vunpack.c.h.b16 %v1658
      %v1749 = vunpack.c.l.b16 %v1659
      %v1750 = vunpack.c.h.b16 %v1659
      %v1751 = vunpack.c.l.b16 %v1660
      %v1752 = vunpack.c.h.b16 %v1660
      %v1753 = vunpack.c.l.b16 %v1661
      %v1754 = vunpack.c.h.b16 %v1661
      %v1755 = vunpack.c.l.b16 %v1662
      %v1756 = vunpack.c.h.b16 %v1662
      %v1757 = vunpack.c.l.b16 %v1663
      %v1758 = vunpack.c.h.b16 %v1663
      %v1759 = vunpack.c.l.b16 %v1664
      %v1760 = vunpack.c.h.b16 %v1664
      %v1761 = vpack.c.b16 %v1697, %v1697
      %v1762 = vpack.c.b16 %v1698, %v1698
      %v1763 = vpack.c.b16 %v1699, %v1699
      %v1764 = vpack.c.b16 %v1700, %v1700
      %v1765 = vpack.c.b16 %v1701, %v1701
      %v1766 = vpack.c.b16 %v1702, %v1702
      %v1767 = vpack.c.b16 %v1703, %v1703
      %v1768 = vpack.c.b16 %v1704, %v1704
      %v1769 = vpack.c.b16 %v1705, %v1705
      %v1770 = vpack.c.b16 %v1706, %v1706
      %v1771 = vpack.c.b16 %v1707, %v1707
      %v1772 = vpack.c.b16 %v1708, %v1708
      %v1773 = vpack.c.b16 %v1709, %v1709
      %v1774 = vpack.c.b16 %v1710, %v1710
      %v1775 = vpack.c.b16 %v1711, %v1711
      %v1776 = vpack.c.b16 %v1712, %v1712
      %v1777 = vpack.c.b16 %v1713, %v1713
      %v1778 = vpack.c.b16 %v1714, %v1714
      %v1779 = vpack.c.b16 %v1715, %v1715
      %v1780 = vpack.c.b16 %v1716, %v1716
      %v1781 = vpack.c.b16 %v1717, %v1717
      %v1782 = vpack.c.b16 %v1718, %v1718
      %v1783 = vpack.c.b16 %v1719, %v1719
      %v1784 = vpack.c.b16 %v1720, %v1720
      %v1785 = vpack.c.b16 %v1721, %v1721
      %v1786 = vpack.c.b16 %v1722, %v1722
      %v1787 = vpack.c.b16 %v1723, %v1723
      %v1788 = vpack.c.b16 %v1724, %v1724
      %v1789 = vpack.c.b16 %v1725, %v1725
      %v1790 = vpack.c.b16 %v1726, %v1726
      %v1791 = vpack.c.b16 %v1727, %v1727
      %v1792 = vpack.c.b16 %v1728, %v1728
      %v1793 = vpack.c.b16 %v1729, %v1729
      %v1794 = vpack.c.b16 %v1730, %v1730
      %v1795 = vpack.c.b16 %v1731, %v1731
      %v1796 = vpack.c.b16 %v1732, %v1732
      %v1797 = vpack.c.b16 %v1733, %v1733
      %v1798 = vpack.c.b16 %v1734, %v1734
      %v1799 = vpack.c.b16 %v1735, %v1735
      %v1800 = vpack.c.b16 %v1736, %v1736
      %v1801 = vpack.c.b16 %v1737, %v1737
      %v1802 = vpack.c.b16 %v1738, %v1738
      %v1803 = vpack.c.b16 %v1739, %v1739
      %v1804 = vpack.c.b16 %v1740, %v1740
      %v1805 = vpack.c.b16 %v1741, %v1741
      %v1806 = vpack.c.b16 %v1742, %v1742
      %v1807 = vpack.c.b16 %v1743, %v1743
      %v1808 = vpack.c.b16 %v1744, %v1744
      %v1809 = vpack.c.b16 %v1745, %v1745
      %v1810 = vpack.c.b16 %v1746, %v1746
      %v1811 = vpack.c.b16 %v1747, %v1747
      %v1812 = vpack.c.b16 %v1748, %v1748
      %v1813 = vpack.c.b16 %v1749, %v1749
      %v1814 = vpack.c.b16 %v1750, %v1750
      %v1815 = vpack.c.b16 %v1751, %v1751
      %v1816 = vpack.c.b16 %v1752, %v1752
      %v1817 = vpack.c.b16 %v1753, %v1753
      %v1818 = vpack.c.b16 %v1754, %v1754
      %v1819 = vpack.c.b16 %v1755, %v1755
      %v1820 = vpack.c.b16 %v1756, %v1756
      %v1821 = vpack.c.b16 %v1757, %v1757
      %v1822 = vpack.c.b16 %v1758, %v1758
      %v1823 = vpack.c.b16 %v1759, %v1759
      %v1824 = vpack.c.b16 %v1760, %v1760
      %1825 = vrot.lane.b32.xlu0 %v1761, 6
      %v1826 = vpop.permute.xlu0 %1825
      %1827 = vrot.lane.b32.xlu0 %v1762, 6
      %v1828 = vpop.permute.xlu0 %1827
      %1829 = vrot.lane.b32.xlu0 %v1763, 6
      %v1830 = vpop.permute.xlu0 %1829
      %1831 = vrot.lane.b32.xlu0 %v1764, 6
      %v1832 = vpop.permute.xlu0 %1831
      %1833 = vrot.lane.b32.xlu0 %v1765, 6
      %v1834 = vpop.permute.xlu0 %1833
      %1835 = vrot.lane.b32.xlu0 %v1766, 6
      %v1836 = vpop.permute.xlu0 %1835
      %1837 = vrot.lane.b32.xlu0 %v1767, 6
      %v1838 = vpop.permute.xlu0 %1837
      %1839 = vrot.lane.b32.xlu0 %v1768, 6
      %v1840 = vpop.permute.xlu0 %1839
      %1841 = vrot.lane.b32.xlu0 %v1769, 6
      %v1842 = vpop.permute.xlu0 %1841
      %1843 = vrot.lane.b32.xlu0 %v1770, 6
      %v1844 = vpop.permute.xlu0 %1843
      %1845 = vrot.lane.b32.xlu0 %v1771, 6
      %v1846 = vpop.permute.xlu0 %1845
      %1847 = vrot.lane.b32.xlu0 %v1772, 6
      %v1848 = vpop.permute.xlu0 %1847
      %1849 = vrot.lane.b32.xlu0 %v1773, 6
      %v1850 = vpop.permute.xlu0 %1849
      %1851 = vrot.lane.b32.xlu0 %v1774, 6
      %v1852 = vpop.permute.xlu0 %1851
      %1853 = vrot.lane.b32.xlu0 %v1775, 6
      %v1854 = vpop.permute.xlu0 %1853
      %1855 = vrot.lane.b32.xlu0 %v1776, 6
      %v1856 = vpop.permute.xlu0 %1855
      %1857 = vrot.lane.b32.xlu0 %v1777, 6
      %v1858 = vpop.permute.xlu0 %1857
      %1859 = vrot.lane.b32.xlu0 %v1778, 6
      %v1860 = vpop.permute.xlu0 %1859
      %1861 = vrot.lane.b32.xlu0 %v1779, 6
      %v1862 = vpop.permute.xlu0 %1861
      %1863 = vrot.lane.b32.xlu0 %v1780, 6
      %v1864 = vpop.permute.xlu0 %1863
      %1865 = vrot.lane.b32.xlu0 %v1781, 6
      %v1866 = vpop.permute.xlu0 %1865
      %1867 = vrot.lane.b32.xlu0 %v1782, 6
      %v1868 = vpop.permute.xlu0 %1867
      %1869 = vrot.lane.b32.xlu0 %v1783, 6
      %v1870 = vpop.permute.xlu0 %1869
      %1871 = vrot.lane.b32.xlu0 %v1784, 6
      %v1872 = vpop.permute.xlu0 %1871
      %1873 = vrot.lane.b32.xlu0 %v1785, 6
      %v1874 = vpop.permute.xlu0 %1873
      %1875 = vrot.lane.b32.xlu0 %v1786, 6
      %v1876 = vpop.permute.xlu0 %1875
      %1877 = vrot.lane.b32.xlu0 %v1787, 6
      %v1878 = vpop.permute.xlu0 %1877
      %1879 = vrot.lane.b32.xlu0 %v1788, 6
      %v1880 = vpop.permute.xlu0 %1879
      %1881 = vrot.lane.b32.xlu0 %v1789, 6
      %v1882 = vpop.permute.xlu0 %1881
      %1883 = vrot.lane.b32.xlu0 %v1790, 6
      %v1884 = vpop.permute.xlu0 %1883
      %1885 = vrot.lane.b32.xlu0 %v1791, 6
      %v1886 = vpop.permute.xlu0 %1885
      %1887 = vrot.lane.b32.xlu0 %v1792, 6
      %v1888 = vpop.permute.xlu0 %1887
      %1889 = vrot.lane.b32.xlu0 %v1793, 6
      %v1890 = vpop.permute.xlu0 %1889
      %1891 = vrot.lane.b32.xlu0 %v1794, 6
      %v1892 = vpop.permute.xlu0 %1891
      %1893 = vrot.lane.b32.xlu0 %v1795, 6
      %v1894 = vpop.permute.xlu0 %1893
      %1895 = vrot.lane.b32.xlu0 %v1796, 6
      %v1896 = vpop.permute.xlu0 %1895
      %1897 = vrot.lane.b32.xlu0 %v1797, 6
      %v1898 = vpop.permute.xlu0 %1897
      %1899 = vrot.lane.b32.xlu0 %v1798, 6
      %v1900 = vpop.permute.xlu0 %1899
      %1901 = vrot.lane.b32.xlu0 %v1799, 6
      %v1902 = vpop.permute.xlu0 %1901
      %1903 = vrot.lane.b32.xlu0 %v1800, 6
      %v1904 = vpop.permute.xlu0 %1903
      %1905 = vrot.lane.b32.xlu0 %v1801, 6
      %v1906 = vpop.permute.xlu0 %1905
      %1907 = vrot.lane.b32.xlu0 %v1802, 6
      %v1908 = vpop.permute.xlu0 %1907
      %1909 = vrot.lane.b32.xlu0 %v1803, 6
      %v1910 = vpop.permute.xlu0 %1909
      %1911 = vrot.lane.b32.xlu0 %v1804, 6
      %v1912 = vpop.permute.xlu0 %1911
      %1913 = vrot.lane.b32.xlu0 %v1805, 6
      %v1914 = vpop.permute.xlu0 %1913
      %1915 = vrot.lane.b32.xlu0 %v1806, 6
      %v1916 = vpop.permute.xlu0 %1915
      %1917 = vrot.lane.b32.xlu0 %v1807, 6
      %v1918 = vpop.permute.xlu0 %1917
      %1919 = vrot.lane.b32.xlu0 %v1808, 6
      %v1920 = vpop.permute.xlu0 %1919
      %1921 = vrot.lane.b32.xlu0 %v1809, 6
      %v1922 = vpop.permute.xlu0 %1921
      %1923 = vrot.lane.b32.xlu0 %v1810, 6
      %v1924 = vpop.permute.xlu0 %1923
      %1925 = vrot.lane.b32.xlu0 %v1811, 6
      %v1926 = vpop.permute.xlu0 %1925
      %1927 = vrot.lane.b32.xlu0 %v1812, 6
      %v1928 = vpop.permute.xlu0 %1927
      %1929 = vrot.lane.b32.xlu0 %v1813, 6
      %v1930 = vpop.permute.xlu0 %1929
      %1931 = vrot.lane.b32.xlu0 %v1814, 6
      %v1932 = vpop.permute.xlu0 %1931
      %1933 = vrot.lane.b32.xlu0 %v1815, 6
      %v1934 = vpop.permute.xlu0 %1933
      %1935 = vrot.lane.b32.xlu0 %v1816, 6
      %v1936 = vpop.permute.xlu0 %1935
      %1937 = vrot.lane.b32.xlu0 %v1817, 6
      %v1938 = vpop.permute.xlu0 %1937
      %1939 = vrot.lane.b32.xlu0 %v1818, 6
      %v1940 = vpop.permute.xlu0 %1939
      %1941 = vrot.lane.b32.xlu0 %v1819, 6
      %v1942 = vpop.permute.xlu0 %1941
      %1943 = vrot.lane.b32.xlu0 %v1820, 6
      %v1944 = vpop.permute.xlu0 %1943
      %1945 = vrot.lane.b32.xlu0 %v1821, 6
      %v1946 = vpop.permute.xlu0 %1945
      %1947 = vrot.lane.b32.xlu0 %v1822, 6
      %v1948 = vpop.permute.xlu0 %1947
      %1949 = vrot.lane.b32.xlu0 %v1823, 6
      %v1950 = vpop.permute.xlu0 %1949
      %1951 = vrot.lane.b32.xlu0 %v1824, 6
      %v1952 = vpop.permute.xlu0 %1951
      %vm2017 = vcmask 68656
      %2018 = vst.msk [vmem:[#allocation7] sm:$0xf] %vm2017, %v1826
      %2019 = vst.msk [vmem:[#allocation7 + $0x4] sm:$0xf] %vm2017, %v1828
      %2020 = vst.msk [vmem:[#allocation7 + $0x8] sm:$0xf] %vm2017, %v1830
      %2021 = vst.msk [vmem:[#allocation7 + $0xc] sm:$0xf] %vm2017, %v1832
      %2022 = vst.msk [vmem:[#allocation7 + $0x10] sm:$0xf] %vm2017, %v1834
      %2023 = vst.msk [vmem:[#allocation7 + $0x14] sm:$0xf] %vm2017, %v1836
      %2024 = vst.msk [vmem:[#allocation7 + $0x18] sm:$0xf] %vm2017, %v1838
      %2025 = vst.msk [vmem:[#allocation7 + $0x1c] sm:$0xf] %vm2017, %v1840
      %2026 = vst.msk [vmem:[#allocation7 + $0x20] sm:$0xf] %vm2017, %v1842
      %2027 = vst.msk [vmem:[#allocation7 + $0x24] sm:$0xf] %vm2017, %v1844
      %2028 = vst.msk [vmem:[#allocation7 + $0x28] sm:$0xf] %vm2017, %v1846
      %2029 = vst.msk [vmem:[#allocation7 + $0x2c] sm:$0xf] %vm2017, %v1848
      %2030 = vst.msk [vmem:[#allocation7 + $0x30] sm:$0xf] %vm2017, %v1850
      %2031 = vst.msk [vmem:[#allocation7 + $0x34] sm:$0xf] %vm2017, %v1852
      %2032 = vst.msk [vmem:[#allocation7 + $0x38] sm:$0xf] %vm2017, %v1854
      %2033 = vst.msk [vmem:[#allocation7 + $0x3c] sm:$0xf] %vm2017, %v1856
      %2034 = vst.msk [vmem:[#allocation7 + $0x40] sm:$0xf] %vm2017, %v1858
      %2035 = vst.msk [vmem:[#allocation7 + $0x44] sm:$0xf] %vm2017, %v1860
      %2036 = vst.msk [vmem:[#allocation7 + $0x48] sm:$0xf] %vm2017, %v1862
      %2037 = vst.msk [vmem:[#allocation7 + $0x4c] sm:$0xf] %vm2017, %v1864
      %2038 = vst.msk [vmem:[#allocation7 + $0x50] sm:$0xf] %vm2017, %v1866
      %2039 = vst.msk [vmem:[#allocation7 + $0x54] sm:$0xf] %vm2017, %v1868
      %2040 = vst.msk [vmem:[#allocation7 + $0x58] sm:$0xf] %vm2017, %v1870
      %2041 = vst.msk [vmem:[#allocation7 + $0x5c] sm:$0xf] %vm2017, %v1872
      %2042 = vst.msk [vmem:[#allocation7 + $0x60] sm:$0xf] %vm2017, %v1874
      %2043 = vst.msk [vmem:[#allocation7 + $0x64] sm:$0xf] %vm2017, %v1876
      %2044 = vst.msk [vmem:[#allocation7 + $0x68] sm:$0xf] %vm2017, %v1878
      %2045 = vst.msk [vmem:[#allocation7 + $0x6c] sm:$0xf] %vm2017, %v1880
      %2046 = vst.msk [vmem:[#allocation7 + $0x70] sm:$0xf] %vm2017, %v1882
      %2047 = vst.msk [vmem:[#allocation7 + $0x74] sm:$0xf] %vm2017, %v1884
      %2048 = vst.msk [vmem:[#allocation7 + $0x78] sm:$0xf] %vm2017, %v1886
      %2049 = vst.msk [vmem:[#allocation7 + $0x7c] sm:$0xf] %vm2017, %v1888
      %2050 = vst.msk [vmem:[#allocation7 + $0x80] sm:$0xf] %vm2017, %v1890
      %2051 = vst.msk [vmem:[#allocation7 + $0x84] sm:$0xf] %vm2017, %v1892
      %2052 = vst.msk [vmem:[#allocation7 + $0x88] sm:$0xf] %vm2017, %v1894
      %2053 = vst.msk [vmem:[#allocation7 + $0x8c] sm:$0xf] %vm2017, %v1896
      %2054 = vst.msk [vmem:[#allocation7 + $0x90] sm:$0xf] %vm2017, %v1898
      %2055 = vst.msk [vmem:[#allocation7 + $0x94] sm:$0xf] %vm2017, %v1900
      %2056 = vst.msk [vmem:[#allocation7 + $0x98] sm:$0xf] %vm2017, %v1902
      %2057 = vst.msk [vmem:[#allocation7 + $0x9c] sm:$0xf] %vm2017, %v1904
      %2058 = vst.msk [vmem:[#allocation7 + $0xa0] sm:$0xf] %vm2017, %v1906
      %2059 = vst.msk [vmem:[#allocation7 + $0xa4] sm:$0xf] %vm2017, %v1908
      %2060 = vst.msk [vmem:[#allocation7 + $0xa8] sm:$0xf] %vm2017, %v1910
      %2061 = vst.msk [vmem:[#allocation7 + $0xac] sm:$0xf] %vm2017, %v1912
      %2062 = vst.msk [vmem:[#allocation7 + $0xb0] sm:$0xf] %vm2017, %v1914
      %2063 = vst.msk [vmem:[#allocation7 + $0xb4] sm:$0xf] %vm2017, %v1916
      %2064 = vst.msk [vmem:[#allocation7 + $0xb8] sm:$0xf] %vm2017, %v1918
      %2065 = vst.msk [vmem:[#allocation7 + $0xbc] sm:$0xf] %vm2017, %v1920
      %2066 = vst.msk [vmem:[#allocation7 + $0xc0] sm:$0xf] %vm2017, %v1922
      %2067 = vst.msk [vmem:[#allocation7 + $0xc4] sm:$0xf] %vm2017, %v1924
      %2068 = vst.msk [vmem:[#allocation7 + $0xc8] sm:$0xf] %vm2017, %v1926
      %2069 = vst.msk [vmem:[#allocation7 + $0xcc] sm:$0xf] %vm2017, %v1928
      %2070 = vst.msk [vmem:[#allocation7 + $0xd0] sm:$0xf] %vm2017, %v1930
      %2071 = vst.msk [vmem:[#allocation7 + $0xd4] sm:$0xf] %vm2017, %v1932
      %2072 = vst.msk [vmem:[#allocation7 + $0xd8] sm:$0xf] %vm2017, %v1934
      %2073 = vst.msk [vmem:[#allocation7 + $0xdc] sm:$0xf] %vm2017, %v1936
      %2074 = vst.msk [vmem:[#allocation7 + $0xe0] sm:$0xf] %vm2017, %v1938
      %2075 = vst.msk [vmem:[#allocation7 + $0xe4] sm:$0xf] %vm2017, %v1940
      %2076 = vst.msk [vmem:[#allocation7 + $0xe8] sm:$0xf] %vm2017, %v1942
      %2077 = vst.msk [vmem:[#allocation7 + $0xec] sm:$0xf] %vm2017, %v1944
      %2078 = vst.msk [vmem:[#allocation7 + $0xf0] sm:$0xf] %vm2017, %v1946
      %2079 = vst.msk [vmem:[#allocation7 + $0xf4] sm:$0xf] %vm2017, %v1948
      %2080 = vst.msk [vmem:[#allocation7 + $0xf8] sm:$0xf] %vm2017, %v1950
      %2081 = vst.msk [vmem:[#allocation7 + $0xfc] sm:$0xf] %vm2017, %v1952
      %v2082 = vld [vmem:[%s573] sm:$0xff]
      %v2083 = vld [vmem:[%s573 + $0x8] sm:$0xff]
      %v2084 = vld [vmem:[%s573 + $0x18] sm:$0xff]
      %v2085 = vld [vmem:[%s573 + $0x20] sm:$0xff]
      %v2086 = vld [vmem:[%s573 + $0x30] sm:$0xff]
      %v2087 = vld [vmem:[%s573 + $0x38] sm:$0xff]
      %v2088 = vld [vmem:[%s573 + $0x48] sm:$0xff]
      %v2089 = vld [vmem:[%s573 + $0x50] sm:$0xff]
      %v2090 = vld [vmem:[%s573 + $0x60] sm:$0xff]
      %v2091 = vld [vmem:[%s573 + $0x68] sm:$0xff]
      %v2092 = vld [vmem:[%s573 + $0x78] sm:$0xff]
      %v2093 = vld [vmem:[%s573 + $0x80] sm:$0xff]
      %v2094 = vld [vmem:[%s573 + $0x90] sm:$0xff]
      %v2095 = vld [vmem:[%s573 + $0x98] sm:$0xff]
      %v2096 = vld [vmem:[%s573 + $0xa8] sm:$0xff]
      %v2097 = vld [vmem:[%s573 + $0xb0] sm:$0xff]
      %v2098 = vld [vmem:[%s573 + $0xc0] sm:$0xff]
      %v2099 = vld [vmem:[%s573 + $0xc8] sm:$0xff]
      %v2100 = vld [vmem:[%s573 + $0xd8] sm:$0xff]
      %v2101 = vld [vmem:[%s573 + $0xe0] sm:$0xff]
      %v2102 = vld [vmem:[%s573 + $0xf0] sm:$0xff]
      %v2103 = vld [vmem:[%s573 + $0xf8] sm:$0xff]
      %v2104 = vld [vmem:[%s573 + $0x108] sm:$0xff]
      %v2105 = vld [vmem:[%s573 + $0x110] sm:$0xff]
      %v2106 = vld [vmem:[%s573 + $0x120] sm:$0xff]
      %v2107 = vld [vmem:[%s573 + $0x128] sm:$0xff]
      %v2108 = vld [vmem:[%s573 + $0x138] sm:$0xff]
      %v2109 = vld [vmem:[%s573 + $0x140] sm:$0xff]
      %v2110 = vld [vmem:[%s573 + $0x150] sm:$0xff]
      %v2111 = vld [vmem:[%s573 + $0x158] sm:$0xff]
      %v2112 = vld [vmem:[%s573 + $0x168] sm:$0xff]
      %v2113 = vld [vmem:[%s573 + $0x170] sm:$0xff]
      %v2114 = vld [vmem:[%s573 + $0x1b0] sm:$0xff]
      %v2115 = vld [vmem:[%s573 + $0x1b8] sm:$0xff]
      %v2116 = vld [vmem:[%s573 + $0x1c8] sm:$0xff]
      %v2117 = vld [vmem:[%s573 + $0x1d0] sm:$0xff]
      %v2118 = vld [vmem:[%s573 + $0x1e0] sm:$0xff]
      %v2119 = vld [vmem:[%s573 + $0x1e8] sm:$0xff]
      %v2120 = vld [vmem:[%s573 + $0x1f8] sm:$0xff]
      %v2121 = vld [vmem:[%s573 + $0x200] sm:$0xff]
      %v2122 = vld [vmem:[%s573 + $0x210] sm:$0xff]
      %v2123 = vld [vmem:[%s573 + $0x218] sm:$0xff]
      %v2124 = vld [vmem:[%s573 + $0x228] sm:$0xff]
      %v2125 = vld [vmem:[%s573 + $0x230] sm:$0xff]
      %v2126 = vld [vmem:[%s573 + $0x240] sm:$0xff]
      %v2127 = vld [vmem:[%s573 + $0x248] sm:$0xff]
      %v2128 = vld [vmem:[%s573 + $0x258] sm:$0xff]
      %v2129 = vld [vmem:[%s573 + $0x260] sm:$0xff]
      %v2130 = vld [vmem:[%s573 + $0x270] sm:$0xff]
      %v2131 = vld [vmem:[%s573 + $0x278] sm:$0xff]
      %v2132 = vld [vmem:[%s573 + $0x288] sm:$0xff]
      %v2133 = vld [vmem:[%s573 + $0x290] sm:$0xff]
      %v2134 = vld [vmem:[%s573 + $0x2a0] sm:$0xff]
      %v2135 = vld [vmem:[%s573 + $0x2a8] sm:$0xff]
      %v2136 = vld [vmem:[%s573 + $0x2b8] sm:$0xff]
      %v2137 = vld [vmem:[%s573 + $0x2c0] sm:$0xff]
      %v2138 = vld [vmem:[%s573 + $0x2d0] sm:$0xff]
      %v2139 = vld [vmem:[%s573 + $0x2d8] sm:$0xff]
      %v2140 = vld [vmem:[%s573 + $0x2e8] sm:$0xff]
      %v2141 = vld [vmem:[%s573 + $0x2f0] sm:$0xff]
      %v2142 = vld [vmem:[%s573 + $0x300] sm:$0xff]
      %v2143 = vld [vmem:[%s573 + $0x308] sm:$0xff]
      %v2144 = vld [vmem:[%s573 + $0x318] sm:$0xff]
      %v2145 = vld [vmem:[%s573 + $0x320] sm:$0xff]
      %v2146 = vpack.c.bf16 %v2083, %v2082
      %v2147 = vpack.c.bf16 %v2085, %v2084
      %v2148 = vpack.c.bf16 %v2087, %v2086
      %v2149 = vpack.c.bf16 %v2089, %v2088
      %v2150 = vpack.c.bf16 %v2091, %v2090
      %v2151 = vpack.c.bf16 %v2093, %v2092
      %v2152 = vpack.c.bf16 %v2095, %v2094
      %v2153 = vpack.c.bf16 %v2097, %v2096
      %v2154 = vpack.c.bf16 %v2099, %v2098
      %v2155 = vpack.c.bf16 %v2101, %v2100
      %v2156 = vpack.c.bf16 %v2103, %v2102
      %v2157 = vpack.c.bf16 %v2105, %v2104
      %v2158 = vpack.c.bf16 %v2107, %v2106
      %v2159 = vpack.c.bf16 %v2109, %v2108
      %v2160 = vpack.c.bf16 %v2111, %v2110
      %v2161 = vpack.c.bf16 %v2113, %v2112
      %v2162 = vpack.c.bf16 %v2115, %v2114
      %v2163 = vpack.c.bf16 %v2117, %v2116
      %v2164 = vpack.c.bf16 %v2119, %v2118
      %v2165 = vpack.c.bf16 %v2121, %v2120
      %v2166 = vpack.c.bf16 %v2123, %v2122
      %v2167 = vpack.c.bf16 %v2125, %v2124
      %v2168 = vpack.c.bf16 %v2127, %v2126
      %v2169 = vpack.c.bf16 %v2129, %v2128
      %v2170 = vpack.c.bf16 %v2131, %v2130
      %v2171 = vpack.c.bf16 %v2133, %v2132
      %v2172 = vpack.c.bf16 %v2135, %v2134
      %v2173 = vpack.c.bf16 %v2137, %v2136
      %v2174 = vpack.c.bf16 %v2139, %v2138
      %v2175 = vpack.c.bf16 %v2141, %v2140
      %v2176 = vpack.c.bf16 %v2143, %v2142
      %v2177 = vpack.c.bf16 %v2145, %v2144
      %v2210 = vunpack.c.l.b16 %v2146
      %v2211 = vunpack.c.h.b16 %v2146
      %v2212 = vunpack.c.l.b16 %v2147
      %v2213 = vunpack.c.h.b16 %v2147
      %v2214 = vunpack.c.l.b16 %v2148
      %v2215 = vunpack.c.h.b16 %v2148
      %v2216 = vunpack.c.l.b16 %v2149
      %v2217 = vunpack.c.h.b16 %v2149
      %v2218 = vunpack.c.l.b16 %v2150
      %v2219 = vunpack.c.h.b16 %v2150
      %v2220 = vunpack.c.l.b16 %v2151
      %v2221 = vunpack.c.h.b16 %v2151
      %v2222 = vunpack.c.l.b16 %v2152
      %v2223 = vunpack.c.h.b16 %v2152
      %v2224 = vunpack.c.l.b16 %v2153
      %v2225 = vunpack.c.h.b16 %v2153
      %v2226 = vunpack.c.l.b16 %v2154
      %v2227 = vunpack.c.h.b16 %v2154
      %v2228 = vunpack.c.l.b16 %v2155
      %v2229 = vunpack.c.h.b16 %v2155
      %v2230 = vunpack.c.l.b16 %v2156
      %v2231 = vunpack.c.h.b16 %v2156
      %v2232 = vunpack.c.l.b16 %v2157
      %v2233 = vunpack.c.h.b16 %v2157
      %v2234 = vunpack.c.l.b16 %v2158
      %v2235 = vunpack.c.h.b16 %v2158
      %v2236 = vunpack.c.l.b16 %v2159
      %v2237 = vunpack.c.h.b16 %v2159
      %v2238 = vunpack.c.l.b16 %v2160
      %v2239 = vunpack.c.h.b16 %v2160
      %v2240 = vunpack.c.l.b16 %v2161
      %v2241 = vunpack.c.h.b16 %v2161
      %v2242 = vunpack.c.l.b16 %v2162
      %v2243 = vunpack.c.h.b16 %v2162
      %v2244 = vunpack.c.l.b16 %v2163
      %v2245 = vunpack.c.h.b16 %v2163
      %v2246 = vunpack.c.l.b16 %v2164
      %v2247 = vunpack.c.h.b16 %v2164
      %v2248 = vunpack.c.l.b16 %v2165
      %v2249 = vunpack.c.h.b16 %v2165
      %v2250 = vunpack.c.l.b16 %v2166
      %v2251 = vunpack.c.h.b16 %v2166
      %v2252 = vunpack.c.l.b16 %v2167
      %v2253 = vunpack.c.h.b16 %v2167
      %v2254 = vunpack.c.l.b16 %v2168
      %v2255 = vunpack.c.h.b16 %v2168
      %v2256 = vunpack.c.l.b16 %v2169
      %v2257 = vunpack.c.h.b16 %v2169
      %v2258 = vunpack.c.l.b16 %v2170
      %v2259 = vunpack.c.h.b16 %v2170
      %v2260 = vunpack.c.l.b16 %v2171
      %v2261 = vunpack.c.h.b16 %v2171
      %v2262 = vunpack.c.l.b16 %v2172
      %v2263 = vunpack.c.h.b16 %v2172
      %v2264 = vunpack.c.l.b16 %v2173
      %v2265 = vunpack.c.h.b16 %v2173
      %v2266 = vunpack.c.l.b16 %v2174
      %v2267 = vunpack.c.h.b16 %v2174
      %v2268 = vunpack.c.l.b16 %v2175
      %v2269 = vunpack.c.h.b16 %v2175
      %v2270 = vunpack.c.l.b16 %v2176
      %v2271 = vunpack.c.h.b16 %v2176
      %v2272 = vunpack.c.l.b16 %v2177
      %v2273 = vunpack.c.h.b16 %v2177
      %v2274 = vpack.c.b16 %v2210, %v2210
      %v2275 = vpack.c.b16 %v2211, %v2211
      %v2276 = vpack.c.b16 %v2212, %v2212
      %v2277 = vpack.c.b16 %v2213, %v2213
      %v2278 = vpack.c.b16 %v2214, %v2214
      %v2279 = vpack.c.b16 %v2215, %v2215
      %v2280 = vpack.c.b16 %v2216, %v2216
      %v2281 = vpack.c.b16 %v2217, %v2217
      %v2282 = vpack.c.b16 %v2218, %v2218
      %v2283 = vpack.c.b16 %v2219, %v2219
      %v2284 = vpack.c.b16 %v2220, %v2220
      %v2285 = vpack.c.b16 %v2221, %v2221
      %v2286 = vpack.c.b16 %v2222, %v2222
      %v2287 = vpack.c.b16 %v2223, %v2223
      %v2288 = vpack.c.b16 %v2224, %v2224
      %v2289 = vpack.c.b16 %v2225, %v2225
      %v2290 = vpack.c.b16 %v2226, %v2226
      %v2291 = vpack.c.b16 %v2227, %v2227
      %v2292 = vpack.c.b16 %v2228, %v2228
      %v2293 = vpack.c.b16 %v2229, %v2229
      %v2294 = vpack.c.b16 %v2230, %v2230
      %v2295 = vpack.c.b16 %v2231, %v2231
      %v2296 = vpack.c.b16 %v2232, %v2232
      %v2297 = vpack.c.b16 %v2233, %v2233
      %v2298 = vpack.c.b16 %v2234, %v2234
      %v2299 = vpack.c.b16 %v2235, %v2235
      %v2300 = vpack.c.b16 %v2236, %v2236
      %v2301 = vpack.c.b16 %v2237, %v2237
      %v2302 = vpack.c.b16 %v2238, %v2238
      %v2303 = vpack.c.b16 %v2239, %v2239
      %v2304 = vpack.c.b16 %v2240, %v2240
      %v2305 = vpack.c.b16 %v2241, %v2241
      %v2306 = vpack.c.b16 %v2242, %v2242
      %v2307 = vpack.c.b16 %v2243, %v2243
      %v2308 = vpack.c.b16 %v2244, %v2244
      %v2309 = vpack.c.b16 %v2245, %v2245
      %v2310 = vpack.c.b16 %v2246, %v2246
      %v2311 = vpack.c.b16 %v2247, %v2247
      %v2312 = vpack.c.b16 %v2248, %v2248
      %v2313 = vpack.c.b16 %v2249, %v2249
      %v2314 = vpack.c.b16 %v2250, %v2250
      %v2315 = vpack.c.b16 %v2251, %v2251
      %v2316 = vpack.c.b16 %v2252, %v2252
      %v2317 = vpack.c.b16 %v2253, %v2253
      %v2318 = vpack.c.b16 %v2254, %v2254
      %v2319 = vpack.c.b16 %v2255, %v2255
      %v2320 = vpack.c.b16 %v2256, %v2256
      %v2321 = vpack.c.b16 %v2257, %v2257
      %v2322 = vpack.c.b16 %v2258, %v2258
      %v2323 = vpack.c.b16 %v2259, %v2259
      %v2324 = vpack.c.b16 %v2260, %v2260
      %v2325 = vpack.c.b16 %v2261, %v2261
      %v2326 = vpack.c.b16 %v2262, %v2262
      %v2327 = vpack.c.b16 %v2263, %v2263
      %v2328 = vpack.c.b16 %v2264, %v2264
      %v2329 = vpack.c.b16 %v2265, %v2265
      %v2330 = vpack.c.b16 %v2266, %v2266
      %v2331 = vpack.c.b16 %v2267, %v2267
      %v2332 = vpack.c.b16 %v2268, %v2268
      %v2333 = vpack.c.b16 %v2269, %v2269
      %v2334 = vpack.c.b16 %v2270, %v2270
      %v2335 = vpack.c.b16 %v2271, %v2271
      %v2336 = vpack.c.b16 %v2272, %v2272
      %v2337 = vpack.c.b16 %v2273, %v2273
      %2338 = vrot.lane.b32.xlu0 %v2274, 9
      %v2339 = vpop.permute.xlu0 %2338
      %2340 = vrot.lane.b32.xlu0 %v2275, 9
      %v2341 = vpop.permute.xlu0 %2340
      %2342 = vrot.lane.b32.xlu0 %v2276, 9
      %v2343 = vpop.permute.xlu0 %2342
      %2344 = vrot.lane.b32.xlu0 %v2277, 9
      %v2345 = vpop.permute.xlu0 %2344
      %2346 = vrot.lane.b32.xlu0 %v2278, 9
      %v2347 = vpop.permute.xlu0 %2346
      %2348 = vrot.lane.b32.xlu0 %v2279, 9
      %v2349 = vpop.permute.xlu0 %2348
      %2350 = vrot.lane.b32.xlu0 %v2280, 9
      %v2351 = vpop.permute.xlu0 %2350
      %2352 = vrot.lane.b32.xlu0 %v2281, 9
      %v2353 = vpop.permute.xlu0 %2352
      %2354 = vrot.lane.b32.xlu0 %v2282, 9
      %v2355 = vpop.permute.xlu0 %2354
      %2356 = vrot.lane.b32.xlu0 %v2283, 9
      %v2357 = vpop.permute.xlu0 %2356
      %2358 = vrot.lane.b32.xlu0 %v2284, 9
      %v2359 = vpop.permute.xlu0 %2358
      %2360 = vrot.lane.b32.xlu0 %v2285, 9
      %v2361 = vpop.permute.xlu0 %2360
      %2362 = vrot.lane.b32.xlu0 %v2286, 9
      %v2363 = vpop.permute.xlu0 %2362
      %2364 = vrot.lane.b32.xlu0 %v2287, 9
      %v2365 = vpop.permute.xlu0 %2364
      %2366 = vrot.lane.b32.xlu0 %v2288, 9
      %v2367 = vpop.permute.xlu0 %2366
      %2368 = vrot.lane.b32.xlu0 %v2289, 9
      %v2369 = vpop.permute.xlu0 %2368
      %2370 = vrot.lane.b32.xlu0 %v2290, 9
      %v2371 = vpop.permute.xlu0 %2370
      %2372 = vrot.lane.b32.xlu0 %v2291, 9
      %v2373 = vpop.permute.xlu0 %2372
      %2374 = vrot.lane.b32.xlu0 %v2292, 9
      %v2375 = vpop.permute.xlu0 %2374
      %2376 = vrot.lane.b32.xlu0 %v2293, 9
      %v2377 = vpop.permute.xlu0 %2376
      %2378 = vrot.lane.b32.xlu0 %v2294, 9
      %v2379 = vpop.permute.xlu0 %2378
      %2380 = vrot.lane.b32.xlu0 %v2295, 9
      %v2381 = vpop.permute.xlu0 %2380
      %2382 = vrot.lane.b32.xlu0 %v2296, 9
      %v2383 = vpop.permute.xlu0 %2382
      %2384 = vrot.lane.b32.xlu0 %v2297, 9
      %v2385 = vpop.permute.xlu0 %2384
      %2386 = vrot.lane.b32.xlu0 %v2298, 9
      %v2387 = vpop.permute.xlu0 %2386
      %2388 = vrot.lane.b32.xlu0 %v2299, 9
      %v2389 = vpop.permute.xlu0 %2388
      %2390 = vrot.lane.b32.xlu0 %v2300, 9
      %v2391 = vpop.permute.xlu0 %2390
      %2392 = vrot.lane.b32.xlu0 %v2301, 9
      %v2393 = vpop.permute.xlu0 %2392
      %2394 = vrot.lane.b32.xlu0 %v2302, 9
      %v2395 = vpop.permute.xlu0 %2394
      %2396 = vrot.lane.b32.xlu0 %v2303, 9
      %v2397 = vpop.permute.xlu0 %2396
      %2398 = vrot.lane.b32.xlu0 %v2304, 9
      %v2399 = vpop.permute.xlu0 %2398
      %2400 = vrot.lane.b32.xlu0 %v2305, 9
      %v2401 = vpop.permute.xlu0 %2400
      %2402 = vrot.lane.b32.xlu0 %v2306, 9
      %v2403 = vpop.permute.xlu0 %2402
      %2404 = vrot.lane.b32.xlu0 %v2307, 9
      %v2405 = vpop.permute.xlu0 %2404
      %2406 = vrot.lane.b32.xlu0 %v2308, 9
      %v2407 = vpop.permute.xlu0 %2406
      %2408 = vrot.lane.b32.xlu0 %v2309, 9
      %v2409 = vpop.permute.xlu0 %2408
      %2410 = vrot.lane.b32.xlu0 %v2310, 9
      %v2411 = vpop.permute.xlu0 %2410
      %2412 = vrot.lane.b32.xlu0 %v2311, 9
      %v2413 = vpop.permute.xlu0 %2412
      %2414 = vrot.lane.b32.xlu0 %v2312, 9
      %v2415 = vpop.permute.xlu0 %2414
      %2416 = vrot.lane.b32.xlu0 %v2313, 9
      %v2417 = vpop.permute.xlu0 %2416
      %2418 = vrot.lane.b32.xlu0 %v2314, 9
      %v2419 = vpop.permute.xlu0 %2418
      %2420 = vrot.lane.b32.xlu0 %v2315, 9
      %v2421 = vpop.permute.xlu0 %2420
      %2422 = vrot.lane.b32.xlu0 %v2316, 9
      %v2423 = vpop.permute.xlu0 %2422
      %2424 = vrot.lane.b32.xlu0 %v2317, 9
      %v2425 = vpop.permute.xlu0 %2424
      %2426 = vrot.lane.b32.xlu0 %v2318, 9
      %v2427 = vpop.permute.xlu0 %2426
      %2428 = vrot.lane.b32.xlu0 %v2319, 9
      %v2429 = vpop.permute.xlu0 %2428
      %2430 = vrot.lane.b32.xlu0 %v2320, 9
      %v2431 = vpop.permute.xlu0 %2430
      %2432 = vrot.lane.b32.xlu0 %v2321, 9
      %v2433 = vpop.permute.xlu0 %2432
      %2434 = vrot.lane.b32.xlu0 %v2322, 9
      %v2435 = vpop.permute.xlu0 %2434
      %2436 = vrot.lane.b32.xlu0 %v2323, 9
      %v2437 = vpop.permute.xlu0 %2436
      %2438 = vrot.lane.b32.xlu0 %v2324, 9
      %v2439 = vpop.permute.xlu0 %2438
      %2440 = vrot.lane.b32.xlu0 %v2325, 9
      %v2441 = vpop.permute.xlu0 %2440
      %2442 = vrot.lane.b32.xlu0 %v2326, 9
      %v2443 = vpop.permute.xlu0 %2442
      %2444 = vrot.lane.b32.xlu0 %v2327, 9
      %v2445 = vpop.permute.xlu0 %2444
      %2446 = vrot.lane.b32.xlu0 %v2328, 9
      %v2447 = vpop.permute.xlu0 %2446
      %2448 = vrot.lane.b32.xlu0 %v2329, 9
      %v2449 = vpop.permute.xlu0 %2448
      %2450 = vrot.lane.b32.xlu0 %v2330, 9
      %v2451 = vpop.permute.xlu0 %2450
      %2452 = vrot.lane.b32.xlu0 %v2331, 9
      %v2453 = vpop.permute.xlu0 %2452
      %2454 = vrot.lane.b32.xlu0 %v2332, 9
      %v2455 = vpop.permute.xlu0 %2454
      %2456 = vrot.lane.b32.xlu0 %v2333, 9
      %v2457 = vpop.permute.xlu0 %2456
      %2458 = vrot.lane.b32.xlu0 %v2334, 9
      %v2459 = vpop.permute.xlu0 %2458
      %2460 = vrot.lane.b32.xlu0 %v2335, 9
      %v2461 = vpop.permute.xlu0 %2460
      %2462 = vrot.lane.b32.xlu0 %v2336, 9
      %v2463 = vpop.permute.xlu0 %2462
      %2464 = vrot.lane.b32.xlu0 %v2337, 9
      %v2465 = vpop.permute.xlu0 %2464
      %vm2530 = vcmask 93256
      %2531 = vst.msk [vmem:[#allocation7] sm:$0xf] %vm2530, %v2339
      %2532 = vst.msk [vmem:[#allocation7 + $0x4] sm:$0xf] %vm2530, %v2341
      %2533 = vst.msk [vmem:[#allocation7 + $0x8] sm:$0xf] %vm2530, %v2343
      %2534 = vst.msk [vmem:[#allocation7 + $0xc] sm:$0xf] %vm2530, %v2345
      %2535 = vst.msk [vmem:[#allocation7 + $0x10] sm:$0xf] %vm2530, %v2347
      %2536 = vst.msk [vmem:[#allocation7 + $0x14] sm:$0xf] %vm2530, %v2349
      %2537 = vst.msk [vmem:[#allocation7 + $0x18] sm:$0xf] %vm2530, %v2351
      %2538 = vst.msk [vmem:[#allocation7 + $0x1c] sm:$0xf] %vm2530, %v2353
      %2539 = vst.msk [vmem:[#allocation7 + $0x20] sm:$0xf] %vm2530, %v2355
      %2540 = vst.msk [vmem:[#allocation7 + $0x24] sm:$0xf] %vm2530, %v2357
      %2541 = vst.msk [vmem:[#allocation7 + $0x28] sm:$0xf] %vm2530, %v2359
      %2542 = vst.msk [vmem:[#allocation7 + $0x2c] sm:$0xf] %vm2530, %v2361
      %2543 = vst.msk [vmem:[#allocation7 + $0x30] sm:$0xf] %vm2530, %v2363
      %2544 = vst.msk [vmem:[#allocation7 + $0x34] sm:$0xf] %vm2530, %v2365
      %2545 = vst.msk [vmem:[#allocation7 + $0x38] sm:$0xf] %vm2530, %v2367
      %2546 = vst.msk [vmem:[#allocation7 + $0x3c] sm:$0xf] %vm2530, %v2369
      %2547 = vst.msk [vmem:[#allocation7 + $0x40] sm:$0xf] %vm2530, %v2371
      %2548 = vst.msk [vmem:[#allocation7 + $0x44] sm:$0xf] %vm2530, %v2373
      %2549 = vst.msk [vmem:[#allocation7 + $0x48] sm:$0xf] %vm2530, %v2375
      %2550 = vst.msk [vmem:[#allocation7 + $0x4c] sm:$0xf] %vm2530, %v2377
      %2551 = vst.msk [vmem:[#allocation7 + $0x50] sm:$0xf] %vm2530, %v2379
      %2552 = vst.msk [vmem:[#allocation7 + $0x54] sm:$0xf] %vm2530, %v2381
      %2553 = vst.msk [vmem:[#allocation7 + $0x58] sm:$0xf] %vm2530, %v2383
      %2554 = vst.msk [vmem:[#allocation7 + $0x5c] sm:$0xf] %vm2530, %v2385
      %2555 = vst.msk [vmem:[#allocation7 + $0x60] sm:$0xf] %vm2530, %v2387
      %2556 = vst.msk [vmem:[#allocation7 + $0x64] sm:$0xf] %vm2530, %v2389
      %2557 = vst.msk [vmem:[#allocation7 + $0x68] sm:$0xf] %vm2530, %v2391
      %2558 = vst.msk [vmem:[#allocation7 + $0x6c] sm:$0xf] %vm2530, %v2393
      %2559 = vst.msk [vmem:[#allocation7 + $0x70] sm:$0xf] %vm2530, %v2395
      %2560 = vst.msk [vmem:[#allocation7 + $0x74] sm:$0xf] %vm2530, %v2397
      %2561 = vst.msk [vmem:[#allocation7 + $0x78] sm:$0xf] %vm2530, %v2399
      %2562 = vst.msk [vmem:[#allocation7 + $0x7c] sm:$0xf] %vm2530, %v2401
      %2563 = vst.msk [vmem:[#allocation7 + $0x80] sm:$0xf] %vm2530, %v2403
      %2564 = vst.msk [vmem:[#allocation7 + $0x84] sm:$0xf] %vm2530, %v2405
      %2565 = vst.msk [vmem:[#allocation7 + $0x88] sm:$0xf] %vm2530, %v2407
      %2566 = vst.msk [vmem:[#allocation7 + $0x8c] sm:$0xf] %vm2530, %v2409
      %2567 = vst.msk [vmem:[#allocation7 + $0x90] sm:$0xf] %vm2530, %v2411
      %2568 = vst.msk [vmem:[#allocation7 + $0x94] sm:$0xf] %vm2530, %v2413
      %2569 = vst.msk [vmem:[#allocation7 + $0x98] sm:$0xf] %vm2530, %v2415
      %2570 = vst.msk [vmem:[#allocation7 + $0x9c] sm:$0xf] %vm2530, %v2417
      %2571 = vst.msk [vmem:[#allocation7 + $0xa0] sm:$0xf] %vm2530, %v2419
      %2572 = vst.msk [vmem:[#allocation7 + $0xa4] sm:$0xf] %vm2530, %v2421
      %2573 = vst.msk [vmem:[#allocation7 + $0xa8] sm:$0xf] %vm2530, %v2423
      %2574 = vst.msk [vmem:[#allocation7 + $0xac] sm:$0xf] %vm2530, %v2425
      %2575 = vst.msk [vmem:[#allocation7 + $0xb0] sm:$0xf] %vm2530, %v2427
      %2576 = vst.msk [vmem:[#allocation7 + $0xb4] sm:$0xf] %vm2530, %v2429
      %2577 = vst.msk [vmem:[#allocation7 + $0xb8] sm:$0xf] %vm2530, %v2431
      %2578 = vst.msk [vmem:[#allocation7 + $0xbc] sm:$0xf] %vm2530, %v2433
      %2579 = vst.msk [vmem:[#allocation7 + $0xc0] sm:$0xf] %vm2530, %v2435
      %2580 = vst.msk [vmem:[#allocation7 + $0xc4] sm:$0xf] %vm2530, %v2437
      %2581 = vst.msk [vmem:[#allocation7 + $0xc8] sm:$0xf] %vm2530, %v2439
      %2582 = vst.msk [vmem:[#allocation7 + $0xcc] sm:$0xf] %vm2530, %v2441
      %2583 = vst.msk [vmem:[#allocation7 + $0xd0] sm:$0xf] %vm2530, %v2443
      %2584 = vst.msk [vmem:[#allocation7 + $0xd4] sm:$0xf] %vm2530, %v2445
      %2585 = vst.msk [vmem:[#allocation7 + $0xd8] sm:$0xf] %vm2530, %v2447
      %2586 = vst.msk [vmem:[#allocation7 + $0xdc] sm:$0xf] %vm2530, %v2449
      %2587 = vst.msk [vmem:[#allocation7 + $0xe0] sm:$0xf] %vm2530, %v2451
      %2588 = vst.msk [vmem:[#allocation7 + $0xe4] sm:$0xf] %vm2530, %v2453
      %2589 = vst.msk [vmem:[#allocation7 + $0xe8] sm:$0xf] %vm2530, %v2455
      %2590 = vst.msk [vmem:[#allocation7 + $0xec] sm:$0xf] %vm2530, %v2457
      %2591 = vst.msk [vmem:[#allocation7 + $0xf0] sm:$0xf] %vm2530, %v2459
      %2592 = vst.msk [vmem:[#allocation7 + $0xf4] sm:$0xf] %vm2530, %v2461
      %2593 = vst.msk [vmem:[#allocation7 + $0xf8] sm:$0xf] %vm2530, %v2463
      %2594 = vst.msk [vmem:[#allocation7 + $0xfc] sm:$0xf] %vm2530, %v2465
      %v2595 = vld [vmem:[%s573 + $0x1] sm:$0xff]
      %v2596 = vld [vmem:[%s573 + $0x9] sm:$0xff]
      %v2597 = vld [vmem:[%s573 + $0x19] sm:$0xff]
      %v2598 = vld [vmem:[%s573 + $0x21] sm:$0xff]
      %v2599 = vld [vmem:[%s573 + $0x31] sm:$0xff]
      %v2600 = vld [vmem:[%s573 + $0x39] sm:$0xff]
      %v2601 = vld [vmem:[%s573 + $0x49] sm:$0xff]
      %v2602 = vld [vmem:[%s573 + $0x51] sm:$0xff]
      %v2603 = vld [vmem:[%s573 + $0x61] sm:$0xff]
      %v2604 = vld [vmem:[%s573 + $0x69] sm:$0xff]
      %v2605 = vld [vmem:[%s573 + $0x79] sm:$0xff]
      %v2606 = vld [vmem:[%s573 + $0x81] sm:$0xff]
      %v2607 = vld [vmem:[%s573 + $0x91] sm:$0xff]
      %v2608 = vld [vmem:[%s573 + $0x99] sm:$0xff]
      %v2609 = vld [vmem:[%s573 + $0xa9] sm:$0xff]
      %v2610 = vld [vmem:[%s573 + $0xb1] sm:$0xff]
      %v2611 = vld [vmem:[%s573 + $0xc1] sm:$0xff]
      %v2612 = vld [vmem:[%s573 + $0xc9] sm:$0xff]
      %v2613 = vld [vmem:[%s573 + $0xd9] sm:$0xff]
      %v2614 = vld [vmem:[%s573 + $0xe1] sm:$0xff]
      %v2615 = vld [vmem:[%s573 + $0xf1] sm:$0xff]
      %v2616 = vld [vmem:[%s573 + $0xf9] sm:$0xff]
      %v2617 = vld [vmem:[%s573 + $0x109] sm:$0xff]
      %v2618 = vld [vmem:[%s573 + $0x111] sm:$0xff]
      %v2619 = vld [vmem:[%s573 + $0x121] sm:$0xff]
      %v2620 = vld [vmem:[%s573 + $0x129] sm:$0xff]
      %v2621 = vld [vmem:[%s573 + $0x139] sm:$0xff]
      %v2622 = vld [vmem:[%s573 + $0x141] sm:$0xff]
      %v2623 = vld [vmem:[%s573 + $0x151] sm:$0xff]
      %v2624 = vld [vmem:[%s573 + $0x159] sm:$0xff]
      %v2625 = vld [vmem:[%s573 + $0x169] sm:$0xff]
      %v2626 = vld [vmem:[%s573 + $0x171] sm:$0xff]
      %v2627 = vld [vmem:[%s573 + $0x1b1] sm:$0xff]
      %v2628 = vld [vmem:[%s573 + $0x1b9] sm:$0xff]
      %v2629 = vld [vmem:[%s573 + $0x1c9] sm:$0xff]
      %v2630 = vld [vmem:[%s573 + $0x1d1] sm:$0xff]
      %v2631 = vld [vmem:[%s573 + $0x1e1] sm:$0xff]
      %v2632 = vld [vmem:[%s573 + $0x1e9] sm:$0xff]
      %v2633 = vld [vmem:[%s573 + $0x1f9] sm:$0xff]
      %v2634 = vld [vmem:[%s573 + $0x201] sm:$0xff]
      %v2635 = vld [vmem:[%s573 + $0x211] sm:$0xff]
      %v2636 = vld [vmem:[%s573 + $0x219] sm:$0xff]
      %v2637 = vld [vmem:[%s573 + $0x229] sm:$0xff]
      %v2638 = vld [vmem:[%s573 + $0x231] sm:$0xff]
      %v2639 = vld [vmem:[%s573 + $0x241] sm:$0xff]
      %v2640 = vld [vmem:[%s573 + $0x249] sm:$0xff]
      %v2641 = vld [vmem:[%s573 + $0x259] sm:$0xff]
      %v2642 = vld [vmem:[%s573 + $0x261] sm:$0xff]
      %v2643 = vld [vmem:[%s573 + $0x271] sm:$0xff]
      %v2644 = vld [vmem:[%s573 + $0x279] sm:$0xff]
      %v2645 = vld [vmem:[%s573 + $0x289] sm:$0xff]
      %v2646 = vld [vmem:[%s573 + $0x291] sm:$0xff]
      %v2647 = vld [vmem:[%s573 + $0x2a1] sm:$0xff]
      %v2648 = vld [vmem:[%s573 + $0x2a9] sm:$0xff]
      %v2649 = vld [vmem:[%s573 + $0x2b9] sm:$0xff]
      %v2650 = vld [vmem:[%s573 + $0x2c1] sm:$0xff]
      %v2651 = vld [vmem:[%s573 + $0x2d1] sm:$0xff]
      %v2652 = vld [vmem:[%s573 + $0x2d9] sm:$0xff]
      %v2653 = vld [vmem:[%s573 + $0x2e9] sm:$0xff]
      %v2654 = vld [vmem:[%s573 + $0x2f1] sm:$0xff]
      %v2655 = vld [vmem:[%s573 + $0x301] sm:$0xff]
      %v2656 = vld [vmem:[%s573 + $0x309] sm:$0xff]
      %v2657 = vld [vmem:[%s573 + $0x319] sm:$0xff]
      %v2658 = vld [vmem:[%s573 + $0x321] sm:$0xff]
      %v2659 = vpack.c.bf16 %v2596, %v2595
      %v2660 = vpack.c.bf16 %v2598, %v2597
      %v2661 = vpack.c.bf16 %v2600, %v2599
      %v2662 = vpack.c.bf16 %v2602, %v2601
      %v2663 = vpack.c.bf16 %v2604, %v2603
      %v2664 = vpack.c.bf16 %v2606, %v2605
      %v2665 = vpack.c.bf16 %v2608, %v2607
      %v2666 = vpack.c.bf16 %v2610, %v2609
      %v2667 = vpack.c.bf16 %v2612, %v2611
      %v2668 = vpack.c.bf16 %v2614, %v2613
      %v2669 = vpack.c.bf16 %v2616, %v2615
      %v2670 = vpack.c.bf16 %v2618, %v2617
      %v2671 = vpack.c.bf16 %v2620, %v2619
      %v2672 = vpack.c.bf16 %v2622, %v2621
      %v2673 = vpack.c.bf16 %v2624, %v2623
      %v2674 = vpack.c.bf16 %v2626, %v2625
      %v2675 = vpack.c.bf16 %v2628, %v2627
      %v2676 = vpack.c.bf16 %v2630, %v2629
      %v2677 = vpack.c.bf16 %v2632, %v2631
      %v2678 = vpack.c.bf16 %v2634, %v2633
      %v2679 = vpack.c.bf16 %v2636, %v2635
      %v2680 = vpack.c.bf16 %v2638, %v2637
      %v2681 = vpack.c.bf16 %v2640, %v2639
      %v2682 = vpack.c.bf16 %v2642, %v2641
      %v2683 = vpack.c.bf16 %v2644, %v2643
      %v2684 = vpack.c.bf16 %v2646, %v2645
      %v2685 = vpack.c.bf16 %v2648, %v2647
      %v2686 = vpack.c.bf16 %v2650, %v2649
      %v2687 = vpack.c.bf16 %v2652, %v2651
      %v2688 = vpack.c.bf16 %v2654, %v2653
      %v2689 = vpack.c.bf16 %v2656, %v2655
      %v2690 = vpack.c.bf16 %v2658, %v2657
      %v2723 = vunpack.c.l.b16 %v2659
      %v2724 = vunpack.c.h.b16 %v2659
      %v2725 = vunpack.c.l.b16 %v2660
      %v2726 = vunpack.c.h.b16 %v2660
      %v2727 = vunpack.c.l.b16 %v2661
      %v2728 = vunpack.c.h.b16 %v2661
      %v2729 = vunpack.c.l.b16 %v2662
      %v2730 = vunpack.c.h.b16 %v2662
      %v2731 = vunpack.c.l.b16 %v2663
      %v2732 = vunpack.c.h.b16 %v2663
      %v2733 = vunpack.c.l.b16 %v2664
      %v2734 = vunpack.c.h.b16 %v2664
      %v2735 = vunpack.c.l.b16 %v2665
      %v2736 = vunpack.c.h.b16 %v2665
      %v2737 = vunpack.c.l.b16 %v2666
      %v2738 = vunpack.c.h.b16 %v2666
      %v2739 = vunpack.c.l.b16 %v2667
      %v2740 = vunpack.c.h.b16 %v2667
      %v2741 = vunpack.c.l.b16 %v2668
      %v2742 = vunpack.c.h.b16 %v2668
      %v2743 = vunpack.c.l.b16 %v2669
      %v2744 = vunpack.c.h.b16 %v2669
      %v2745 = vunpack.c.l.b16 %v2670
      %v2746 = vunpack.c.h.b16 %v2670
      %v2747 = vunpack.c.l.b16 %v2671
      %v2748 = vunpack.c.h.b16 %v2671
      %v2749 = vunpack.c.l.b16 %v2672
      %v2750 = vunpack.c.h.b16 %v2672
      %v2751 = vunpack.c.l.b16 %v2673
      %v2752 = vunpack.c.h.b16 %v2673
      %v2753 = vunpack.c.l.b16 %v2674
      %v2754 = vunpack.c.h.b16 %v2674
      %v2755 = vunpack.c.l.b16 %v2675
      %v2756 = vunpack.c.h.b16 %v2675
      %v2757 = vunpack.c.l.b16 %v2676
      %v2758 = vunpack.c.h.b16 %v2676
      %v2759 = vunpack.c.l.b16 %v2677
      %v2760 = vunpack.c.h.b16 %v2677
      %v2761 = vunpack.c.l.b16 %v2678
      %v2762 = vunpack.c.h.b16 %v2678
      %v2763 = vunpack.c.l.b16 %v2679
      %v2764 = vunpack.c.h.b16 %v2679
      %v2765 = vunpack.c.l.b16 %v2680
      %v2766 = vunpack.c.h.b16 %v2680
      %v2767 = vunpack.c.l.b16 %v2681
      %v2768 = vunpack.c.h.b16 %v2681
      %v2769 = vunpack.c.l.b16 %v2682
      %v2770 = vunpack.c.h.b16 %v2682
      %v2771 = vunpack.c.l.b16 %v2683
      %v2772 = vunpack.c.h.b16 %v2683
      %v2773 = vunpack.c.l.b16 %v2684
      %v2774 = vunpack.c.h.b16 %v2684
      %v2775 = vunpack.c.l.b16 %v2685
      %v2776 = vunpack.c.h.b16 %v2685
      %v2777 = vunpack.c.l.b16 %v2686
      %v2778 = vunpack.c.h.b16 %v2686
      %v2779 = vunpack.c.l.b16 %v2687
      %v2780 = vunpack.c.h.b16 %v2687
      %v2781 = vunpack.c.l.b16 %v2688
      %v2782 = vunpack.c.h.b16 %v2688
      %v2783 = vunpack.c.l.b16 %v2689
      %v2784 = vunpack.c.h.b16 %v2689
      %v2785 = vunpack.c.l.b16 %v2690
      %v2786 = vunpack.c.h.b16 %v2690
      %v2787 = vpack.c.b16 %v2723, %v2723
      %v2788 = vpack.c.b16 %v2724, %v2724
      %v2789 = vpack.c.b16 %v2725, %v2725
      %v2790 = vpack.c.b16 %v2726, %v2726
      %v2791 = vpack.c.b16 %v2727, %v2727
      %v2792 = vpack.c.b16 %v2728, %v2728
      %v2793 = vpack.c.b16 %v2729, %v2729
      %v2794 = vpack.c.b16 %v2730, %v2730
      %v2795 = vpack.c.b16 %v2731, %v2731
      %v2796 = vpack.c.b16 %v2732, %v2732
      %v2797 = vpack.c.b16 %v2733, %v2733
      %v2798 = vpack.c.b16 %v2734, %v2734
      %v2799 = vpack.c.b16 %v2735, %v2735
      %v2800 = vpack.c.b16 %v2736, %v2736
      %v2801 = vpack.c.b16 %v2737, %v2737
      %v2802 = vpack.c.b16 %v2738, %v2738
      %v2803 = vpack.c.b16 %v2739, %v2739
      %v2804 = vpack.c.b16 %v2740, %v2740
      %v2805 = vpack.c.b16 %v2741, %v2741
      %v2806 = vpack.c.b16 %v2742, %v2742
      %v2807 = vpack.c.b16 %v2743, %v2743
      %v2808 = vpack.c.b16 %v2744, %v2744
      %v2809 = vpack.c.b16 %v2745, %v2745
      %v2810 = vpack.c.b16 %v2746, %v2746
      %v2811 = vpack.c.b16 %v2747, %v2747
      %v2812 = vpack.c.b16 %v2748, %v2748
      %v2813 = vpack.c.b16 %v2749, %v2749
      %v2814 = vpack.c.b16 %v2750, %v2750
      %v2815 = vpack.c.b16 %v2751, %v2751
      %v2816 = vpack.c.b16 %v2752, %v2752
      %v2817 = vpack.c.b16 %v2753, %v2753
      %v2818 = vpack.c.b16 %v2754, %v2754
      %v2819 = vpack.c.b16 %v2755, %v2755
      %v2820 = vpack.c.b16 %v2756, %v2756
      %v2821 = vpack.c.b16 %v2757, %v2757
      %v2822 = vpack.c.b16 %v2758, %v2758
      %v2823 = vpack.c.b16 %v2759, %v2759
      %v2824 = vpack.c.b16 %v2760, %v2760
      %v2825 = vpack.c.b16 %v2761, %v2761
      %v2826 = vpack.c.b16 %v2762, %v2762
      %v2827 = vpack.c.b16 %v2763, %v2763
      %v2828 = vpack.c.b16 %v2764, %v2764
      %v2829 = vpack.c.b16 %v2765, %v2765
      %v2830 = vpack.c.b16 %v2766, %v2766
      %v2831 = vpack.c.b16 %v2767, %v2767
      %v2832 = vpack.c.b16 %v2768, %v2768
      %v2833 = vpack.c.b16 %v2769, %v2769
      %v2834 = vpack.c.b16 %v2770, %v2770
      %v2835 = vpack.c.b16 %v2771, %v2771
      %v2836 = vpack.c.b16 %v2772, %v2772
      %v2837 = vpack.c.b16 %v2773, %v2773
      %v2838 = vpack.c.b16 %v2774, %v2774
      %v2839 = vpack.c.b16 %v2775, %v2775
      %v2840 = vpack.c.b16 %v2776, %v2776
      %v2841 = vpack.c.b16 %v2777, %v2777
      %v2842 = vpack.c.b16 %v2778, %v2778
      %v2843 = vpack.c.b16 %v2779, %v2779
      %v2844 = vpack.c.b16 %v2780, %v2780
      %v2845 = vpack.c.b16 %v2781, %v2781
      %v2846 = vpack.c.b16 %v2782, %v2782
      %v2847 = vpack.c.b16 %v2783, %v2783
      %v2848 = vpack.c.b16 %v2784, %v2784
      %v2849 = vpack.c.b16 %v2785, %v2785
      %v2850 = vpack.c.b16 %v2786, %v2786
      %2851 = vrot.lane.b32.xlu0 %v2787, 12
      %v2852 = vpop.permute.xlu0 %2851
      %2853 = vrot.lane.b32.xlu0 %v2788, 12
      %v2854 = vpop.permute.xlu0 %2853
      %2855 = vrot.lane.b32.xlu0 %v2789, 12
      %v2856 = vpop.permute.xlu0 %2855
      %2857 = vrot.lane.b32.xlu0 %v2790, 12
      %v2858 = vpop.permute.xlu0 %2857
      %2859 = vrot.lane.b32.xlu0 %v2791, 12
      %v2860 = vpop.permute.xlu0 %2859
      %2861 = vrot.lane.b32.xlu0 %v2792, 12
      %v2862 = vpop.permute.xlu0 %2861
      %2863 = vrot.lane.b32.xlu0 %v2793, 12
      %v2864 = vpop.permute.xlu0 %2863
      %2865 = vrot.lane.b32.xlu0 %v2794, 12
      %v2866 = vpop.permute.xlu0 %2865
      %2867 = vrot.lane.b32.xlu0 %v2795, 12
      %v2868 = vpop.permute.xlu0 %2867
      %2869 = vrot.lane.b32.xlu0 %v2796, 12
      %v2870 = vpop.permute.xlu0 %2869
      %2871 = vrot.lane.b32.xlu0 %v2797, 12
      %v2872 = vpop.permute.xlu0 %2871
      %2873 = vrot.lane.b32.xlu0 %v2798, 12
      %v2874 = vpop.permute.xlu0 %2873
      %2875 = vrot.lane.b32.xlu0 %v2799, 12
      %v2876 = vpop.permute.xlu0 %2875
      %2877 = vrot.lane.b32.xlu0 %v2800, 12
      %v2878 = vpop.permute.xlu0 %2877
      %2879 = vrot.lane.b32.xlu0 %v2801, 12
      %v2880 = vpop.permute.xlu0 %2879
      %2881 = vrot.lane.b32.xlu0 %v2802, 12
      %v2882 = vpop.permute.xlu0 %2881
      %2883 = vrot.lane.b32.xlu0 %v2803, 12
      %v2884 = vpop.permute.xlu0 %2883
      %2885 = vrot.lane.b32.xlu0 %v2804, 12
      %v2886 = vpop.permute.xlu0 %2885
      %2887 = vrot.lane.b32.xlu0 %v2805, 12
      %v2888 = vpop.permute.xlu0 %2887
      %2889 = vrot.lane.b32.xlu0 %v2806, 12
      %v2890 = vpop.permute.xlu0 %2889
      %2891 = vrot.lane.b32.xlu0 %v2807, 12
      %v2892 = vpop.permute.xlu0 %2891
      %2893 = vrot.lane.b32.xlu0 %v2808, 12
      %v2894 = vpop.permute.xlu0 %2893
      %2895 = vrot.lane.b32.xlu0 %v2809, 12
      %v2896 = vpop.permute.xlu0 %2895
      %2897 = vrot.lane.b32.xlu0 %v2810, 12
      %v2898 = vpop.permute.xlu0 %2897
      %2899 = vrot.lane.b32.xlu0 %v2811, 12
      %v2900 = vpop.permute.xlu0 %2899
      %2901 = vrot.lane.b32.xlu0 %v2812, 12
      %v2902 = vpop.permute.xlu0 %2901
      %2903 = vrot.lane.b32.xlu0 %v2813, 12
      %v2904 = vpop.permute.xlu0 %2903
      %2905 = vrot.lane.b32.xlu0 %v2814, 12
      %v2906 = vpop.permute.xlu0 %2905
      %2907 = vrot.lane.b32.xlu0 %v2815, 12
      %v2908 = vpop.permute.xlu0 %2907
      %2909 = vrot.lane.b32.xlu0 %v2816, 12
      %v2910 = vpop.permute.xlu0 %2909
      %2911 = vrot.lane.b32.xlu0 %v2817, 12
      %v2912 = vpop.permute.xlu0 %2911
      %2913 = vrot.lane.b32.xlu0 %v2818, 12
      %v2914 = vpop.permute.xlu0 %2913
      %2915 = vrot.lane.b32.xlu0 %v2819, 12
      %v2916 = vpop.permute.xlu0 %2915
      %2917 = vrot.lane.b32.xlu0 %v2820, 12
      %v2918 = vpop.permute.xlu0 %2917
      %2919 = vrot.lane.b32.xlu0 %v2821, 12
      %v2920 = vpop.permute.xlu0 %2919
      %2921 = vrot.lane.b32.xlu0 %v2822, 12
      %v2922 = vpop.permute.xlu0 %2921
      %2923 = vrot.lane.b32.xlu0 %v2823, 12
      %v2924 = vpop.permute.xlu0 %2923
      %2925 = vrot.lane.b32.xlu0 %v2824, 12
      %v2926 = vpop.permute.xlu0 %2925
      %2927 = vrot.lane.b32.xlu0 %v2825, 12
      %v2928 = vpop.permute.xlu0 %2927
      %2929 = vrot.lane.b32.xlu0 %v2826, 12
      %v2930 = vpop.permute.xlu0 %2929
      %2931 = vrot.lane.b32.xlu0 %v2827, 12
      %v2932 = vpop.permute.xlu0 %2931
      %2933 = vrot.lane.b32.xlu0 %v2828, 12
      %v2934 = vpop.permute.xlu0 %2933
      %2935 = vrot.lane.b32.xlu0 %v2829, 12
      %v2936 = vpop.permute.xlu0 %2935
      %2937 = vrot.lane.b32.xlu0 %v2830, 12
      %v2938 = vpop.permute.xlu0 %2937
      %2939 = vrot.lane.b32.xlu0 %v2831, 12
      %v2940 = vpop.permute.xlu0 %2939
      %2941 = vrot.lane.b32.xlu0 %v2832, 12
      %v2942 = vpop.permute.xlu0 %2941
      %2943 = vrot.lane.b32.xlu0 %v2833, 12
      %v2944 = vpop.permute.xlu0 %2943
      %2945 = vrot.lane.b32.xlu0 %v2834, 12
      %v2946 = vpop.permute.xlu0 %2945
      %2947 = vrot.lane.b32.xlu0 %v2835, 12
      %v2948 = vpop.permute.xlu0 %2947
      %2949 = vrot.lane.b32.xlu0 %v2836, 12
      %v2950 = vpop.permute.xlu0 %2949
      %2951 = vrot.lane.b32.xlu0 %v2837, 12
      %v2952 = vpop.permute.xlu0 %2951
      %2953 = vrot.lane.b32.xlu0 %v2838, 12
      %v2954 = vpop.permute.xlu0 %2953
      %2955 = vrot.lane.b32.xlu0 %v2839, 12
      %v2956 = vpop.permute.xlu0 %2955
      %2957 = vrot.lane.b32.xlu0 %v2840, 12
      %v2958 = vpop.permute.xlu0 %2957
      %2959 = vrot.lane.b32.xlu0 %v2841, 12
      %v2960 = vpop.permute.xlu0 %2959
      %2961 = vrot.lane.b32.xlu0 %v2842, 12
      %v2962 = vpop.permute.xlu0 %2961
      %2963 = vrot.lane.b32.xlu0 %v2843, 12
      %v2964 = vpop.permute.xlu0 %2963
      %2965 = vrot.lane.b32.xlu0 %v2844, 12
      %v2966 = vpop.permute.xlu0 %2965
      %2967 = vrot.lane.b32.xlu0 %v2845, 12
      %v2968 = vpop.permute.xlu0 %2967
      %2969 = vrot.lane.b32.xlu0 %v2846, 12
      %v2970 = vpop.permute.xlu0 %2969
      %2971 = vrot.lane.b32.xlu0 %v2847, 12
      %v2972 = vpop.permute.xlu0 %2971
      %2973 = vrot.lane.b32.xlu0 %v2848, 12
      %v2974 = vpop.permute.xlu0 %2973
      %2975 = vrot.lane.b32.xlu0 %v2849, 12
      %v2976 = vpop.permute.xlu0 %2975
      %2977 = vrot.lane.b32.xlu0 %v2850, 12
      %v2978 = vpop.permute.xlu0 %2977
      %vm3043 = vcmask 117856
      %3044 = vst.msk [vmem:[#allocation7] sm:$0xf] %vm3043, %v2852
      %3045 = vst.msk [vmem:[#allocation7 + $0x4] sm:$0xf] %vm3043, %v2854
      %3046 = vst.msk [vmem:[#allocation7 + $0x8] sm:$0xf] %vm3043, %v2856
      %3047 = vst.msk [vmem:[#allocation7 + $0xc] sm:$0xf] %vm3043, %v2858
      %3048 = vst.msk [vmem:[#allocation7 + $0x10] sm:$0xf] %vm3043, %v2860
      %3049 = vst.msk [vmem:[#allocation7 + $0x14] sm:$0xf] %vm3043, %v2862
      %3050 = vst.msk [vmem:[#allocation7 + $0x18] sm:$0xf] %vm3043, %v2864
      %3051 = vst.msk [vmem:[#allocation7 + $0x1c] sm:$0xf] %vm3043, %v2866
      %3052 = vst.msk [vmem:[#allocation7 + $0x20] sm:$0xf] %vm3043, %v2868
      %3053 = vst.msk [vmem:[#allocation7 + $0x24] sm:$0xf] %vm3043, %v2870
      %3054 = vst.msk [vmem:[#allocation7 + $0x28] sm:$0xf] %vm3043, %v2872
      %3055 = vst.msk [vmem:[#allocation7 + $0x2c] sm:$0xf] %vm3043, %v2874
      %3056 = vst.msk [vmem:[#allocation7 + $0x30] sm:$0xf] %vm3043, %v2876
      %3057 = vst.msk [vmem:[#allocation7 + $0x34] sm:$0xf] %vm3043, %v2878
      %3058 = vst.msk [vmem:[#allocation7 + $0x38] sm:$0xf] %vm3043, %v2880
      %3059 = vst.msk [vmem:[#allocation7 + $0x3c] sm:$0xf] %vm3043, %v2882
      %3060 = vst.msk [vmem:[#allocation7 + $0x40] sm:$0xf] %vm3043, %v2884
      %3061 = vst.msk [vmem:[#allocation7 + $0x44] sm:$0xf] %vm3043, %v2886
      %3062 = vst.msk [vmem:[#allocation7 + $0x48] sm:$0xf] %vm3043, %v2888
      %3063 = vst.msk [vmem:[#allocation7 + $0x4c] sm:$0xf] %vm3043, %v2890
      %3064 = vst.msk [vmem:[#allocation7 + $0x50] sm:$0xf] %vm3043, %v2892
      %3065 = vst.msk [vmem:[#allocation7 + $0x54] sm:$0xf] %vm3043, %v2894
      %3066 = vst.msk [vmem:[#allocation7 + $0x58] sm:$0xf] %vm3043, %v2896
      %3067 = vst.msk [vmem:[#allocation7 + $0x5c] sm:$0xf] %vm3043, %v2898
      %3068 = vst.msk [vmem:[#allocation7 + $0x60] sm:$0xf] %vm3043, %v2900
      %3069 = vst.msk [vmem:[#allocation7 + $0x64] sm:$0xf] %vm3043, %v2902
      %3070 = vst.msk [vmem:[#allocation7 + $0x68] sm:$0xf] %vm3043, %v2904
      %3071 = vst.msk [vmem:[#allocation7 + $0x6c] sm:$0xf] %vm3043, %v2906
      %3072 = vst.msk [vmem:[#allocation7 + $0x70] sm:$0xf] %vm3043, %v2908
      %3073 = vst.msk [vmem:[#allocation7 + $0x74] sm:$0xf] %vm3043, %v2910
      %3074 = vst.msk [vmem:[#allocation7 + $0x78] sm:$0xf] %vm3043, %v2912
      %3075 = vst.msk [vmem:[#allocation7 + $0x7c] sm:$0xf] %vm3043, %v2914
      %3076 = vst.msk [vmem:[#allocation7 + $0x80] sm:$0xf] %vm3043, %v2916
      %3077 = vst.msk [vmem:[#allocation7 + $0x84] sm:$0xf] %vm3043, %v2918
      %3078 = vst.msk [vmem:[#allocation7 + $0x88] sm:$0xf] %vm3043, %v2920
      %3079 = vst.msk [vmem:[#allocation7 + $0x8c] sm:$0xf] %vm3043, %v2922
      %3080 = vst.msk [vmem:[#allocation7 + $0x90] sm:$0xf] %vm3043, %v2924
      %3081 = vst.msk [vmem:[#allocation7 + $0x94] sm:$0xf] %vm3043, %v2926
      %3082 = vst.msk [vmem:[#allocation7 + $0x98] sm:$0xf] %vm3043, %v2928
      %3083 = vst.msk [vmem:[#allocation7 + $0x9c] sm:$0xf] %vm3043, %v2930
      %3084 = vst.msk [vmem:[#allocation7 + $0xa0] sm:$0xf] %vm3043, %v2932
      %3085 = vst.msk [vmem:[#allocation7 + $0xa4] sm:$0xf] %vm3043, %v2934
      %3086 = vst.msk [vmem:[#allocation7 + $0xa8] sm:$0xf] %vm3043, %v2936
      %3087 = vst.msk [vmem:[#allocation7 + $0xac] sm:$0xf] %vm3043, %v2938
      %3088 = vst.msk [vmem:[#allocation7 + $0xb0] sm:$0xf] %vm3043, %v2940
      %3089 = vst.msk [vmem:[#allocation7 + $0xb4] sm:$0xf] %vm3043, %v2942
      %3090 = vst.msk [vmem:[#allocation7 + $0xb8] sm:$0xf] %vm3043, %v2944
      %3091 = vst.msk [vmem:[#allocation7 + $0xbc] sm:$0xf] %vm3043, %v2946
      %3092 = vst.msk [vmem:[#allocation7 + $0xc0] sm:$0xf] %vm3043, %v2948
      %3093 = vst.msk [vmem:[#allocation7 + $0xc4] sm:$0xf] %vm3043, %v2950
      %3094 = vst.msk [vmem:[#allocation7 + $0xc8] sm:$0xf] %vm3043, %v2952
      %3095 = vst.msk [vmem:[#allocation7 + $0xcc] sm:$0xf] %vm3043, %v2954
      %3096 = vst.msk [vmem:[#allocation7 + $0xd0] sm:$0xf] %vm3043, %v2956
      %3097 = vst.msk [vmem:[#allocation7 + $0xd4] sm:$0xf] %vm3043, %v2958
      %3098 = vst.msk [vmem:[#allocation7 + $0xd8] sm:$0xf] %vm3043, %v2960
      %3099 = vst.msk [vmem:[#allocation7 + $0xdc] sm:$0xf] %vm3043, %v2962
      %3100 = vst.msk [vmem:[#allocation7 + $0xe0] sm:$0xf] %vm3043, %v2964
      %3101 = vst.msk [vmem:[#allocation7 + $0xe4] sm:$0xf] %vm3043, %v2966
      %3102 = vst.msk [vmem:[#allocation7 + $0xe8] sm:$0xf] %vm3043, %v2968
      %3103 = vst.msk [vmem:[#allocation7 + $0xec] sm:$0xf] %vm3043, %v2970
      %3104 = vst.msk [vmem:[#allocation7 + $0xf0] sm:$0xf] %vm3043, %v2972
      %3105 = vst.msk [vmem:[#allocation7 + $0xf4] sm:$0xf] %vm3043, %v2974
      %3106 = vst.msk [vmem:[#allocation7 + $0xf8] sm:$0xf] %vm3043, %v2976
      %3107 = vst.msk [vmem:[#allocation7 + $0xfc] sm:$0xf] %vm3043, %v2978
      %v3108 = vld [vmem:[%s573 + $0x2] sm:$0xff]
      %v3109 = vld [vmem:[%s573 + $0xa] sm:$0xff]
      %v3110 = vld [vmem:[%s573 + $0x1a] sm:$0xff]
      %v3111 = vld [vmem:[%s573 + $0x22] sm:$0xff]
      %v3112 = vld [vmem:[%s573 + $0x32] sm:$0xff]
      %v3113 = vld [vmem:[%s573 + $0x3a] sm:$0xff]
      %v3114 = vld [vmem:[%s573 + $0x4a] sm:$0xff]
      %v3115 = vld [vmem:[%s573 + $0x52] sm:$0xff]
      %v3116 = vld [vmem:[%s573 + $0x62] sm:$0xff]
      %v3117 = vld [vmem:[%s573 + $0x6a] sm:$0xff]
      %v3118 = vld [vmem:[%s573 + $0x7a] sm:$0xff]
      %v3119 = vld [vmem:[%s573 + $0x82] sm:$0xff]
      %v3120 = vld [vmem:[%s573 + $0x92] sm:$0xff]
      %v3121 = vld [vmem:[%s573 + $0x9a] sm:$0xff]
      %v3122 = vld [vmem:[%s573 + $0xaa] sm:$0xff]
      %v3123 = vld [vmem:[%s573 + $0xb2] sm:$0xff]
      %v3124 = vld [vmem:[%s573 + $0xc2] sm:$0xff]
      %v3125 = vld [vmem:[%s573 + $0xca] sm:$0xff]
      %v3126 = vld [vmem:[%s573 + $0xda] sm:$0xff]
      %v3127 = vld [vmem:[%s573 + $0xe2] sm:$0xff]
      %v3128 = vld [vmem:[%s573 + $0xf2] sm:$0xff]
      %v3129 = vld [vmem:[%s573 + $0xfa] sm:$0xff]
      %v3130 = vld [vmem:[%s573 + $0x10a] sm:$0xff]
      %v3131 = vld [vmem:[%s573 + $0x112] sm:$0xff]
      %v3132 = vld [vmem:[%s573 + $0x122] sm:$0xff]
      %v3133 = vld [vmem:[%s573 + $0x12a] sm:$0xff]
      %v3134 = vld [vmem:[%s573 + $0x13a] sm:$0xff]
      %v3135 = vld [vmem:[%s573 + $0x142] sm:$0xff]
      %v3136 = vld [vmem:[%s573 + $0x152] sm:$0xff]
      %v3137 = vld [vmem:[%s573 + $0x15a] sm:$0xff]
      %v3138 = vld [vmem:[%s573 + $0x16a] sm:$0xff]
      %v3139 = vld [vmem:[%s573 + $0x172] sm:$0xff]
      %v3140 = vld [vmem:[%s573 + $0x1b2] sm:$0xff]
      %v3141 = vld [vmem:[%s573 + $0x1ba] sm:$0xff]
      %v3142 = vld [vmem:[%s573 + $0x1ca] sm:$0xff]
      %v3143 = vld [vmem:[%s573 + $0x1d2] sm:$0xff]
      %v3144 = vld [vmem:[%s573 + $0x1e2] sm:$0xff]
      %v3145 = vld [vmem:[%s573 + $0x1ea] sm:$0xff]
      %v3146 = vld [vmem:[%s573 + $0x1fa] sm:$0xff]
      %v3147 = vld [vmem:[%s573 + $0x202] sm:$0xff]
      %v3148 = vld [vmem:[%s573 + $0x212] sm:$0xff]
      %v3149 = vld [vmem:[%s573 + $0x21a] sm:$0xff]
      %v3150 = vld [vmem:[%s573 + $0x22a] sm:$0xff]
      %v3151 = vld [vmem:[%s573 + $0x232] sm:$0xff]
      %v3152 = vld [vmem:[%s573 + $0x242] sm:$0xff]
      %v3153 = vld [vmem:[%s573 + $0x24a] sm:$0xff]
      %v3154 = vld [vmem:[%s573 + $0x25a] sm:$0xff]
      %v3155 = vld [vmem:[%s573 + $0x262] sm:$0xff]
      %v3156 = vld [vmem:[%s573 + $0x272] sm:$0xff]
      %v3157 = vld [vmem:[%s573 + $0x27a] sm:$0xff]
      %v3158 = vld [vmem:[%s573 + $0x28a] sm:$0xff]
      %v3159 = vld [vmem:[%s573 + $0x292] sm:$0xff]
      %v3160 = vld [vmem:[%s573 + $0x2a2] sm:$0xff]
      %v3161 = vld [vmem:[%s573 + $0x2aa] sm:$0xff]
      %v3162 = vld [vmem:[%s573 + $0x2ba] sm:$0xff]
      %v3163 = vld [vmem:[%s573 + $0x2c2] sm:$0xff]
      %v3164 = vld [vmem:[%s573 + $0x2d2] sm:$0xff]
      %v3165 = vld [vmem:[%s573 + $0x2da] sm:$0xff]
      %v3166 = vld [vmem:[%s573 + $0x2ea] sm:$0xff]
      %v3167 = vld [vmem:[%s573 + $0x2f2] sm:$0xff]
      %v3168 = vld [vmem:[%s573 + $0x302] sm:$0xff]
      %v3169 = vld [vmem:[%s573 + $0x30a] sm:$0xff]
      %v3170 = vld [vmem:[%s573 + $0x31a] sm:$0xff]
      %v3171 = vld [vmem:[%s573 + $0x322] sm:$0xff]
      %v3172 = vpack.c.bf16 %v3109, %v3108
      %v3173 = vpack.c.bf16 %v3111, %v3110
      %v3174 = vpack.c.bf16 %v3113, %v3112
      %v3175 = vpack.c.bf16 %v3115, %v3114
      %v3176 = vpack.c.bf16 %v3117, %v3116
      %v3177 = vpack.c.bf16 %v3119, %v3118
      %v3178 = vpack.c.bf16 %v3121, %v3120
      %v3179 = vpack.c.bf16 %v3123, %v3122
      %v3180 = vpack.c.bf16 %v3125, %v3124
      %v3181 = vpack.c.bf16 %v3127, %v3126
      %v3182 = vpack.c.bf16 %v3129, %v3128
      %v3183 = vpack.c.bf16 %v3131, %v3130
      %v3184 = vpack.c.bf16 %v3133, %v3132
      %v3185 = vpack.c.bf16 %v3135, %v3134
      %v3186 = vpack.c.bf16 %v3137, %v3136
      %v3187 = vpack.c.bf16 %v3139, %v3138
      %v3188 = vpack.c.bf16 %v3141, %v3140
      %v3189 = vpack.c.bf16 %v3143, %v3142
      %v3190 = vpack.c.bf16 %v3145, %v3144
      %v3191 = vpack.c.bf16 %v3147, %v3146
      %v3192 = vpack.c.bf16 %v3149, %v3148
      %v3193 = vpack.c.bf16 %v3151, %v3150
      %v3194 = vpack.c.bf16 %v3153, %v3152
      %v3195 = vpack.c.bf16 %v3155, %v3154
      %v3196 = vpack.c.bf16 %v3157, %v3156
      %v3197 = vpack.c.bf16 %v3159, %v3158
      %v3198 = vpack.c.bf16 %v3161, %v3160
      %v3199 = vpack.c.bf16 %v3163, %v3162
      %v3200 = vpack.c.bf16 %v3165, %v3164
      %v3201 = vpack.c.bf16 %v3167, %v3166
      %v3202 = vpack.c.bf16 %v3169, %v3168
      %v3203 = vpack.c.bf16 %v3171, %v3170
      %v3236 = vunpack.c.l.b16 %v3172
      %v3237 = vunpack.c.h.b16 %v3172
      %v3238 = vunpack.c.l.b16 %v3173
      %v3239 = vunpack.c.h.b16 %v3173
      %v3240 = vunpack.c.l.b16 %v3174
      %v3241 = vunpack.c.h.b16 %v3174
      %v3242 = vunpack.c.l.b16 %v3175
      %v3243 = vunpack.c.h.b16 %v3175
      %v3244 = vunpack.c.l.b16 %v3176
      %v3245 = vunpack.c.h.b16 %v3176
      %v3246 = vunpack.c.l.b16 %v3177
      %v3247 = vunpack.c.h.b16 %v3177
      %v3248 = vunpack.c.l.b16 %v3178
      %v3249 = vunpack.c.h.b16 %v3178
      %v3250 = vunpack.c.l.b16 %v3179
      %v3251 = vunpack.c.h.b16 %v3179
      %v3252 = vunpack.c.l.b16 %v3180
      %v3253 = vunpack.c.h.b16 %v3180
      %v3254 = vunpack.c.l.b16 %v3181
      %v3255 = vunpack.c.h.b16 %v3181
      %v3256 = vunpack.c.l.b16 %v3182
      %v3257 = vunpack.c.h.b16 %v3182
      %v3258 = vunpack.c.l.b16 %v3183
      %v3259 = vunpack.c.h.b16 %v3183
      %v3260 = vunpack.c.l.b16 %v3184
      %v3261 = vunpack.c.h.b16 %v3184
      %v3262 = vunpack.c.l.b16 %v3185
      %v3263 = vunpack.c.h.b16 %v3185
      %v3264 = vunpack.c.l.b16 %v3186
      %v3265 = vunpack.c.h.b16 %v3186
      %v3266 = vunpack.c.l.b16 %v3187
      %v3267 = vunpack.c.h.b16 %v3187
      %v3268 = vunpack.c.l.b16 %v3188
      %v3269 = vunpack.c.h.b16 %v3188
      %v3270 = vunpack.c.l.b16 %v3189
      %v3271 = vunpack.c.h.b16 %v3189
      %v3272 = vunpack.c.l.b16 %v3190
      %v3273 = vunpack.c.h.b16 %v3190
      %v3274 = vunpack.c.l.b16 %v3191
      %v3275 = vunpack.c.h.b16 %v3191
      %v3276 = vunpack.c.l.b16 %v3192
      %v3277 = vunpack.c.h.b16 %v3192
      %v3278 = vunpack.c.l.b16 %v3193
      %v3279 = vunpack.c.h.b16 %v3193
      %v3280 = vunpack.c.l.b16 %v3194
      %v3281 = vunpack.c.h.b16 %v3194
      %v3282 = vunpack.c.l.b16 %v3195
      %v3283 = vunpack.c.h.b16 %v3195
      %v3284 = vunpack.c.l.b16 %v3196
      %v3285 = vunpack.c.h.b16 %v3196
      %v3286 = vunpack.c.l.b16 %v3197
      %v3287 = vunpack.c.h.b16 %v3197
      %v3288 = vunpack.c.l.b16 %v3198
      %v3289 = vunpack.c.h.b16 %v3198
      %v3290 = vunpack.c.l.b16 %v3199
      %v3291 = vunpack.c.h.b16 %v3199
      %v3292 = vunpack.c.l.b16 %v3200
      %v3293 = vunpack.c.h.b16 %v3200
      %v3294 = vunpack.c.l.b16 %v3201
      %v3295 = vunpack.c.h.b16 %v3201
      %v3296 = vunpack.c.l.b16 %v3202
      %v3297 = vunpack.c.h.b16 %v3202
      %v3298 = vunpack.c.l.b16 %v3203
      %v3299 = vunpack.c.h.b16 %v3203
      %v3300 = vpack.c.b16 %v3236, %v3236
      %v3301 = vpack.c.b16 %v3237, %v3237
      %v3302 = vpack.c.b16 %v3238, %v3238
      %v3303 = vpack.c.b16 %v3239, %v3239
      %v3304 = vpack.c.b16 %v3240, %v3240
      %v3305 = vpack.c.b16 %v3241, %v3241
      %v3306 = vpack.c.b16 %v3242, %v3242
      %v3307 = vpack.c.b16 %v3243, %v3243
      %v3308 = vpack.c.b16 %v3244, %v3244
      %v3309 = vpack.c.b16 %v3245, %v3245
      %v3310 = vpack.c.b16 %v3246, %v3246
      %v3311 = vpack.c.b16 %v3247, %v3247
      %v3312 = vpack.c.b16 %v3248, %v3248
      %v3313 = vpack.c.b16 %v3249, %v3249
      %v3314 = vpack.c.b16 %v3250, %v3250
      %v3315 = vpack.c.b16 %v3251, %v3251
      %v3316 = vpack.c.b16 %v3252, %v3252
      %v3317 = vpack.c.b16 %v3253, %v3253
      %v3318 = vpack.c.b16 %v3254, %v3254
      %v3319 = vpack.c.b16 %v3255, %v3255
      %v3320 = vpack.c.b16 %v3256, %v3256
      %v3321 = vpack.c.b16 %v3257, %v3257
      %v3322 = vpack.c.b16 %v3258, %v3258
      %v3323 = vpack.c.b16 %v3259, %v3259
      %v3324 = vpack.c.b16 %v3260, %v3260
      %v3325 = vpack.c.b16 %v3261, %v3261
      %v3326 = vpack.c.b16 %v3262, %v3262
      %v3327 = vpack.c.b16 %v3263, %v3263
      %v3328 = vpack.c.b16 %v3264, %v3264
      %v3329 = vpack.c.b16 %v3265, %v3265
      %v3330 = vpack.c.b16 %v3266, %v3266
      %v3331 = vpack.c.b16 %v3267, %v3267
      %v3332 = vpack.c.b16 %v3268, %v3268
      %v3333 = vpack.c.b16 %v3269, %v3269
      %v3334 = vpack.c.b16 %v3270, %v3270
      %v3335 = vpack.c.b16 %v3271, %v3271
      %v3336 = vpack.c.b16 %v3272, %v3272
      %v3337 = vpack.c.b16 %v3273, %v3273
      %v3338 = vpack.c.b16 %v3274, %v3274
      %v3339 = vpack.c.b16 %v3275, %v3275
      %v3340 = vpack.c.b16 %v3276, %v3276
      %v3341 = vpack.c.b16 %v3277, %v3277
      %v3342 = vpack.c.b16 %v3278, %v3278
      %v3343 = vpack.c.b16 %v3279, %v3279
      %v3344 = vpack.c.b16 %v3280, %v3280
      %v3345 = vpack.c.b16 %v3281, %v3281
      %v3346 = vpack.c.b16 %v3282, %v3282
      %v3347 = vpack.c.b16 %v3283, %v3283
      %v3348 = vpack.c.b16 %v3284, %v3284
      %v3349 = vpack.c.b16 %v3285, %v3285
      %v3350 = vpack.c.b16 %v3286, %v3286
      %v3351 = vpack.c.b16 %v3287, %v3287
      %v3352 = vpack.c.b16 %v3288, %v3288
      %v3353 = vpack.c.b16 %v3289, %v3289
      %v3354 = vpack.c.b16 %v3290, %v3290
      %v3355 = vpack.c.b16 %v3291, %v3291
      %v3356 = vpack.c.b16 %v3292, %v3292
      %v3357 = vpack.c.b16 %v3293, %v3293
      %v3358 = vpack.c.b16 %v3294, %v3294
      %v3359 = vpack.c.b16 %v3295, %v3295
      %v3360 = vpack.c.b16 %v3296, %v3296
      %v3361 = vpack.c.b16 %v3297, %v3297
      %v3362 = vpack.c.b16 %v3298, %v3298
      %v3363 = vpack.c.b16 %v3299, %v3299
      %3364 = vrot.lane.b32.xlu0 %v3300, 15
      %v3365 = vpop.permute.xlu0 %3364
      %3366 = vrot.lane.b32.xlu0 %v3301, 15
      %v3367 = vpop.permute.xlu0 %3366
      %3368 = vrot.lane.b32.xlu0 %v3302, 15
      %v3369 = vpop.permute.xlu0 %3368
      %3370 = vrot.lane.b32.xlu0 %v3303, 15
      %v3371 = vpop.permute.xlu0 %3370
      %3372 = vrot.lane.b32.xlu0 %v3304, 15
      %v3373 = vpop.permute.xlu0 %3372
      %3374 = vrot.lane.b32.xlu0 %v3305, 15
      %v3375 = vpop.permute.xlu0 %3374
      %3376 = vrot.lane.b32.xlu0 %v3306, 15
      %v3377 = vpop.permute.xlu0 %3376
      %3378 = vrot.lane.b32.xlu0 %v3307, 15
      %v3379 = vpop.permute.xlu0 %3378
      %3380 = vrot.lane.b32.xlu0 %v3308, 15
      %v3381 = vpop.permute.xlu0 %3380
      %3382 = vrot.lane.b32.xlu0 %v3309, 15
      %v3383 = vpop.permute.xlu0 %3382
      %3384 = vrot.lane.b32.xlu0 %v3310, 15
      %v3385 = vpop.permute.xlu0 %3384
      %3386 = vrot.lane.b32.xlu0 %v3311, 15
      %v3387 = vpop.permute.xlu0 %3386
      %3388 = vrot.lane.b32.xlu0 %v3312, 15
      %v3389 = vpop.permute.xlu0 %3388
      %3390 = vrot.lane.b32.xlu0 %v3313, 15
      %v3391 = vpop.permute.xlu0 %3390
      %3392 = vrot.lane.b32.xlu0 %v3314, 15
      %v3393 = vpop.permute.xlu0 %3392
      %3394 = vrot.lane.b32.xlu0 %v3315, 15
      %v3395 = vpop.permute.xlu0 %3394
      %3396 = vrot.lane.b32.xlu0 %v3316, 15
      %v3397 = vpop.permute.xlu0 %3396
      %3398 = vrot.lane.b32.xlu0 %v3317, 15
      %v3399 = vpop.permute.xlu0 %3398
      %3400 = vrot.lane.b32.xlu0 %v3318, 15
      %v3401 = vpop.permute.xlu0 %3400
      %3402 = vrot.lane.b32.xlu0 %v3319, 15
      %v3403 = vpop.permute.xlu0 %3402
      %3404 = vrot.lane.b32.xlu0 %v3320, 15
      %v3405 = vpop.permute.xlu0 %3404
      %3406 = vrot.lane.b32.xlu0 %v3321, 15
      %v3407 = vpop.permute.xlu0 %3406
      %3408 = vrot.lane.b32.xlu0 %v3322, 15
      %v3409 = vpop.permute.xlu0 %3408
      %3410 = vrot.lane.b32.xlu0 %v3323, 15
      %v3411 = vpop.permute.xlu0 %3410
      %3412 = vrot.lane.b32.xlu0 %v3324, 15
      %v3413 = vpop.permute.xlu0 %3412
      %3414 = vrot.lane.b32.xlu0 %v3325, 15
      %v3415 = vpop.permute.xlu0 %3414
      %3416 = vrot.lane.b32.xlu0 %v3326, 15
      %v3417 = vpop.permute.xlu0 %3416
      %3418 = vrot.lane.b32.xlu0 %v3327, 15
      %v3419 = vpop.permute.xlu0 %3418
      %3420 = vrot.lane.b32.xlu0 %v3328, 15
      %v3421 = vpop.permute.xlu0 %3420
      %3422 = vrot.lane.b32.xlu0 %v3329, 15
      %v3423 = vpop.permute.xlu0 %3422
      %3424 = vrot.lane.b32.xlu0 %v3330, 15
      %v3425 = vpop.permute.xlu0 %3424
      %3426 = vrot.lane.b32.xlu0 %v3331, 15
      %v3427 = vpop.permute.xlu0 %3426
      %3428 = vrot.lane.b32.xlu0 %v3332, 15
      %v3429 = vpop.permute.xlu0 %3428
      %3430 = vrot.lane.b32.xlu0 %v3333, 15
      %v3431 = vpop.permute.xlu0 %3430
      %3432 = vrot.lane.b32.xlu0 %v3334, 15
      %v3433 = vpop.permute.xlu0 %3432
      %3434 = vrot.lane.b32.xlu0 %v3335, 15
      %v3435 = vpop.permute.xlu0 %3434
      %3436 = vrot.lane.b32.xlu0 %v3336, 15
      %v3437 = vpop.permute.xlu0 %3436
      %3438 = vrot.lane.b32.xlu0 %v3337, 15
      %v3439 = vpop.permute.xlu0 %3438
      %3440 = vrot.lane.b32.xlu0 %v3338, 15
      %v3441 = vpop.permute.xlu0 %3440
      %3442 = vrot.lane.b32.xlu0 %v3339, 15
      %v3443 = vpop.permute.xlu0 %3442
      %3444 = vrot.lane.b32.xlu0 %v3340, 15
      %v3445 = vpop.permute.xlu0 %3444
      %3446 = vrot.lane.b32.xlu0 %v3341, 15
      %v3447 = vpop.permute.xlu0 %3446
      %3448 = vrot.lane.b32.xlu0 %v3342, 15
      %v3449 = vpop.permute.xlu0 %3448
      %3450 = vrot.lane.b32.xlu0 %v3343, 15
      %v3451 = vpop.permute.xlu0 %3450
      %3452 = vrot.lane.b32.xlu0 %v3344, 15
      %v3453 = vpop.permute.xlu0 %3452
      %3454 = vrot.lane.b32.xlu0 %v3345, 15
      %v3455 = vpop.permute.xlu0 %3454
      %3456 = vrot.lane.b32.xlu0 %v3346, 15
      %v3457 = vpop.permute.xlu0 %3456
      %3458 = vrot.lane.b32.xlu0 %v3347, 15
      %v3459 = vpop.permute.xlu0 %3458
      %3460 = vrot.lane.b32.xlu0 %v3348, 15
      %v3461 = vpop.permute.xlu0 %3460
      %3462 = vrot.lane.b32.xlu0 %v3349, 15
      %v3463 = vpop.permute.xlu0 %3462
      %3464 = vrot.lane.b32.xlu0 %v3350, 15
      %v3465 = vpop.permute.xlu0 %3464
      %3466 = vrot.lane.b32.xlu0 %v3351, 15
      %v3467 = vpop.permute.xlu0 %3466
      %3468 = vrot.lane.b32.xlu0 %v3352, 15
      %v3469 = vpop.permute.xlu0 %3468
      %3470 = vrot.lane.b32.xlu0 %v3353, 15
      %v3471 = vpop.permute.xlu0 %3470
      %3472 = vrot.lane.b32.xlu0 %v3354, 15
      %v3473 = vpop.permute.xlu0 %3472
      %3474 = vrot.lane.b32.xlu0 %v3355, 15
      %v3475 = vpop.permute.xlu0 %3474
      %3476 = vrot.lane.b32.xlu0 %v3356, 15
      %v3477 = vpop.permute.xlu0 %3476
      %3478 = vrot.lane.b32.xlu0 %v3357, 15
      %v3479 = vpop.permute.xlu0 %3478
      %3480 = vrot.lane.b32.xlu0 %v3358, 15
      %v3481 = vpop.permute.xlu0 %3480
      %3482 = vrot.lane.b32.xlu0 %v3359, 15
      %v3483 = vpop.permute.xlu0 %3482
      %3484 = vrot.lane.b32.xlu0 %v3360, 15
      %v3485 = vpop.permute.xlu0 %3484
      %3486 = vrot.lane.b32.xlu0 %v3361, 15
      %v3487 = vpop.permute.xlu0 %3486
      %3488 = vrot.lane.b32.xlu0 %v3362, 15
      %v3489 = vpop.permute.xlu0 %3488
      %3490 = vrot.lane.b32.xlu0 %v3363, 15
      %v3491 = vpop.permute.xlu0 %3490
      %vm3556 = vcmask 142456
      %3557 = vst.msk [vmem:[#allocation7] sm:$0xf] %vm3556, %v3365
      %3558 = vst.msk [vmem:[#allocation7 + $0x4] sm:$0xf] %vm3556, %v3367
      %3559 = vst.msk [vmem:[#allocation7 + $0x8] sm:$0xf] %vm3556, %v3369
      %3560 = vst.msk [vmem:[#allocation7 + $0xc] sm:$0xf] %vm3556, %v3371
      %3561 = vst.msk [vmem:[#allocation7 + $0x10] sm:$0xf] %vm3556, %v3373
      %3562 = vst.msk [vmem:[#allocation7 + $0x14] sm:$0xf] %vm3556, %v3375
      %3563 = vst.msk [vmem:[#allocation7 + $0x18] sm:$0xf] %vm3556, %v3377
      %3564 = vst.msk [vmem:[#allocation7 + $0x1c] sm:$0xf] %vm3556, %v3379
      %3565 = vst.msk [vmem:[#allocation7 + $0x20] sm:$0xf] %vm3556, %v3381
      %3566 = vst.msk [vmem:[#allocation7 + $0x24] sm:$0xf] %vm3556, %v3383
      %3567 = vst.msk [vmem:[#allocation7 + $0x28] sm:$0xf] %vm3556, %v3385
      %3568 = vst.msk [vmem:[#allocation7 + $0x2c] sm:$0xf] %vm3556, %v3387
      %3569 = vst.msk [vmem:[#allocation7 + $0x30] sm:$0xf] %vm3556, %v3389
      %3570 = vst.msk [vmem:[#allocation7 + $0x34] sm:$0xf] %vm3556, %v3391
      %3571 = vst.msk [vmem:[#allocation7 + $0x38] sm:$0xf] %vm3556, %v3393
      %3572 = vst.msk [vmem:[#allocation7 + $0x3c] sm:$0xf] %vm3556, %v3395
      %3573 = vst.msk [vmem:[#allocation7 + $0x40] sm:$0xf] %vm3556, %v3397
      %3574 = vst.msk [vmem:[#allocation7 + $0x44] sm:$0xf] %vm3556, %v3399
      %3575 = vst.msk [vmem:[#allocation7 + $0x48] sm:$0xf] %vm3556, %v3401
      %3576 = vst.msk [vmem:[#allocation7 + $0x4c] sm:$0xf] %vm3556, %v3403
      %3577 = vst.msk [vmem:[#allocation7 + $0x50] sm:$0xf] %vm3556, %v3405
      %3578 = vst.msk [vmem:[#allocation7 + $0x54] sm:$0xf] %vm3556, %v3407
      %3579 = vst.msk [vmem:[#allocation7 + $0x58] sm:$0xf] %vm3556, %v3409
      %3580 = vst.msk [vmem:[#allocation7 + $0x5c] sm:$0xf] %vm3556, %v3411
      %3581 = vst.msk [vmem:[#allocation7 + $0x60] sm:$0xf] %vm3556, %v3413
      %3582 = vst.msk [vmem:[#allocation7 + $0x64] sm:$0xf] %vm3556, %v3415
      %3583 = vst.msk [vmem:[#allocation7 + $0x68] sm:$0xf] %vm3556, %v3417
      %3584 = vst.msk [vmem:[#allocation7 + $0x6c] sm:$0xf] %vm3556, %v3419
      %3585 = vst.msk [vmem:[#allocation7 + $0x70] sm:$0xf] %vm3556, %v3421
      %3586 = vst.msk [vmem:[#allocation7 + $0x74] sm:$0xf] %vm3556, %v3423
      %3587 = vst.msk [vmem:[#allocation7 + $0x78] sm:$0xf] %vm3556, %v3425
      %3588 = vst.msk [vmem:[#allocation7 + $0x7c] sm:$0xf] %vm3556, %v3427
      %3589 = vst.msk [vmem:[#allocation7 + $0x80] sm:$0xf] %vm3556, %v3429
      %3590 = vst.msk [vmem:[#allocation7 + $0x84] sm:$0xf] %vm3556, %v3431
      %3591 = vst.msk [vmem:[#allocation7 + $0x88] sm:$0xf] %vm3556, %v3433
      %3592 = vst.msk [vmem:[#allocation7 + $0x8c] sm:$0xf] %vm3556, %v3435
      %3593 = vst.msk [vmem:[#allocation7 + $0x90] sm:$0xf] %vm3556, %v3437
      %3594 = vst.msk [vmem:[#allocation7 + $0x94] sm:$0xf] %vm3556, %v3439
      %3595 = vst.msk [vmem:[#allocation7 + $0x98] sm:$0xf] %vm3556, %v3441
      %3596 = vst.msk [vmem:[#allocation7 + $0x9c] sm:$0xf] %vm3556, %v3443
      %3597 = vst.msk [vmem:[#allocation7 + $0xa0] sm:$0xf] %vm3556, %v3445
      %3598 = vst.msk [vmem:[#allocation7 + $0xa4] sm:$0xf] %vm3556, %v3447
      %3599 = vst.msk [vmem:[#allocation7 + $0xa8] sm:$0xf] %vm3556, %v3449
      %3600 = vst.msk [vmem:[#allocation7 + $0xac] sm:$0xf] %vm3556, %v3451
      %3601 = vst.msk [vmem:[#allocation7 + $0xb0] sm:$0xf] %vm3556, %v3453
      %3602 = vst.msk [vmem:[#allocation7 + $0xb4] sm:$0xf] %vm3556, %v3455
      %3603 = vst.msk [vmem:[#allocation7 + $0xb8] sm:$0xf] %vm3556, %v3457
      %3604 = vst.msk [vmem:[#allocation7 + $0xbc] sm:$0xf] %vm3556, %v3459
      %3605 = vst.msk [vmem:[#allocation7 + $0xc0] sm:$0xf] %vm3556, %v3461
      %3606 = vst.msk [vmem:[#allocation7 + $0xc4] sm:$0xf] %vm3556, %v3463
      %3607 = vst.msk [vmem:[#allocation7 + $0xc8] sm:$0xf] %vm3556, %v3465
      %3608 = vst.msk [vmem:[#allocation7 + $0xcc] sm:$0xf] %vm3556, %v3467
      %3609 = vst.msk [vmem:[#allocation7 + $0xd0] sm:$0xf] %vm3556, %v3469
      %3610 = vst.msk [vmem:[#allocation7 + $0xd4] sm:$0xf] %vm3556, %v3471
      %3611 = vst.msk [vmem:[#allocation7 + $0xd8] sm:$0xf] %vm3556, %v3473
      %3612 = vst.msk [vmem:[#allocation7 + $0xdc] sm:$0xf] %vm3556, %v3475
      %3613 = vst.msk [vmem:[#allocation7 + $0xe0] sm:$0xf] %vm3556, %v3477
      %3614 = vst.msk [vmem:[#allocation7 + $0xe4] sm:$0xf] %vm3556, %v3479
      %3615 = vst.msk [vmem:[#allocation7 + $0xe8] sm:$0xf] %vm3556, %v3481
      %3616 = vst.msk [vmem:[#allocation7 + $0xec] sm:$0xf] %vm3556, %v3483
      %3617 = vst.msk [vmem:[#allocation7 + $0xf0] sm:$0xf] %vm3556, %v3485
      %3618 = vst.msk [vmem:[#allocation7 + $0xf4] sm:$0xf] %vm3556, %v3487
      %3619 = vst.msk [vmem:[#allocation7 + $0xf8] sm:$0xf] %vm3556, %v3489
      %3620 = vst.msk [vmem:[#allocation7 + $0xfc] sm:$0xf] %vm3556, %v3491
      %s3621 = scalar_lea.vmem [#allocation2], 48
      %v3622 = vld [vmem:[%s3621] sm:$0xff]
      %v3623 = vld [vmem:[%s3621 + $0x8] sm:$0xff]
      %v3624 = vld [vmem:[%s3621 + $0x18] sm:$0xff]
      %v3625 = vld [vmem:[%s3621 + $0x20] sm:$0xff]
      %v3626 = vld [vmem:[%s3621 + $0x30] sm:$0xff]
      %v3627 = vld [vmem:[%s3621 + $0x38] sm:$0xff]
      %v3628 = vld [vmem:[%s3621 + $0x48] sm:$0xff]
      %v3629 = vld [vmem:[%s3621 + $0x50] sm:$0xff]
      %v3630 = vld [vmem:[%s3621 + $0x60] sm:$0xff]
      %v3631 = vld [vmem:[%s3621 + $0x68] sm:$0xff]
      %v3632 = vld [vmem:[%s3621 + $0x78] sm:$0xff]
      %v3633 = vld [vmem:[%s3621 + $0x80] sm:$0xff]
      %v3634 = vld [vmem:[%s3621 + $0x90] sm:$0xff]
      %v3635 = vld [vmem:[%s3621 + $0x98] sm:$0xff]
      %v3636 = vld [vmem:[%s3621 + $0xa8] sm:$0xff]
      %v3637 = vld [vmem:[%s3621 + $0xb0] sm:$0xff]
      %v3638 = vld [vmem:[%s3621 + $0xc0] sm:$0xff]
      %v3639 = vld [vmem:[%s3621 + $0xc8] sm:$0xff]
      %v3640 = vld [vmem:[%s3621 + $0xd8] sm:$0xff]
      %v3641 = vld [vmem:[%s3621 + $0xe0] sm:$0xff]
      %v3642 = vld [vmem:[%s3621 + $0xf0] sm:$0xff]
      %v3643 = vld [vmem:[%s3621 + $0xf8] sm:$0xff]
      %v3644 = vld [vmem:[%s3621 + $0x108] sm:$0xff]
      %v3645 = vld [vmem:[%s3621 + $0x110] sm:$0xff]
      %v3646 = vld [vmem:[%s3621 + $0x120] sm:$0xff]
      %v3647 = vld [vmem:[%s3621 + $0x128] sm:$0xff]
      %v3648 = vld [vmem:[%s3621 + $0x138] sm:$0xff]
      %v3649 = vld [vmem:[%s3621 + $0x140] sm:$0xff]
      %v3650 = vld [vmem:[%s3621 + $0x150] sm:$0xff]
      %v3651 = vld [vmem:[%s3621 + $0x158] sm:$0xff]
      %v3652 = vld [vmem:[%s3621 + $0x168] sm:$0xff]
      %v3653 = vld [vmem:[%s3621 + $0x170] sm:$0xff]
      %v3654 = vld [vmem:[%s3621 + $0x1b0] sm:$0xff]
      %v3655 = vld [vmem:[%s3621 + $0x1b8] sm:$0xff]
      %v3656 = vld [vmem:[%s3621 + $0x1c8] sm:$0xff]
      %v3657 = vld [vmem:[%s3621 + $0x1d0] sm:$0xff]
      %v3658 = vld [vmem:[%s3621 + $0x1e0] sm:$0xff]
      %v3659 = vld [vmem:[%s3621 + $0x1e8] sm:$0xff]
      %v3660 = vld [vmem:[%s3621 + $0x1f8] sm:$0xff]
      %v3661 = vld [vmem:[%s3621 + $0x200] sm:$0xff]
      %v3662 = vld [vmem:[%s3621 + $0x210] sm:$0xff]
      %v3663 = vld [vmem:[%s3621 + $0x218] sm:$0xff]
      %v3664 = vld [vmem:[%s3621 + $0x228] sm:$0xff]
      %v3665 = vld [vmem:[%s3621 + $0x230] sm:$0xff]
      %v3666 = vld [vmem:[%s3621 + $0x240] sm:$0xff]
      %v3667 = vld [vmem:[%s3621 + $0x248] sm:$0xff]
      %v3668 = vld [vmem:[%s3621 + $0x258] sm:$0xff]
      %v3669 = vld [vmem:[%s3621 + $0x260] sm:$0xff]
      %v3670 = vld [vmem:[%s3621 + $0x270] sm:$0xff]
      %v3671 = vld [vmem:[%s3621 + $0x278] sm:$0xff]
      %v3672 = vld [vmem:[%s3621 + $0x288] sm:$0xff]
      %v3673 = vld [vmem:[%s3621 + $0x290] sm:$0xff]
      %v3674 = vld [vmem:[%s3621 + $0x2a0] sm:$0xff]
      %v3675 = vld [vmem:[%s3621 + $0x2a8] sm:$0xff]
      %v3676 = vld [vmem:[%s3621 + $0x2b8] sm:$0xff]
      %v3677 = vld [vmem:[%s3621 + $0x2c0] sm:$0xff]
      %v3678 = vld [vmem:[%s3621 + $0x2d0] sm:$0xff]
      %v3679 = vld [vmem:[%s3621 + $0x2d8] sm:$0xff]
      %v3680 = vld [vmem:[%s3621 + $0x2e8] sm:$0xff]
      %v3681 = vld [vmem:[%s3621 + $0x2f0] sm:$0xff]
      %v3682 = vld [vmem:[%s3621 + $0x300] sm:$0xff]
      %v3683 = vld [vmem:[%s3621 + $0x308] sm:$0xff]
      %v3684 = vld [vmem:[%s3621 + $0x318] sm:$0xff]
      %v3685 = vld [vmem:[%s3621 + $0x320] sm:$0xff]
      %v3686 = vpack.c.bf16 %v3623, %v3622
      %v3687 = vpack.c.bf16 %v3625, %v3624
      %v3688 = vpack.c.bf16 %v3627, %v3626
      %v3689 = vpack.c.bf16 %v3629, %v3628
      %v3690 = vpack.c.bf16 %v3631, %v3630
      %v3691 = vpack.c.bf16 %v3633, %v3632
      %v3692 = vpack.c.bf16 %v3635, %v3634
      %v3693 = vpack.c.bf16 %v3637, %v3636
      %v3694 = vpack.c.bf16 %v3639, %v3638
      %v3695 = vpack.c.bf16 %v3641, %v3640
      %v3696 = vpack.c.bf16 %v3643, %v3642
      %v3697 = vpack.c.bf16 %v3645, %v3644
      %v3698 = vpack.c.bf16 %v3647, %v3646
      %v3699 = vpack.c.bf16 %v3649, %v3648
      %v3700 = vpack.c.bf16 %v3651, %v3650
      %v3701 = vpack.c.bf16 %v3653, %v3652
      %v3702 = vpack.c.bf16 %v3655, %v3654
      %v3703 = vpack.c.bf16 %v3657, %v3656
      %v3704 = vpack.c.bf16 %v3659, %v3658
      %v3705 = vpack.c.bf16 %v3661, %v3660
      %v3706 = vpack.c.bf16 %v3663, %v3662
      %v3707 = vpack.c.bf16 %v3665, %v3664
      %v3708 = vpack.c.bf16 %v3667, %v3666
      %v3709 = vpack.c.bf16 %v3669, %v3668
      %v3710 = vpack.c.bf16 %v3671, %v3670
      %v3711 = vpack.c.bf16 %v3673, %v3672
      %v3712 = vpack.c.bf16 %v3675, %v3674
      %v3713 = vpack.c.bf16 %v3677, %v3676
      %v3714 = vpack.c.bf16 %v3679, %v3678
      %v3715 = vpack.c.bf16 %v3681, %v3680
      %v3716 = vpack.c.bf16 %v3683, %v3682
      %v3717 = vpack.c.bf16 %v3685, %v3684
      %v3750 = vunpack.c.l.b16 %v3686
      %v3751 = vunpack.c.h.b16 %v3686
      %v3752 = vunpack.c.l.b16 %v3687
      %v3753 = vunpack.c.h.b16 %v3687
      %v3754 = vunpack.c.l.b16 %v3688
      %v3755 = vunpack.c.h.b16 %v3688
      %v3756 = vunpack.c.l.b16 %v3689
      %v3757 = vunpack.c.h.b16 %v3689
      %v3758 = vunpack.c.l.b16 %v3690
      %v3759 = vunpack.c.h.b16 %v3690
      %v3760 = vunpack.c.l.b16 %v3691
      %v3761 = vunpack.c.h.b16 %v3691
      %v3762 = vunpack.c.l.b16 %v3692
      %v3763 = vunpack.c.h.b16 %v3692
      %v3764 = vunpack.c.l.b16 %v3693
      %v3765 = vunpack.c.h.b16 %v3693
      %v3766 = vunpack.c.l.b16 %v3694
      %v3767 = vunpack.c.h.b16 %v3694
      %v3768 = vunpack.c.l.b16 %v3695
      %v3769 = vunpack.c.h.b16 %v3695
      %v3770 = vunpack.c.l.b16 %v3696
      %v3771 = vunpack.c.h.b16 %v3696
      %v3772 = vunpack.c.l.b16 %v3697
      %v3773 = vunpack.c.h.b16 %v3697
      %v3774 = vunpack.c.l.b16 %v3698
      %v3775 = vunpack.c.h.b16 %v3698
      %v3776 = vunpack.c.l.b16 %v3699
      %v3777 = vunpack.c.h.b16 %v3699
      %v3778 = vunpack.c.l.b16 %v3700
      %v3779 = vunpack.c.h.b16 %v3700
      %v3780 = vunpack.c.l.b16 %v3701
      %v3781 = vunpack.c.h.b16 %v3701
      %v3782 = vunpack.c.l.b16 %v3702
      %v3783 = vunpack.c.h.b16 %v3702
      %v3784 = vunpack.c.l.b16 %v3703
      %v3785 = vunpack.c.h.b16 %v3703
      %v3786 = vunpack.c.l.b16 %v3704
      %v3787 = vunpack.c.h.b16 %v3704
      %v3788 = vunpack.c.l.b16 %v3705
      %v3789 = vunpack.c.h.b16 %v3705
      %v3790 = vunpack.c.l.b16 %v3706
      %v3791 = vunpack.c.h.b16 %v3706
      %v3792 = vunpack.c.l.b16 %v3707
      %v3793 = vunpack.c.h.b16 %v3707
      %v3794 = vunpack.c.l.b16 %v3708
      %v3795 = vunpack.c.h.b16 %v3708
      %v3796 = vunpack.c.l.b16 %v3709
      %v3797 = vunpack.c.h.b16 %v3709
      %v3798 = vunpack.c.l.b16 %v3710
      %v3799 = vunpack.c.h.b16 %v3710
      %v3800 = vunpack.c.l.b16 %v3711
      %v3801 = vunpack.c.h.b16 %v3711
      %v3802 = vunpack.c.l.b16 %v3712
      %v3803 = vunpack.c.h.b16 %v3712
      %v3804 = vunpack.c.l.b16 %v3713
      %v3805 = vunpack.c.h.b16 %v3713
      %v3806 = vunpack.c.l.b16 %v3714
      %v3807 = vunpack.c.h.b16 %v3714
      %v3808 = vunpack.c.l.b16 %v3715
      %v3809 = vunpack.c.h.b16 %v3715
      %v3810 = vunpack.c.l.b16 %v3716
      %v3811 = vunpack.c.h.b16 %v3716
      %v3812 = vunpack.c.l.b16 %v3717
      %v3813 = vunpack.c.h.b16 %v3717
      %v3814 = vpack.c.b16 %v3750, %v3750
      %v3815 = vpack.c.b16 %v3751, %v3751
      %v3816 = vpack.c.b16 %v3752, %v3752
      %v3817 = vpack.c.b16 %v3753, %v3753
      %v3818 = vpack.c.b16 %v3754, %v3754
      %v3819 = vpack.c.b16 %v3755, %v3755
      %v3820 = vpack.c.b16 %v3756, %v3756
      %v3821 = vpack.c.b16 %v3757, %v3757
      %v3822 = vpack.c.b16 %v3758, %v3758
      %v3823 = vpack.c.b16 %v3759, %v3759
      %v3824 = vpack.c.b16 %v3760, %v3760
      %v3825 = vpack.c.b16 %v3761, %v3761
      %v3826 = vpack.c.b16 %v3762, %v3762
      %v3827 = vpack.c.b16 %v3763, %v3763
      %v3828 = vpack.c.b16 %v3764, %v3764
      %v3829 = vpack.c.b16 %v3765, %v3765
      %v3830 = vpack.c.b16 %v3766, %v3766
      %v3831 = vpack.c.b16 %v3767, %v3767
      %v3832 = vpack.c.b16 %v3768, %v3768
      %v3833 = vpack.c.b16 %v3769, %v3769
      %v3834 = vpack.c.b16 %v3770, %v3770
      %v3835 = vpack.c.b16 %v3771, %v3771
      %v3836 = vpack.c.b16 %v3772, %v3772
      %v3837 = vpack.c.b16 %v3773, %v3773
      %v3838 = vpack.c.b16 %v3774, %v3774
      %v3839 = vpack.c.b16 %v3775, %v3775
      %v3840 = vpack.c.b16 %v3776, %v3776
      %v3841 = vpack.c.b16 %v3777, %v3777
      %v3842 = vpack.c.b16 %v3778, %v3778
      %v3843 = vpack.c.b16 %v3779, %v3779
      %v3844 = vpack.c.b16 %v3780, %v3780
      %v3845 = vpack.c.b16 %v3781, %v3781
      %v3846 = vpack.c.b16 %v3782, %v3782
      %v3847 = vpack.c.b16 %v3783, %v3783
      %v3848 = vpack.c.b16 %v3784, %v3784
      %v3849 = vpack.c.b16 %v3785, %v3785
      %v3850 = vpack.c.b16 %v3786, %v3786
      %v3851 = vpack.c.b16 %v3787, %v3787
      %v3852 = vpack.c.b16 %v3788, %v3788
      %v3853 = vpack.c.b16 %v3789, %v3789
      %v3854 = vpack.c.b16 %v3790, %v3790
      %v3855 = vpack.c.b16 %v3791, %v3791
      %v3856 = vpack.c.b16 %v3792, %v3792
      %v3857 = vpack.c.b16 %v3793, %v3793
      %v3858 = vpack.c.b16 %v3794, %v3794
      %v3859 = vpack.c.b16 %v3795, %v3795
      %v3860 = vpack.c.b16 %v3796, %v3796
      %v3861 = vpack.c.b16 %v3797, %v3797
      %v3862 = vpack.c.b16 %v3798, %v3798
      %v3863 = vpack.c.b16 %v3799, %v3799
      %v3864 = vpack.c.b16 %v3800, %v3800
      %v3865 = vpack.c.b16 %v3801, %v3801
      %v3866 = vpack.c.b16 %v3802, %v3802
      %v3867 = vpack.c.b16 %v3803, %v3803
      %v3868 = vpack.c.b16 %v3804, %v3804
      %v3869 = vpack.c.b16 %v3805, %v3805
      %v3870 = vpack.c.b16 %v3806, %v3806
      %v3871 = vpack.c.b16 %v3807, %v3807
      %v3872 = vpack.c.b16 %v3808, %v3808
      %v3873 = vpack.c.b16 %v3809, %v3809
      %v3874 = vpack.c.b16 %v3810, %v3810
      %v3875 = vpack.c.b16 %v3811, %v3811
      %v3876 = vpack.c.b16 %v3812, %v3812
      %v3877 = vpack.c.b16 %v3813, %v3813
      %3878 = vrot.lane.b32.xlu0 %v3814, 18
      %v3879 = vpop.permute.xlu0 %3878
      %3880 = vrot.lane.b32.xlu0 %v3815, 18
      %v3881 = vpop.permute.xlu0 %3880
      %3882 = vrot.lane.b32.xlu0 %v3816, 18
      %v3883 = vpop.permute.xlu0 %3882
      %3884 = vrot.lane.b32.xlu0 %v3817, 18
      %v3885 = vpop.permute.xlu0 %3884
      %3886 = vrot.lane.b32.xlu0 %v3818, 18
      %v3887 = vpop.permute.xlu0 %3886
      %3888 = vrot.lane.b32.xlu0 %v3819, 18
      %v3889 = vpop.permute.xlu0 %3888
      %3890 = vrot.lane.b32.xlu0 %v3820, 18
      %v3891 = vpop.permute.xlu0 %3890
      %3892 = vrot.lane.b32.xlu0 %v3821, 18
      %v3893 = vpop.permute.xlu0 %3892
      %3894 = vrot.lane.b32.xlu0 %v3822, 18
      %v3895 = vpop.permute.xlu0 %3894
      %3896 = vrot.lane.b32.xlu0 %v3823, 18
      %v3897 = vpop.permute.xlu0 %3896
      %3898 = vrot.lane.b32.xlu0 %v3824, 18
      %v3899 = vpop.permute.xlu0 %3898
      %3900 = vrot.lane.b32.xlu0 %v3825, 18
      %v3901 = vpop.permute.xlu0 %3900
      %3902 = vrot.lane.b32.xlu0 %v3826, 18
      %v3903 = vpop.permute.xlu0 %3902
      %3904 = vrot.lane.b32.xlu0 %v3827, 18
      %v3905 = vpop.permute.xlu0 %3904
      %3906 = vrot.lane.b32.xlu0 %v3828, 18
      %v3907 = vpop.permute.xlu0 %3906
      %3908 = vrot.lane.b32.xlu0 %v3829, 18
      %v3909 = vpop.permute.xlu0 %3908
      %3910 = vrot.lane.b32.xlu0 %v3830, 18
      %v3911 = vpop.permute.xlu0 %3910
      %3912 = vrot.lane.b32.xlu0 %v3831, 18
      %v3913 = vpop.permute.xlu0 %3912
      %3914 = vrot.lane.b32.xlu0 %v3832, 18
      %v3915 = vpop.permute.xlu0 %3914
      %3916 = vrot.lane.b32.xlu0 %v3833, 18
      %v3917 = vpop.permute.xlu0 %3916
      %3918 = vrot.lane.b32.xlu0 %v3834, 18
      %v3919 = vpop.permute.xlu0 %3918
      %3920 = vrot.lane.b32.xlu0 %v3835, 18
      %v3921 = vpop.permute.xlu0 %3920
      %3922 = vrot.lane.b32.xlu0 %v3836, 18
      %v3923 = vpop.permute.xlu0 %3922
      %3924 = vrot.lane.b32.xlu0 %v3837, 18
      %v3925 = vpop.permute.xlu0 %3924
      %3926 = vrot.lane.b32.xlu0 %v3838, 18
      %v3927 = vpop.permute.xlu0 %3926
      %3928 = vrot.lane.b32.xlu0 %v3839, 18
      %v3929 = vpop.permute.xlu0 %3928
      %3930 = vrot.lane.b32.xlu0 %v3840, 18
      %v3931 = vpop.permute.xlu0 %3930
      %3932 = vrot.lane.b32.xlu0 %v3841, 18
      %v3933 = vpop.permute.xlu0 %3932
      %3934 = vrot.lane.b32.xlu0 %v3842, 18
      %v3935 = vpop.permute.xlu0 %3934
      %3936 = vrot.lane.b32.xlu0 %v3843, 18
      %v3937 = vpop.permute.xlu0 %3936
      %3938 = vrot.lane.b32.xlu0 %v3844, 18
      %v3939 = vpop.permute.xlu0 %3938
      %3940 = vrot.lane.b32.xlu0 %v3845, 18
      %v3941 = vpop.permute.xlu0 %3940
      %3942 = vrot.lane.b32.xlu0 %v3846, 18
      %v3943 = vpop.permute.xlu0 %3942
      %3944 = vrot.lane.b32.xlu0 %v3847, 18
      %v3945 = vpop.permute.xlu0 %3944
      %3946 = vrot.lane.b32.xlu0 %v3848, 18
      %v3947 = vpop.permute.xlu0 %3946
      %3948 = vrot.lane.b32.xlu0 %v3849, 18
      %v3949 = vpop.permute.xlu0 %3948
      %3950 = vrot.lane.b32.xlu0 %v3850, 18
      %v3951 = vpop.permute.xlu0 %3950
      %3952 = vrot.lane.b32.xlu0 %v3851, 18
      %v3953 = vpop.permute.xlu0 %3952
      %3954 = vrot.lane.b32.xlu0 %v3852, 18
      %v3955 = vpop.permute.xlu0 %3954
      %3956 = vrot.lane.b32.xlu0 %v3853, 18
      %v3957 = vpop.permute.xlu0 %3956
      %3958 = vrot.lane.b32.xlu0 %v3854, 18
      %v3959 = vpop.permute.xlu0 %3958
      %3960 = vrot.lane.b32.xlu0 %v3855, 18
      %v3961 = vpop.permute.xlu0 %3960
      %3962 = vrot.lane.b32.xlu0 %v3856, 18
      %v3963 = vpop.permute.xlu0 %3962
      %3964 = vrot.lane.b32.xlu0 %v3857, 18
      %v3965 = vpop.permute.xlu0 %3964
      %3966 = vrot.lane.b32.xlu0 %v3858, 18
      %v3967 = vpop.permute.xlu0 %3966
      %3968 = vrot.lane.b32.xlu0 %v3859, 18
      %v3969 = vpop.permute.xlu0 %3968
      %3970 = vrot.lane.b32.xlu0 %v3860, 18
      %v3971 = vpop.permute.xlu0 %3970
      %3972 = vrot.lane.b32.xlu0 %v3861, 18
      %v3973 = vpop.permute.xlu0 %3972
      %3974 = vrot.lane.b32.xlu0 %v3862, 18
      %v3975 = vpop.permute.xlu0 %3974
      %3976 = vrot.lane.b32.xlu0 %v3863, 18
      %v3977 = vpop.permute.xlu0 %3976
      %3978 = vrot.lane.b32.xlu0 %v3864, 18
      %v3979 = vpop.permute.xlu0 %3978
      %3980 = vrot.lane.b32.xlu0 %v3865, 18
      %v3981 = vpop.permute.xlu0 %3980
      %3982 = vrot.lane.b32.xlu0 %v3866, 18
      %v3983 = vpop.permute.xlu0 %3982
      %3984 = vrot.lane.b32.xlu0 %v3867, 18
      %v3985 = vpop.permute.xlu0 %3984
      %3986 = vrot.lane.b32.xlu0 %v3868, 18
      %v3987 = vpop.permute.xlu0 %3986
      %3988 = vrot.lane.b32.xlu0 %v3869, 18
      %v3989 = vpop.permute.xlu0 %3988
      %3990 = vrot.lane.b32.xlu0 %v3870, 18
      %v3991 = vpop.permute.xlu0 %3990
      %3992 = vrot.lane.b32.xlu0 %v3871, 18
      %v3993 = vpop.permute.xlu0 %3992
      %3994 = vrot.lane.b32.xlu0 %v3872, 18
      %v3995 = vpop.permute.xlu0 %3994
      %3996 = vrot.lane.b32.xlu0 %v3873, 18
      %v3997 = vpop.permute.xlu0 %3996
      %3998 = vrot.lane.b32.xlu0 %v3874, 18
      %v3999 = vpop.permute.xlu0 %3998
      %4000 = vrot.lane.b32.xlu0 %v3875, 18
      %v4001 = vpop.permute.xlu0 %4000
      %4002 = vrot.lane.b32.xlu0 %v3876, 18
      %v4003 = vpop.permute.xlu0 %4002
      %4004 = vrot.lane.b32.xlu0 %v3877, 18
      %v4005 = vpop.permute.xlu0 %4004
      %vm4070 = vcmask 167056
      %4071 = vst.msk [vmem:[#allocation7] sm:$0xf] %vm4070, %v3879
      %4072 = vst.msk [vmem:[#allocation7 + $0x4] sm:$0xf] %vm4070, %v3881
      %4073 = vst.msk [vmem:[#allocation7 + $0x8] sm:$0xf] %vm4070, %v3883
      %4074 = vst.msk [vmem:[#allocation7 + $0xc] sm:$0xf] %vm4070, %v3885
      %4075 = vst.msk [vmem:[#allocation7 + $0x10] sm:$0xf] %vm4070, %v3887
      %4076 = vst.msk [vmem:[#allocation7 + $0x14] sm:$0xf] %vm4070, %v3889
      %4077 = vst.msk [vmem:[#allocation7 + $0x18] sm:$0xf] %vm4070, %v3891
      %4078 = vst.msk [vmem:[#allocation7 + $0x1c] sm:$0xf] %vm4070, %v3893
      %4079 = vst.msk [vmem:[#allocation7 + $0x20] sm:$0xf] %vm4070, %v3895
      %4080 = vst.msk [vmem:[#allocation7 + $0x24] sm:$0xf] %vm4070, %v3897
      %4081 = vst.msk [vmem:[#allocation7 + $0x28] sm:$0xf] %vm4070, %v3899
      %4082 = vst.msk [vmem:[#allocation7 + $0x2c] sm:$0xf] %vm4070, %v3901
      %4083 = vst.msk [vmem:[#allocation7 + $0x30] sm:$0xf] %vm4070, %v3903
      %4084 = vst.msk [vmem:[#allocation7 + $0x34] sm:$0xf] %vm4070, %v3905
      %4085 = vst.msk [vmem:[#allocation7 + $0x38] sm:$0xf] %vm4070, %v3907
      %4086 = vst.msk [vmem:[#allocation7 + $0x3c] sm:$0xf] %vm4070, %v3909
      %4087 = vst.msk [vmem:[#allocation7 + $0x40] sm:$0xf] %vm4070, %v3911
      %4088 = vst.msk [vmem:[#allocation7 + $0x44] sm:$0xf] %vm4070, %v3913
      %4089 = vst.msk [vmem:[#allocation7 + $0x48] sm:$0xf] %vm4070, %v3915
      %4090 = vst.msk [vmem:[#allocation7 + $0x4c] sm:$0xf] %vm4070, %v3917
      %4091 = vst.msk [vmem:[#allocation7 + $0x50] sm:$0xf] %vm4070, %v3919
      %4092 = vst.msk [vmem:[#allocation7 + $0x54] sm:$0xf] %vm4070, %v3921
      %4093 = vst.msk [vmem:[#allocation7 + $0x58] sm:$0xf] %vm4070, %v3923
      %4094 = vst.msk [vmem:[#allocation7 + $0x5c] sm:$0xf] %vm4070, %v3925
      %4095 = vst.msk [vmem:[#allocation7 + $0x60] sm:$0xf] %vm4070, %v3927
      %4096 = vst.msk [vmem:[#allocation7 + $0x64] sm:$0xf] %vm4070, %v3929
      %4097 = vst.msk [vmem:[#allocation7 + $0x68] sm:$0xf] %vm4070, %v3931
      %4098 = vst.msk [vmem:[#allocation7 + $0x6c] sm:$0xf] %vm4070, %v3933
      %4099 = vst.msk [vmem:[#allocation7 + $0x70] sm:$0xf] %vm4070, %v3935
      %4100 = vst.msk [vmem:[#allocation7 + $0x74] sm:$0xf] %vm4070, %v3937
      %4101 = vst.msk [vmem:[#allocation7 + $0x78] sm:$0xf] %vm4070, %v3939
      %4102 = vst.msk [vmem:[#allocation7 + $0x7c] sm:$0xf] %vm4070, %v3941
      %4103 = vst.msk [vmem:[#allocation7 + $0x80] sm:$0xf] %vm4070, %v3943
      %4104 = vst.msk [vmem:[#allocation7 + $0x84] sm:$0xf] %vm4070, %v3945
      %4105 = vst.msk [vmem:[#allocation7 + $0x88] sm:$0xf] %vm4070, %v3947
      %4106 = vst.msk [vmem:[#allocation7 + $0x8c] sm:$0xf] %vm4070, %v3949
      %4107 = vst.msk [vmem:[#allocation7 + $0x90] sm:$0xf] %vm4070, %v3951
      %4108 = vst.msk [vmem:[#allocation7 + $0x94] sm:$0xf] %vm4070, %v3953
      %4109 = vst.msk [vmem:[#allocation7 + $0x98] sm:$0xf] %vm4070, %v3955
      %4110 = vst.msk [vmem:[#allocation7 + $0x9c] sm:$0xf] %vm4070, %v3957
      %4111 = vst.msk [vmem:[#allocation7 + $0xa0] sm:$0xf] %vm4070, %v3959
      %4112 = vst.msk [vmem:[#allocation7 + $0xa4] sm:$0xf] %vm4070, %v3961
      %4113 = vst.msk [vmem:[#allocation7 + $0xa8] sm:$0xf] %vm4070, %v3963
      %4114 = vst.msk [vmem:[#allocation7 + $0xac] sm:$0xf] %vm4070, %v3965
      %4115 = vst.msk [vmem:[#allocation7 + $0xb0] sm:$0xf] %vm4070, %v3967
      %4116 = vst.msk [vmem:[#allocation7 + $0xb4] sm:$0xf] %vm4070, %v3969
      %4117 = vst.msk [vmem:[#allocation7 + $0xb8] sm:$0xf] %vm4070, %v3971
      %4118 = vst.msk [vmem:[#allocation7 + $0xbc] sm:$0xf] %vm4070, %v3973
      %4119 = vst.msk [vmem:[#allocation7 + $0xc0] sm:$0xf] %vm4070, %v3975
      %4120 = vst.msk [vmem:[#allocation7 + $0xc4] sm:$0xf] %vm4070, %v3977
      %4121 = vst.msk [vmem:[#allocation7 + $0xc8] sm:$0xf] %vm4070, %v3979
      %4122 = vst.msk [vmem:[#allocation7 + $0xcc] sm:$0xf] %vm4070, %v3981
      %4123 = vst.msk [vmem:[#allocation7 + $0xd0] sm:$0xf] %vm4070, %v3983
      %4124 = vst.msk [vmem:[#allocation7 + $0xd4] sm:$0xf] %vm4070, %v3985
      %4125 = vst.msk [vmem:[#allocation7 + $0xd8] sm:$0xf] %vm4070, %v3987
      %4126 = vst.msk [vmem:[#allocation7 + $0xdc] sm:$0xf] %vm4070, %v3989
      %4127 = vst.msk [vmem:[#allocation7 + $0xe0] sm:$0xf] %vm4070, %v3991
      %4128 = vst.msk [vmem:[#allocation7 + $0xe4] sm:$0xf] %vm4070, %v3993
      %4129 = vst.msk [vmem:[#allocation7 + $0xe8] sm:$0xf] %vm4070, %v3995
      %4130 = vst.msk [vmem:[#allocation7 + $0xec] sm:$0xf] %vm4070, %v3997
      %4131 = vst.msk [vmem:[#allocation7 + $0xf0] sm:$0xf] %vm4070, %v3999
      %4132 = vst.msk [vmem:[#allocation7 + $0xf4] sm:$0xf] %vm4070, %v4001
      %4133 = vst.msk [vmem:[#allocation7 + $0xf8] sm:$0xf] %vm4070, %v4003
      %4134 = vst.msk [vmem:[#allocation7 + $0xfc] sm:$0xf] %vm4070, %v4005
      %v4135 = vld [vmem:[%s3621 + $0x1] sm:$0xff]
      %v4136 = vld [vmem:[%s3621 + $0x9] sm:$0xff]
      %v4137 = vld [vmem:[%s3621 + $0x19] sm:$0xff]
      %v4138 = vld [vmem:[%s3621 + $0x21] sm:$0xff]
      %v4139 = vld [vmem:[%s3621 + $0x31] sm:$0xff]
      %v4140 = vld [vmem:[%s3621 + $0x39] sm:$0xff]
      %v4141 = vld [vmem:[%s3621 + $0x49] sm:$0xff]
      %v4142 = vld [vmem:[%s3621 + $0x51] sm:$0xff]
      %v4143 = vld [vmem:[%s3621 + $0x61] sm:$0xff]
      %v4144 = vld [vmem:[%s3621 + $0x69] sm:$0xff]
      %v4145 = vld [vmem:[%s3621 + $0x79] sm:$0xff]
      %v4146 = vld [vmem:[%s3621 + $0x81] sm:$0xff]
      %v4147 = vld [vmem:[%s3621 + $0x91] sm:$0xff]
      %v4148 = vld [vmem:[%s3621 + $0x99] sm:$0xff]
      %v4149 = vld [vmem:[%s3621 + $0xa9] sm:$0xff]
      %v4150 = vld [vmem:[%s3621 + $0xb1] sm:$0xff]
      %v4151 = vld [vmem:[%s3621 + $0xc1] sm:$0xff]
      %v4152 = vld [vmem:[%s3621 + $0xc9] sm:$0xff]
      %v4153 = vld [vmem:[%s3621 + $0xd9] sm:$0xff]
      %v4154 = vld [vmem:[%s3621 + $0xe1] sm:$0xff]
      %v4155 = vld [vmem:[%s3621 + $0xf1] sm:$0xff]
      %v4156 = vld [vmem:[%s3621 + $0xf9] sm:$0xff]
      %v4157 = vld [vmem:[%s3621 + $0x109] sm:$0xff]
      %v4158 = vld [vmem:[%s3621 + $0x111] sm:$0xff]
      %v4159 = vld [vmem:[%s3621 + $0x121] sm:$0xff]
      %v4160 = vld [vmem:[%s3621 + $0x129] sm:$0xff]
      %v4161 = vld [vmem:[%s3621 + $0x139] sm:$0xff]
      %v4162 = vld [vmem:[%s3621 + $0x141] sm:$0xff]
      %v4163 = vld [vmem:[%s3621 + $0x151] sm:$0xff]
      %v4164 = vld [vmem:[%s3621 + $0x159] sm:$0xff]
      %v4165 = vld [vmem:[%s3621 + $0x169] sm:$0xff]
      %v4166 = vld [vmem:[%s3621 + $0x171] sm:$0xff]
      %v4167 = vld [vmem:[%s3621 + $0x1b1] sm:$0xff]
      %v4168 = vld [vmem:[%s3621 + $0x1b9] sm:$0xff]
      %v4169 = vld [vmem:[%s3621 + $0x1c9] sm:$0xff]
      %v4170 = vld [vmem:[%s3621 + $0x1d1] sm:$0xff]
      %v4171 = vld [vmem:[%s3621 + $0x1e1] sm:$0xff]
      %v4172 = vld [vmem:[%s3621 + $0x1e9] sm:$0xff]
      %v4173 = vld [vmem:[%s3621 + $0x1f9] sm:$0xff]
      %v4174 = vld [vmem:[%s3621 + $0x201] sm:$0xff]
      %v4175 = vld [vmem:[%s3621 + $0x211] sm:$0xff]
      %v4176 = vld [vmem:[%s3621 + $0x219] sm:$0xff]
      %v4177 = vld [vmem:[%s3621 + $0x229] sm:$0xff]
      %v4178 = vld [vmem:[%s3621 + $0x231] sm:$0xff]
      %v4179 = vld [vmem:[%s3621 + $0x241] sm:$0xff]
      %v4180 = vld [vmem:[%s3621 + $0x249] sm:$0xff]
      %v4181 = vld [vmem:[%s3621 + $0x259] sm:$0xff]
      %v4182 = vld [vmem:[%s3621 + $0x261] sm:$0xff]
      %v4183 = vld [vmem:[%s3621 + $0x271] sm:$0xff]
      %v4184 = vld [vmem:[%s3621 + $0x279] sm:$0xff]
      %v4185 = vld [vmem:[%s3621 + $0x289] sm:$0xff]
      %v4186 = vld [vmem:[%s3621 + $0x291] sm:$0xff]
      %v4187 = vld [vmem:[%s3621 + $0x2a1] sm:$0xff]
      %v4188 = vld [vmem:[%s3621 + $0x2a9] sm:$0xff]
      %v4189 = vld [vmem:[%s3621 + $0x2b9] sm:$0xff]
      %v4190 = vld [vmem:[%s3621 + $0x2c1] sm:$0xff]
      %v4191 = vld [vmem:[%s3621 + $0x2d1] sm:$0xff]
      %v4192 = vld [vmem:[%s3621 + $0x2d9] sm:$0xff]
      %v4193 = vld [vmem:[%s3621 + $0x2e9] sm:$0xff]
      %v4194 = vld [vmem:[%s3621 + $0x2f1] sm:$0xff]
      %v4195 = vld [vmem:[%s3621 + $0x301] sm:$0xff]
      %v4196 = vld [vmem:[%s3621 + $0x309] sm:$0xff]
      %v4197 = vld [vmem:[%s3621 + $0x319] sm:$0xff]
      %v4198 = vld [vmem:[%s3621 + $0x321] sm:$0xff]
      %v4199 = vpack.c.bf16 %v4136, %v4135
      %v4200 = vpack.c.bf16 %v4138, %v4137
      %v4201 = vpack.c.bf16 %v4140, %v4139
      %v4202 = vpack.c.bf16 %v4142, %v4141
      %v4203 = vpack.c.bf16 %v4144, %v4143
      %v4204 = vpack.c.bf16 %v4146, %v4145
      %v4205 = vpack.c.bf16 %v4148, %v4147
      %v4206 = vpack.c.bf16 %v4150, %v4149
      %v4207 = vpack.c.bf16 %v4152, %v4151
      %v4208 = vpack.c.bf16 %v4154, %v4153
      %v4209 = vpack.c.bf16 %v4156, %v4155
      %v4210 = vpack.c.bf16 %v4158, %v4157
      %v4211 = vpack.c.bf16 %v4160, %v4159
      %v4212 = vpack.c.bf16 %v4162, %v4161
      %v4213 = vpack.c.bf16 %v4164, %v4163
      %v4214 = vpack.c.bf16 %v4166, %v4165
      %v4215 = vpack.c.bf16 %v4168, %v4167
      %v4216 = vpack.c.bf16 %v4170, %v4169
      %v4217 = vpack.c.bf16 %v4172, %v4171
      %v4218 = vpack.c.bf16 %v4174, %v4173
      %v4219 = vpack.c.bf16 %v4176, %v4175
      %v4220 = vpack.c.bf16 %v4178, %v4177
      %v4221 = vpack.c.bf16 %v4180, %v4179
      %v4222 = vpack.c.bf16 %v4182, %v4181
      %v4223 = vpack.c.bf16 %v4184, %v4183
      %v4224 = vpack.c.bf16 %v4186, %v4185
      %v4225 = vpack.c.bf16 %v4188, %v4187
      %v4226 = vpack.c.bf16 %v4190, %v4189
      %v4227 = vpack.c.bf16 %v4192, %v4191
      %v4228 = vpack.c.bf16 %v4194, %v4193
      %v4229 = vpack.c.bf16 %v4196, %v4195
      %v4230 = vpack.c.bf16 %v4198, %v4197
      %v4263 = vunpack.c.l.b16 %v4199
      %v4264 = vunpack.c.h.b16 %v4199
      %v4265 = vunpack.c.l.b16 %v4200
      %v4266 = vunpack.c.h.b16 %v4200
      %v4267 = vunpack.c.l.b16 %v4201
      %v4268 = vunpack.c.h.b16 %v4201
      %v4269 = vunpack.c.l.b16 %v4202
      %v4270 = vunpack.c.h.b16 %v4202
      %v4271 = vunpack.c.l.b16 %v4203
      %v4272 = vunpack.c.h.b16 %v4203
      %v4273 = vunpack.c.l.b16 %v4204
      %v4274 = vunpack.c.h.b16 %v4204
      %v4275 = vunpack.c.l.b16 %v4205
      %v4276 = vunpack.c.h.b16 %v4205
      %v4277 = vunpack.c.l.b16 %v4206
      %v4278 = vunpack.c.h.b16 %v4206
      %v4279 = vunpack.c.l.b16 %v4207
      %v4280 = vunpack.c.h.b16 %v4207
      %v4281 = vunpack.c.l.b16 %v4208
      %v4282 = vunpack.c.h.b16 %v4208
      %v4283 = vunpack.c.l.b16 %v4209
      %v4284 = vunpack.c.h.b16 %v4209
      %v4285 = vunpack.c.l.b16 %v4210
      %v4286 = vunpack.c.h.b16 %v4210
      %v4287 = vunpack.c.l.b16 %v4211
      %v4288 = vunpack.c.h.b16 %v4211
      %v4289 = vunpack.c.l.b16 %v4212
      %v4290 = vunpack.c.h.b16 %v4212
      %v4291 = vunpack.c.l.b16 %v4213
      %v4292 = vunpack.c.h.b16 %v4213
      %v4293 = vunpack.c.l.b16 %v4214
      %v4294 = vunpack.c.h.b16 %v4214
      %v4295 = vunpack.c.l.b16 %v4215
      %v4296 = vunpack.c.h.b16 %v4215
      %v4297 = vunpack.c.l.b16 %v4216
      %v4298 = vunpack.c.h.b16 %v4216
      %v4299 = vunpack.c.l.b16 %v4217
      %v4300 = vunpack.c.h.b16 %v4217
      %v4301 = vunpack.c.l.b16 %v4218
      %v4302 = vunpack.c.h.b16 %v4218
      %v4303 = vunpack.c.l.b16 %v4219
      %v4304 = vunpack.c.h.b16 %v4219
      %v4305 = vunpack.c.l.b16 %v4220
      %v4306 = vunpack.c.h.b16 %v4220
      %v4307 = vunpack.c.l.b16 %v4221
      %v4308 = vunpack.c.h.b16 %v4221
      %v4309 = vunpack.c.l.b16 %v4222
      %v4310 = vunpack.c.h.b16 %v4222
      %v4311 = vunpack.c.l.b16 %v4223
      %v4312 = vunpack.c.h.b16 %v4223
      %v4313 = vunpack.c.l.b16 %v4224
      %v4314 = vunpack.c.h.b16 %v4224
      %v4315 = vunpack.c.l.b16 %v4225
      %v4316 = vunpack.c.h.b16 %v4225
      %v4317 = vunpack.c.l.b16 %v4226
      %v4318 = vunpack.c.h.b16 %v4226
      %v4319 = vunpack.c.l.b16 %v4227
      %v4320 = vunpack.c.h.b16 %v4227
      %v4321 = vunpack.c.l.b16 %v4228
      %v4322 = vunpack.c.h.b16 %v4228
      %v4323 = vunpack.c.l.b16 %v4229
      %v4324 = vunpack.c.h.b16 %v4229
      %v4325 = vunpack.c.l.b16 %v4230
      %v4326 = vunpack.c.h.b16 %v4230
      %v4327 = vpack.c.b16 %v4263, %v4263
      %v4328 = vpack.c.b16 %v4264, %v4264
      %v4329 = vpack.c.b16 %v4265, %v4265
      %v4330 = vpack.c.b16 %v4266, %v4266
      %v4331 = vpack.c.b16 %v4267, %v4267
      %v4332 = vpack.c.b16 %v4268, %v4268
      %v4333 = vpack.c.b16 %v4269, %v4269
      %v4334 = vpack.c.b16 %v4270, %v4270
      %v4335 = vpack.c.b16 %v4271, %v4271
      %v4336 = vpack.c.b16 %v4272, %v4272
      %v4337 = vpack.c.b16 %v4273, %v4273
      %v4338 = vpack.c.b16 %v4274, %v4274
      %v4339 = vpack.c.b16 %v4275, %v4275
      %v4340 = vpack.c.b16 %v4276, %v4276
      %v4341 = vpack.c.b16 %v4277, %v4277
      %v4342 = vpack.c.b16 %v4278, %v4278
      %v4343 = vpack.c.b16 %v4279, %v4279
      %v4344 = vpack.c.b16 %v4280, %v4280
      %v4345 = vpack.c.b16 %v4281, %v4281
      %v4346 = vpack.c.b16 %v4282, %v4282
      %v4347 = vpack.c.b16 %v4283, %v4283
      %v4348 = vpack.c.b16 %v4284, %v4284
      %v4349 = vpack.c.b16 %v4285, %v4285
      %v4350 = vpack.c.b16 %v4286, %v4286
      %v4351 = vpack.c.b16 %v4287, %v4287
      %v4352 = vpack.c.b16 %v4288, %v4288
      %v4353 = vpack.c.b16 %v4289, %v4289
      %v4354 = vpack.c.b16 %v4290, %v4290
      %v4355 = vpack.c.b16 %v4291, %v4291
      %v4356 = vpack.c.b16 %v4292, %v4292
      %v4357 = vpack.c.b16 %v4293, %v4293
      %v4358 = vpack.c.b16 %v4294, %v4294
      %v4359 = vpack.c.b16 %v4295, %v4295
      %v4360 = vpack.c.b16 %v4296, %v4296
      %v4361 = vpack.c.b16 %v4297, %v4297
      %v4362 = vpack.c.b16 %v4298, %v4298
      %v4363 = vpack.c.b16 %v4299, %v4299
      %v4364 = vpack.c.b16 %v4300, %v4300
      %v4365 = vpack.c.b16 %v4301, %v4301
      %v4366 = vpack.c.b16 %v4302, %v4302
      %v4367 = vpack.c.b16 %v4303, %v4303
      %v4368 = vpack.c.b16 %v4304, %v4304
      %v4369 = vpack.c.b16 %v4305, %v4305
      %v4370 = vpack.c.b16 %v4306, %v4306
      %v4371 = vpack.c.b16 %v4307, %v4307
      %v4372 = vpack.c.b16 %v4308, %v4308
      %v4373 = vpack.c.b16 %v4309, %v4309
      %v4374 = vpack.c.b16 %v4310, %v4310
      %v4375 = vpack.c.b16 %v4311, %v4311
      %v4376 = vpack.c.b16 %v4312, %v4312
      %v4377 = vpack.c.b16 %v4313, %v4313
      %v4378 = vpack.c.b16 %v4314, %v4314
      %v4379 = vpack.c.b16 %v4315, %v4315
      %v4380 = vpack.c.b16 %v4316, %v4316
      %v4381 = vpack.c.b16 %v4317, %v4317
      %v4382 = vpack.c.b16 %v4318, %v4318
      %v4383 = vpack.c.b16 %v4319, %v4319
      %v4384 = vpack.c.b16 %v4320, %v4320
      %v4385 = vpack.c.b16 %v4321, %v4321
      %v4386 = vpack.c.b16 %v4322, %v4322
      %v4387 = vpack.c.b16 %v4323, %v4323
      %v4388 = vpack.c.b16 %v4324, %v4324
      %v4389 = vpack.c.b16 %v4325, %v4325
      %v4390 = vpack.c.b16 %v4326, %v4326
      %4391 = vrot.lane.b32.xlu0 %v4327, 21
      %v4392 = vpop.permute.xlu0 %4391
      %4393 = vrot.lane.b32.xlu0 %v4328, 21
      %v4394 = vpop.permute.xlu0 %4393
      %4395 = vrot.lane.b32.xlu0 %v4329, 21
      %v4396 = vpop.permute.xlu0 %4395
      %4397 = vrot.lane.b32.xlu0 %v4330, 21
      %v4398 = vpop.permute.xlu0 %4397
      %4399 = vrot.lane.b32.xlu0 %v4331, 21
      %v4400 = vpop.permute.xlu0 %4399
      %4401 = vrot.lane.b32.xlu0 %v4332, 21
      %v4402 = vpop.permute.xlu0 %4401
      %4403 = vrot.lane.b32.xlu0 %v4333, 21
      %v4404 = vpop.permute.xlu0 %4403
      %4405 = vrot.lane.b32.xlu0 %v4334, 21
      %v4406 = vpop.permute.xlu0 %4405
      %4407 = vrot.lane.b32.xlu0 %v4335, 21
      %v4408 = vpop.permute.xlu0 %4407
      %4409 = vrot.lane.b32.xlu0 %v4336, 21
      %v4410 = vpop.permute.xlu0 %4409
      %4411 = vrot.lane.b32.xlu0 %v4337, 21
      %v4412 = vpop.permute.xlu0 %4411
      %4413 = vrot.lane.b32.xlu0 %v4338, 21
      %v4414 = vpop.permute.xlu0 %4413
      %4415 = vrot.lane.b32.xlu0 %v4339, 21
      %v4416 = vpop.permute.xlu0 %4415
      %4417 = vrot.lane.b32.xlu0 %v4340, 21
      %v4418 = vpop.permute.xlu0 %4417
      %4419 = vrot.lane.b32.xlu0 %v4341, 21
      %v4420 = vpop.permute.xlu0 %4419
      %4421 = vrot.lane.b32.xlu0 %v4342, 21
      %v4422 = vpop.permute.xlu0 %4421
      %4423 = vrot.lane.b32.xlu0 %v4343, 21
      %v4424 = vpop.permute.xlu0 %4423
      %4425 = vrot.lane.b32.xlu0 %v4344, 21
      %v4426 = vpop.permute.xlu0 %4425
      %4427 = vrot.lane.b32.xlu0 %v4345, 21
      %v4428 = vpop.permute.xlu0 %4427
      %4429 = vrot.lane.b32.xlu0 %v4346, 21
      %v4430 = vpop.permute.xlu0 %4429
      %4431 = vrot.lane.b32.xlu0 %v4347, 21
      %v4432 = vpop.permute.xlu0 %4431
      %4433 = vrot.lane.b32.xlu0 %v4348, 21
      %v4434 = vpop.permute.xlu0 %4433
      %4435 = vrot.lane.b32.xlu0 %v4349, 21
      %v4436 = vpop.permute.xlu0 %4435
      %4437 = vrot.lane.b32.xlu0 %v4350, 21
      %v4438 = vpop.permute.xlu0 %4437
      %4439 = vrot.lane.b32.xlu0 %v4351, 21
      %v4440 = vpop.permute.xlu0 %4439
      %4441 = vrot.lane.b32.xlu0 %v4352, 21
      %v4442 = vpop.permute.xlu0 %4441
      %4443 = vrot.lane.b32.xlu0 %v4353, 21
      %v4444 = vpop.permute.xlu0 %4443
      %4445 = vrot.lane.b32.xlu0 %v4354, 21
      %v4446 = vpop.permute.xlu0 %4445
      %4447 = vrot.lane.b32.xlu0 %v4355, 21
      %v4448 = vpop.permute.xlu0 %4447
      %4449 = vrot.lane.b32.xlu0 %v4356, 21
      %v4450 = vpop.permute.xlu0 %4449
      %4451 = vrot.lane.b32.xlu0 %v4357, 21
      %v4452 = vpop.permute.xlu0 %4451
      %4453 = vrot.lane.b32.xlu0 %v4358, 21
      %v4454 = vpop.permute.xlu0 %4453
      %4455 = vrot.lane.b32.xlu0 %v4359, 21
      %v4456 = vpop.permute.xlu0 %4455
      %4457 = vrot.lane.b32.xlu0 %v4360, 21
      %v4458 = vpop.permute.xlu0 %4457
      %4459 = vrot.lane.b32.xlu0 %v4361, 21
      %v4460 = vpop.permute.xlu0 %4459
      %4461 = vrot.lane.b32.xlu0 %v4362, 21
      %v4462 = vpop.permute.xlu0 %4461
      %4463 = vrot.lane.b32.xlu0 %v4363, 21
      %v4464 = vpop.permute.xlu0 %4463
      %4465 = vrot.lane.b32.xlu0 %v4364, 21
      %v4466 = vpop.permute.xlu0 %4465
      %4467 = vrot.lane.b32.xlu0 %v4365, 21
      %v4468 = vpop.permute.xlu0 %4467
      %4469 = vrot.lane.b32.xlu0 %v4366, 21
      %v4470 = vpop.permute.xlu0 %4469
      %4471 = vrot.lane.b32.xlu0 %v4367, 21
      %v4472 = vpop.permute.xlu0 %4471
      %4473 = vrot.lane.b32.xlu0 %v4368, 21
      %v4474 = vpop.permute.xlu0 %4473
      %4475 = vrot.lane.b32.xlu0 %v4369, 21
      %v4476 = vpop.permute.xlu0 %4475
      %4477 = vrot.lane.b32.xlu0 %v4370, 21
      %v4478 = vpop.permute.xlu0 %4477
      %4479 = vrot.lane.b32.xlu0 %v4371, 21
      %v4480 = vpop.permute.xlu0 %4479
      %4481 = vrot.lane.b32.xlu0 %v4372, 21
      %v4482 = vpop.permute.xlu0 %4481
      %4483 = vrot.lane.b32.xlu0 %v4373, 21
      %v4484 = vpop.permute.xlu0 %4483
      %4485 = vrot.lane.b32.xlu0 %v4374, 21
      %v4486 = vpop.permute.xlu0 %4485
      %4487 = vrot.lane.b32.xlu0 %v4375, 21
      %v4488 = vpop.permute.xlu0 %4487
      %4489 = vrot.lane.b32.xlu0 %v4376, 21
      %v4490 = vpop.permute.xlu0 %4489
      %4491 = vrot.lane.b32.xlu0 %v4377, 21
      %v4492 = vpop.permute.xlu0 %4491
      %4493 = vrot.lane.b32.xlu0 %v4378, 21
      %v4494 = vpop.permute.xlu0 %4493
      %4495 = vrot.lane.b32.xlu0 %v4379, 21
      %v4496 = vpop.permute.xlu0 %4495
      %4497 = vrot.lane.b32.xlu0 %v4380, 21
      %v4498 = vpop.permute.xlu0 %4497
      %4499 = vrot.lane.b32.xlu0 %v4381, 21
      %v4500 = vpop.permute.xlu0 %4499
      %4501 = vrot.lane.b32.xlu0 %v4382, 21
      %v4502 = vpop.permute.xlu0 %4501
      %4503 = vrot.lane.b32.xlu0 %v4383, 21
      %v4504 = vpop.permute.xlu0 %4503
      %4505 = vrot.lane.b32.xlu0 %v4384, 21
      %v4506 = vpop.permute.xlu0 %4505
      %4507 = vrot.lane.b32.xlu0 %v4385, 21
      %v4508 = vpop.permute.xlu0 %4507
      %4509 = vrot.lane.b32.xlu0 %v4386, 21
      %v4510 = vpop.permute.xlu0 %4509
      %4511 = vrot.lane.b32.xlu0 %v4387, 21
      %v4512 = vpop.permute.xlu0 %4511
      %4513 = vrot.lane.b32.xlu0 %v4388, 21
      %v4514 = vpop.permute.xlu0 %4513
      %4515 = vrot.lane.b32.xlu0 %v4389, 21
      %v4516 = vpop.permute.xlu0 %4515
      %4517 = vrot.lane.b32.xlu0 %v4390, 21
      %v4518 = vpop.permute.xlu0 %4517
      %vm4583 = vcmask 191656
      %4584 = vst.msk [vmem:[#allocation7] sm:$0xf] %vm4583, %v4392
      %4585 = vst.msk [vmem:[#allocation7 + $0x4] sm:$0xf] %vm4583, %v4394
      %4586 = vst.msk [vmem:[#allocation7 + $0x8] sm:$0xf] %vm4583, %v4396
      %4587 = vst.msk [vmem:[#allocation7 + $0xc] sm:$0xf] %vm4583, %v4398
      %4588 = vst.msk [vmem:[#allocation7 + $0x10] sm:$0xf] %vm4583, %v4400
      %4589 = vst.msk [vmem:[#allocation7 + $0x14] sm:$0xf] %vm4583, %v4402
      %4590 = vst.msk [vmem:[#allocation7 + $0x18] sm:$0xf] %vm4583, %v4404
      %4591 = vst.msk [vmem:[#allocation7 + $0x1c] sm:$0xf] %vm4583, %v4406
      %4592 = vst.msk [vmem:[#allocation7 + $0x20] sm:$0xf] %vm4583, %v4408
      %4593 = vst.msk [vmem:[#allocation7 + $0x24] sm:$0xf] %vm4583, %v4410
      %4594 = vst.msk [vmem:[#allocation7 + $0x28] sm:$0xf] %vm4583, %v4412
      %4595 = vst.msk [vmem:[#allocation7 + $0x2c] sm:$0xf] %vm4583, %v4414
      %4596 = vst.msk [vmem:[#allocation7 + $0x30] sm:$0xf] %vm4583, %v4416
      %4597 = vst.msk [vmem:[#allocation7 + $0x34] sm:$0xf] %vm4583, %v4418
      %4598 = vst.msk [vmem:[#allocation7 + $0x38] sm:$0xf] %vm4583, %v4420
      %4599 = vst.msk [vmem:[#allocation7 + $0x3c] sm:$0xf] %vm4583, %v4422
      %4600 = vst.msk [vmem:[#allocation7 + $0x40] sm:$0xf] %vm4583, %v4424
      %4601 = vst.msk [vmem:[#allocation7 + $0x44] sm:$0xf] %vm4583, %v4426
      %4602 = vst.msk [vmem:[#allocation7 + $0x48] sm:$0xf] %vm4583, %v4428
      %4603 = vst.msk [vmem:[#allocation7 + $0x4c] sm:$0xf] %vm4583, %v4430
      %4604 = vst.msk [vmem:[#allocation7 + $0x50] sm:$0xf] %vm4583, %v4432
      %4605 = vst.msk [vmem:[#allocation7 + $0x54] sm:$0xf] %vm4583, %v4434
      %4606 = vst.msk [vmem:[#allocation7 + $0x58] sm:$0xf] %vm4583, %v4436
      %4607 = vst.msk [vmem:[#allocation7 + $0x5c] sm:$0xf] %vm4583, %v4438
      %4608 = vst.msk [vmem:[#allocation7 + $0x60] sm:$0xf] %vm4583, %v4440
      %4609 = vst.msk [vmem:[#allocation7 + $0x64] sm:$0xf] %vm4583, %v4442
      %4610 = vst.msk [vmem:[#allocation7 + $0x68] sm:$0xf] %vm4583, %v4444
      %4611 = vst.msk [vmem:[#allocation7 + $0x6c] sm:$0xf] %vm4583, %v4446
      %4612 = vst.msk [vmem:[#allocation7 + $0x70] sm:$0xf] %vm4583, %v4448
      %4613 = vst.msk [vmem:[#allocation7 + $0x74] sm:$0xf] %vm4583, %v4450
      %4614 = vst.msk [vmem:[#allocation7 + $0x78] sm:$0xf] %vm4583, %v4452
      %4615 = vst.msk [vmem:[#allocation7 + $0x7c] sm:$0xf] %vm4583, %v4454
      %4616 = vst.msk [vmem:[#allocation7 + $0x80] sm:$0xf] %vm4583, %v4456
      %4617 = vst.msk [vmem:[#allocation7 + $0x84] sm:$0xf] %vm4583, %v4458
      %4618 = vst.msk [vmem:[#allocation7 + $0x88] sm:$0xf] %vm4583, %v4460
      %4619 = vst.msk [vmem:[#allocation7 + $0x8c] sm:$0xf] %vm4583, %v4462
      %4620 = vst.msk [vmem:[#allocation7 + $0x90] sm:$0xf] %vm4583, %v4464
      %4621 = vst.msk [vmem:[#allocation7 + $0x94] sm:$0xf] %vm4583, %v4466
      %4622 = vst.msk [vmem:[#allocation7 + $0x98] sm:$0xf] %vm4583, %v4468
      %4623 = vst.msk [vmem:[#allocation7 + $0x9c] sm:$0xf] %vm4583, %v4470
      %4624 = vst.msk [vmem:[#allocation7 + $0xa0] sm:$0xf] %vm4583, %v4472
      %4625 = vst.msk [vmem:[#allocation7 + $0xa4] sm:$0xf] %vm4583, %v4474
      %4626 = vst.msk [vmem:[#allocation7 + $0xa8] sm:$0xf] %vm4583, %v4476
      %4627 = vst.msk [vmem:[#allocation7 + $0xac] sm:$0xf] %vm4583, %v4478
      %4628 = vst.msk [vmem:[#allocation7 + $0xb0] sm:$0xf] %vm4583, %v4480
      %4629 = vst.msk [vmem:[#allocation7 + $0xb4] sm:$0xf] %vm4583, %v4482
      %4630 = vst.msk [vmem:[#allocation7 + $0xb8] sm:$0xf] %vm4583, %v4484
      %4631 = vst.msk [vmem:[#allocation7 + $0xbc] sm:$0xf] %vm4583, %v4486
      %4632 = vst.msk [vmem:[#allocation7 + $0xc0] sm:$0xf] %vm4583, %v4488
      %4633 = vst.msk [vmem:[#allocation7 + $0xc4] sm:$0xf] %vm4583, %v4490
      %4634 = vst.msk [vmem:[#allocation7 + $0xc8] sm:$0xf] %vm4583, %v4492
      %4635 = vst.msk [vmem:[#allocation7 + $0xcc] sm:$0xf] %vm4583, %v4494
      %4636 = vst.msk [vmem:[#allocation7 + $0xd0] sm:$0xf] %vm4583, %v4496
      %4637 = vst.msk [vmem:[#allocation7 + $0xd4] sm:$0xf] %vm4583, %v4498
      %4638 = vst.msk [vmem:[#allocation7 + $0xd8] sm:$0xf] %vm4583, %v4500
      %4639 = vst.msk [vmem:[#allocation7 + $0xdc] sm:$0xf] %vm4583, %v4502
      %4640 = vst.msk [vmem:[#allocation7 + $0xe0] sm:$0xf] %vm4583, %v4504
      %4641 = vst.msk [vmem:[#allocation7 + $0xe4] sm:$0xf] %vm4583, %v4506
      %4642 = vst.msk [vmem:[#allocation7 + $0xe8] sm:$0xf] %vm4583, %v4508
      %4643 = vst.msk [vmem:[#allocation7 + $0xec] sm:$0xf] %vm4583, %v4510
      %4644 = vst.msk [vmem:[#allocation7 + $0xf0] sm:$0xf] %vm4583, %v4512
      %4645 = vst.msk [vmem:[#allocation7 + $0xf4] sm:$0xf] %vm4583, %v4514
      %4646 = vst.msk [vmem:[#allocation7 + $0xf8] sm:$0xf] %vm4583, %v4516
      %4647 = vst.msk [vmem:[#allocation7 + $0xfc] sm:$0xf] %vm4583, %v4518
      %v4648 = vld [vmem:[%s3621 + $0x2] sm:$0xff]
      %v4649 = vld [vmem:[%s3621 + $0xa] sm:$0xff]
      %v4650 = vld [vmem:[%s3621 + $0x1a] sm:$0xff]
      %v4651 = vld [vmem:[%s3621 + $0x22] sm:$0xff]
      %v4652 = vld [vmem:[%s3621 + $0x32] sm:$0xff]
      %v4653 = vld [vmem:[%s3621 + $0x3a] sm:$0xff]
      %v4654 = vld [vmem:[%s3621 + $0x4a] sm:$0xff]
      %v4655 = vld [vmem:[%s3621 + $0x52] sm:$0xff]
      %v4656 = vld [vmem:[%s3621 + $0x62] sm:$0xff]
      %v4657 = vld [vmem:[%s3621 + $0x6a] sm:$0xff]
      %v4658 = vld [vmem:[%s3621 + $0x7a] sm:$0xff]
      %v4659 = vld [vmem:[%s3621 + $0x82] sm:$0xff]
      %v4660 = vld [vmem:[%s3621 + $0x92] sm:$0xff]
      %v4661 = vld [vmem:[%s3621 + $0x9a] sm:$0xff]
      %v4662 = vld [vmem:[%s3621 + $0xaa] sm:$0xff]
      %v4663 = vld [vmem:[%s3621 + $0xb2] sm:$0xff]
      %v4664 = vld [vmem:[%s3621 + $0xc2] sm:$0xff]
      %v4665 = vld [vmem:[%s3621 + $0xca] sm:$0xff]
      %v4666 = vld [vmem:[%s3621 + $0xda] sm:$0xff]
      %v4667 = vld [vmem:[%s3621 + $0xe2] sm:$0xff]
      %v4668 = vld [vmem:[%s3621 + $0xf2] sm:$0xff]
      %v4669 = vld [vmem:[%s3621 + $0xfa] sm:$0xff]
      %v4670 = vld [vmem:[%s3621 + $0x10a] sm:$0xff]
      %v4671 = vld [vmem:[%s3621 + $0x112] sm:$0xff]
      %v4672 = vld [vmem:[%s3621 + $0x122] sm:$0xff]
      %v4673 = vld [vmem:[%s3621 + $0x12a] sm:$0xff]
      %v4674 = vld [vmem:[%s3621 + $0x13a] sm:$0xff]
      %v4675 = vld [vmem:[%s3621 + $0x142] sm:$0xff]
      %v4676 = vld [vmem:[%s3621 + $0x152] sm:$0xff]
      %v4677 = vld [vmem:[%s3621 + $0x15a] sm:$0xff]
      %v4678 = vld [vmem:[%s3621 + $0x16a] sm:$0xff]
      %v4679 = vld [vmem:[%s3621 + $0x172] sm:$0xff]
      %v4680 = vld [vmem:[%s3621 + $0x1b2] sm:$0xff]
      %v4681 = vld [vmem:[%s3621 + $0x1ba] sm:$0xff]
      %v4682 = vld [vmem:[%s3621 + $0x1ca] sm:$0xff]
      %v4683 = vld [vmem:[%s3621 + $0x1d2] sm:$0xff]
      %v4684 = vld [vmem:[%s3621 + $0x1e2] sm:$0xff]
      %v4685 = vld [vmem:[%s3621 + $0x1ea] sm:$0xff]
      %v4686 = vld [vmem:[%s3621 + $0x1fa] sm:$0xff]
      %v4687 = vld [vmem:[%s3621 + $0x202] sm:$0xff]
      %v4688 = vld [vmem:[%s3621 + $0x212] sm:$0xff]
      %v4689 = vld [vmem:[%s3621 + $0x21a] sm:$0xff]
      %v4690 = vld [vmem:[%s3621 + $0x22a] sm:$0xff]
      %v4691 = vld [vmem:[%s3621 + $0x232] sm:$0xff]
      %v4692 = vld [vmem:[%s3621 + $0x242] sm:$0xff]
      %v4693 = vld [vmem:[%s3621 + $0x24a] sm:$0xff]
      %v4694 = vld [vmem:[%s3621 + $0x25a] sm:$0xff]
      %v4695 = vld [vmem:[%s3621 + $0x262] sm:$0xff]
      %v4696 = vld [vmem:[%s3621 + $0x272] sm:$0xff]
      %v4697 = vld [vmem:[%s3621 + $0x27a] sm:$0xff]
      %v4698 = vld [vmem:[%s3621 + $0x28a] sm:$0xff]
      %v4699 = vld [vmem:[%s3621 + $0x292] sm:$0xff]
      %v4700 = vld [vmem:[%s3621 + $0x2a2] sm:$0xff]
      %v4701 = vld [vmem:[%s3621 + $0x2aa] sm:$0xff]
      %v4702 = vld [vmem:[%s3621 + $0x2ba] sm:$0xff]
      %v4703 = vld [vmem:[%s3621 + $0x2c2] sm:$0xff]
      %v4704 = vld [vmem:[%s3621 + $0x2d2] sm:$0xff]
      %v4705 = vld [vmem:[%s3621 + $0x2da] sm:$0xff]
      %v4706 = vld [vmem:[%s3621 + $0x2ea] sm:$0xff]
      %v4707 = vld [vmem:[%s3621 + $0x2f2] sm:$0xff]
      %v4708 = vld [vmem:[%s3621 + $0x302] sm:$0xff]
      %v4709 = vld [vmem:[%s3621 + $0x30a] sm:$0xff]
      %v4710 = vld [vmem:[%s3621 + $0x31a] sm:$0xff]
      %v4711 = vld [vmem:[%s3621 + $0x322] sm:$0xff]
      %v4712 = vpack.c.bf16 %v4649, %v4648
      %v4713 = vpack.c.bf16 %v4651, %v4650
      %v4714 = vpack.c.bf16 %v4653, %v4652
      %v4715 = vpack.c.bf16 %v4655, %v4654
      %v4716 = vpack.c.bf16 %v4657, %v4656
      %v4717 = vpack.c.bf16 %v4659, %v4658
      %v4718 = vpack.c.bf16 %v4661, %v4660
      %v4719 = vpack.c.bf16 %v4663, %v4662
      %v4720 = vpack.c.bf16 %v4665, %v4664
      %v4721 = vpack.c.bf16 %v4667, %v4666
      %v4722 = vpack.c.bf16 %v4669, %v4668
      %v4723 = vpack.c.bf16 %v4671, %v4670
      %v4724 = vpack.c.bf16 %v4673, %v4672
      %v4725 = vpack.c.bf16 %v4675, %v4674
      %v4726 = vpack.c.bf16 %v4677, %v4676
      %v4727 = vpack.c.bf16 %v4679, %v4678
      %v4728 = vpack.c.bf16 %v4681, %v4680
      %v4729 = vpack.c.bf16 %v4683, %v4682
      %v4730 = vpack.c.bf16 %v4685, %v4684
      %v4731 = vpack.c.bf16 %v4687, %v4686
      %v4732 = vpack.c.bf16 %v4689, %v4688
      %v4733 = vpack.c.bf16 %v4691, %v4690
      %v4734 = vpack.c.bf16 %v4693, %v4692
      %v4735 = vpack.c.bf16 %v4695, %v4694
      %v4736 = vpack.c.bf16 %v4697, %v4696
      %v4737 = vpack.c.bf16 %v4699, %v4698
      %v4738 = vpack.c.bf16 %v4701, %v4700
      %v4739 = vpack.c.bf16 %v4703, %v4702
      %v4740 = vpack.c.bf16 %v4705, %v4704
      %v4741 = vpack.c.bf16 %v4707, %v4706
      %v4742 = vpack.c.bf16 %v4709, %v4708
      %v4743 = vpack.c.bf16 %v4711, %v4710
      %v4776 = vunpack.c.l.b16 %v4712
      %v4777 = vunpack.c.h.b16 %v4712
      %v4778 = vunpack.c.l.b16 %v4713
      %v4779 = vunpack.c.h.b16 %v4713
      %v4780 = vunpack.c.l.b16 %v4714
      %v4781 = vunpack.c.h.b16 %v4714
      %v4782 = vunpack.c.l.b16 %v4715
      %v4783 = vunpack.c.h.b16 %v4715
      %v4784 = vunpack.c.l.b16 %v4716
      %v4785 = vunpack.c.h.b16 %v4716
      %v4786 = vunpack.c.l.b16 %v4717
      %v4787 = vunpack.c.h.b16 %v4717
      %v4788 = vunpack.c.l.b16 %v4718
      %v4789 = vunpack.c.h.b16 %v4718
      %v4790 = vunpack.c.l.b16 %v4719
      %v4791 = vunpack.c.h.b16 %v4719
      %v4792 = vunpack.c.l.b16 %v4720
      %v4793 = vunpack.c.h.b16 %v4720
      %v4794 = vunpack.c.l.b16 %v4721
      %v4795 = vunpack.c.h.b16 %v4721
      %v4796 = vunpack.c.l.b16 %v4722
      %v4797 = vunpack.c.h.b16 %v4722
      %v4798 = vunpack.c.l.b16 %v4723
      %v4799 = vunpack.c.h.b16 %v4723
      %v4800 = vunpack.c.l.b16 %v4724
      %v4801 = vunpack.c.h.b16 %v4724
      %v4802 = vunpack.c.l.b16 %v4725
      %v4803 = vunpack.c.h.b16 %v4725
      %v4804 = vunpack.c.l.b16 %v4726
      %v4805 = vunpack.c.h.b16 %v4726
      %v4806 = vunpack.c.l.b16 %v4727
      %v4807 = vunpack.c.h.b16 %v4727
      %v4808 = vunpack.c.l.b16 %v4728
      %v4809 = vunpack.c.h.b16 %v4728
      %v4810 = vunpack.c.l.b16 %v4729
      %v4811 = vunpack.c.h.b16 %v4729
      %v4812 = vunpack.c.l.b16 %v4730
      %v4813 = vunpack.c.h.b16 %v4730
      %v4814 = vunpack.c.l.b16 %v4731
      %v4815 = vunpack.c.h.b16 %v4731
      %v4816 = vunpack.c.l.b16 %v4732
      %v4817 = vunpack.c.h.b16 %v4732
      %v4818 = vunpack.c.l.b16 %v4733
      %v4819 = vunpack.c.h.b16 %v4733
      %v4820 = vunpack.c.l.b16 %v4734
      %v4821 = vunpack.c.h.b16 %v4734
      %v4822 = vunpack.c.l.b16 %v4735
      %v4823 = vunpack.c.h.b16 %v4735
      %v4824 = vunpack.c.l.b16 %v4736
      %v4825 = vunpack.c.h.b16 %v4736
      %v4826 = vunpack.c.l.b16 %v4737
      %v4827 = vunpack.c.h.b16 %v4737
      %v4828 = vunpack.c.l.b16 %v4738
      %v4829 = vunpack.c.h.b16 %v4738
      %v4830 = vunpack.c.l.b16 %v4739
      %v4831 = vunpack.c.h.b16 %v4739
      %v4832 = vunpack.c.l.b16 %v4740
      %v4833 = vunpack.c.h.b16 %v4740
      %v4834 = vunpack.c.l.b16 %v4741
      %v4835 = vunpack.c.h.b16 %v4741
      %v4836 = vunpack.c.l.b16 %v4742
      %v4837 = vunpack.c.h.b16 %v4742
      %v4838 = vunpack.c.l.b16 %v4743
      %v4839 = vunpack.c.h.b16 %v4743
      %v4840 = vpack.c.b16 %v4776, %v4776
      %v4841 = vpack.c.b16 %v4777, %v4777
      %v4842 = vpack.c.b16 %v4778, %v4778
      %v4843 = vpack.c.b16 %v4779, %v4779
      %v4844 = vpack.c.b16 %v4780, %v4780
      %v4845 = vpack.c.b16 %v4781, %v4781
      %v4846 = vpack.c.b16 %v4782, %v4782
      %v4847 = vpack.c.b16 %v4783, %v4783
      %v4848 = vpack.c.b16 %v4784, %v4784
      %v4849 = vpack.c.b16 %v4785, %v4785
      %v4850 = vpack.c.b16 %v4786, %v4786
      %v4851 = vpack.c.b16 %v4787, %v4787
      %v4852 = vpack.c.b16 %v4788, %v4788
      %v4853 = vpack.c.b16 %v4789, %v4789
      %v4854 = vpack.c.b16 %v4790, %v4790
      %v4855 = vpack.c.b16 %v4791, %v4791
      %v4856 = vpack.c.b16 %v4792, %v4792
      %v4857 = vpack.c.b16 %v4793, %v4793
      %v4858 = vpack.c.b16 %v4794, %v4794
      %v4859 = vpack.c.b16 %v4795, %v4795
      %v4860 = vpack.c.b16 %v4796, %v4796
      %v4861 = vpack.c.b16 %v4797, %v4797
      %v4862 = vpack.c.b16 %v4798, %v4798
      %v4863 = vpack.c.b16 %v4799, %v4799
      %v4864 = vpack.c.b16 %v4800, %v4800
      %v4865 = vpack.c.b16 %v4801, %v4801
      %v4866 = vpack.c.b16 %v4802, %v4802
      %v4867 = vpack.c.b16 %v4803, %v4803
      %v4868 = vpack.c.b16 %v4804, %v4804
      %v4869 = vpack.c.b16 %v4805, %v4805
      %v4870 = vpack.c.b16 %v4806, %v4806
      %v4871 = vpack.c.b16 %v4807, %v4807
      %v4872 = vpack.c.b16 %v4808, %v4808
      %v4873 = vpack.c.b16 %v4809, %v4809
      %v4874 = vpack.c.b16 %v4810, %v4810
      %v4875 = vpack.c.b16 %v4811, %v4811
      %v4876 = vpack.c.b16 %v4812, %v4812
      %v4877 = vpack.c.b16 %v4813, %v4813
      %v4878 = vpack.c.b16 %v4814, %v4814
      %v4879 = vpack.c.b16 %v4815, %v4815
      %v4880 = vpack.c.b16 %v4816, %v4816
      %v4881 = vpack.c.b16 %v4817, %v4817
      %v4882 = vpack.c.b16 %v4818, %v4818
      %v4883 = vpack.c.b16 %v4819, %v4819
      %v4884 = vpack.c.b16 %v4820, %v4820
      %v4885 = vpack.c.b16 %v4821, %v4821
      %v4886 = vpack.c.b16 %v4822, %v4822
      %v4887 = vpack.c.b16 %v4823, %v4823
      %v4888 = vpack.c.b16 %v4824, %v4824
      %v4889 = vpack.c.b16 %v4825, %v4825
      %v4890 = vpack.c.b16 %v4826, %v4826
      %v4891 = vpack.c.b16 %v4827, %v4827
      %v4892 = vpack.c.b16 %v4828, %v4828
      %v4893 = vpack.c.b16 %v4829, %v4829
      %v4894 = vpack.c.b16 %v4830, %v4830
      %v4895 = vpack.c.b16 %v4831, %v4831
      %v4896 = vpack.c.b16 %v4832, %v4832
      %v4897 = vpack.c.b16 %v4833, %v4833
      %v4898 = vpack.c.b16 %v4834, %v4834
      %v4899 = vpack.c.b16 %v4835, %v4835
      %v4900 = vpack.c.b16 %v4836, %v4836
      %v4901 = vpack.c.b16 %v4837, %v4837
      %v4902 = vpack.c.b16 %v4838, %v4838
      %v4903 = vpack.c.b16 %v4839, %v4839
      %4904 = vrot.lane.b32.xlu0 %v4840, 24
      %v4905 = vpop.permute.xlu0 %4904
      %4906 = vrot.lane.b32.xlu0 %v4841, 24
      %v4907 = vpop.permute.xlu0 %4906
      %4908 = vrot.lane.b32.xlu0 %v4842, 24
      %v4909 = vpop.permute.xlu0 %4908
      %4910 = vrot.lane.b32.xlu0 %v4843, 24
      %v4911 = vpop.permute.xlu0 %4910
      %4912 = vrot.lane.b32.xlu0 %v4844, 24
      %v4913 = vpop.permute.xlu0 %4912
      %4914 = vrot.lane.b32.xlu0 %v4845, 24
      %v4915 = vpop.permute.xlu0 %4914
      %4916 = vrot.lane.b32.xlu0 %v4846, 24
      %v4917 = vpop.permute.xlu0 %4916
      %4918 = vrot.lane.b32.xlu0 %v4847, 24
      %v4919 = vpop.permute.xlu0 %4918
      %4920 = vrot.lane.b32.xlu0 %v4848, 24
      %v4921 = vpop.permute.xlu0 %4920
      %4922 = vrot.lane.b32.xlu0 %v4849, 24
      %v4923 = vpop.permute.xlu0 %4922
      %4924 = vrot.lane.b32.xlu0 %v4850, 24
      %v4925 = vpop.permute.xlu0 %4924
      %4926 = vrot.lane.b32.xlu0 %v4851, 24
      %v4927 = vpop.permute.xlu0 %4926
      %4928 = vrot.lane.b32.xlu0 %v4852, 24
      %v4929 = vpop.permute.xlu0 %4928
      %4930 = vrot.lane.b32.xlu0 %v4853, 24
      %v4931 = vpop.permute.xlu0 %4930
      %4932 = vrot.lane.b32.xlu0 %v4854, 24
      %v4933 = vpop.permute.xlu0 %4932
      %4934 = vrot.lane.b32.xlu0 %v4855, 24
      %v4935 = vpop.permute.xlu0 %4934
      %4936 = vrot.lane.b32.xlu0 %v4856, 24
      %v4937 = vpop.permute.xlu0 %4936
      %4938 = vrot.lane.b32.xlu0 %v4857, 24
      %v4939 = vpop.permute.xlu0 %4938
      %4940 = vrot.lane.b32.xlu0 %v4858, 24
      %v4941 = vpop.permute.xlu0 %4940
      %4942 = vrot.lane.b32.xlu0 %v4859, 24
      %v4943 = vpop.permute.xlu0 %4942
      %4944 = vrot.lane.b32.xlu0 %v4860, 24
      %v4945 = vpop.permute.xlu0 %4944
      %4946 = vrot.lane.b32.xlu0 %v4861, 24
      %v4947 = vpop.permute.xlu0 %4946
      %4948 = vrot.lane.b32.xlu0 %v4862, 24
      %v4949 = vpop.permute.xlu0 %4948
      %4950 = vrot.lane.b32.xlu0 %v4863, 24
      %v4951 = vpop.permute.xlu0 %4950
      %4952 = vrot.lane.b32.xlu0 %v4864, 24
      %v4953 = vpop.permute.xlu0 %4952
      %4954 = vrot.lane.b32.xlu0 %v4865, 24
      %v4955 = vpop.permute.xlu0 %4954
      %4956 = vrot.lane.b32.xlu0 %v4866, 24
      %v4957 = vpop.permute.xlu0 %4956
      %4958 = vrot.lane.b32.xlu0 %v4867, 24
      %v4959 = vpop.permute.xlu0 %4958
      %4960 = vrot.lane.b32.xlu0 %v4868, 24
      %v4961 = vpop.permute.xlu0 %4960
      %4962 = vrot.lane.b32.xlu0 %v4869, 24
      %v4963 = vpop.permute.xlu0 %4962
      %4964 = vrot.lane.b32.xlu0 %v4870, 24
      %v4965 = vpop.permute.xlu0 %4964
      %4966 = vrot.lane.b32.xlu0 %v4871, 24
      %v4967 = vpop.permute.xlu0 %4966
      %4968 = vrot.lane.b32.xlu0 %v4872, 24
      %v4969 = vpop.permute.xlu0 %4968
      %4970 = vrot.lane.b32.xlu0 %v4873, 24
      %v4971 = vpop.permute.xlu0 %4970
      %4972 = vrot.lane.b32.xlu0 %v4874, 24
      %v4973 = vpop.permute.xlu0 %4972
      %4974 = vrot.lane.b32.xlu0 %v4875, 24
      %v4975 = vpop.permute.xlu0 %4974
      %4976 = vrot.lane.b32.xlu0 %v4876, 24
      %v4977 = vpop.permute.xlu0 %4976
      %4978 = vrot.lane.b32.xlu0 %v4877, 24
      %v4979 = vpop.permute.xlu0 %4978
      %4980 = vrot.lane.b32.xlu0 %v4878, 24
      %v4981 = vpop.permute.xlu0 %4980
      %4982 = vrot.lane.b32.xlu0 %v4879, 24
      %v4983 = vpop.permute.xlu0 %4982
      %4984 = vrot.lane.b32.xlu0 %v4880, 24
      %v4985 = vpop.permute.xlu0 %4984
      %4986 = vrot.lane.b32.xlu0 %v4881, 24
      %v4987 = vpop.permute.xlu0 %4986
      %4988 = vrot.lane.b32.xlu0 %v4882, 24
      %v4989 = vpop.permute.xlu0 %4988
      %4990 = vrot.lane.b32.xlu0 %v4883, 24
      %v4991 = vpop.permute.xlu0 %4990
      %4992 = vrot.lane.b32.xlu0 %v4884, 24
      %v4993 = vpop.permute.xlu0 %4992
      %4994 = vrot.lane.b32.xlu0 %v4885, 24
      %v4995 = vpop.permute.xlu0 %4994
      %4996 = vrot.lane.b32.xlu0 %v4886, 24
      %v4997 = vpop.permute.xlu0 %4996
      %4998 = vrot.lane.b32.xlu0 %v4887, 24
      %v4999 = vpop.permute.xlu0 %4998
      %5000 = vrot.lane.b32.xlu0 %v4888, 24
      %v5001 = vpop.permute.xlu0 %5000
      %5002 = vrot.lane.b32.xlu0 %v4889, 24
      %v5003 = vpop.permute.xlu0 %5002
      %5004 = vrot.lane.b32.xlu0 %v4890, 24
      %v5005 = vpop.permute.xlu0 %5004
      %5006 = vrot.lane.b32.xlu0 %v4891, 24
      %v5007 = vpop.permute.xlu0 %5006
      %5008 = vrot.lane.b32.xlu0 %v4892, 24
      %v5009 = vpop.permute.xlu0 %5008
      %5010 = vrot.lane.b32.xlu0 %v4893, 24
      %v5011 = vpop.permute.xlu0 %5010
      %5012 = vrot.lane.b32.xlu0 %v4894, 24
      %v5013 = vpop.permute.xlu0 %5012
      %5014 = vrot.lane.b32.xlu0 %v4895, 24
      %v5015 = vpop.permute.xlu0 %5014
      %5016 = vrot.lane.b32.xlu0 %v4896, 24
      %v5017 = vpop.permute.xlu0 %5016
      %5018 = vrot.lane.b32.xlu0 %v4897, 24
      %v5019 = vpop.permute.xlu0 %5018
      %5020 = vrot.lane.b32.xlu0 %v4898, 24
      %v5021 = vpop.permute.xlu0 %5020
      %5022 = vrot.lane.b32.xlu0 %v4899, 24
      %v5023 = vpop.permute.xlu0 %5022
      %5024 = vrot.lane.b32.xlu0 %v4900, 24
      %v5025 = vpop.permute.xlu0 %5024
      %5026 = vrot.lane.b32.xlu0 %v4901, 24
      %v5027 = vpop.permute.xlu0 %5026
      %5028 = vrot.lane.b32.xlu0 %v4902, 24
      %v5029 = vpop.permute.xlu0 %5028
      %5030 = vrot.lane.b32.xlu0 %v4903, 24
      %v5031 = vpop.permute.xlu0 %5030
      %vm5096 = vcmask 216256
      %5097 = vst.msk [vmem:[#allocation7] sm:$0xf] %vm5096, %v4905
      %5098 = vst.msk [vmem:[#allocation7 + $0x4] sm:$0xf] %vm5096, %v4907
      %5099 = vst.msk [vmem:[#allocation7 + $0x8] sm:$0xf] %vm5096, %v4909
      %5100 = vst.msk [vmem:[#allocation7 + $0xc] sm:$0xf] %vm5096, %v4911
      %5101 = vst.msk [vmem:[#allocation7 + $0x10] sm:$0xf] %vm5096, %v4913
      %5102 = vst.msk [vmem:[#allocation7 + $0x14] sm:$0xf] %vm5096, %v4915
      %5103 = vst.msk [vmem:[#allocation7 + $0x18] sm:$0xf] %vm5096, %v4917
      %5104 = vst.msk [vmem:[#allocation7 + $0x1c] sm:$0xf] %vm5096, %v4919
      %5105 = vst.msk [vmem:[#allocation7 + $0x20] sm:$0xf] %vm5096, %v4921
      %5106 = vst.msk [vmem:[#allocation7 + $0x24] sm:$0xf] %vm5096, %v4923
      %5107 = vst.msk [vmem:[#allocation7 + $0x28] sm:$0xf] %vm5096, %v4925
      %5108 = vst.msk [vmem:[#allocation7 + $0x2c] sm:$0xf] %vm5096, %v4927
      %5109 = vst.msk [vmem:[#allocation7 + $0x30] sm:$0xf] %vm5096, %v4929
      %5110 = vst.msk [vmem:[#allocation7 + $0x34] sm:$0xf] %vm5096, %v4931
      %5111 = vst.msk [vmem:[#allocation7 + $0x38] sm:$0xf] %vm5096, %v4933
      %5112 = vst.msk [vmem:[#allocation7 + $0x3c] sm:$0xf] %vm5096, %v4935
      %5113 = vst.msk [vmem:[#allocation7 + $0x40] sm:$0xf] %vm5096, %v4937
      %5114 = vst.msk [vmem:[#allocation7 + $0x44] sm:$0xf] %vm5096, %v4939
      %5115 = vst.msk [vmem:[#allocation7 + $0x48] sm:$0xf] %vm5096, %v4941
      %5116 = vst.msk [vmem:[#allocation7 + $0x4c] sm:$0xf] %vm5096, %v4943
      %5117 = vst.msk [vmem:[#allocation7 + $0x50] sm:$0xf] %vm5096, %v4945
      %5118 = vst.msk [vmem:[#allocation7 + $0x54] sm:$0xf] %vm5096, %v4947
      %5119 = vst.msk [vmem:[#allocation7 + $0x58] sm:$0xf] %vm5096, %v4949
      %5120 = vst.msk [vmem:[#allocation7 + $0x5c] sm:$0xf] %vm5096, %v4951
      %5121 = vst.msk [vmem:[#allocation7 + $0x60] sm:$0xf] %vm5096, %v4953
      %5122 = vst.msk [vmem:[#allocation7 + $0x64] sm:$0xf] %vm5096, %v4955
      %5123 = vst.msk [vmem:[#allocation7 + $0x68] sm:$0xf] %vm5096, %v4957
      %5124 = vst.msk [vmem:[#allocation7 + $0x6c] sm:$0xf] %vm5096, %v4959
      %5125 = vst.msk [vmem:[#allocation7 + $0x70] sm:$0xf] %vm5096, %v4961
      %5126 = vst.msk [vmem:[#allocation7 + $0x74] sm:$0xf] %vm5096, %v4963
      %5127 = vst.msk [vmem:[#allocation7 + $0x78] sm:$0xf] %vm5096, %v4965
      %5128 = vst.msk [vmem:[#allocation7 + $0x7c] sm:$0xf] %vm5096, %v4967
      %5129 = vst.msk [vmem:[#allocation7 + $0x80] sm:$0xf] %vm5096, %v4969
      %5130 = vst.msk [vmem:[#allocation7 + $0x84] sm:$0xf] %vm5096, %v4971
      %5131 = vst.msk [vmem:[#allocation7 + $0x88] sm:$0xf] %vm5096, %v4973
      %5132 = vst.msk [vmem:[#allocation7 + $0x8c] sm:$0xf] %vm5096, %v4975
      %5133 = vst.msk [vmem:[#allocation7 + $0x90] sm:$0xf] %vm5096, %v4977
      %5134 = vst.msk [vmem:[#allocation7 + $0x94] sm:$0xf] %vm5096, %v4979
      %5135 = vst.msk [vmem:[#allocation7 + $0x98] sm:$0xf] %vm5096, %v4981
      %5136 = vst.msk [vmem:[#allocation7 + $0x9c] sm:$0xf] %vm5096, %v4983
      %5137 = vst.msk [vmem:[#allocation7 + $0xa0] sm:$0xf] %vm5096, %v4985
      %5138 = vst.msk [vmem:[#allocation7 + $0xa4] sm:$0xf] %vm5096, %v4987
      %5139 = vst.msk [vmem:[#allocation7 + $0xa8] sm:$0xf] %vm5096, %v4989
      %5140 = vst.msk [vmem:[#allocation7 + $0xac] sm:$0xf] %vm5096, %v4991
      %5141 = vst.msk [vmem:[#allocation7 + $0xb0] sm:$0xf] %vm5096, %v4993
      %5142 = vst.msk [vmem:[#allocation7 + $0xb4] sm:$0xf] %vm5096, %v4995
      %5143 = vst.msk [vmem:[#allocation7 + $0xb8] sm:$0xf] %vm5096, %v4997
      %5144 = vst.msk [vmem:[#allocation7 + $0xbc] sm:$0xf] %vm5096, %v4999
      %5145 = vst.msk [vmem:[#allocation7 + $0xc0] sm:$0xf] %vm5096, %v5001
      %5146 = vst.msk [vmem:[#allocation7 + $0xc4] sm:$0xf] %vm5096, %v5003
      %5147 = vst.msk [vmem:[#allocation7 + $0xc8] sm:$0xf] %vm5096, %v5005
      %5148 = vst.msk [vmem:[#allocation7 + $0xcc] sm:$0xf] %vm5096, %v5007
      %5149 = vst.msk [vmem:[#allocation7 + $0xd0] sm:$0xf] %vm5096, %v5009
      %5150 = vst.msk [vmem:[#allocation7 + $0xd4] sm:$0xf] %vm5096, %v5011
      %5151 = vst.msk [vmem:[#allocation7 + $0xd8] sm:$0xf] %vm5096, %v5013
      %5152 = vst.msk [vmem:[#allocation7 + $0xdc] sm:$0xf] %vm5096, %v5015
      %5153 = vst.msk [vmem:[#allocation7 + $0xe0] sm:$0xf] %vm5096, %v5017
      %5154 = vst.msk [vmem:[#allocation7 + $0xe4] sm:$0xf] %vm5096, %v5019
      %5155 = vst.msk [vmem:[#allocation7 + $0xe8] sm:$0xf] %vm5096, %v5021
      %5156 = vst.msk [vmem:[#allocation7 + $0xec] sm:$0xf] %vm5096, %v5023
      %5157 = vst.msk [vmem:[#allocation7 + $0xf0] sm:$0xf] %vm5096, %v5025
      %5158 = vst.msk [vmem:[#allocation7 + $0xf4] sm:$0xf] %vm5096, %v5027
      %5159 = vst.msk [vmem:[#allocation7 + $0xf8] sm:$0xf] %vm5096, %v5029
      %5160 = vst.msk [vmem:[#allocation7 + $0xfc] sm:$0xf] %vm5096, %v5031
      %v5161 = vld [vmem:[#allocation7] sm:$0xf]
      %v5162 = vld [vmem:[#allocation7 + $0x4] sm:$0xf]
      %v5163 = vld [vmem:[#allocation7 + $0x8] sm:$0xf]
      %v5164 = vld [vmem:[#allocation7 + $0xc] sm:$0xf]
      %v5165 = vld [vmem:[#allocation7 + $0x10] sm:$0xf]
      %v5166 = vld [vmem:[#allocation7 + $0x14] sm:$0xf]
      %v5167 = vld [vmem:[#allocation7 + $0x18] sm:$0xf]
      %v5168 = vld [vmem:[#allocation7 + $0x1c] sm:$0xf]
      %v5169 = vld [vmem:[#allocation7 + $0x20] sm:$0xf]
      %v5170 = vld [vmem:[#allocation7 + $0x24] sm:$0xf]
      %v5171 = vld [vmem:[#allocation7 + $0x28] sm:$0xf]
      %v5172 = vld [vmem:[#allocation7 + $0x2c] sm:$0xf]
      %v5173 = vld [vmem:[#allocation7 + $0x30] sm:$0xf]
      %v5174 = vld [vmem:[#allocation7 + $0x34] sm:$0xf]
      %v5175 = vld [vmem:[#allocation7 + $0x38] sm:$0xf]
      %v5176 = vld [vmem:[#allocation7 + $0x3c] sm:$0xf]
      %v5177 = vld [vmem:[#allocation7 + $0x40] sm:$0xf]
      %v5178 = vld [vmem:[#allocation7 + $0x44] sm:$0xf]
      %v5179 = vld [vmem:[#allocation7 + $0x48] sm:$0xf]
      %v5180 = vld [vmem:[#allocation7 + $0x4c] sm:$0xf]
      %v5181 = vld [vmem:[#allocation7 + $0x50] sm:$0xf]
      %v5182 = vld [vmem:[#allocation7 + $0x54] sm:$0xf]
      %v5183 = vld [vmem:[#allocation7 + $0x58] sm:$0xf]
      %v5184 = vld [vmem:[#allocation7 + $0x5c] sm:$0xf]
      %v5185 = vld [vmem:[#allocation7 + $0x60] sm:$0xf]
      %v5186 = vld [vmem:[#allocation7 + $0x64] sm:$0xf]
      %v5187 = vld [vmem:[#allocation7 + $0x68] sm:$0xf]
      %v5188 = vld [vmem:[#allocation7 + $0x6c] sm:$0xf]
      %v5189 = vld [vmem:[#allocation7 + $0x70] sm:$0xf]
      %v5190 = vld [vmem:[#allocation7 + $0x74] sm:$0xf]
      %v5191 = vld [vmem:[#allocation7 + $0x78] sm:$0xf]
      %v5192 = vld [vmem:[#allocation7 + $0x7c] sm:$0xf]
      %v5193 = vld [vmem:[#allocation7 + $0x80] sm:$0xf]
      %v5194 = vld [vmem:[#allocation7 + $0x84] sm:$0xf]
      %v5195 = vld [vmem:[#allocation7 + $0x88] sm:$0xf]
      %v5196 = vld [vmem:[#allocation7 + $0x8c] sm:$0xf]
      %v5197 = vld [vmem:[#allocation7 + $0x90] sm:$0xf]
      %v5198 = vld [vmem:[#allocation7 + $0x94] sm:$0xf]
      %v5199 = vld [vmem:[#allocation7 + $0x98] sm:$0xf]
      %v5200 = vld [vmem:[#allocation7 + $0x9c] sm:$0xf]
      %v5201 = vld [vmem:[#allocation7 + $0xa0] sm:$0xf]
      %v5202 = vld [vmem:[#allocation7 + $0xa4] sm:$0xf]
      %v5203 = vld [vmem:[#allocation7 + $0xa8] sm:$0xf]
      %v5204 = vld [vmem:[#allocation7 + $0xac] sm:$0xf]
      %v5205 = vld [vmem:[#allocation7 + $0xb0] sm:$0xf]
      %v5206 = vld [vmem:[#allocation7 + $0xb4] sm:$0xf]
      %v5207 = vld [vmem:[#allocation7 + $0xb8] sm:$0xf]
      %v5208 = vld [vmem:[#allocation7 + $0xbc] sm:$0xf]
      %v5209 = vld [vmem:[#allocation7 + $0xc0] sm:$0xf]
      %v5210 = vld [vmem:[#allocation7 + $0xc4] sm:$0xf]
      %v5211 = vld [vmem:[#allocation7 + $0xc8] sm:$0xf]
      %v5212 = vld [vmem:[#allocation7 + $0xcc] sm:$0xf]
      %v5213 = vld [vmem:[#allocation7 + $0xd0] sm:$0xf]
      %v5214 = vld [vmem:[#allocation7 + $0xd4] sm:$0xf]
      %v5215 = vld [vmem:[#allocation7 + $0xd8] sm:$0xf]
      %v5216 = vld [vmem:[#allocation7 + $0xdc] sm:$0xf]
      %v5217 = vld [vmem:[#allocation7 + $0xe0] sm:$0xf]
      %v5218 = vld [vmem:[#allocation7 + $0xe4] sm:$0xf]
      %v5219 = vld [vmem:[#allocation7 + $0xe8] sm:$0xf]
      %v5220 = vld [vmem:[#allocation7 + $0xec] sm:$0xf]
      %v5221 = vld [vmem:[#allocation7 + $0xf0] sm:$0xf]
      %v5222 = vld [vmem:[#allocation7 + $0xf4] sm:$0xf]
      %v5223 = vld [vmem:[#allocation7 + $0xf8] sm:$0xf]
      %v5224 = vld [vmem:[#allocation7 + $0xfc] sm:$0xf]
      %v5225 = vld [vmem:[%s2] sm:$0xf]
      %v5226 = vld [vmem:[%s2 + $0x4] sm:$0xf]
      %v5227 = vld [vmem:[%s2 + $0x8] sm:$0xf]
      %v5228 = vld [vmem:[%s2 + $0xc] sm:$0x3]
      %v5229 = vld [vmem:[%s3] sm:$0x1]
      %v5231 = vlaneseq
      %v5232 = vshrl.u32 %v5231, 7
      %v5233 = vsub.s32 0, %v5232
      %v5234 = vrot.slane %v5229, %v5233
      %v5300 = vunpack.c.l.b16 %v5161
      %v5301 = vunpack.c.l.b16 %v5162
      %v5302 = vunpack.c.l.b16 %v5163
      %v5303 = vunpack.c.l.b16 %v5164
      %v5304 = vunpack.c.l.b16 %v5165
      %v5305 = vunpack.c.l.b16 %v5166
      %v5306 = vunpack.c.l.b16 %v5167
      %v5307 = vunpack.c.l.b16 %v5168
      %v5308 = vunpack.c.l.b16 %v5169
      %v5309 = vunpack.c.l.b16 %v5170
      %v5310 = vunpack.c.l.b16 %v5171
      %v5311 = vunpack.c.l.b16 %v5172
      %v5312 = vunpack.c.l.b16 %v5173
      %v5313 = vunpack.c.l.b16 %v5174
      %v5314 = vunpack.c.l.b16 %v5175
      %v5315 = vunpack.c.l.b16 %v5176
      %v5316 = vunpack.c.l.b16 %v5177
      %v5317 = vunpack.c.l.b16 %v5178
      %v5318 = vunpack.c.l.b16 %v5179
      %v5319 = vunpack.c.l.b16 %v5180
      %v5320 = vunpack.c.l.b16 %v5181
      %v5321 = vunpack.c.l.b16 %v5182
      %v5322 = vunpack.c.l.b16 %v5183
      %v5323 = vunpack.c.l.b16 %v5184
      %v5324 = vunpack.c.l.b16 %v5185
      %v5325 = vunpack.c.l.b16 %v5186
      %v5326 = vunpack.c.l.b16 %v5187
      %v5327 = vunpack.c.l.b16 %v5188
      %v5328 = vunpack.c.l.b16 %v5189
      %v5329 = vunpack.c.l.b16 %v5190
      %v5330 = vunpack.c.l.b16 %v5191
      %v5331 = vunpack.c.l.b16 %v5192
      %v5332 = vunpack.c.l.b16 %v5193
      %v5333 = vunpack.c.l.b16 %v5194
      %v5334 = vunpack.c.l.b16 %v5195
      %v5335 = vunpack.c.l.b16 %v5196
      %v5336 = vunpack.c.l.b16 %v5197
      %v5337 = vunpack.c.l.b16 %v5198
      %v5338 = vunpack.c.l.b16 %v5199
      %v5339 = vunpack.c.l.b16 %v5200
      %v5340 = vunpack.c.l.b16 %v5201
      %v5341 = vunpack.c.l.b16 %v5202
      %v5342 = vunpack.c.l.b16 %v5203
      %v5343 = vunpack.c.l.b16 %v5204
      %v5344 = vunpack.c.l.b16 %v5205
      %v5345 = vunpack.c.l.b16 %v5206
      %v5346 = vunpack.c.l.b16 %v5207
      %v5347 = vunpack.c.l.b16 %v5208
      %v5348 = vunpack.c.l.b16 %v5209
      %v5349 = vunpack.c.l.b16 %v5210
      %v5350 = vunpack.c.l.b16 %v5211
      %v5351 = vunpack.c.l.b16 %v5212
      %v5352 = vunpack.c.l.b16 %v5213
      %v5353 = vunpack.c.l.b16 %v5214
      %v5354 = vunpack.c.l.b16 %v5215
      %v5355 = vunpack.c.l.b16 %v5216
      %v5356 = vunpack.c.l.b16 %v5217
      %v5357 = vunpack.c.l.b16 %v5218
      %v5358 = vunpack.c.l.b16 %v5219
      %v5359 = vunpack.c.l.b16 %v5220
      %v5360 = vunpack.c.l.b16 %v5221
      %v5361 = vunpack.c.l.b16 %v5222
      %v5362 = vunpack.c.l.b16 %v5223
      %v5363 = vunpack.c.l.b16 %v5224
      %v5364 = vpack.c.b16 %v5301, %v5300
      %v5365 = vpack.c.b16 %v5303, %v5302
      %v5366 = vpack.c.b16 %v5305, %v5304
      %v5367 = vpack.c.b16 %v5307, %v5306
      %v5368 = vpack.c.b16 %v5309, %v5308
      %v5369 = vpack.c.b16 %v5311, %v5310
      %v5370 = vpack.c.b16 %v5313, %v5312
      %v5371 = vpack.c.b16 %v5315, %v5314
      %v5372 = vpack.c.b16 %v5317, %v5316
      %v5373 = vpack.c.b16 %v5319, %v5318
      %v5374 = vpack.c.b16 %v5321, %v5320
      %v5375 = vpack.c.b16 %v5323, %v5322
      %v5376 = vpack.c.b16 %v5325, %v5324
      %v5377 = vpack.c.b16 %v5327, %v5326
      %v5378 = vpack.c.b16 %v5329, %v5328
      %v5379 = vpack.c.b16 %v5331, %v5330
      %v5380 = vpack.c.b16 %v5333, %v5332
      %v5381 = vpack.c.b16 %v5335, %v5334
      %v5382 = vpack.c.b16 %v5337, %v5336
      %v5383 = vpack.c.b16 %v5339, %v5338
      %v5384 = vpack.c.b16 %v5341, %v5340
      %v5385 = vpack.c.b16 %v5343, %v5342
      %v5386 = vpack.c.b16 %v5345, %v5344
      %v5387 = vpack.c.b16 %v5347, %v5346
      %v5388 = vpack.c.b16 %v5349, %v5348
      %v5389 = vpack.c.b16 %v5351, %v5350
      %v5390 = vpack.c.b16 %v5353, %v5352
      %v5391 = vpack.c.b16 %v5355, %v5354
      %v5392 = vpack.c.b16 %v5357, %v5356
      %v5393 = vpack.c.b16 %v5359, %v5358
      %v5394 = vpack.c.b16 %v5361, %v5360
      %v5395 = vpack.c.b16 %v5363, %v5362
      %v5400 = vunpack.c.l.b16 %v5225
      %v5401 = vunpack.c.l.b16 %v5226
      %v5402 = vunpack.c.l.b16 %v5227
      %v5403 = vunpack.c.l.b16 %v5228
      %v5404 = vpack.c.b16 %v5401, %v5400
      %v5405 = vpack.c.b16 %v5403, %v5402
      %vm5407 = vcmask 220160
      %v5409 = vsel %vm5407, %v5364, 0
      %v5412 = vsel %vm5407, %v5365, 0
      %v5415 = vsel %vm5407, %v5366, 0
      %v5418 = vsel %vm5407, %v5367, 0
      %v5421 = vsel %vm5407, %v5368, 0
      %v5424 = vsel %vm5407, %v5369, 0
      %v5427 = vsel %vm5407, %v5370, 0
      %v5430 = vsel %vm5407, %v5371, 0
      %v5433 = vsel %vm5407, %v5372, 0
      %v5436 = vsel %vm5407, %v5373, 0
      %v5439 = vsel %vm5407, %v5374, 0
      %v5442 = vsel %vm5407, %v5375, 0
      %v5445 = vsel %vm5407, %v5376, 0
      %v5448 = vsel %vm5407, %v5377, 0
      %v5451 = vsel %vm5407, %v5378, 0
      %v5454 = vsel %vm5407, %v5379, 0
      %v5457 = vsel %vm5407, %v5380, 0
      %v5460 = vsel %vm5407, %v5381, 0
      %v5463 = vsel %vm5407, %v5382, 0
      %v5466 = vsel %vm5407, %v5383, 0
      %v5469 = vsel %vm5407, %v5384, 0
      %v5472 = vsel %vm5407, %v5385, 0
      %v5475 = vsel %vm5407, %v5386, 0
      %v5478 = vsel %vm5407, %v5387, 0
      %v5481 = vsel %vm5407, %v5388, 0
      %v5484 = vsel %vm5407, %v5389, 0
      %v5487 = vsel %vm5407, %v5390, 0
      %v5490 = vsel %vm5407, %v5391, 0
      %v5493 = vsel %vm5407, %v5392, 0
      %v5496 = vsel %vm5407, %v5393, 0
      %v5499 = vsel %vm5407, %v5394, 0
      %v5502 = vsel %vm5407, %v5395, 0
      %vm5504 = vcmask 1044480
      %vm5505 = vcmask 1045504
      %v5506 = vsel %vm5504, 4294967295, 65535
      %v5507 = vsel %vm5505, %v5506, 0
      %v5509 = vand.u32 %v5405, %v5507
      %5511 = vmatprep.subr.bf16.mxu0 0
      %5512 = vmatpush1.bf16.msra.mxu0 0
      %5513 = vmatprep.subr.bf16.mxu0 0
      %5514 = vmatpush1.bf16.msra.mxu0 0
      %5515 = vmatprep.subr.bf16.mxu0 0
      %5516 = vmatpush1.bf16.msra.mxu0 0
      %5517 = vmatprep.subr.bf16.mxu0 0
      %5518 = vmatpush1.bf16.msra.mxu0 0
      %5519 = vmatprep.subr.bf16.mxu0 0
      %5520 = vmatpush1.bf16.msra.mxu0 0
      %5521 = vmatprep.subr.bf16.mxu0 0
      %5522 = vmatpush1.bf16.msra.mxu0 0
      %5523 = vmatprep.subr.bf16.mxu0 0
      %5524 = vmatpush1.bf16.msra.mxu0 %v5509
      %5525 = vmatprep.subr.bf16.mxu0 0
      %5526 = vmatpush1.bf16.msra.mxu0 %v5404
      %5527 = vmatprep.subr.bf16.mxu0 0
      %5528 = vmatpush2.bf16.msra.mxu0 0
      %5529 = vmatprep.subr.bf16.mxu0 0
      %5530 = vmatpush2.bf16.msra.mxu0 0
      %5531 = vmatprep.subr.bf16.mxu0 0
      %5532 = vmatpush2.bf16.msra.mxu0 0
      %5533 = vmatprep.subr.bf16.mxu0 0
      %5534 = vmatpush2.bf16.msra.mxu0 0
      %5535 = vmatprep.subr.bf16.mxu0 0
      %5536 = vmatpush2.bf16.msra.mxu0 0
      %5537 = vmatprep.subr.bf16.mxu0 0
      %5538 = vmatpush2.bf16.msra.mxu0 0
      %5539 = vmatprep.subr.bf16.mxu0 0
      %5540 = vmatpush2.bf16.msra.mxu0 0
      %5541 = vmatprep.subr.bf16.mxu0 0
      %5542 = vmatpush2.bf16.msra.mxu0 0
      %5543 = vmatprep.mubr.bf16.mxu0 0
      %5544 = vmatmul.mubr.bf16.gmra.mxu0 %v5409
      %v5545 = vpop.f32.mrf.mxu0
      %v5546 = vadd.f32 %v5234, %v5545
      %v5547 = vpop.f32.mrf.mxu0
      %v5548 = vpop.f32.mrf.mxu0
      %v5549 = vadd.f32 %v5234, %v5548
      %v5550 = vpop.f32.mrf.mxu0
      %5551 = vmatprep.mubr.bf16.mxu0 0
      %5552 = vmatmul.mubr.bf16.gmra.mxu0 %v5412
      %v5553 = vpop.f32.mrf.mxu0
      %v5554 = vadd.f32 %v5234, %v5553
      %v5555 = vpop.f32.mrf.mxu0
      %v5556 = vpop.f32.mrf.mxu0
      %v5557 = vadd.f32 %v5234, %v5556
      %v5558 = vpop.f32.mrf.mxu0
      %5559 = vmatprep.mubr.bf16.mxu0 0
      %5560 = vmatmul.mubr.bf16.gmra.mxu0 %v5415
      %v5561 = vpop.f32.mrf.mxu0
      %v5562 = vadd.f32 %v5234, %v5561
      %v5563 = vpop.f32.mrf.mxu0
      %v5564 = vpop.f32.mrf.mxu0
      %v5565 = vadd.f32 %v5234, %v5564
      %v5566 = vpop.f32.mrf.mxu0
      %5567 = vmatprep.mubr.bf16.mxu0 0
      %5568 = vmatmul.mubr.bf16.gmra.mxu0 %v5418
      %v5569 = vpop.f32.mrf.mxu0
      %v5570 = vadd.f32 %v5234, %v5569
      %v5571 = vpop.f32.mrf.mxu0
      %v5572 = vpop.f32.mrf.mxu0
      %v5573 = vadd.f32 %v5234, %v5572
      %v5574 = vpop.f32.mrf.mxu0
      %5575 = vmatprep.mubr.bf16.mxu0 0
      %5576 = vmatmul.mubr.bf16.gmra.mxu0 %v5421
      %v5577 = vpop.f32.mrf.mxu0
      %v5578 = vadd.f32 %v5234, %v5577
      %v5579 = vpop.f32.mrf.mxu0
      %v5580 = vpop.f32.mrf.mxu0
      %v5581 = vadd.f32 %v5234, %v5580
      %v5582 = vpop.f32.mrf.mxu0
      %5583 = vmatprep.mubr.bf16.mxu0 0
      %5584 = vmatmul.mubr.bf16.gmra.mxu0 %v5424
      %v5585 = vpop.f32.mrf.mxu0
      %v5586 = vadd.f32 %v5234, %v5585
      %v5587 = vpop.f32.mrf.mxu0
      %v5588 = vpop.f32.mrf.mxu0
      %v5589 = vadd.f32 %v5234, %v5588
      %v5590 = vpop.f32.mrf.mxu0
      %5591 = vmatprep.mubr.bf16.mxu0 0
      %5592 = vmatmul.mubr.bf16.gmra.mxu0 %v5427
      %v5593 = vpop.f32.mrf.mxu0
      %v5594 = vadd.f32 %v5234, %v5593
      %v5595 = vpop.f32.mrf.mxu0
      %v5596 = vpop.f32.mrf.mxu0
      %v5597 = vadd.f32 %v5234, %v5596
      %v5598 = vpop.f32.mrf.mxu0
      %5599 = vmatprep.mubr.bf16.mxu0 0
      %5600 = vmatmul.mubr.bf16.gmra.mxu0 %v5430
      %v5601 = vpop.f32.mrf.mxu0
      %v5602 = vadd.f32 %v5234, %v5601
      %v5603 = vpop.f32.mrf.mxu0
      %v5604 = vpop.f32.mrf.mxu0
      %v5605 = vadd.f32 %v5234, %v5604
      %v5606 = vpop.f32.mrf.mxu0
      %5607 = vmatprep.mubr.bf16.mxu0 0
      %5608 = vmatmul.mubr.bf16.gmra.mxu0 %v5433
      %v5609 = vpop.f32.mrf.mxu0
      %v5610 = vadd.f32 %v5234, %v5609
      %v5611 = vpop.f32.mrf.mxu0
      %v5612 = vpop.f32.mrf.mxu0
      %v5613 = vadd.f32 %v5234, %v5612
      %v5614 = vpop.f32.mrf.mxu0
      %5615 = vmatprep.mubr.bf16.mxu0 0
      %5616 = vmatmul.mubr.bf16.gmra.mxu0 %v5436
      %v5617 = vpop.f32.mrf.mxu0
      %v5618 = vadd.f32 %v5234, %v5617
      %v5619 = vpop.f32.mrf.mxu0
      %v5620 = vpop.f32.mrf.mxu0
      %v5621 = vadd.f32 %v5234, %v5620
      %v5622 = vpop.f32.mrf.mxu0
      %5623 = vmatprep.mubr.bf16.mxu0 0
      %5624 = vmatmul.mubr.bf16.gmra.mxu0 %v5439
      %v5625 = vpop.f32.mrf.mxu0
      %v5626 = vadd.f32 %v5234, %v5625
      %v5627 = vpop.f32.mrf.mxu0
      %v5628 = vpop.f32.mrf.mxu0
      %v5629 = vadd.f32 %v5234, %v5628
      %v5630 = vpop.f32.mrf.mxu0
      %5631 = vmatprep.mubr.bf16.mxu0 0
      %5632 = vmatmul.mubr.bf16.gmra.mxu0 %v5442
      %v5633 = vpop.f32.mrf.mxu0
      %v5634 = vadd.f32 %v5234, %v5633
      %v5635 = vpop.f32.mrf.mxu0
      %v5636 = vpop.f32.mrf.mxu0
      %v5637 = vadd.f32 %v5234, %v5636
      %v5638 = vpop.f32.mrf.mxu0
      %5639 = vmatprep.mubr.bf16.mxu0 0
      %5640 = vmatmul.mubr.bf16.gmra.mxu0 %v5445
      %v5641 = vpop.f32.mrf.mxu0
      %v5642 = vadd.f32 %v5234, %v5641
      %v5643 = vpop.f32.mrf.mxu0
      %v5644 = vpop.f32.mrf.mxu0
      %v5645 = vadd.f32 %v5234, %v5644
      %v5646 = vpop.f32.mrf.mxu0
      %5647 = vmatprep.mubr.bf16.mxu0 0
      %5648 = vmatmul.mubr.bf16.gmra.mxu0 %v5448
      %v5649 = vpop.f32.mrf.mxu0
      %v5650 = vadd.f32 %v5234, %v5649
      %v5651 = vpop.f32.mrf.mxu0
      %v5652 = vpop.f32.mrf.mxu0
      %v5653 = vadd.f32 %v5234, %v5652
      %v5654 = vpop.f32.mrf.mxu0
      %5655 = vmatprep.mubr.bf16.mxu0 0
      %5656 = vmatmul.mubr.bf16.gmra.mxu0 %v5451
      %v5657 = vpop.f32.mrf.mxu0
      %v5658 = vadd.f32 %v5234, %v5657
      %v5659 = vpop.f32.mrf.mxu0
      %v5660 = vpop.f32.mrf.mxu0
      %v5661 = vadd.f32 %v5234, %v5660
      %v5662 = vpop.f32.mrf.mxu0
      %5663 = vmatprep.mubr.bf16.mxu0 0
      %5664 = vmatmul.mubr.bf16.gmra.mxu0 %v5454
      %v5665 = vpop.f32.mrf.mxu0
      %v5666 = vadd.f32 %v5234, %v5665
      %v5667 = vpop.f32.mrf.mxu0
      %v5668 = vpop.f32.mrf.mxu0
      %v5669 = vadd.f32 %v5234, %v5668
      %v5670 = vpop.f32.mrf.mxu0
      %5671 = vmatprep.mubr.bf16.mxu0 0
      %5672 = vmatmul.mubr.bf16.gmra.mxu0 %v5457
      %v5673 = vpop.f32.mrf.mxu0
      %v5674 = vadd.f32 %v5234, %v5673
      %v5675 = vpop.f32.mrf.mxu0
      %v5676 = vpop.f32.mrf.mxu0
      %v5677 = vadd.f32 %v5234, %v5676
      %v5678 = vpop.f32.mrf.mxu0
      %5679 = vmatprep.mubr.bf16.mxu0 0
      %5680 = vmatmul.mubr.bf16.gmra.mxu0 %v5460
      %v5681 = vpop.f32.mrf.mxu0
      %v5682 = vadd.f32 %v5234, %v5681
      %v5683 = vpop.f32.mrf.mxu0
      %v5684 = vpop.f32.mrf.mxu0
      %v5685 = vadd.f32 %v5234, %v5684
      %v5686 = vpop.f32.mrf.mxu0
      %5687 = vmatprep.mubr.bf16.mxu0 0
      %5688 = vmatmul.mubr.bf16.gmra.mxu0 %v5463
      %v5689 = vpop.f32.mrf.mxu0
      %v5690 = vadd.f32 %v5234, %v5689
      %v5691 = vpop.f32.mrf.mxu0
      %v5692 = vpop.f32.mrf.mxu0
      %v5693 = vadd.f32 %v5234, %v5692
      %v5694 = vpop.f32.mrf.mxu0
      %5695 = vmatprep.mubr.bf16.mxu0 0
      %5696 = vmatmul.mubr.bf16.gmra.mxu0 %v5466
      %v5697 = vpop.f32.mrf.mxu0
      %v5698 = vadd.f32 %v5234, %v5697
      %v5699 = vpop.f32.mrf.mxu0
      %v5700 = vpop.f32.mrf.mxu0
      %v5701 = vadd.f32 %v5234, %v5700
      %v5702 = vpop.f32.mrf.mxu0
      %5703 = vmatprep.mubr.bf16.mxu0 0
      %5704 = vmatmul.mubr.bf16.gmra.mxu0 %v5469
      %v5705 = vpop.f32.mrf.mxu0
      %v5706 = vadd.f32 %v5234, %v5705
      %v5707 = vpop.f32.mrf.mxu0
      %v5708 = vpop.f32.mrf.mxu0
      %v5709 = vadd.f32 %v5234, %v5708
      %v5710 = vpop.f32.mrf.mxu0
      %5711 = vmatprep.mubr.bf16.mxu0 0
      %5712 = vmatmul.mubr.bf16.gmra.mxu0 %v5472
      %v5713 = vpop.f32.mrf.mxu0
      %v5714 = vadd.f32 %v5234, %v5713
      %v5715 = vpop.f32.mrf.mxu0
      %v5716 = vpop.f32.mrf.mxu0
      %v5717 = vadd.f32 %v5234, %v5716
      %v5718 = vpop.f32.mrf.mxu0
      %5719 = vmatprep.mubr.bf16.mxu0 0
      %5720 = vmatmul.mubr.bf16.gmra.mxu0 %v5475
      %v5721 = vpop.f32.mrf.mxu0
      %v5722 = vadd.f32 %v5234, %v5721
      %v5723 = vpop.f32.mrf.mxu0
      %v5724 = vpop.f32.mrf.mxu0
      %v5725 = vadd.f32 %v5234, %v5724
      %v5726 = vpop.f32.mrf.mxu0
      %5727 = vmatprep.mubr.bf16.mxu0 0
      %5728 = vmatmul.mubr.bf16.gmra.mxu0 %v5478
      %v5729 = vpop.f32.mrf.mxu0
      %v5730 = vadd.f32 %v5234, %v5729
      %v5731 = vpop.f32.mrf.mxu0
      %v5732 = vpop.f32.mrf.mxu0
      %v5733 = vadd.f32 %v5234, %v5732
      %v5734 = vpop.f32.mrf.mxu0
      %5735 = vmatprep.mubr.bf16.mxu0 0
      %5736 = vmatmul.mubr.bf16.gmra.mxu0 %v5481
      %v5737 = vpop.f32.mrf.mxu0
      %v5738 = vadd.f32 %v5234, %v5737
      %v5739 = vpop.f32.mrf.mxu0
      %v5740 = vpop.f32.mrf.mxu0
      %v5741 = vadd.f32 %v5234, %v5740
      %v5742 = vpop.f32.mrf.mxu0
      %5743 = vmatprep.mubr.bf16.mxu0 0
      %5744 = vmatmul.mubr.bf16.gmra.mxu0 %v5484
      %v5745 = vpop.f32.mrf.mxu0
      %v5746 = vadd.f32 %v5234, %v5745
      %v5747 = vpop.f32.mrf.mxu0
      %v5748 = vpop.f32.mrf.mxu0
      %v5749 = vadd.f32 %v5234, %v5748
      %v5750 = vpop.f32.mrf.mxu0
      %5751 = vmatprep.mubr.bf16.mxu0 0
      %5752 = vmatmul.mubr.bf16.gmra.mxu0 %v5487
      %v5753 = vpop.f32.mrf.mxu0
      %v5754 = vadd.f32 %v5234, %v5753
      %v5755 = vpop.f32.mrf.mxu0
      %v5756 = vpop.f32.mrf.mxu0
      %v5757 = vadd.f32 %v5234, %v5756
      %v5758 = vpop.f32.mrf.mxu0
      %5759 = vmatprep.mubr.bf16.mxu0 0
      %5760 = vmatmul.mubr.bf16.gmra.mxu0 %v5490
      %v5761 = vpop.f32.mrf.mxu0
      %v5762 = vadd.f32 %v5234, %v5761
      %v5763 = vpop.f32.mrf.mxu0
      %v5764 = vpop.f32.mrf.mxu0
      %v5765 = vadd.f32 %v5234, %v5764
      %v5766 = vpop.f32.mrf.mxu0
      %5767 = vmatprep.mubr.bf16.mxu0 0
      %5768 = vmatmul.mubr.bf16.gmra.mxu0 %v5493
      %v5769 = vpop.f32.mrf.mxu0
      %v5770 = vadd.f32 %v5234, %v5769
      %v5771 = vpop.f32.mrf.mxu0
      %v5772 = vpop.f32.mrf.mxu0
      %v5773 = vadd.f32 %v5234, %v5772
      %v5774 = vpop.f32.mrf.mxu0
      %5775 = vmatprep.mubr.bf16.mxu0 0
      %5776 = vmatmul.mubr.bf16.gmra.mxu0 %v5496
      %v5777 = vpop.f32.mrf.mxu0
      %v5778 = vadd.f32 %v5234, %v5777
      %v5779 = vpop.f32.mrf.mxu0
      %v5780 = vpop.f32.mrf.mxu0
      %v5781 = vadd.f32 %v5234, %v5780
      %v5782 = vpop.f32.mrf.mxu0
      %5783 = vmatprep.mubr.bf16.mxu0 0
      %5784 = vmatmul.mubr.bf16.gmra.mxu0 %v5499
      %v5785 = vpop.f32.mrf.mxu0
      %v5786 = vadd.f32 %v5234, %v5785
      %v5787 = vpop.f32.mrf.mxu0
      %v5788 = vpop.f32.mrf.mxu0
      %v5789 = vadd.f32 %v5234, %v5788
      %v5790 = vpop.f32.mrf.mxu0
      %5791 = vmatprep.mubr.bf16.mxu0 0
      %5792 = vmatmul.mubr.bf16.gmra.mxu0 %v5502
      %v5793 = vpop.f32.mrf.mxu0
      %v5794 = vadd.f32 %v5234, %v5793
      %v5795 = vpop.f32.mrf.mxu0
      %v5796 = vpop.f32.mrf.mxu0
      %v5797 = vadd.f32 %v5234, %v5796
      %v5798 = vpop.f32.mrf.mxu0
      %5799 = vdwg.mxu0
      %v5800 = vmax.f32 %v5546, 0.0
      %v5801 = vmax.f32 %v5549, 0.0
      %v5802 = vmax.f32 %v5554, 0.0
      %v5803 = vmax.f32 %v5557, 0.0
      %v5804 = vmax.f32 %v5562, 0.0
      %v5805 = vmax.f32 %v5565, 0.0
      %v5806 = vmax.f32 %v5570, 0.0
      %v5807 = vmax.f32 %v5573, 0.0
      %v5808 = vmax.f32 %v5578, 0.0
      %v5809 = vmax.f32 %v5581, 0.0
      %v5810 = vmax.f32 %v5586, 0.0
      %v5811 = vmax.f32 %v5589, 0.0
      %v5812 = vmax.f32 %v5594, 0.0
      %v5813 = vmax.f32 %v5597, 0.0
      %v5814 = vmax.f32 %v5602, 0.0
      %v5815 = vmax.f32 %v5605, 0.0
      %v5816 = vmax.f32 %v5610, 0.0
      %v5817 = vmax.f32 %v5613, 0.0
      %v5818 = vmax.f32 %v5618, 0.0
      %v5819 = vmax.f32 %v5621, 0.0
      %v5820 = vmax.f32 %v5626, 0.0
      %v5821 = vmax.f32 %v5629, 0.0
      %v5822 = vmax.f32 %v5634, 0.0
      %v5823 = vmax.f32 %v5637, 0.0
      %v5824 = vmax.f32 %v5642, 0.0
      %v5825 = vmax.f32 %v5645, 0.0
      %v5826 = vmax.f32 %v5650, 0.0
      %v5827 = vmax.f32 %v5653, 0.0
      %v5828 = vmax.f32 %v5658, 0.0
      %v5829 = vmax.f32 %v5661, 0.0
      %v5830 = vmax.f32 %v5666, 0.0
      %v5831 = vmax.f32 %v5669, 0.0
      %v5832 = vmax.f32 %v5674, 0.0
      %v5833 = vmax.f32 %v5677, 0.0
      %v5834 = vmax.f32 %v5682, 0.0
      %v5835 = vmax.f32 %v5685, 0.0
      %v5836 = vmax.f32 %v5690, 0.0
      %v5837 = vmax.f32 %v5693, 0.0
      %v5838 = vmax.f32 %v5698, 0.0
      %v5839 = vmax.f32 %v5701, 0.0
      %v5840 = vmax.f32 %v5706, 0.0
      %v5841 = vmax.f32 %v5709, 0.0
      %v5842 = vmax.f32 %v5714, 0.0
      %v5843 = vmax.f32 %v5717, 0.0
      %v5844 = vmax.f32 %v5722, 0.0
      %v5845 = vmax.f32 %v5725, 0.0
      %v5846 = vmax.f32 %v5730, 0.0
      %v5847 = vmax.f32 %v5733, 0.0
      %v5848 = vmax.f32 %v5738, 0.0
      %v5849 = vmax.f32 %v5741, 0.0
      %v5850 = vmax.f32 %v5746, 0.0
      %v5851 = vmax.f32 %v5749, 0.0
      %v5852 = vmax.f32 %v5754, 0.0
      %v5853 = vmax.f32 %v5757, 0.0
      %v5854 = vmax.f32 %v5762, 0.0
      %v5855 = vmax.f32 %v5765, 0.0
      %v5856 = vmax.f32 %v5770, 0.0
      %v5857 = vmax.f32 %v5773, 0.0
      %v5858 = vmax.f32 %v5778, 0.0
      %v5859 = vmax.f32 %v5781, 0.0
      %v5860 = vmax.f32 %v5786, 0.0
      %v5861 = vmax.f32 %v5789, 0.0
      %v5862 = vmax.f32 %v5794, 0.0
      %v5863 = vmax.f32 %v5797, 0.0
      %v5864 = vsub.f32 %v5800, %v5832
      %v5865 = vsub.f32 %v5801, %v5833
      %v5866 = vsub.f32 %v5802, %v5834
      %v5867 = vsub.f32 %v5803, %v5835
      %v5868 = vsub.f32 %v5804, %v5836
      %v5869 = vsub.f32 %v5805, %v5837
      %v5870 = vsub.f32 %v5806, %v5838
      %v5871 = vsub.f32 %v5807, %v5839
      %v5872 = vsub.f32 %v5808, %v5840
      %v5873 = vsub.f32 %v5809, %v5841
      %v5874 = vsub.f32 %v5810, %v5842
      %v5875 = vsub.f32 %v5811, %v5843
      %v5876 = vsub.f32 %v5812, %v5844
      %v5877 = vsub.f32 %v5813, %v5845
      %v5878 = vsub.f32 %v5814, %v5846
      %v5879 = vsub.f32 %v5815, %v5847
      %v5880 = vsub.f32 %v5816, %v5848
      %v5881 = vsub.f32 %v5817, %v5849
      %v5882 = vsub.f32 %v5818, %v5850
      %v5883 = vsub.f32 %v5819, %v5851
      %v5884 = vsub.f32 %v5820, %v5852
      %v5885 = vsub.f32 %v5821, %v5853
      %v5886 = vsub.f32 %v5822, %v5854
      %v5887 = vsub.f32 %v5823, %v5855
      %v5888 = vsub.f32 %v5824, %v5856
      %v5889 = vsub.f32 %v5825, %v5857
      %v5890 = vsub.f32 %v5826, %v5858
      %v5891 = vsub.f32 %v5827, %v5859
      %v5892 = vsub.f32 %v5828, %v5860
      %v5893 = vsub.f32 %v5829, %v5861
      %v5894 = vsub.f32 %v5830, %v5862
      %v5895 = vsub.f32 %v5831, %v5863
      %v5896 = vand.u32 2147483647, %v5864
      %v5897 = vand.u32 2147483647, %v5865
      %v5898 = vand.u32 2147483647, %v5866
      %v5899 = vand.u32 2147483647, %v5867
      %v5900 = vand.u32 2147483647, %v5868
      %v5901 = vand.u32 2147483647, %v5869
      %v5902 = vand.u32 2147483647, %v5870
      %v5903 = vand.u32 2147483647, %v5871
      %v5904 = vand.u32 2147483647, %v5872
      %v5905 = vand.u32 2147483647, %v5873
      %v5906 = vand.u32 2147483647, %v5874
      %v5907 = vand.u32 2147483647, %v5875
      %v5908 = vand.u32 2147483647, %v5876
      %v5909 = vand.u32 2147483647, %v5877
      %v5910 = vand.u32 2147483647, %v5878
      %v5911 = vand.u32 2147483647, %v5879
      %v5912 = vand.u32 2147483647, %v5880
      %v5913 = vand.u32 2147483647, %v5881
      %v5914 = vand.u32 2147483647, %v5882
      %v5915 = vand.u32 2147483647, %v5883
      %v5916 = vand.u32 2147483647, %v5884
      %v5917 = vand.u32 2147483647, %v5885
      %v5918 = vand.u32 2147483647, %v5886
      %v5919 = vand.u32 2147483647, %v5887
      %v5920 = vand.u32 2147483647, %v5888
      %v5921 = vand.u32 2147483647, %v5889
      %v5922 = vand.u32 2147483647, %v5890
      %v5923 = vand.u32 2147483647, %v5891
      %v5924 = vand.u32 2147483647, %v5892
      %v5925 = vand.u32 2147483647, %v5893
      %v5926 = vand.u32 2147483647, %v5894
      %v5927 = vand.u32 2147483647, %v5895
      %vm5928 = vcmask 64512
      %v5929 = vsel %vm5928, %v5896, 0.0
      %v5930 = vsel %vm5928, %v5897, 0.0
      %v5931 = vadd.f32 %v5929, %v5930
      %v5932 = vsel %vm5928, %v5898, 0.0
      %v5933 = vadd.f32 %v5931, %v5932
      %v5934 = vsel %vm5928, %v5899, 0.0
      %v5935 = vadd.f32 %v5933, %v5934
      %v5936 = vsel %vm5928, %v5900, 0.0
      %v5937 = vadd.f32 %v5935, %v5936
      %v5938 = vsel %vm5928, %v5901, 0.0
      %v5939 = vadd.f32 %v5937, %v5938
      %v5940 = vsel %vm5928, %v5902, 0.0
      %v5941 = vadd.f32 %v5939, %v5940
      %v5942 = vsel %vm5928, %v5903, 0.0
      %v5943 = vadd.f32 %v5941, %v5942
      %v5944 = vsel %vm5928, %v5904, 0.0
      %v5945 = vadd.f32 %v5943, %v5944
      %v5946 = vsel %vm5928, %v5905, 0.0
      %v5947 = vadd.f32 %v5945, %v5946
      %v5948 = vsel %vm5928, %v5906, 0.0
      %v5949 = vadd.f32 %v5947, %v5948
      %v5950 = vsel %vm5928, %v5907, 0.0
      %v5951 = vadd.f32 %v5949, %v5950
      %v5952 = vsel %vm5928, %v5908, 0.0
      %v5953 = vadd.f32 %v5951, %v5952
      %v5954 = vsel %vm5928, %v5909, 0.0
      %v5955 = vadd.f32 %v5953, %v5954
      %v5956 = vsel %vm5928, %v5910, 0.0
      %v5957 = vadd.f32 %v5955, %v5956
      %v5958 = vsel %vm5928, %v5911, 0.0
      %v5959 = vadd.f32 %v5957, %v5958
      %v5960 = vsel %vm5928, %v5912, 0.0
      %v5961 = vadd.f32 %v5959, %v5960
      %v5962 = vsel %vm5928, %v5913, 0.0
      %v5963 = vadd.f32 %v5961, %v5962
      %v5964 = vsel %vm5928, %v5914, 0.0
      %v5965 = vadd.f32 %v5963, %v5964
      %v5966 = vsel %vm5928, %v5915, 0.0
      %v5967 = vadd.f32 %v5965, %v5966
      %v5968 = vsel %vm5928, %v5916, 0.0
      %v5969 = vadd.f32 %v5967, %v5968
      %v5970 = vsel %vm5928, %v5917, 0.0
      %v5971 = vadd.f32 %v5969, %v5970
      %v5972 = vsel %vm5928, %v5918, 0.0
      %v5973 = vadd.f32 %v5971, %v5972
      %v5974 = vsel %vm5928, %v5919, 0.0
      %v5975 = vadd.f32 %v5973, %v5974
      %v5976 = vsel %vm5928, %v5920, 0.0
      %v5977 = vadd.f32 %v5975, %v5976
      %v5978 = vsel %vm5928, %v5921, 0.0
      %v5979 = vadd.f32 %v5977, %v5978
      %v5980 = vsel %vm5928, %v5922, 0.0
      %v5981 = vadd.f32 %v5979, %v5980
      %v5982 = vsel %vm5928, %v5923, 0.0
      %v5983 = vadd.f32 %v5981, %v5982
      %v5984 = vsel %vm5928, %v5924, 0.0
      %v5985 = vadd.f32 %v5983, %v5984
      %v5986 = vsel %vm5928, %v5925, 0.0
      %v5987 = vadd.f32 %v5985, %v5986
      %v5988 = vsel %vm5928, %v5926, 0.0
      %v5989 = vadd.f32 %v5987, %v5988
      %v5990 = vsel %vm5928, %v5927, 0.0
      %v5991 = vadd.f32 %v5989, %v5990
      %5992 = vadd.xlane.f32.xlu0 %v5991
      %v5993 = vpop.xlane.xlu0 %5992
      %v5994 = vrot.slane %v5993, 4
      %v5995 = vadd.f32 %v5993, %v5994
      %v5996 = vrot.slane %v5995, 2
      %v5997 = vadd.f32 %v5995, %v5996
      %v5998 = vrot.slane %v5997, 1
      %v5999 = vadd.f32 %v5997, %v5998
      %s6000 = vtos %v5999
      %s6001 = smul.f32 %s6000, 7.6293945e-06
      %s6002 = sadd.f32 %s6001, 0.0
      %6003 = vst.msk [vmem:[#allocation12] sm:$0xff] %vm5928, %v5800
      %6004 = vst.msk [vmem:[#allocation12 + $0x8] sm:$0xff] %vm5928, %v5801
      %6005 = vst.msk [vmem:[#allocation12 + $0x10] sm:$0xff] %vm5928, %v5802
      %6006 = vst.msk [vmem:[#allocation12 + $0x18] sm:$0xff] %vm5928, %v5803
      %6007 = vst.msk [vmem:[#allocation12 + $0x20] sm:$0xff] %vm5928, %v5804
      %6008 = vst.msk [vmem:[#allocation12 + $0x28] sm:$0xff] %vm5928, %v5805
      %6009 = vst.msk [vmem:[#allocation12 + $0x30] sm:$0xff] %vm5928, %v5806
      %6010 = vst.msk [vmem:[#allocation12 + $0x38] sm:$0xff] %vm5928, %v5807
      %6011 = vst.msk [vmem:[#allocation12 + $0x40] sm:$0xff] %vm5928, %v5808
      %6012 = vst.msk [vmem:[#allocation12 + $0x48] sm:$0xff] %vm5928, %v5809
      %6013 = vst.msk [vmem:[#allocation12 + $0x50] sm:$0xff] %vm5928, %v5810
      %6014 = vst.msk [vmem:[#allocation12 + $0x58] sm:$0xff] %vm5928, %v5811
      %6015 = vst.msk [vmem:[#allocation12 + $0x60] sm:$0xff] %vm5928, %v5812
      %6016 = vst.msk [vmem:[#allocation12 + $0x68] sm:$0xff] %vm5928, %v5813
      %6017 = vst.msk [vmem:[#allocation12 + $0x70] sm:$0xff] %vm5928, %v5814
      %6018 = vst.msk [vmem:[#allocation12 + $0x78] sm:$0xff] %vm5928, %v5815
      %6019 = vst.msk [vmem:[#allocation12 + $0x80] sm:$0xff] %vm5928, %v5816
      %6020 = vst.msk [vmem:[#allocation12 + $0x88] sm:$0xff] %vm5928, %v5817
      %6021 = vst.msk [vmem:[#allocation12 + $0x90] sm:$0xff] %vm5928, %v5818
      %6022 = vst.msk [vmem:[#allocation12 + $0x98] sm:$0xff] %vm5928, %v5819
      %6023 = vst.msk [vmem:[#allocation12 + $0xa0] sm:$0xff] %vm5928, %v5820
      %6024 = vst.msk [vmem:[#allocation12 + $0xa8] sm:$0xff] %vm5928, %v5821
      %6025 = vst.msk [vmem:[#allocation12 + $0xb0] sm:$0xff] %vm5928, %v5822
      %6026 = vst.msk [vmem:[#allocation12 + $0xb8] sm:$0xff] %vm5928, %v5823
      %6027 = vst.msk [vmem:[#allocation12 + $0xc0] sm:$0xff] %vm5928, %v5824
      %6028 = vst.msk [vmem:[#allocation12 + $0xc8] sm:$0xff] %vm5928, %v5825
      %6029 = vst.msk [vmem:[#allocation12 + $0xd0] sm:$0xff] %vm5928, %v5826
      %6030 = vst.msk [vmem:[#allocation12 + $0xd8] sm:$0xff] %vm5928, %v5827
      %6031 = vst.msk [vmem:[#allocation12 + $0xe0] sm:$0xff] %vm5928, %v5828
      %6032 = vst.msk [vmem:[#allocation12 + $0xe8] sm:$0xff] %vm5928, %v5829
      %6033 = vst.msk [vmem:[#allocation12 + $0xf0] sm:$0xff] %vm5928, %v5830
      %6034 = vst.msk [vmem:[#allocation12 + $0xf8] sm:$0xff] %vm5928, %v5831
      %6035 = vst.msk [vmem:[#allocation12 + $0x100] sm:$0xff] %vm5928, %v5832
      %6036 = vst.msk [vmem:[#allocation12 + $0x108] sm:$0xff] %vm5928, %v5833
      %6037 = vst.msk [vmem:[#allocation12 + $0x110] sm:$0xff] %vm5928, %v5834
      %6038 = vst.msk [vmem:[#allocation12 + $0x118] sm:$0xff] %vm5928, %v5835
      %6039 = vst.msk [vmem:[#allocation12 + $0x120] sm:$0xff] %vm5928, %v5836
      %6040 = vst.msk [vmem:[#allocation12 + $0x128] sm:$0xff] %vm5928, %v5837
      %6041 = vst.msk [vmem:[#allocation12 + $0x130] sm:$0xff] %vm5928, %v5838
      %6042 = vst.msk [vmem:[#allocation12 + $0x138] sm:$0xff] %vm5928, %v5839
      %6043 = vst.msk [vmem:[#allocation12 + $0x140] sm:$0xff] %vm5928, %v5840
      %6044 = vst.msk [vmem:[#allocation12 + $0x148] sm:$0xff] %vm5928, %v5841
      %6045 = vst.msk [vmem:[#allocation12 + $0x150] sm:$0xff] %vm5928, %v5842
      %6046 = vst.msk [vmem:[#allocation12 + $0x158] sm:$0xff] %vm5928, %v5843
      %6047 = vst.msk [vmem:[#allocation12 + $0x160] sm:$0xff] %vm5928, %v5844
      %6048 = vst.msk [vmem:[#allocation12 + $0x168] sm:$0xff] %vm5928, %v5845
      %6049 = vst.msk [vmem:[#allocation12 + $0x170] sm:$0xff] %vm5928, %v5846
      %6050 = vst.msk [vmem:[#allocation12 + $0x178] sm:$0xff] %vm5928, %v5847
      %6051 = vst.msk [vmem:[#allocation12 + $0x180] sm:$0xff] %vm5928, %v5848
      %6052 = vst.msk [vmem:[#allocation12 + $0x188] sm:$0xff] %vm5928, %v5849
      %6053 = vst.msk [vmem:[#allocation12 + $0x190] sm:$0xff] %vm5928, %v5850
      %6054 = vst.msk [vmem:[#allocation12 + $0x198] sm:$0xff] %vm5928, %v5851
      %6055 = vst.msk [vmem:[#allocation12 + $0x1a0] sm:$0xff] %vm5928, %v5852
      %6056 = vst.msk [vmem:[#allocation12 + $0x1a8] sm:$0xff] %vm5928, %v5853
      %6057 = vst.msk [vmem:[#allocation12 + $0x1b0] sm:$0xff] %vm5928, %v5854
      %6058 = vst.msk [vmem:[#allocation12 + $0x1b8] sm:$0xff] %vm5928, %v5855
      %6059 = vst.msk [vmem:[#allocation12 + $0x1c0] sm:$0xff] %vm5928, %v5856
      %6060 = vst.msk [vmem:[#allocation12 + $0x1c8] sm:$0xff] %vm5928, %v5857
      %6061 = vst.msk [vmem:[#allocation12 + $0x1d0] sm:$0xff] %vm5928, %v5858
      %6062 = vst.msk [vmem:[#allocation12 + $0x1d8] sm:$0xff] %vm5928, %v5859
      %6063 = vst.msk [vmem:[#allocation12 + $0x1e0] sm:$0xff] %vm5928, %v5860
      %6064 = vst.msk [vmem:[#allocation12 + $0x1e8] sm:$0xff] %vm5928, %v5861
      %6065 = vst.msk [vmem:[#allocation12 + $0x1f0] sm:$0xff] %vm5928, %v5862
      %6066 = vst.msk [vmem:[#allocation12 + $0x1f8] sm:$0xff] %vm5928, %v5863
      %v6067 = vld [vmem:[#allocation12] ss:$2 sm:$0xff]
      %s6068 = scalar_lea.vmem [#allocation12], 16
      %v6069 = vld [vmem:[%s6068] ss:$2 sm:$0xff]
      %s6070 = scalar_lea.vmem [#allocation12], 32
      %v6071 = vld [vmem:[%s6070] ss:$2 sm:$0xff]
      %s6072 = scalar_lea.vmem [#allocation12], 48
      %v6073 = vld [vmem:[%s6072] ss:$2 sm:$0xff]
      %s6074 = scalar_lea.vmem [#allocation12], 64
      %v6075 = vld [vmem:[%s6074] ss:$2 sm:$0xff]
      %s6076 = scalar_lea.vmem [#allocation12], 80
      %v6077 = vld [vmem:[%s6076] ss:$2 sm:$0xff]
      %s6078 = scalar_lea.vmem [#allocation12], 96
      %v6079 = vld [vmem:[%s6078] ss:$2 sm:$0xff]
      %s6080 = scalar_lea.vmem [#allocation12], 112
      %v6081 = vld [vmem:[%s6080] ss:$2 sm:$0xff]
      %s6082 = scalar_lea.vmem [#allocation12], 128
      %v6083 = vld [vmem:[%s6082] ss:$2 sm:$0xff]
      %s6084 = scalar_lea.vmem [#allocation12], 144
      %v6085 = vld [vmem:[%s6084] ss:$2 sm:$0xff]
      %s6086 = scalar_lea.vmem [#allocation12], 160
      %v6087 = vld [vmem:[%s6086] ss:$2 sm:$0xff]
      %s6088 = scalar_lea.vmem [#allocation12], 176
      %v6089 = vld [vmem:[%s6088] ss:$2 sm:$0xff]
      %s6090 = scalar_lea.vmem [#allocation12], 192
      %v6091 = vld [vmem:[%s6090] ss:$2 sm:$0xff]
      %s6092 = scalar_lea.vmem [#allocation12], 208
      %v6093 = vld [vmem:[%s6092] ss:$2 sm:$0xff]
      %s6094 = scalar_lea.vmem [#allocation12], 224
      %v6095 = vld [vmem:[%s6094] ss:$2 sm:$0xff]
      %s6096 = scalar_lea.vmem [#allocation12], 240
      %v6097 = vld [vmem:[%s6096] ss:$2 sm:$0xff]
      %s6098 = scalar_lea.vmem [#allocation12], 256
      %v6099 = vld [vmem:[%s6098] ss:$2 sm:$0xff]
      %s6100 = scalar_lea.vmem [#allocation12], 272
      %v6101 = vld [vmem:[%s6100] ss:$2 sm:$0xff]
      %s6102 = scalar_lea.vmem [#allocation12], 288
      %v6103 = vld [vmem:[%s6102] ss:$2 sm:$0xff]
      %s6104 = scalar_lea.vmem [#allocation12], 304
      %v6105 = vld [vmem:[%s6104] ss:$2 sm:$0xff]
      %s6106 = scalar_lea.vmem [#allocation12], 320
      %v6107 = vld [vmem:[%s6106] ss:$2 sm:$0xff]
      %s6108 = scalar_lea.vmem [#allocation12], 336
      %v6109 = vld [vmem:[%s6108] ss:$2 sm:$0xff]
      %s6110 = scalar_lea.vmem [#allocation12], 352
      %v6111 = vld [vmem:[%s6110] ss:$2 sm:$0xff]
      %s6112 = scalar_lea.vmem [#allocation12], 368
      %v6113 = vld [vmem:[%s6112] ss:$2 sm:$0xff]
      %s6114 = scalar_lea.vmem [#allocation12], 384
      %v6115 = vld [vmem:[%s6114] ss:$2 sm:$0xff]
      %s6116 = scalar_lea.vmem [#allocation12], 400
      %v6117 = vld [vmem:[%s6116] ss:$2 sm:$0xff]
      %s6118 = scalar_lea.vmem [#allocation12], 416
      %v6119 = vld [vmem:[%s6118] ss:$2 sm:$0xff]
      %s6120 = scalar_lea.vmem [#allocation12], 432
      %v6121 = vld [vmem:[%s6120] ss:$2 sm:$0xff]
      %s6122 = scalar_lea.vmem [#allocation12], 448
      %v6123 = vld [vmem:[%s6122] ss:$2 sm:$0xff]
      %s6124 = scalar_lea.vmem [#allocation12], 464
      %v6125 = vld [vmem:[%s6124] ss:$2 sm:$0xff]
      %s6126 = scalar_lea.vmem [#allocation12], 480
      %v6127 = vld [vmem:[%s6126] ss:$2 sm:$0xff]
      %s6128 = scalar_lea.vmem [#allocation12], 496
      %v6129 = vld [vmem:[%s6128] ss:$2 sm:$0xff]
      %s6130 = scalar_lea.vmem [#allocation12], 1
      %v6131 = vld [vmem:[%s6130] ss:$2 sm:$0xff]
      %s6132 = scalar_lea.vmem [#allocation12], 17
      %v6133 = vld [vmem:[%s6132] ss:$2 sm:$0xff]
      %s6134 = scalar_lea.vmem [#allocation12], 33
      %v6135 = vld [vmem:[%s6134] ss:$2 sm:$0xff]
      %s6136 = scalar_lea.vmem [#allocation12], 49
      %v6137 = vld [vmem:[%s6136] ss:$2 sm:$0xff]
      %s6138 = scalar_lea.vmem [#allocation12], 65
      %v6139 = vld [vmem:[%s6138] ss:$2 sm:$0xff]
      %s6140 = scalar_lea.vmem [#allocation12], 81
      %v6141 = vld [vmem:[%s6140] ss:$2 sm:$0xff]
      %s6142 = scalar_lea.vmem [#allocation12], 97
      %v6143 = vld [vmem:[%s6142] ss:$2 sm:$0xff]
      %s6144 = scalar_lea.vmem [#allocation12], 113
      %v6145 = vld [vmem:[%s6144] ss:$2 sm:$0xff]
      %s6146 = scalar_lea.vmem [#allocation12], 129
      %v6147 = vld [vmem:[%s6146] ss:$2 sm:$0xff]
      %s6148 = scalar_lea.vmem [#allocation12], 145
      %v6149 = vld [vmem:[%s6148] ss:$2 sm:$0xff]
      %s6150 = scalar_lea.vmem [#allocation12], 161
      %v6151 = vld [vmem:[%s6150] ss:$2 sm:$0xff]
      %s6152 = scalar_lea.vmem [#allocation12], 177
      %v6153 = vld [vmem:[%s6152] ss:$2 sm:$0xff]
      %s6154 = scalar_lea.vmem [#allocation12], 193
      %v6155 = vld [vmem:[%s6154] ss:$2 sm:$0xff]
      %s6156 = scalar_lea.vmem [#allocation12], 209
      %v6157 = vld [vmem:[%s6156] ss:$2 sm:$0xff]
      %s6158 = scalar_lea.vmem [#allocation12], 225
      %v6159 = vld [vmem:[%s6158] ss:$2 sm:$0xff]
      %s6160 = scalar_lea.vmem [#allocation12], 241
      %v6161 = vld [vmem:[%s6160] ss:$2 sm:$0xff]
      %s6162 = scalar_lea.vmem [#allocation12], 257
      %v6163 = vld [vmem:[%s6162] ss:$2 sm:$0xff]
      %s6164 = scalar_lea.vmem [#allocation12], 273
      %v6165 = vld [vmem:[%s6164] ss:$2 sm:$0xff]
      %s6166 = scalar_lea.vmem [#allocation12], 289
      %v6167 = vld [vmem:[%s6166] ss:$2 sm:$0xff]
      %s6168 = scalar_lea.vmem [#allocation12], 305
      %v6169 = vld [vmem:[%s6168] ss:$2 sm:$0xff]
      %s6170 = scalar_lea.vmem [#allocation12], 321
      %v6171 = vld [vmem:[%s6170] ss:$2 sm:$0xff]
      %s6172 = scalar_lea.vmem [#allocation12], 337
      %v6173 = vld [vmem:[%s6172] ss:$2 sm:$0xff]
      %s6174 = scalar_lea.vmem [#allocation12], 353
      %v6175 = vld [vmem:[%s6174] ss:$2 sm:$0xff]
      %s6176 = scalar_lea.vmem [#allocation12], 369
      %v6177 = vld [vmem:[%s6176] ss:$2 sm:$0xff]
      %s6178 = scalar_lea.vmem [#allocation12], 385
      %v6179 = vld [vmem:[%s6178] ss:$2 sm:$0xff]
      %s6180 = scalar_lea.vmem [#allocation12], 401
      %v6181 = vld [vmem:[%s6180] ss:$2 sm:$0xff]
      %s6182 = scalar_lea.vmem [#allocation12], 417
      %v6183 = vld [vmem:[%s6182] ss:$2 sm:$0xff]
      %s6184 = scalar_lea.vmem [#allocation12], 433
      %v6185 = vld [vmem:[%s6184] ss:$2 sm:$0xff]
      %s6186 = scalar_lea.vmem [#allocation12], 449
      %v6187 = vld [vmem:[%s6186] ss:$2 sm:$0xff]
      %s6188 = scalar_lea.vmem [#allocation12], 465
      %v6189 = vld [vmem:[%s6188] ss:$2 sm:$0xff]
      %s6190 = scalar_lea.vmem [#allocation12], 481
      %v6191 = vld [vmem:[%s6190] ss:$2 sm:$0xff]
      %s6192 = scalar_lea.vmem [#allocation12], 497
      %v6193 = vld [vmem:[%s6192] ss:$2 sm:$0xff]
      %v6194 = vmax.f32 %v6067, %v6131
      %v6195 = vmax.f32 %v6069, %v6133
      %v6196 = vmax.f32 %v6071, %v6135
      %v6197 = vmax.f32 %v6073, %v6137
      %v6198 = vmax.f32 %v6075, %v6139
      %v6199 = vmax.f32 %v6077, %v6141
      %v6200 = vmax.f32 %v6079, %v6143
      %v6201 = vmax.f32 %v6081, %v6145
      %v6202 = vmax.f32 %v6083, %v6147
      %v6203 = vmax.f32 %v6085, %v6149
      %v6204 = vmax.f32 %v6087, %v6151
      %v6205 = vmax.f32 %v6089, %v6153
      %v6206 = vmax.f32 %v6091, %v6155
      %v6207 = vmax.f32 %v6093, %v6157
      %v6208 = vmax.f32 %v6095, %v6159
      %v6209 = vmax.f32 %v6097, %v6161
      %v6210 = vmax.f32 %v6099, %v6163
      %v6211 = vmax.f32 %v6101, %v6165
      %v6212 = vmax.f32 %v6103, %v6167
      %v6213 = vmax.f32 %v6105, %v6169
      %v6214 = vmax.f32 %v6107, %v6171
      %v6215 = vmax.f32 %v6109, %v6173
      %v6216 = vmax.f32 %v6111, %v6175
      %v6217 = vmax.f32 %v6113, %v6177
      %v6218 = vmax.f32 %v6115, %v6179
      %v6219 = vmax.f32 %v6117, %v6181
      %v6220 = vmax.f32 %v6119, %v6183
      %v6221 = vmax.f32 %v6121, %v6185
      %v6222 = vmax.f32 %v6123, %v6187
      %v6223 = vmax.f32 %v6125, %v6189
      %v6224 = vmax.f32 %v6127, %v6191
      %v6225 = vmax.f32 %v6129, %v6193
      %v6226 = vmax.f32 %v6194, %v6195
      %v6227 = vmax.f32 %v6196, %v6197
      %v6228 = vmax.f32 %v6198, %v6199
      %v6229 = vmax.f32 %v6200, %v6201
      %v6230 = vmax.f32 %v6202, %v6203
      %v6231 = vmax.f32 %v6204, %v6205
      %v6232 = vmax.f32 %v6206, %v6207
      %v6233 = vmax.f32 %v6208, %v6209
      %v6234 = vmax.f32 %v6210, %v6211
      %v6235 = vmax.f32 %v6212, %v6213
      %v6236 = vmax.f32 %v6214, %v6215
      %v6237 = vmax.f32 %v6216, %v6217
      %v6238 = vmax.f32 %v6218, %v6219
      %v6239 = vmax.f32 %v6220, %v6221
      %v6240 = vmax.f32 %v6222, %v6223
      %v6241 = vmax.f32 %v6224, %v6225
      %6242 = vst.msk [vmem:[#allocation3] sm:$0xff] %vm5928, 0.0
      %vm6243 = vcmask 58368
      %6244 = vst.msk [vmem:[#allocation3 + $0x8] sm:$0x3] %vm6243, 0.0
      %6245 = vst.msk [vmem:[#allocation3 + $0x10] sm:$0xff] %vm5928, 0.0
      %6246 = vst.msk [vmem:[#allocation3 + $0x18] sm:$0x3] %vm6243, 0.0
      %6247 = vst.msk [vmem:[#allocation3 + $0x20] sm:$0xff] %vm5928, 0.0
      %6248 = vst.msk [vmem:[#allocation3 + $0x28] sm:$0x3] %vm6243, 0.0
      %6249 = vst.msk [vmem:[#allocation3 + $0x30] sm:$0xff] %vm5928, 0.0
      %6250 = vst.msk [vmem:[#allocation3 + $0x38] sm:$0x3] %vm6243, 0.0
      %6251 = vst.msk [vmem:[#allocation3 + $0x40] sm:$0xff] %vm5928, 0.0
      %6252 = vst.msk [vmem:[#allocation3 + $0x48] sm:$0x3] %vm6243, 0.0
      %6253 = vst.msk [vmem:[#allocation3 + $0x50] sm:$0xff] %vm5928, 0.0
      %6254 = vst.msk [vmem:[#allocation3 + $0x58] sm:$0x3] %vm6243, 0.0
      %6255 = vst.msk [vmem:[#allocation3 + $0x60] sm:$0xff] %vm5928, 0.0
      %6256 = vst.msk [vmem:[#allocation3 + $0x68] sm:$0x3] %vm6243, 0.0
      %6257 = vst.msk [vmem:[#allocation3 + $0x70] sm:$0xff] %vm5928, 0.0
      %6258 = vst.msk [vmem:[#allocation3 + $0x78] sm:$0x3] %vm6243, 0.0
      %6259 = vst.msk [vmem:[#allocation3 + $0x80] sm:$0xff] %vm5928, 0.0
      %6260 = vst.msk [vmem:[#allocation3 + $0x88] sm:$0x3] %vm6243, 0.0
      %6261 = vst.msk [vmem:[#allocation3 + $0x90] sm:$0xff] %vm5928, 0.0
      %6262 = vst.msk [vmem:[#allocation3 + $0x98] sm:$0x3] %vm6243, 0.0
      %6263 = vst.msk [vmem:[#allocation3 + $0xa0] sm:$0xff] %vm5928, 0.0
      %6264 = vst.msk [vmem:[#allocation3 + $0xa8] sm:$0x3] %vm6243, 0.0
      %6265 = vst.msk [vmem:[#allocation3 + $0xb0] sm:$0xff] %vm5928, 0.0
      %6266 = vst.msk [vmem:[#allocation3 + $0xb8] sm:$0x3] %vm6243, 0.0
      %6267 = vst.msk [vmem:[#allocation3 + $0xc0] sm:$0xff] %vm5928, 0.0
      %6268 = vst.msk [vmem:[#allocation3 + $0xc8] sm:$0x3] %vm6243, 0.0
      %6269 = vst.msk [vmem:[#allocation3 + $0xd0] sm:$0xff] %vm5928, 0.0
      %6270 = vst.msk [vmem:[#allocation3 + $0xd8] sm:$0x3] %vm6243, 0.0
      %6271 = vst.msk [vmem:[#allocation3 + $0xe0] sm:$0xff] %vm5928, 0.0
      %6272 = vst.msk [vmem:[#allocation3 + $0xe8] sm:$0x3] %vm6243, 0.0
      %6273 = vst.msk [vmem:[#allocation3 + $0xf0] sm:$0xff] %vm5928, 0.0
      %6274 = vst.msk [vmem:[#allocation3 + $0xf8] sm:$0x3] %vm6243, 0.0
      %6275 = vst.msk [vmem:[#allocation3 + $0x100] sm:$0xff] %vm5928, 0.0
      %6276 = vst.msk [vmem:[#allocation3 + $0x108] sm:$0x3] %vm6243, 0.0
      %6277 = vst.msk [vmem:[#allocation3 + $0x110] sm:$0xff] %vm5928, 0.0
      %6278 = vst.msk [vmem:[#allocation3 + $0x118] sm:$0x3] %vm6243, 0.0
      %6279 = vst.msk [vmem:[#allocation3 + $0x120] sm:$0xff] %vm5928, 0.0
      %6280 = vst.msk [vmem:[#allocation3 + $0x128] sm:$0x3] %vm6243, 0.0
      %6281 = vst.msk [vmem:[#allocation3 + $0x130] sm:$0xff] %vm5928, 0.0
      %6282 = vst.msk [vmem:[#allocation3 + $0x138] sm:$0x3] %vm6243, 0.0
      %s6283 = scalar_lea.vmem [#allocation3], 16
      %6284 = vst.msk [vmem:[%s6283 + $0x1] sm:$0xff] %vm5928, %v6226
      %6285 = vst.msk [vmem:[%s6283 + $0x11] sm:$0xff] %vm5928, %v6227
      %6286 = vst.msk [vmem:[%s6283 + $0x21] sm:$0xff] %vm5928, %v6228
      %6287 = vst.msk [vmem:[%s6283 + $0x31] sm:$0xff] %vm5928, %v6229
      %6288 = vst.msk [vmem:[%s6283 + $0x41] sm:$0xff] %vm5928, %v6230
      %6289 = vst.msk [vmem:[%s6283 + $0x51] sm:$0xff] %vm5928, %v6231
      %6290 = vst.msk [vmem:[%s6283 + $0x61] sm:$0xff] %vm5928, %v6232
      %6291 = vst.msk [vmem:[%s6283 + $0x71] sm:$0xff] %vm5928, %v6233
      %6292 = vst.msk [vmem:[%s6283 + $0xa1] sm:$0xff] %vm5928, %v6234
      %6293 = vst.msk [vmem:[%s6283 + $0xb1] sm:$0xff] %vm5928, %v6235
      %6294 = vst.msk [vmem:[%s6283 + $0xc1] sm:$0xff] %vm5928, %v6236
      %6295 = vst.msk [vmem:[%s6283 + $0xd1] sm:$0xff] %vm5928, %v6237
      %6296 = vst.msk [vmem:[%s6283 + $0xe1] sm:$0xff] %vm5928, %v6238
      %6297 = vst.msk [vmem:[%s6283 + $0xf1] sm:$0xff] %vm5928, %v6239
      %6298 = vst.msk [vmem:[%s6283 + $0x101] sm:$0xff] %vm5928, %v6240
      %6299 = vst.msk [vmem:[%s6283 + $0x111] sm:$0xff] %vm5928, %v6241
      %v6300 = vld [vmem:[#allocation3] sm:$0xff]
      %v6301 = vld [vmem:[#allocation3 + $0x10] sm:$0xff]
      %v6302 = vld [vmem:[#allocation3 + $0x20] sm:$0xff]
      %v6303 = vld [vmem:[#allocation3 + $0x30] sm:$0xff]
      %v6304 = vld [vmem:[#allocation3 + $0x40] sm:$0xff]
      %v6305 = vld [vmem:[#allocation3 + $0x50] sm:$0xff]
      %v6306 = vld [vmem:[#allocation3 + $0x60] sm:$0xff]
      %v6307 = vld [vmem:[#allocation3 + $0x70] sm:$0xff]
      %v6308 = vld [vmem:[#allocation3 + $0xa0] sm:$0xff]
      %v6309 = vld [vmem:[#allocation3 + $0xb0] sm:$0xff]
      %v6310 = vld [vmem:[#allocation3 + $0xc0] sm:$0xff]
      %v6311 = vld [vmem:[#allocation3 + $0xd0] sm:$0xff]
      %v6312 = vld [vmem:[#allocation3 + $0xe0] sm:$0xff]
      %v6313 = vld [vmem:[#allocation3 + $0xf0] sm:$0xff]
      %v6314 = vld [vmem:[#allocation3 + $0x100] sm:$0xff]
      %v6315 = vld [vmem:[#allocation3 + $0x110] sm:$0xff]
      %v6316 = vpack.c.bf16 %v6301, %v6300
      %v6317 = vpack.c.bf16 %v6303, %v6302
      %v6318 = vpack.c.bf16 %v6305, %v6304
      %v6319 = vpack.c.bf16 %v6307, %v6306
      %v6320 = vpack.c.bf16 %v6309, %v6308
      %v6321 = vpack.c.bf16 %v6311, %v6310
      %v6322 = vpack.c.bf16 %v6313, %v6312
      %v6323 = vpack.c.bf16 %v6315, %v6314
      %v6332 = vunpack.c.l.b16 %v6316
      %v6333 = vunpack.c.h.b16 %v6316
      %v6334 = vunpack.c.l.b16 %v6317
      %v6335 = vunpack.c.h.b16 %v6317
      %v6336 = vunpack.c.l.b16 %v6318
      %v6337 = vunpack.c.h.b16 %v6318
      %v6338 = vunpack.c.l.b16 %v6319
      %v6339 = vunpack.c.h.b16 %v6319
      %v6340 = vunpack.c.l.b16 %v6320
      %v6341 = vunpack.c.h.b16 %v6320
      %v6342 = vunpack.c.l.b16 %v6321
      %v6343 = vunpack.c.h.b16 %v6321
      %v6344 = vunpack.c.l.b16 %v6322
      %v6345 = vunpack.c.h.b16 %v6322
      %v6346 = vunpack.c.l.b16 %v6323
      %v6347 = vunpack.c.h.b16 %v6323
      %v6348 = vpack.c.b16 %v6332, %v6332
      %v6349 = vpack.c.b16 %v6333, %v6333
      %v6350 = vpack.c.b16 %v6334, %v6334
      %v6351 = vpack.c.b16 %v6335, %v6335
      %v6352 = vpack.c.b16 %v6336, %v6336
      %v6353 = vpack.c.b16 %v6337, %v6337
      %v6354 = vpack.c.b16 %v6338, %v6338
      %v6355 = vpack.c.b16 %v6339, %v6339
      %v6356 = vpack.c.b16 %v6340, %v6340
      %v6357 = vpack.c.b16 %v6341, %v6341
      %v6358 = vpack.c.b16 %v6342, %v6342
      %v6359 = vpack.c.b16 %v6343, %v6343
      %v6360 = vpack.c.b16 %v6344, %v6344
      %v6361 = vpack.c.b16 %v6345, %v6345
      %v6362 = vpack.c.b16 %v6346, %v6346
      %v6363 = vpack.c.b16 %v6347, %v6347
      %vm6380 = vcmask 60416
      %6381 = vst.msk [vmem:[#allocation8] sm:$0xf] %vm6380, %v6348
      %6382 = vst.msk [vmem:[#allocation8 + $0x4] sm:$0xf] %vm6380, %v6349
      %6383 = vst.msk [vmem:[#allocation8 + $0x8] sm:$0xf] %vm6380, %v6350
      %6384 = vst.msk [vmem:[#allocation8 + $0xc] sm:$0xf] %vm6380, %v6351
      %6385 = vst.msk [vmem:[#allocation8 + $0x10] sm:$0xf] %vm6380, %v6352
      %6386 = vst.msk [vmem:[#allocation8 + $0x14] sm:$0xf] %vm6380, %v6353
      %6387 = vst.msk [vmem:[#allocation8 + $0x18] sm:$0xf] %vm6380, %v6354
      %6388 = vst.msk [vmem:[#allocation8 + $0x1c] sm:$0xf] %vm6380, %v6355
      %6389 = vst.msk [vmem:[#allocation8 + $0x20] sm:$0xf] %vm6380, %v6356
      %6390 = vst.msk [vmem:[#allocation8 + $0x24] sm:$0xf] %vm6380, %v6357
      %6391 = vst.msk [vmem:[#allocation8 + $0x28] sm:$0xf] %vm6380, %v6358
      %6392 = vst.msk [vmem:[#allocation8 + $0x2c] sm:$0xf] %vm6380, %v6359
      %6393 = vst.msk [vmem:[#allocation8 + $0x30] sm:$0xf] %vm6380, %v6360
      %6394 = vst.msk [vmem:[#allocation8 + $0x34] sm:$0xf] %vm6380, %v6361
      %6395 = vst.msk [vmem:[#allocation8 + $0x38] sm:$0xf] %vm6380, %v6362
      %6396 = vst.msk [vmem:[#allocation8 + $0x3c] sm:$0xf] %vm6380, %v6363
      %v6397 = vld [vmem:[#allocation3 + $0x1] sm:$0xff]
      %v6398 = vld [vmem:[#allocation3 + $0x11] sm:$0xff]
      %v6399 = vld [vmem:[#allocation3 + $0x21] sm:$0xff]
      %v6400 = vld [vmem:[#allocation3 + $0x31] sm:$0xff]
      %v6401 = vld [vmem:[#allocation3 + $0x41] sm:$0xff]
      %v6402 = vld [vmem:[#allocation3 + $0x51] sm:$0xff]
      %v6403 = vld [vmem:[#allocation3 + $0x61] sm:$0xff]
      %v6404 = vld [vmem:[#allocation3 + $0x71] sm:$0xff]
      %v6405 = vld [vmem:[#allocation3 + $0xa1] sm:$0xff]
      %v6406 = vld [vmem:[#allocation3 + $0xb1] sm:$0xff]
      %v6407 = vld [vmem:[#allocation3 + $0xc1] sm:$0xff]
      %v6408 = vld [vmem:[#allocation3 + $0xd1] sm:$0xff]
      %v6409 = vld [vmem:[#allocation3 + $0xe1] sm:$0xff]
      %v6410 = vld [vmem:[#allocation3 + $0xf1] sm:$0xff]
      %v6411 = vld [vmem:[#allocation3 + $0x101] sm:$0xff]
      %v6412 = vld [vmem:[#allocation3 + $0x111] sm:$0xff]
      %v6413 = vpack.c.bf16 %v6398, %v6397
      %v6414 = vpack.c.bf16 %v6400, %v6399
      %v6415 = vpack.c.bf16 %v6402, %v6401
      %v6416 = vpack.c.bf16 %v6404, %v6403
      %v6417 = vpack.c.bf16 %v6406, %v6405
      %v6418 = vpack.c.bf16 %v6408, %v6407
      %v6419 = vpack.c.bf16 %v6410, %v6409
      %v6420 = vpack.c.bf16 %v6412, %v6411
      %v6429 = vunpack.c.l.b16 %v6413
      %v6430 = vunpack.c.h.b16 %v6413
      %v6431 = vunpack.c.l.b16 %v6414
      %v6432 = vunpack.c.h.b16 %v6414
      %v6433 = vunpack.c.l.b16 %v6415
      %v6434 = vunpack.c.h.b16 %v6415
      %v6435 = vunpack.c.l.b16 %v6416
      %v6436 = vunpack.c.h.b16 %v6416
      %v6437 = vunpack.c.l.b16 %v6417
      %v6438 = vunpack.c.h.b16 %v6417
      %v6439 = vunpack.c.l.b16 %v6418
      %v6440 = vunpack.c.h.b16 %v6418
      %v6441 = vunpack.c.l.b16 %v6419
      %v6442 = vunpack.c.h.b16 %v6419
      %v6443 = vunpack.c.l.b16 %v6420
      %v6444 = vunpack.c.h.b16 %v6420
      %v6445 = vpack.c.b16 %v6429, %v6429
      %v6446 = vpack.c.b16 %v6430, %v6430
      %v6447 = vpack.c.b16 %v6431, %v6431
      %v6448 = vpack.c.b16 %v6432, %v6432
      %v6449 = vpack.c.b16 %v6433, %v6433
      %v6450 = vpack.c.b16 %v6434, %v6434
      %v6451 = vpack.c.b16 %v6435, %v6435
      %v6452 = vpack.c.b16 %v6436, %v6436
      %v6453 = vpack.c.b16 %v6437, %v6437
      %v6454 = vpack.c.b16 %v6438, %v6438
      %v6455 = vpack.c.b16 %v6439, %v6439
      %v6456 = vpack.c.b16 %v6440, %v6440
      %v6457 = vpack.c.b16 %v6441, %v6441
      %v6458 = vpack.c.b16 %v6442, %v6442
      %v6459 = vpack.c.b16 %v6443, %v6443
      %v6460 = vpack.c.b16 %v6444, %v6444
      %6461 = vrot.lane.b32.xlu0 %v6445, 8
      %v6462 = vpop.permute.xlu0 %6461
      %6463 = vrot.lane.b32.xlu0 %v6446, 8
      %v6464 = vpop.permute.xlu0 %6463
      %6465 = vrot.lane.b32.xlu0 %v6447, 8
      %v6466 = vpop.permute.xlu0 %6465
      %6467 = vrot.lane.b32.xlu0 %v6448, 8
      %v6468 = vpop.permute.xlu0 %6467
      %6469 = vrot.lane.b32.xlu0 %v6449, 8
      %v6470 = vpop.permute.xlu0 %6469
      %6471 = vrot.lane.b32.xlu0 %v6450, 8
      %v6472 = vpop.permute.xlu0 %6471
      %6473 = vrot.lane.b32.xlu0 %v6451, 8
      %v6474 = vpop.permute.xlu0 %6473
      %6475 = vrot.lane.b32.xlu0 %v6452, 8
      %v6476 = vpop.permute.xlu0 %6475
      %6477 = vrot.lane.b32.xlu0 %v6453, 8
      %v6478 = vpop.permute.xlu0 %6477
      %6479 = vrot.lane.b32.xlu0 %v6454, 8
      %v6480 = vpop.permute.xlu0 %6479
      %6481 = vrot.lane.b32.xlu0 %v6455, 8
      %v6482 = vpop.permute.xlu0 %6481
      %6483 = vrot.lane.b32.xlu0 %v6456, 8
      %v6484 = vpop.permute.xlu0 %6483
      %6485 = vrot.lane.b32.xlu0 %v6457, 8
      %v6486 = vpop.permute.xlu0 %6485
      %6487 = vrot.lane.b32.xlu0 %v6458, 8
      %v6488 = vpop.permute.xlu0 %6487
      %6489 = vrot.lane.b32.xlu0 %v6459, 8
      %v6490 = vpop.permute.xlu0 %6489
      %6491 = vrot.lane.b32.xlu0 %v6460, 8
      %v6492 = vpop.permute.xlu0 %6491
      %vm6509 = vcmask 126016
      %6510 = vst.msk [vmem:[#allocation8] sm:$0xf] %vm6509, %v6462
      %6511 = vst.msk [vmem:[#allocation8 + $0x4] sm:$0xf] %vm6509, %v6464
      %6512 = vst.msk [vmem:[#allocation8 + $0x8] sm:$0xf] %vm6509, %v6466
      %6513 = vst.msk [vmem:[#allocation8 + $0xc] sm:$0xf] %vm6509, %v6468
      %6514 = vst.msk [vmem:[#allocation8 + $0x10] sm:$0xf] %vm6509, %v6470
      %6515 = vst.msk [vmem:[#allocation8 + $0x14] sm:$0xf] %vm6509, %v6472
      %6516 = vst.msk [vmem:[#allocation8 + $0x18] sm:$0xf] %vm6509, %v6474
      %6517 = vst.msk [vmem:[#allocation8 + $0x1c] sm:$0xf] %vm6509, %v6476
      %6518 = vst.msk [vmem:[#allocation8 + $0x20] sm:$0xf] %vm6509, %v6478
      %6519 = vst.msk [vmem:[#allocation8 + $0x24] sm:$0xf] %vm6509, %v6480
      %6520 = vst.msk [vmem:[#allocation8 + $0x28] sm:$0xf] %vm6509, %v6482
      %6521 = vst.msk [vmem:[#allocation8 + $0x2c] sm:$0xf] %vm6509, %v6484
      %6522 = vst.msk [vmem:[#allocation8 + $0x30] sm:$0xf] %vm6509, %v6486
      %6523 = vst.msk [vmem:[#allocation8 + $0x34] sm:$0xf] %vm6509, %v6488
      %6524 = vst.msk [vmem:[#allocation8 + $0x38] sm:$0xf] %vm6509, %v6490
      %6525 = vst.msk [vmem:[#allocation8 + $0x3c] sm:$0xf] %vm6509, %v6492
      %v6526 = vld [vmem:[#allocation3 + $0x2] sm:$0xff]
      %v6527 = vld [vmem:[#allocation3 + $0x12] sm:$0xff]
      %v6528 = vld [vmem:[#allocation3 + $0x22] sm:$0xff]
      %v6529 = vld [vmem:[#allocation3 + $0x32] sm:$0xff]
      %v6530 = vld [vmem:[#allocation3 + $0x42] sm:$0xff]
      %v6531 = vld [vmem:[#allocation3 + $0x52] sm:$0xff]
      %v6532 = vld [vmem:[#allocation3 + $0x62] sm:$0xff]
      %v6533 = vld [vmem:[#allocation3 + $0x72] sm:$0xff]
      %v6534 = vld [vmem:[#allocation3 + $0xa2] sm:$0xff]
      %v6535 = vld [vmem:[#allocation3 + $0xb2] sm:$0xff]
      %v6536 = vld [vmem:[#allocation3 + $0xc2] sm:$0xff]
      %v6537 = vld [vmem:[#allocation3 + $0xd2] sm:$0xff]
      %v6538 = vld [vmem:[#allocation3 + $0xe2] sm:$0xff]
      %v6539 = vld [vmem:[#allocation3 + $0xf2] sm:$0xff]
      %v6540 = vld [vmem:[#allocation3 + $0x102] sm:$0xff]
      %v6541 = vld [vmem:[#allocation3 + $0x112] sm:$0xff]
      %v6542 = vpack.c.bf16 %v6527, %v6526
      %v6543 = vpack.c.bf16 %v6529, %v6528
      %v6544 = vpack.c.bf16 %v6531, %v6530
      %v6545 = vpack.c.bf16 %v6533, %v6532
      %v6546 = vpack.c.bf16 %v6535, %v6534
      %v6547 = vpack.c.bf16 %v6537, %v6536
      %v6548 = vpack.c.bf16 %v6539, %v6538
      %v6549 = vpack.c.bf16 %v6541, %v6540
      %v6558 = vunpack.c.l.b16 %v6542
      %v6559 = vunpack.c.h.b16 %v6542
      %v6560 = vunpack.c.l.b16 %v6543
      %v6561 = vunpack.c.h.b16 %v6543
      %v6562 = vunpack.c.l.b16 %v6544
      %v6563 = vunpack.c.h.b16 %v6544
      %v6564 = vunpack.c.l.b16 %v6545
      %v6565 = vunpack.c.h.b16 %v6545
      %v6566 = vunpack.c.l.b16 %v6546
      %v6567 = vunpack.c.h.b16 %v6546
      %v6568 = vunpack.c.l.b16 %v6547
      %v6569 = vunpack.c.h.b16 %v6547
      %v6570 = vunpack.c.l.b16 %v6548
      %v6571 = vunpack.c.h.b16 %v6548
      %v6572 = vunpack.c.l.b16 %v6549
      %v6573 = vunpack.c.h.b16 %v6549
      %v6574 = vpack.c.b16 %v6558, %v6558
      %v6575 = vpack.c.b16 %v6559, %v6559
      %v6576 = vpack.c.b16 %v6560, %v6560
      %v6577 = vpack.c.b16 %v6561, %v6561
      %v6578 = vpack.c.b16 %v6562, %v6562
      %v6579 = vpack.c.b16 %v6563, %v6563
      %v6580 = vpack.c.b16 %v6564, %v6564
      %v6581 = vpack.c.b16 %v6565, %v6565
      %v6582 = vpack.c.b16 %v6566, %v6566
      %v6583 = vpack.c.b16 %v6567, %v6567
      %v6584 = vpack.c.b16 %v6568, %v6568
      %v6585 = vpack.c.b16 %v6569, %v6569
      %v6586 = vpack.c.b16 %v6570, %v6570
      %v6587 = vpack.c.b16 %v6571, %v6571
      %v6588 = vpack.c.b16 %v6572, %v6572
      %v6589 = vpack.c.b16 %v6573, %v6573
      %6590 = vrot.lane.b32.xlu0 %v6574, 16
      %v6591 = vpop.permute.xlu0 %6590
      %6592 = vrot.lane.b32.xlu0 %v6575, 16
      %v6593 = vpop.permute.xlu0 %6592
      %6594 = vrot.lane.b32.xlu0 %v6576, 16
      %v6595 = vpop.permute.xlu0 %6594
      %6596 = vrot.lane.b32.xlu0 %v6577, 16
      %v6597 = vpop.permute.xlu0 %6596
      %6598 = vrot.lane.b32.xlu0 %v6578, 16
      %v6599 = vpop.permute.xlu0 %6598
      %6600 = vrot.lane.b32.xlu0 %v6579, 16
      %v6601 = vpop.permute.xlu0 %6600
      %6602 = vrot.lane.b32.xlu0 %v6580, 16
      %v6603 = vpop.permute.xlu0 %6602
      %6604 = vrot.lane.b32.xlu0 %v6581, 16
      %v6605 = vpop.permute.xlu0 %6604
      %6606 = vrot.lane.b32.xlu0 %v6582, 16
      %v6607 = vpop.permute.xlu0 %6606
      %6608 = vrot.lane.b32.xlu0 %v6583, 16
      %v6609 = vpop.permute.xlu0 %6608
      %6610 = vrot.lane.b32.xlu0 %v6584, 16
      %v6611 = vpop.permute.xlu0 %6610
      %6612 = vrot.lane.b32.xlu0 %v6585, 16
      %v6613 = vpop.permute.xlu0 %6612
      %6614 = vrot.lane.b32.xlu0 %v6586, 16
      %v6615 = vpop.permute.xlu0 %6614
      %6616 = vrot.lane.b32.xlu0 %v6587, 16
      %v6617 = vpop.permute.xlu0 %6616
      %6618 = vrot.lane.b32.xlu0 %v6588, 16
      %v6619 = vpop.permute.xlu0 %6618
      %6620 = vrot.lane.b32.xlu0 %v6589, 16
      %v6621 = vpop.permute.xlu0 %6620
      %vm6638 = vcmask 191616
      %6639 = vst.msk [vmem:[#allocation8] sm:$0xf] %vm6638, %v6591
      %6640 = vst.msk [vmem:[#allocation8 + $0x4] sm:$0xf] %vm6638, %v6593
      %6641 = vst.msk [vmem:[#allocation8 + $0x8] sm:$0xf] %vm6638, %v6595
      %6642 = vst.msk [vmem:[#allocation8 + $0xc] sm:$0xf] %vm6638, %v6597
      %6643 = vst.msk [vmem:[#allocation8 + $0x10] sm:$0xf] %vm6638, %v6599
      %6644 = vst.msk [vmem:[#allocation8 + $0x14] sm:$0xf] %vm6638, %v6601
      %6645 = vst.msk [vmem:[#allocation8 + $0x18] sm:$0xf] %vm6638, %v6603
      %6646 = vst.msk [vmem:[#allocation8 + $0x1c] sm:$0xf] %vm6638, %v6605
      %6647 = vst.msk [vmem:[#allocation8 + $0x20] sm:$0xf] %vm6638, %v6607
      %6648 = vst.msk [vmem:[#allocation8 + $0x24] sm:$0xf] %vm6638, %v6609
      %6649 = vst.msk [vmem:[#allocation8 + $0x28] sm:$0xf] %vm6638, %v6611
      %6650 = vst.msk [vmem:[#allocation8 + $0x2c] sm:$0xf] %vm6638, %v6613
      %6651 = vst.msk [vmem:[#allocation8 + $0x30] sm:$0xf] %vm6638, %v6615
      %6652 = vst.msk [vmem:[#allocation8 + $0x34] sm:$0xf] %vm6638, %v6617
      %6653 = vst.msk [vmem:[#allocation8 + $0x38] sm:$0xf] %vm6638, %v6619
      %6654 = vst.msk [vmem:[#allocation8 + $0x3c] sm:$0xf] %vm6638, %v6621
      %v6655 = vld [vmem:[%s6283] sm:$0xff]
      %v6656 = vld [vmem:[%s6283 + $0x10] sm:$0xff]
      %v6657 = vld [vmem:[%s6283 + $0x20] sm:$0xff]
      %v6658 = vld [vmem:[%s6283 + $0x30] sm:$0xff]
      %v6659 = vld [vmem:[%s6283 + $0x40] sm:$0xff]
      %v6660 = vld [vmem:[%s6283 + $0x50] sm:$0xff]
      %v6661 = vld [vmem:[%s6283 + $0x60] sm:$0xff]
      %v6662 = vld [vmem:[%s6283 + $0x70] sm:$0xff]
      %v6663 = vld [vmem:[%s6283 + $0xa0] sm:$0xff]
      %v6664 = vld [vmem:[%s6283 + $0xb0] sm:$0xff]
      %v6665 = vld [vmem:[%s6283 + $0xc0] sm:$0xff]
      %v6666 = vld [vmem:[%s6283 + $0xd0] sm:$0xff]
      %v6667 = vld [vmem:[%s6283 + $0xe0] sm:$0xff]
      %v6668 = vld [vmem:[%s6283 + $0xf0] sm:$0xff]
      %v6669 = vld [vmem:[%s6283 + $0x100] sm:$0xff]
      %v6670 = vld [vmem:[%s6283 + $0x110] sm:$0xff]
      %v6671 = vpack.c.bf16 %v6656, %v6655
      %v6672 = vpack.c.bf16 %v6658, %v6657
      %v6673 = vpack.c.bf16 %v6660, %v6659
      %v6674 = vpack.c.bf16 %v6662, %v6661
      %v6675 = vpack.c.bf16 %v6664, %v6663
      %v6676 = vpack.c.bf16 %v6666, %v6665
      %v6677 = vpack.c.bf16 %v6668, %v6667
      %v6678 = vpack.c.bf16 %v6670, %v6669
      %v6687 = vunpack.c.l.b16 %v6671
      %v6688 = vunpack.c.h.b16 %v6671
      %v6689 = vunpack.c.l.b16 %v6672
      %v6690 = vunpack.c.h.b16 %v6672
      %v6691 = vunpack.c.l.b16 %v6673
      %v6692 = vunpack.c.h.b16 %v6673
      %v6693 = vunpack.c.l.b16 %v6674
      %v6694 = vunpack.c.h.b16 %v6674
      %v6695 = vunpack.c.l.b16 %v6675
      %v6696 = vunpack.c.h.b16 %v6675
      %v6697 = vunpack.c.l.b16 %v6676
      %v6698 = vunpack.c.h.b16 %v6676
      %v6699 = vunpack.c.l.b16 %v6677
      %v6700 = vunpack.c.h.b16 %v6677
      %v6701 = vunpack.c.l.b16 %v6678
      %v6702 = vunpack.c.h.b16 %v6678
      %v6703 = vpack.c.b16 %v6687, %v6687
      %v6704 = vpack.c.b16 %v6688, %v6688
      %v6705 = vpack.c.b16 %v6689, %v6689
      %v6706 = vpack.c.b16 %v6690, %v6690
      %v6707 = vpack.c.b16 %v6691, %v6691
      %v6708 = vpack.c.b16 %v6692, %v6692
      %v6709 = vpack.c.b16 %v6693, %v6693
      %v6710 = vpack.c.b16 %v6694, %v6694
      %v6711 = vpack.c.b16 %v6695, %v6695
      %v6712 = vpack.c.b16 %v6696, %v6696
      %v6713 = vpack.c.b16 %v6697, %v6697
      %v6714 = vpack.c.b16 %v6698, %v6698
      %v6715 = vpack.c.b16 %v6699, %v6699
      %v6716 = vpack.c.b16 %v6700, %v6700
      %v6717 = vpack.c.b16 %v6701, %v6701
      %v6718 = vpack.c.b16 %v6702, %v6702
      %6719 = vrot.lane.b32.xlu0 %v6703, 24
      %v6720 = vpop.permute.xlu0 %6719
      %6721 = vrot.lane.b32.xlu0 %v6704, 24
      %v6722 = vpop.permute.xlu0 %6721
      %6723 = vrot.lane.b32.xlu0 %v6705, 24
      %v6724 = vpop.permute.xlu0 %6723
      %6725 = vrot.lane.b32.xlu0 %v6706, 24
      %v6726 = vpop.permute.xlu0 %6725
      %6727 = vrot.lane.b32.xlu0 %v6707, 24
      %v6728 = vpop.permute.xlu0 %6727
      %6729 = vrot.lane.b32.xlu0 %v6708, 24
      %v6730 = vpop.permute.xlu0 %6729
      %6731 = vrot.lane.b32.xlu0 %v6709, 24
      %v6732 = vpop.permute.xlu0 %6731
      %6733 = vrot.lane.b32.xlu0 %v6710, 24
      %v6734 = vpop.permute.xlu0 %6733
      %6735 = vrot.lane.b32.xlu0 %v6711, 24
      %v6736 = vpop.permute.xlu0 %6735
      %6737 = vrot.lane.b32.xlu0 %v6712, 24
      %v6738 = vpop.permute.xlu0 %6737
      %6739 = vrot.lane.b32.xlu0 %v6713, 24
      %v6740 = vpop.permute.xlu0 %6739
      %6741 = vrot.lane.b32.xlu0 %v6714, 24
      %v6742 = vpop.permute.xlu0 %6741
      %6743 = vrot.lane.b32.xlu0 %v6715, 24
      %v6744 = vpop.permute.xlu0 %6743
      %6745 = vrot.lane.b32.xlu0 %v6716, 24
      %v6746 = vpop.permute.xlu0 %6745
      %6747 = vrot.lane.b32.xlu0 %v6717, 24
      %v6748 = vpop.permute.xlu0 %6747
      %6749 = vrot.lane.b32.xlu0 %v6718, 24
      %v6750 = vpop.permute.xlu0 %6749
      %vm6767 = vcmask 257216
      %6768 = vst.msk [vmem:[#allocation8] sm:$0xf] %vm6767, %v6720
      %6769 = vst.msk [vmem:[#allocation8 + $0x4] sm:$0xf] %vm6767, %v6722
      %6770 = vst.msk [vmem:[#allocation8 + $0x8] sm:$0xf] %vm6767, %v6724
      %6771 = vst.msk [vmem:[#allocation8 + $0xc] sm:$0xf] %vm6767, %v6726
      %6772 = vst.msk [vmem:[#allocation8 + $0x10] sm:$0xf] %vm6767, %v6728
      %6773 = vst.msk [vmem:[#allocation8 + $0x14] sm:$0xf] %vm6767, %v6730
      %6774 = vst.msk [vmem:[#allocation8 + $0x18] sm:$0xf] %vm6767, %v6732
      %6775 = vst.msk [vmem:[#allocation8 + $0x1c] sm:$0xf] %vm6767, %v6734
      %6776 = vst.msk [vmem:[#allocation8 + $0x20] sm:$0xf] %vm6767, %v6736
      %6777 = vst.msk [vmem:[#allocation8 + $0x24] sm:$0xf] %vm6767, %v6738
      %6778 = vst.msk [vmem:[#allocation8 + $0x28] sm:$0xf] %vm6767, %v6740
      %6779 = vst.msk [vmem:[#allocation8 + $0x2c] sm:$0xf] %vm6767, %v6742
      %6780 = vst.msk [vmem:[#allocation8 + $0x30] sm:$0xf] %vm6767, %v6744
      %6781 = vst.msk [vmem:[#allocation8 + $0x34] sm:$0xf] %vm6767, %v6746
      %6782 = vst.msk [vmem:[#allocation8 + $0x38] sm:$0xf] %vm6767, %v6748
      %6783 = vst.msk [vmem:[#allocation8 + $0x3c] sm:$0xf] %vm6767, %v6750
      %v6784 = vld [vmem:[%s6283 + $0x1] sm:$0xff]
      %v6785 = vld [vmem:[%s6283 + $0x11] sm:$0xff]
      %v6786 = vld [vmem:[%s6283 + $0x21] sm:$0xff]
      %v6787 = vld [vmem:[%s6283 + $0x31] sm:$0xff]
      %v6788 = vld [vmem:[%s6283 + $0x41] sm:$0xff]
      %v6789 = vld [vmem:[%s6283 + $0x51] sm:$0xff]
      %v6790 = vld [vmem:[%s6283 + $0x61] sm:$0xff]
      %v6791 = vld [vmem:[%s6283 + $0x71] sm:$0xff]
      %v6792 = vld [vmem:[%s6283 + $0xa1] sm:$0xff]
      %v6793 = vld [vmem:[%s6283 + $0xb1] sm:$0xff]
      %v6794 = vld [vmem:[%s6283 + $0xc1] sm:$0xff]
      %v6795 = vld [vmem:[%s6283 + $0xd1] sm:$0xff]
      %v6796 = vld [vmem:[%s6283 + $0xe1] sm:$0xff]
      %v6797 = vld [vmem:[%s6283 + $0xf1] sm:$0xff]
      %v6798 = vld [vmem:[%s6283 + $0x101] sm:$0xff]
      %v6799 = vld [vmem:[%s6283 + $0x111] sm:$0xff]
      %v6800 = vpack.c.bf16 %v6785, %v6784
      %v6801 = vpack.c.bf16 %v6787, %v6786
      %v6802 = vpack.c.bf16 %v6789, %v6788
      %v6803 = vpack.c.bf16 %v6791, %v6790
      %v6804 = vpack.c.bf16 %v6793, %v6792
      %v6805 = vpack.c.bf16 %v6795, %v6794
      %v6806 = vpack.c.bf16 %v6797, %v6796
      %v6807 = vpack.c.bf16 %v6799, %v6798
      %v6816 = vunpack.c.l.b16 %v6800
      %v6817 = vunpack.c.h.b16 %v6800
      %v6818 = vunpack.c.l.b16 %v6801
      %v6819 = vunpack.c.h.b16 %v6801
      %v6820 = vunpack.c.l.b16 %v6802
      %v6821 = vunpack.c.h.b16 %v6802
      %v6822 = vunpack.c.l.b16 %v6803
      %v6823 = vunpack.c.h.b16 %v6803
      %v6824 = vunpack.c.l.b16 %v6804
      %v6825 = vunpack.c.h.b16 %v6804
      %v6826 = vunpack.c.l.b16 %v6805
      %v6827 = vunpack.c.h.b16 %v6805
      %v6828 = vunpack.c.l.b16 %v6806
      %v6829 = vunpack.c.h.b16 %v6806
      %v6830 = vunpack.c.l.b16 %v6807
      %v6831 = vunpack.c.h.b16 %v6807
      %v6832 = vpack.c.b16 %v6816, %v6816
      %v6833 = vpack.c.b16 %v6817, %v6817
      %v6834 = vpack.c.b16 %v6818, %v6818
      %v6835 = vpack.c.b16 %v6819, %v6819
      %v6836 = vpack.c.b16 %v6820, %v6820
      %v6837 = vpack.c.b16 %v6821, %v6821
      %v6838 = vpack.c.b16 %v6822, %v6822
      %v6839 = vpack.c.b16 %v6823, %v6823
      %v6840 = vpack.c.b16 %v6824, %v6824
      %v6841 = vpack.c.b16 %v6825, %v6825
      %v6842 = vpack.c.b16 %v6826, %v6826
      %v6843 = vpack.c.b16 %v6827, %v6827
      %v6844 = vpack.c.b16 %v6828, %v6828
      %v6845 = vpack.c.b16 %v6829, %v6829
      %v6846 = vpack.c.b16 %v6830, %v6830
      %v6847 = vpack.c.b16 %v6831, %v6831
      %6848 = vrot.lane.b32.xlu0 %v6832, 32
      %v6849 = vpop.permute.xlu0 %6848
      %6850 = vrot.lane.b32.xlu0 %v6833, 32
      %v6851 = vpop.permute.xlu0 %6850
      %6852 = vrot.lane.b32.xlu0 %v6834, 32
      %v6853 = vpop.permute.xlu0 %6852
      %6854 = vrot.lane.b32.xlu0 %v6835, 32
      %v6855 = vpop.permute.xlu0 %6854
      %6856 = vrot.lane.b32.xlu0 %v6836, 32
      %v6857 = vpop.permute.xlu0 %6856
      %6858 = vrot.lane.b32.xlu0 %v6837, 32
      %v6859 = vpop.permute.xlu0 %6858
      %6860 = vrot.lane.b32.xlu0 %v6838, 32
      %v6861 = vpop.permute.xlu0 %6860
      %6862 = vrot.lane.b32.xlu0 %v6839, 32
      %v6863 = vpop.permute.xlu0 %6862
      %6864 = vrot.lane.b32.xlu0 %v6840, 32
      %v6865 = vpop.permute.xlu0 %6864
      %6866 = vrot.lane.b32.xlu0 %v6841, 32
      %v6867 = vpop.permute.xlu0 %6866
      %6868 = vrot.lane.b32.xlu0 %v6842, 32
      %v6869 = vpop.permute.xlu0 %6868
      %6870 = vrot.lane.b32.xlu0 %v6843, 32
      %v6871 = vpop.permute.xlu0 %6870
      %6872 = vrot.lane.b32.xlu0 %v6844, 32
      %v6873 = vpop.permute.xlu0 %6872
      %6874 = vrot.lane.b32.xlu0 %v6845, 32
      %v6875 = vpop.permute.xlu0 %6874
      %6876 = vrot.lane.b32.xlu0 %v6846, 32
      %v6877 = vpop.permute.xlu0 %6876
      %6878 = vrot.lane.b32.xlu0 %v6847, 32
      %v6879 = vpop.permute.xlu0 %6878
      %vm6896 = vcmask 322816
      %6897 = vst.msk [vmem:[#allocation8] sm:$0xf] %vm6896, %v6849
      %6898 = vst.msk [vmem:[#allocation8 + $0x4] sm:$0xf] %vm6896, %v6851
      %6899 = vst.msk [vmem:[#allocation8 + $0x8] sm:$0xf] %vm6896, %v6853
      %6900 = vst.msk [vmem:[#allocation8 + $0xc] sm:$0xf] %vm6896, %v6855
      %6901 = vst.msk [vmem:[#allocation8 + $0x10] sm:$0xf] %vm6896, %v6857
      %6902 = vst.msk [vmem:[#allocation8 + $0x14] sm:$0xf] %vm6896, %v6859
      %6903 = vst.msk [vmem:[#allocation8 + $0x18] sm:$0xf] %vm6896, %v6861
      %6904 = vst.msk [vmem:[#allocation8 + $0x1c] sm:$0xf] %vm6896, %v6863
      %6905 = vst.msk [vmem:[#allocation8 + $0x20] sm:$0xf] %vm6896, %v6865
      %6906 = vst.msk [vmem:[#allocation8 + $0x24] sm:$0xf] %vm6896, %v6867
      %6907 = vst.msk [vmem:[#allocation8 + $0x28] sm:$0xf] %vm6896, %v6869
      %6908 = vst.msk [vmem:[#allocation8 + $0x2c] sm:$0xf] %vm6896, %v6871
      %6909 = vst.msk [vmem:[#allocation8 + $0x30] sm:$0xf] %vm6896, %v6873
      %6910 = vst.msk [vmem:[#allocation8 + $0x34] sm:$0xf] %vm6896, %v6875
      %6911 = vst.msk [vmem:[#allocation8 + $0x38] sm:$0xf] %vm6896, %v6877
      %6912 = vst.msk [vmem:[#allocation8 + $0x3c] sm:$0xf] %vm6896, %v6879
      %v6913 = vld [vmem:[%s6283 + $0x2] sm:$0xff]
      %v6914 = vld [vmem:[%s6283 + $0x12] sm:$0xff]
      %v6915 = vld [vmem:[%s6283 + $0x22] sm:$0xff]
      %v6916 = vld [vmem:[%s6283 + $0x32] sm:$0xff]
      %v6917 = vld [vmem:[%s6283 + $0x42] sm:$0xff]
      %v6918 = vld [vmem:[%s6283 + $0x52] sm:$0xff]
      %v6919 = vld [vmem:[%s6283 + $0x62] sm:$0xff]
      %v6920 = vld [vmem:[%s6283 + $0x72] sm:$0xff]
      %v6921 = vld [vmem:[%s6283 + $0xa2] sm:$0xff]
      %v6922 = vld [vmem:[%s6283 + $0xb2] sm:$0xff]
      %v6923 = vld [vmem:[%s6283 + $0xc2] sm:$0xff]
      %v6924 = vld [vmem:[%s6283 + $0xd2] sm:$0xff]
      %v6925 = vld [vmem:[%s6283 + $0xe2] sm:$0xff]
      %v6926 = vld [vmem:[%s6283 + $0xf2] sm:$0xff]
      %v6927 = vld [vmem:[%s6283 + $0x102] sm:$0xff]
      %v6928 = vld [vmem:[%s6283 + $0x112] sm:$0xff]
      %v6929 = vpack.c.bf16 %v6914, %v6913
      %v6930 = vpack.c.bf16 %v6916, %v6915
      %v6931 = vpack.c.bf16 %v6918, %v6917
      %v6932 = vpack.c.bf16 %v6920, %v6919
      %v6933 = vpack.c.bf16 %v6922, %v6921
      %v6934 = vpack.c.bf16 %v6924, %v6923
      %v6935 = vpack.c.bf16 %v6926, %v6925
      %v6936 = vpack.c.bf16 %v6928, %v6927
      %v6945 = vunpack.c.l.b16 %v6929
      %v6946 = vunpack.c.h.b16 %v6929
      %v6947 = vunpack.c.l.b16 %v6930
      %v6948 = vunpack.c.h.b16 %v6930
      %v6949 = vunpack.c.l.b16 %v6931
      %v6950 = vunpack.c.h.b16 %v6931
      %v6951 = vunpack.c.l.b16 %v6932
      %v6952 = vunpack.c.h.b16 %v6932
      %v6953 = vunpack.c.l.b16 %v6933
      %v6954 = vunpack.c.h.b16 %v6933
      %v6955 = vunpack.c.l.b16 %v6934
      %v6956 = vunpack.c.h.b16 %v6934
      %v6957 = vunpack.c.l.b16 %v6935
      %v6958 = vunpack.c.h.b16 %v6935
      %v6959 = vunpack.c.l.b16 %v6936
      %v6960 = vunpack.c.h.b16 %v6936
      %v6961 = vpack.c.b16 %v6945, %v6945
      %v6962 = vpack.c.b16 %v6946, %v6946
      %v6963 = vpack.c.b16 %v6947, %v6947
      %v6964 = vpack.c.b16 %v6948, %v6948
      %v6965 = vpack.c.b16 %v6949, %v6949
      %v6966 = vpack.c.b16 %v6950, %v6950
      %v6967 = vpack.c.b16 %v6951, %v6951
      %v6968 = vpack.c.b16 %v6952, %v6952
      %v6969 = vpack.c.b16 %v6953, %v6953
      %v6970 = vpack.c.b16 %v6954, %v6954
      %v6971 = vpack.c.b16 %v6955, %v6955
      %v6972 = vpack.c.b16 %v6956, %v6956
      %v6973 = vpack.c.b16 %v6957, %v6957
      %v6974 = vpack.c.b16 %v6958, %v6958
      %v6975 = vpack.c.b16 %v6959, %v6959
      %v6976 = vpack.c.b16 %v6960, %v6960
      %6977 = vrot.lane.b32.xlu0 %v6961, 40
      %v6978 = vpop.permute.xlu0 %6977
      %6979 = vrot.lane.b32.xlu0 %v6962, 40
      %v6980 = vpop.permute.xlu0 %6979
      %6981 = vrot.lane.b32.xlu0 %v6963, 40
      %v6982 = vpop.permute.xlu0 %6981
      %6983 = vrot.lane.b32.xlu0 %v6964, 40
      %v6984 = vpop.permute.xlu0 %6983
      %6985 = vrot.lane.b32.xlu0 %v6965, 40
      %v6986 = vpop.permute.xlu0 %6985
      %6987 = vrot.lane.b32.xlu0 %v6966, 40
      %v6988 = vpop.permute.xlu0 %6987
      %6989 = vrot.lane.b32.xlu0 %v6967, 40
      %v6990 = vpop.permute.xlu0 %6989
      %6991 = vrot.lane.b32.xlu0 %v6968, 40
      %v6992 = vpop.permute.xlu0 %6991
      %6993 = vrot.lane.b32.xlu0 %v6969, 40
      %v6994 = vpop.permute.xlu0 %6993
      %6995 = vrot.lane.b32.xlu0 %v6970, 40
      %v6996 = vpop.permute.xlu0 %6995
      %6997 = vrot.lane.b32.xlu0 %v6971, 40
      %v6998 = vpop.permute.xlu0 %6997
      %6999 = vrot.lane.b32.xlu0 %v6972, 40
      %v7000 = vpop.permute.xlu0 %6999
      %7001 = vrot.lane.b32.xlu0 %v6973, 40
      %v7002 = vpop.permute.xlu0 %7001
      %7003 = vrot.lane.b32.xlu0 %v6974, 40
      %v7004 = vpop.permute.xlu0 %7003
      %7005 = vrot.lane.b32.xlu0 %v6975, 40
      %v7006 = vpop.permute.xlu0 %7005
      %7007 = vrot.lane.b32.xlu0 %v6976, 40
      %v7008 = vpop.permute.xlu0 %7007
      %vm7025 = vcmask 388416
      %7026 = vst.msk [vmem:[#allocation8] sm:$0xf] %vm7025, %v6978
      %7027 = vst.msk [vmem:[#allocation8 + $0x4] sm:$0xf] %vm7025, %v6980
      %7028 = vst.msk [vmem:[#allocation8 + $0x8] sm:$0xf] %vm7025, %v6982
      %7029 = vst.msk [vmem:[#allocation8 + $0xc] sm:$0xf] %vm7025, %v6984
      %7030 = vst.msk [vmem:[#allocation8 + $0x10] sm:$0xf] %vm7025, %v6986
      %7031 = vst.msk [vmem:[#allocation8 + $0x14] sm:$0xf] %vm7025, %v6988
      %7032 = vst.msk [vmem:[#allocation8 + $0x18] sm:$0xf] %vm7025, %v6990
      %7033 = vst.msk [vmem:[#allocation8 + $0x1c] sm:$0xf] %vm7025, %v6992
      %7034 = vst.msk [vmem:[#allocation8 + $0x20] sm:$0xf] %vm7025, %v6994
      %7035 = vst.msk [vmem:[#allocation8 + $0x24] sm:$0xf] %vm7025, %v6996
      %7036 = vst.msk [vmem:[#allocation8 + $0x28] sm:$0xf] %vm7025, %v6998
      %7037 = vst.msk [vmem:[#allocation8 + $0x2c] sm:$0xf] %vm7025, %v7000
      %7038 = vst.msk [vmem:[#allocation8 + $0x30] sm:$0xf] %vm7025, %v7002
      %7039 = vst.msk [vmem:[#allocation8 + $0x34] sm:$0xf] %vm7025, %v7004
      %7040 = vst.msk [vmem:[#allocation8 + $0x38] sm:$0xf] %vm7025, %v7006
      %7041 = vst.msk [vmem:[#allocation8 + $0x3c] sm:$0xf] %vm7025, %v7008
      %s7042 = scalar_lea.vmem [#allocation3], 32
      %v7043 = vld [vmem:[%s7042] sm:$0xff]
      %v7044 = vld [vmem:[%s7042 + $0x10] sm:$0xff]
      %v7045 = vld [vmem:[%s7042 + $0x20] sm:$0xff]
      %v7046 = vld [vmem:[%s7042 + $0x30] sm:$0xff]
      %v7047 = vld [vmem:[%s7042 + $0x40] sm:$0xff]
      %v7048 = vld [vmem:[%s7042 + $0x50] sm:$0xff]
      %v7049 = vld [vmem:[%s7042 + $0x60] sm:$0xff]
      %v7050 = vld [vmem:[%s7042 + $0x70] sm:$0xff]
      %v7051 = vld [vmem:[%s7042 + $0xa0] sm:$0xff]
      %v7052 = vld [vmem:[%s7042 + $0xb0] sm:$0xff]
      %v7053 = vld [vmem:[%s7042 + $0xc0] sm:$0xff]
      %v7054 = vld [vmem:[%s7042 + $0xd0] sm:$0xff]
      %v7055 = vld [vmem:[%s7042 + $0xe0] sm:$0xff]
      %v7056 = vld [vmem:[%s7042 + $0xf0] sm:$0xff]
      %v7057 = vld [vmem:[%s7042 + $0x100] sm:$0xff]
      %v7058 = vld [vmem:[%s7042 + $0x110] sm:$0xff]
      %v7059 = vpack.c.bf16 %v7044, %v7043
      %v7060 = vpack.c.bf16 %v7046, %v7045
      %v7061 = vpack.c.bf16 %v7048, %v7047
      %v7062 = vpack.c.bf16 %v7050, %v7049
      %v7063 = vpack.c.bf16 %v7052, %v7051
      %v7064 = vpack.c.bf16 %v7054, %v7053
      %v7065 = vpack.c.bf16 %v7056, %v7055
      %v7066 = vpack.c.bf16 %v7058, %v7057
      %v7075 = vunpack.c.l.b16 %v7059
      %v7076 = vunpack.c.h.b16 %v7059
      %v7077 = vunpack.c.l.b16 %v7060
      %v7078 = vunpack.c.h.b16 %v7060
      %v7079 = vunpack.c.l.b16 %v7061
      %v7080 = vunpack.c.h.b16 %v7061
      %v7081 = vunpack.c.l.b16 %v7062
      %v7082 = vunpack.c.h.b16 %v7062
      %v7083 = vunpack.c.l.b16 %v7063
      %v7084 = vunpack.c.h.b16 %v7063
      %v7085 = vunpack.c.l.b16 %v7064
      %v7086 = vunpack.c.h.b16 %v7064
      %v7087 = vunpack.c.l.b16 %v7065
      %v7088 = vunpack.c.h.b16 %v7065
      %v7089 = vunpack.c.l.b16 %v7066
      %v7090 = vunpack.c.h.b16 %v7066
      %v7091 = vpack.c.b16 %v7075, %v7075
      %v7092 = vpack.c.b16 %v7076, %v7076
      %v7093 = vpack.c.b16 %v7077, %v7077
      %v7094 = vpack.c.b16 %v7078, %v7078
      %v7095 = vpack.c.b16 %v7079, %v7079
      %v7096 = vpack.c.b16 %v7080, %v7080
      %v7097 = vpack.c.b16 %v7081, %v7081
      %v7098 = vpack.c.b16 %v7082, %v7082
      %v7099 = vpack.c.b16 %v7083, %v7083
      %v7100 = vpack.c.b16 %v7084, %v7084
      %v7101 = vpack.c.b16 %v7085, %v7085
      %v7102 = vpack.c.b16 %v7086, %v7086
      %v7103 = vpack.c.b16 %v7087, %v7087
      %v7104 = vpack.c.b16 %v7088, %v7088
      %v7105 = vpack.c.b16 %v7089, %v7089
      %v7106 = vpack.c.b16 %v7090, %v7090
      %7107 = vrot.lane.b32.xlu0 %v7091, 48
      %v7108 = vpop.permute.xlu0 %7107
      %7109 = vrot.lane.b32.xlu0 %v7092, 48
      %v7110 = vpop.permute.xlu0 %7109
      %7111 = vrot.lane.b32.xlu0 %v7093, 48
      %v7112 = vpop.permute.xlu0 %7111
      %7113 = vrot.lane.b32.xlu0 %v7094, 48
      %v7114 = vpop.permute.xlu0 %7113
      %7115 = vrot.lane.b32.xlu0 %v7095, 48
      %v7116 = vpop.permute.xlu0 %7115
      %7117 = vrot.lane.b32.xlu0 %v7096, 48
      %v7118 = vpop.permute.xlu0 %7117
      %7119 = vrot.lane.b32.xlu0 %v7097, 48
      %v7120 = vpop.permute.xlu0 %7119
      %7121 = vrot.lane.b32.xlu0 %v7098, 48
      %v7122 = vpop.permute.xlu0 %7121
      %7123 = vrot.lane.b32.xlu0 %v7099, 48
      %v7124 = vpop.permute.xlu0 %7123
      %7125 = vrot.lane.b32.xlu0 %v7100, 48
      %v7126 = vpop.permute.xlu0 %7125
      %7127 = vrot.lane.b32.xlu0 %v7101, 48
      %v7128 = vpop.permute.xlu0 %7127
      %7129 = vrot.lane.b32.xlu0 %v7102, 48
      %v7130 = vpop.permute.xlu0 %7129
      %7131 = vrot.lane.b32.xlu0 %v7103, 48
      %v7132 = vpop.permute.xlu0 %7131
      %7133 = vrot.lane.b32.xlu0 %v7104, 48
      %v7134 = vpop.permute.xlu0 %7133
      %7135 = vrot.lane.b32.xlu0 %v7105, 48
      %v7136 = vpop.permute.xlu0 %7135
      %7137 = vrot.lane.b32.xlu0 %v7106, 48
      %v7138 = vpop.permute.xlu0 %7137
      %vm7155 = vcmask 454016
      %7156 = vst.msk [vmem:[#allocation8] sm:$0xf] %vm7155, %v7108
      %7157 = vst.msk [vmem:[#allocation8 + $0x4] sm:$0xf] %vm7155, %v7110
      %7158 = vst.msk [vmem:[#allocation8 + $0x8] sm:$0xf] %vm7155, %v7112
      %7159 = vst.msk [vmem:[#allocation8 + $0xc] sm:$0xf] %vm7155, %v7114
      %7160 = vst.msk [vmem:[#allocation8 + $0x10] sm:$0xf] %vm7155, %v7116
      %7161 = vst.msk [vmem:[#allocation8 + $0x14] sm:$0xf] %vm7155, %v7118
      %7162 = vst.msk [vmem:[#allocation8 + $0x18] sm:$0xf] %vm7155, %v7120
      %7163 = vst.msk [vmem:[#allocation8 + $0x1c] sm:$0xf] %vm7155, %v7122
      %7164 = vst.msk [vmem:[#allocation8 + $0x20] sm:$0xf] %vm7155, %v7124
      %7165 = vst.msk [vmem:[#allocation8 + $0x24] sm:$0xf] %vm7155, %v7126
      %7166 = vst.msk [vmem:[#allocation8 + $0x28] sm:$0xf] %vm7155, %v7128
      %7167 = vst.msk [vmem:[#allocation8 + $0x2c] sm:$0xf] %vm7155, %v7130
      %7168 = vst.msk [vmem:[#allocation8 + $0x30] sm:$0xf] %vm7155, %v7132
      %7169 = vst.msk [vmem:[#allocation8 + $0x34] sm:$0xf] %vm7155, %v7134
      %7170 = vst.msk [vmem:[#allocation8 + $0x38] sm:$0xf] %vm7155, %v7136
      %7171 = vst.msk [vmem:[#allocation8 + $0x3c] sm:$0xf] %vm7155, %v7138
      %v7172 = vld [vmem:[%s7042 + $0x1] sm:$0xff]
      %v7173 = vld [vmem:[%s7042 + $0x11] sm:$0xff]
      %v7174 = vld [vmem:[%s7042 + $0x21] sm:$0xff]
      %v7175 = vld [vmem:[%s7042 + $0x31] sm:$0xff]
      %v7176 = vld [vmem:[%s7042 + $0x41] sm:$0xff]
      %v7177 = vld [vmem:[%s7042 + $0x51] sm:$0xff]
      %v7178 = vld [vmem:[%s7042 + $0x61] sm:$0xff]
      %v7179 = vld [vmem:[%s7042 + $0x71] sm:$0xff]
      %v7180 = vld [vmem:[%s7042 + $0xa1] sm:$0xff]
      %v7181 = vld [vmem:[%s7042 + $0xb1] sm:$0xff]
      %v7182 = vld [vmem:[%s7042 + $0xc1] sm:$0xff]
      %v7183 = vld [vmem:[%s7042 + $0xd1] sm:$0xff]
      %v7184 = vld [vmem:[%s7042 + $0xe1] sm:$0xff]
      %v7185 = vld [vmem:[%s7042 + $0xf1] sm:$0xff]
      %v7186 = vld [vmem:[%s7042 + $0x101] sm:$0xff]
      %v7187 = vld [vmem:[%s7042 + $0x111] sm:$0xff]
      %v7188 = vpack.c.bf16 %v7173, %v7172
      %v7189 = vpack.c.bf16 %v7175, %v7174
      %v7190 = vpack.c.bf16 %v7177, %v7176
      %v7191 = vpack.c.bf16 %v7179, %v7178
      %v7192 = vpack.c.bf16 %v7181, %v7180
      %v7193 = vpack.c.bf16 %v7183, %v7182
      %v7194 = vpack.c.bf16 %v7185, %v7184
      %v7195 = vpack.c.bf16 %v7187, %v7186
      %v7204 = vunpack.c.l.b16 %v7188
      %v7205 = vunpack.c.h.b16 %v7188
      %v7206 = vunpack.c.l.b16 %v7189
      %v7207 = vunpack.c.h.b16 %v7189
      %v7208 = vunpack.c.l.b16 %v7190
      %v7209 = vunpack.c.h.b16 %v7190
      %v7210 = vunpack.c.l.b16 %v7191
      %v7211 = vunpack.c.h.b16 %v7191
      %v7212 = vunpack.c.l.b16 %v7192
      %v7213 = vunpack.c.h.b16 %v7192
      %v7214 = vunpack.c.l.b16 %v7193
      %v7215 = vunpack.c.h.b16 %v7193
      %v7216 = vunpack.c.l.b16 %v7194
      %v7217 = vunpack.c.h.b16 %v7194
      %v7218 = vunpack.c.l.b16 %v7195
      %v7219 = vunpack.c.h.b16 %v7195
      %v7220 = vpack.c.b16 %v7204, %v7204
      %v7221 = vpack.c.b16 %v7205, %v7205
      %v7222 = vpack.c.b16 %v7206, %v7206
      %v7223 = vpack.c.b16 %v7207, %v7207
      %v7224 = vpack.c.b16 %v7208, %v7208
      %v7225 = vpack.c.b16 %v7209, %v7209
      %v7226 = vpack.c.b16 %v7210, %v7210
      %v7227 = vpack.c.b16 %v7211, %v7211
      %v7228 = vpack.c.b16 %v7212, %v7212
      %v7229 = vpack.c.b16 %v7213, %v7213
      %v7230 = vpack.c.b16 %v7214, %v7214
      %v7231 = vpack.c.b16 %v7215, %v7215
      %v7232 = vpack.c.b16 %v7216, %v7216
      %v7233 = vpack.c.b16 %v7217, %v7217
      %v7234 = vpack.c.b16 %v7218, %v7218
      %v7235 = vpack.c.b16 %v7219, %v7219
      %7236 = vrot.lane.b32.xlu0 %v7220, 56
      %v7237 = vpop.permute.xlu0 %7236
      %7238 = vrot.lane.b32.xlu0 %v7221, 56
      %v7239 = vpop.permute.xlu0 %7238
      %7240 = vrot.lane.b32.xlu0 %v7222, 56
      %v7241 = vpop.permute.xlu0 %7240
      %7242 = vrot.lane.b32.xlu0 %v7223, 56
      %v7243 = vpop.permute.xlu0 %7242
      %7244 = vrot.lane.b32.xlu0 %v7224, 56
      %v7245 = vpop.permute.xlu0 %7244
      %7246 = vrot.lane.b32.xlu0 %v7225, 56
      %v7247 = vpop.permute.xlu0 %7246
      %7248 = vrot.lane.b32.xlu0 %v7226, 56
      %v7249 = vpop.permute.xlu0 %7248
      %7250 = vrot.lane.b32.xlu0 %v7227, 56
      %v7251 = vpop.permute.xlu0 %7250
      %7252 = vrot.lane.b32.xlu0 %v7228, 56
      %v7253 = vpop.permute.xlu0 %7252
      %7254 = vrot.lane.b32.xlu0 %v7229, 56
      %v7255 = vpop.permute.xlu0 %7254
      %7256 = vrot.lane.b32.xlu0 %v7230, 56
      %v7257 = vpop.permute.xlu0 %7256
      %7258 = vrot.lane.b32.xlu0 %v7231, 56
      %v7259 = vpop.permute.xlu0 %7258
      %7260 = vrot.lane.b32.xlu0 %v7232, 56
      %v7261 = vpop.permute.xlu0 %7260
      %7262 = vrot.lane.b32.xlu0 %v7233, 56
      %v7263 = vpop.permute.xlu0 %7262
      %7264 = vrot.lane.b32.xlu0 %v7234, 56
      %v7265 = vpop.permute.xlu0 %7264
      %7266 = vrot.lane.b32.xlu0 %v7235, 56
      %v7267 = vpop.permute.xlu0 %7266
      %vm7284 = vcmask 519616
      %7285 = vst.msk [vmem:[#allocation8] sm:$0xf] %vm7284, %v7237
      %7286 = vst.msk [vmem:[#allocation8 + $0x4] sm:$0xf] %vm7284, %v7239
      %7287 = vst.msk [vmem:[#allocation8 + $0x8] sm:$0xf] %vm7284, %v7241
      %7288 = vst.msk [vmem:[#allocation8 + $0xc] sm:$0xf] %vm7284, %v7243
      %7289 = vst.msk [vmem:[#allocation8 + $0x10] sm:$0xf] %vm7284, %v7245
      %7290 = vst.msk [vmem:[#allocation8 + $0x14] sm:$0xf] %vm7284, %v7247
      %7291 = vst.msk [vmem:[#allocation8 + $0x18] sm:$0xf] %vm7284, %v7249
      %7292 = vst.msk [vmem:[#allocation8 + $0x1c] sm:$0xf] %vm7284, %v7251
      %7293 = vst.msk [vmem:[#allocation8 + $0x20] sm:$0xf] %vm7284, %v7253
      %7294 = vst.msk [vmem:[#allocation8 + $0x24] sm:$0xf] %vm7284, %v7255
      %7295 = vst.msk [vmem:[#allocation8 + $0x28] sm:$0xf] %vm7284, %v7257
      %7296 = vst.msk [vmem:[#allocation8 + $0x2c] sm:$0xf] %vm7284, %v7259
      %7297 = vst.msk [vmem:[#allocation8 + $0x30] sm:$0xf] %vm7284, %v7261
      %7298 = vst.msk [vmem:[#allocation8 + $0x34] sm:$0xf] %vm7284, %v7263
      %7299 = vst.msk [vmem:[#allocation8 + $0x38] sm:$0xf] %vm7284, %v7265
      %7300 = vst.msk [vmem:[#allocation8 + $0x3c] sm:$0xf] %vm7284, %v7267
      %v7301 = vld [vmem:[%s7042 + $0x2] sm:$0xff]
      %v7302 = vld [vmem:[%s7042 + $0x12] sm:$0xff]
      %v7303 = vld [vmem:[%s7042 + $0x22] sm:$0xff]
      %v7304 = vld [vmem:[%s7042 + $0x32] sm:$0xff]
      %v7305 = vld [vmem:[%s7042 + $0x42] sm:$0xff]
      %v7306 = vld [vmem:[%s7042 + $0x52] sm:$0xff]
      %v7307 = vld [vmem:[%s7042 + $0x62] sm:$0xff]
      %v7308 = vld [vmem:[%s7042 + $0x72] sm:$0xff]
      %v7309 = vld [vmem:[%s7042 + $0xa2] sm:$0xff]
      %v7310 = vld [vmem:[%s7042 + $0xb2] sm:$0xff]
      %v7311 = vld [vmem:[%s7042 + $0xc2] sm:$0xff]
      %v7312 = vld [vmem:[%s7042 + $0xd2] sm:$0xff]
      %v7313 = vld [vmem:[%s7042 + $0xe2] sm:$0xff]
      %v7314 = vld [vmem:[%s7042 + $0xf2] sm:$0xff]
      %v7315 = vld [vmem:[%s7042 + $0x102] sm:$0xff]
      %v7316 = vld [vmem:[%s7042 + $0x112] sm:$0xff]
      %v7317 = vpack.c.bf16 %v7302, %v7301
      %v7318 = vpack.c.bf16 %v7304, %v7303
      %v7319 = vpack.c.bf16 %v7306, %v7305
      %v7320 = vpack.c.bf16 %v7308, %v7307
      %v7321 = vpack.c.bf16 %v7310, %v7309
      %v7322 = vpack.c.bf16 %v7312, %v7311
      %v7323 = vpack.c.bf16 %v7314, %v7313
      %v7324 = vpack.c.bf16 %v7316, %v7315
      %v7333 = vunpack.c.l.b16 %v7317
      %v7334 = vunpack.c.h.b16 %v7317
      %v7335 = vunpack.c.l.b16 %v7318
      %v7336 = vunpack.c.h.b16 %v7318
      %v7337 = vunpack.c.l.b16 %v7319
      %v7338 = vunpack.c.h.b16 %v7319
      %v7339 = vunpack.c.l.b16 %v7320
      %v7340 = vunpack.c.h.b16 %v7320
      %v7341 = vunpack.c.l.b16 %v7321
      %v7342 = vunpack.c.h.b16 %v7321
      %v7343 = vunpack.c.l.b16 %v7322
      %v7344 = vunpack.c.h.b16 %v7322
      %v7345 = vunpack.c.l.b16 %v7323
      %v7346 = vunpack.c.h.b16 %v7323
      %v7347 = vunpack.c.l.b16 %v7324
      %v7348 = vunpack.c.h.b16 %v7324
      %v7349 = vpack.c.b16 %v7333, %v7333
      %v7350 = vpack.c.b16 %v7334, %v7334
      %v7351 = vpack.c.b16 %v7335, %v7335
      %v7352 = vpack.c.b16 %v7336, %v7336
      %v7353 = vpack.c.b16 %v7337, %v7337
      %v7354 = vpack.c.b16 %v7338, %v7338
      %v7355 = vpack.c.b16 %v7339, %v7339
      %v7356 = vpack.c.b16 %v7340, %v7340
      %v7357 = vpack.c.b16 %v7341, %v7341
      %v7358 = vpack.c.b16 %v7342, %v7342
      %v7359 = vpack.c.b16 %v7343, %v7343
      %v7360 = vpack.c.b16 %v7344, %v7344
      %v7361 = vpack.c.b16 %v7345, %v7345
      %v7362 = vpack.c.b16 %v7346, %v7346
      %v7363 = vpack.c.b16 %v7347, %v7347
      %v7364 = vpack.c.b16 %v7348, %v7348
      %7365 = vrot.lane.b32.xlu0 %v7349, 64
      %v7366 = vpop.permute.xlu0 %7365
      %7367 = vrot.lane.b32.xlu0 %v7350, 64
      %v7368 = vpop.permute.xlu0 %7367
      %7369 = vrot.lane.b32.xlu0 %v7351, 64
      %v7370 = vpop.permute.xlu0 %7369
      %7371 = vrot.lane.b32.xlu0 %v7352, 64
      %v7372 = vpop.permute.xlu0 %7371
      %7373 = vrot.lane.b32.xlu0 %v7353, 64
      %v7374 = vpop.permute.xlu0 %7373
      %7375 = vrot.lane.b32.xlu0 %v7354, 64
      %v7376 = vpop.permute.xlu0 %7375
      %7377 = vrot.lane.b32.xlu0 %v7355, 64
      %v7378 = vpop.permute.xlu0 %7377
      %7379 = vrot.lane.b32.xlu0 %v7356, 64
      %v7380 = vpop.permute.xlu0 %7379
      %7381 = vrot.lane.b32.xlu0 %v7357, 64
      %v7382 = vpop.permute.xlu0 %7381
      %7383 = vrot.lane.b32.xlu0 %v7358, 64
      %v7384 = vpop.permute.xlu0 %7383
      %7385 = vrot.lane.b32.xlu0 %v7359, 64
      %v7386 = vpop.permute.xlu0 %7385
      %7387 = vrot.lane.b32.xlu0 %v7360, 64
      %v7388 = vpop.permute.xlu0 %7387
      %7389 = vrot.lane.b32.xlu0 %v7361, 64
      %v7390 = vpop.permute.xlu0 %7389
      %7391 = vrot.lane.b32.xlu0 %v7362, 64
      %v7392 = vpop.permute.xlu0 %7391
      %7393 = vrot.lane.b32.xlu0 %v7363, 64
      %v7394 = vpop.permute.xlu0 %7393
      %7395 = vrot.lane.b32.xlu0 %v7364, 64
      %v7396 = vpop.permute.xlu0 %7395
      %vm7413 = vcmask 585216
      %7414 = vst.msk [vmem:[#allocation8] sm:$0xf] %vm7413, %v7366
      %7415 = vst.msk [vmem:[#allocation8 + $0x4] sm:$0xf] %vm7413, %v7368
      %7416 = vst.msk [vmem:[#allocation8 + $0x8] sm:$0xf] %vm7413, %v7370
      %7417 = vst.msk [vmem:[#allocation8 + $0xc] sm:$0xf] %vm7413, %v7372
      %7418 = vst.msk [vmem:[#allocation8 + $0x10] sm:$0xf] %vm7413, %v7374
      %7419 = vst.msk [vmem:[#allocation8 + $0x14] sm:$0xf] %vm7413, %v7376
      %7420 = vst.msk [vmem:[#allocation8 + $0x18] sm:$0xf] %vm7413, %v7378
      %7421 = vst.msk [vmem:[#allocation8 + $0x1c] sm:$0xf] %vm7413, %v7380
      %7422 = vst.msk [vmem:[#allocation8 + $0x20] sm:$0xf] %vm7413, %v7382
      %7423 = vst.msk [vmem:[#allocation8 + $0x24] sm:$0xf] %vm7413, %v7384
      %7424 = vst.msk [vmem:[#allocation8 + $0x28] sm:$0xf] %vm7413, %v7386
      %7425 = vst.msk [vmem:[#allocation8 + $0x2c] sm:$0xf] %vm7413, %v7388
      %7426 = vst.msk [vmem:[#allocation8 + $0x30] sm:$0xf] %vm7413, %v7390
      %7427 = vst.msk [vmem:[#allocation8 + $0x34] sm:$0xf] %vm7413, %v7392
      %7428 = vst.msk [vmem:[#allocation8 + $0x38] sm:$0xf] %vm7413, %v7394
      %7429 = vst.msk [vmem:[#allocation8 + $0x3c] sm:$0xf] %vm7413, %v7396
      %v7430 = vld [vmem:[#allocation8] sm:$0xf]
      %v7431 = vld [vmem:[#allocation8 + $0x4] sm:$0xf]
      %v7432 = vld [vmem:[#allocation8 + $0x8] sm:$0xf]
      %v7433 = vld [vmem:[#allocation8 + $0xc] sm:$0xf]
      %v7434 = vld [vmem:[#allocation8 + $0x10] sm:$0xf]
      %v7435 = vld [vmem:[#allocation8 + $0x14] sm:$0xf]
      %v7436 = vld [vmem:[#allocation8 + $0x18] sm:$0xf]
      %v7437 = vld [vmem:[#allocation8 + $0x1c] sm:$0xf]
      %v7438 = vld [vmem:[#allocation8 + $0x20] sm:$0xf]
      %v7439 = vld [vmem:[#allocation8 + $0x24] sm:$0xf]
      %v7440 = vld [vmem:[#allocation8 + $0x28] sm:$0xf]
      %v7441 = vld [vmem:[#allocation8 + $0x2c] sm:$0xf]
      %v7442 = vld [vmem:[#allocation8 + $0x30] sm:$0xf]
      %v7443 = vld [vmem:[#allocation8 + $0x34] sm:$0xf]
      %v7444 = vld [vmem:[#allocation8 + $0x38] sm:$0xf]
      %v7445 = vld [vmem:[#allocation8 + $0x3c] sm:$0xf]
      %v7446 = vld [vmem:[%s4] sm:$0xf]
      %v7447 = vld [vmem:[%s4 + $0x4] sm:$0xf]
      %v7448 = vld [vmem:[%s4 + $0x8] sm:$0xf]
      %v7449 = vld [vmem:[%s4 + $0xc] sm:$0xf]
      %v7450 = vld [vmem:[%s4 + $0x10] sm:$0xf]
      %v7451 = vld [vmem:[%s4 + $0x14] sm:$0xf]
      %v7452 = vld [vmem:[%s4 + $0x18] sm:$0xf]
      %v7453 = vld [vmem:[%s4 + $0x1c] sm:$0xf]
      %v7454 = vld [vmem:[%s4 + $0x20] sm:$0xf]
      %v7455 = vld [vmem:[%s5] sm:$0x1]
      %v7457 = vlaneseq
      %v7458 = vshrl.u32 %v7457, 7
      %v7459 = vsub.s32 0, %v7458
      %v7460 = vrot.slane %v7455, %v7459
      %v7478 = vunpack.c.l.b16 %v7430
      %v7479 = vunpack.c.l.b16 %v7431
      %v7480 = vunpack.c.l.b16 %v7432
      %v7481 = vunpack.c.l.b16 %v7433
      %v7482 = vunpack.c.l.b16 %v7434
      %v7483 = vunpack.c.l.b16 %v7435
      %v7484 = vunpack.c.l.b16 %v7436
      %v7485 = vunpack.c.l.b16 %v7437
      %v7486 = vunpack.c.l.b16 %v7438
      %v7487 = vunpack.c.l.b16 %v7439
      %v7488 = vunpack.c.l.b16 %v7440
      %v7489 = vunpack.c.l.b16 %v7441
      %v7490 = vunpack.c.l.b16 %v7442
      %v7491 = vunpack.c.l.b16 %v7443
      %v7492 = vunpack.c.l.b16 %v7444
      %v7493 = vunpack.c.l.b16 %v7445
      %v7494 = vpack.c.b16 %v7479, %v7478
      %v7495 = vpack.c.b16 %v7481, %v7480
      %v7496 = vpack.c.b16 %v7483, %v7482
      %v7497 = vpack.c.b16 %v7485, %v7484
      %v7498 = vpack.c.b16 %v7487, %v7486
      %v7499 = vpack.c.b16 %v7489, %v7488
      %v7500 = vpack.c.b16 %v7491, %v7490
      %v7501 = vpack.c.b16 %v7493, %v7492
      %v7511 = vunpack.c.l.b16 %v7446
      %v7512 = vunpack.c.l.b16 %v7447
      %v7513 = vunpack.c.l.b16 %v7448
      %v7514 = vunpack.c.l.b16 %v7449
      %v7515 = vunpack.c.l.b16 %v7450
      %v7516 = vunpack.c.l.b16 %v7451
      %v7517 = vunpack.c.l.b16 %v7452
      %v7518 = vunpack.c.l.b16 %v7453
      %v7519 = vunpack.c.l.b16 %v7454
      %v7520 = vpack.c.b16 %v7512, %v7511
      %v7521 = vpack.c.b16 %v7514, %v7513
      %v7522 = vpack.c.b16 %v7516, %v7515
      %v7523 = vpack.c.b16 %v7518, %v7517
      %v7524 = vpack.c.b16 %v7519, %v7519
      %vm7529 = vcmask 588800
      %v7531 = vsel %vm7529, %v7494, 0
      %v7534 = vsel %vm7529, %v7495, 0
      %v7537 = vsel %vm7529, %v7496, 0
      %v7540 = vsel %vm7529, %v7497, 0
      %v7543 = vsel %vm7529, %v7498, 0
      %v7546 = vsel %vm7529, %v7499, 0
      %v7549 = vsel %vm7529, %v7500, 0
      %v7552 = vsel %vm7529, %v7501, 0
      %vm7554 = vcmask 1043456
      %v7556 = vsel %vm7554, %v7524, 0
      %7558 = vmatprep.subr.bf16.mxu0 0
      %7559 = vmatpush1.bf16.msra.mxu0 0
      %7560 = vmatprep.subr.bf16.mxu0 0
      %7561 = vmatpush1.bf16.msra.mxu0 0
      %7562 = vmatprep.subr.bf16.mxu0 0
      %7563 = vmatpush1.bf16.msra.mxu0 0
      %7564 = vmatprep.subr.bf16.mxu0 0
      %7565 = vmatpush1.bf16.msra.mxu0 %v7556
      %7566 = vmatprep.subr.bf16.mxu0 0
      %7567 = vmatpush1.bf16.msra.mxu0 %v7523
      %7568 = vmatprep.subr.bf16.mxu0 0
      %7569 = vmatpush1.bf16.msra.mxu0 %v7522
      %7570 = vmatprep.subr.bf16.mxu0 0
      %7571 = vmatpush1.bf16.msra.mxu0 %v7521
      %7572 = vmatprep.subr.bf16.mxu0 0
      %7573 = vmatpush1.bf16.msra.mxu0 %v7520
      %7574 = vmatprep.subr.bf16.mxu0 0
      %7575 = vmatpush2.bf16.msra.mxu0 0
      %7576 = vmatprep.subr.bf16.mxu0 0
      %7577 = vmatpush2.bf16.msra.mxu0 0
      %7578 = vmatprep.subr.bf16.mxu0 0
      %7579 = vmatpush2.bf16.msra.mxu0 0
      %7580 = vmatprep.subr.bf16.mxu0 0
      %7581 = vmatpush2.bf16.msra.mxu0 0
      %7582 = vmatprep.subr.bf16.mxu0 0
      %7583 = vmatpush2.bf16.msra.mxu0 0
      %7584 = vmatprep.subr.bf16.mxu0 0
      %7585 = vmatpush2.bf16.msra.mxu0 0
      %7586 = vmatprep.subr.bf16.mxu0 0
      %7587 = vmatpush2.bf16.msra.mxu0 0
      %7588 = vmatprep.subr.bf16.mxu0 0
      %7589 = vmatpush2.bf16.msra.mxu0 0
      %7590 = vmatprep.mubr.bf16.mxu0 0
      %7591 = vmatmul.mubr.bf16.gmra.mxu0 %v7531
      %v7592 = vpop.f32.mrf.mxu0
      %v7593 = vadd.f32 %v7460, %v7592
      %v7594 = vpop.f32.mrf.mxu0
      %v7595 = vpop.f32.mrf.mxu0
      %v7596 = vadd.f32 %v7460, %v7595
      %v7597 = vpop.f32.mrf.mxu0
      %7598 = vmatprep.mubr.bf16.mxu0 0
      %7599 = vmatmul.mubr.bf16.gmra.mxu0 %v7534
      %v7600 = vpop.f32.mrf.mxu0
      %v7601 = vadd.f32 %v7460, %v7600
      %v7602 = vpop.f32.mrf.mxu0
      %v7603 = vpop.f32.mrf.mxu0
      %v7604 = vadd.f32 %v7460, %v7603
      %v7605 = vpop.f32.mrf.mxu0
      %7606 = vmatprep.mubr.bf16.mxu0 0
      %7607 = vmatmul.mubr.bf16.gmra.mxu0 %v7537
      %v7608 = vpop.f32.mrf.mxu0
      %v7609 = vadd.f32 %v7460, %v7608
      %v7610 = vpop.f32.mrf.mxu0
      %v7611 = vpop.f32.mrf.mxu0
      %v7612 = vadd.f32 %v7460, %v7611
      %v7613 = vpop.f32.mrf.mxu0
      %7614 = vmatprep.mubr.bf16.mxu0 0
      %7615 = vmatmul.mubr.bf16.gmra.mxu0 %v7540
      %v7616 = vpop.f32.mrf.mxu0
      %v7617 = vadd.f32 %v7460, %v7616
      %v7618 = vpop.f32.mrf.mxu0
      %v7619 = vpop.f32.mrf.mxu0
      %v7620 = vadd.f32 %v7460, %v7619
      %v7621 = vpop.f32.mrf.mxu0
      %7622 = vmatprep.mubr.bf16.mxu0 0
      %7623 = vmatmul.mubr.bf16.gmra.mxu0 %v7543
      %v7624 = vpop.f32.mrf.mxu0
      %v7625 = vadd.f32 %v7460, %v7624
      %v7626 = vpop.f32.mrf.mxu0
      %v7627 = vpop.f32.mrf.mxu0
      %v7628 = vadd.f32 %v7460, %v7627
      %v7629 = vpop.f32.mrf.mxu0
      %7630 = vmatprep.mubr.bf16.mxu0 0
      %7631 = vmatmul.mubr.bf16.gmra.mxu0 %v7546
      %v7632 = vpop.f32.mrf.mxu0
      %v7633 = vadd.f32 %v7460, %v7632
      %v7634 = vpop.f32.mrf.mxu0
      %v7635 = vpop.f32.mrf.mxu0
      %v7636 = vadd.f32 %v7460, %v7635
      %v7637 = vpop.f32.mrf.mxu0
      %7638 = vmatprep.mubr.bf16.mxu0 0
      %7639 = vmatmul.mubr.bf16.gmra.mxu0 %v7549
      %v7640 = vpop.f32.mrf.mxu0
      %v7641 = vadd.f32 %v7460, %v7640
      %v7642 = vpop.f32.mrf.mxu0
      %v7643 = vpop.f32.mrf.mxu0
      %v7644 = vadd.f32 %v7460, %v7643
      %v7645 = vpop.f32.mrf.mxu0
      %7646 = vmatprep.mubr.bf16.mxu0 0
      %7647 = vmatmul.mubr.bf16.gmra.mxu0 %v7552
      %v7648 = vpop.f32.mrf.mxu0
      %v7649 = vadd.f32 %v7460, %v7648
      %v7650 = vpop.f32.mrf.mxu0
      %v7651 = vpop.f32.mrf.mxu0
      %v7652 = vadd.f32 %v7460, %v7651
      %v7653 = vpop.f32.mrf.mxu0
      %7654 = vdwg.mxu0
      %v7655 = vmax.f32 %v7593, 0.0
      %v7656 = vmax.f32 %v7596, 0.0
      %v7657 = vmax.f32 %v7601, 0.0
      %v7658 = vmax.f32 %v7604, 0.0
      %v7659 = vmax.f32 %v7609, 0.0
      %v7660 = vmax.f32 %v7612, 0.0
      %v7661 = vmax.f32 %v7617, 0.0
      %v7662 = vmax.f32 %v7620, 0.0
      %v7663 = vmax.f32 %v7625, 0.0
      %v7664 = vmax.f32 %v7628, 0.0
      %v7665 = vmax.f32 %v7633, 0.0
      %v7666 = vmax.f32 %v7636, 0.0
      %v7667 = vmax.f32 %v7641, 0.0
      %v7668 = vmax.f32 %v7644, 0.0
      %v7669 = vmax.f32 %v7649, 0.0
      %v7670 = vmax.f32 %v7652, 0.0
      %v7671 = vsub.f32 %v7655, %v7663
      %v7672 = vsub.f32 %v7656, %v7664
      %v7673 = vsub.f32 %v7657, %v7665
      %v7674 = vsub.f32 %v7658, %v7666
      %v7675 = vsub.f32 %v7659, %v7667
      %v7676 = vsub.f32 %v7660, %v7668
      %v7677 = vsub.f32 %v7661, %v7669
      %v7678 = vsub.f32 %v7662, %v7670
      %v7679 = vand.u32 2147483647, %v7671
      %v7680 = vand.u32 2147483647, %v7672
      %v7681 = vand.u32 2147483647, %v7673
      %v7682 = vand.u32 2147483647, %v7674
      %v7683 = vand.u32 2147483647, %v7675
      %v7684 = vand.u32 2147483647, %v7676
      %v7685 = vand.u32 2147483647, %v7677
      %v7686 = vand.u32 2147483647, %v7678
      %vm7687 = vcmask 130048
      %v7688 = vsel %vm7687, %v7679, 0.0
      %v7689 = vsel %vm7687, %v7680, 0.0
      %v7690 = vadd.f32 %v7688, %v7689
      %v7691 = vsel %vm7687, %v7681, 0.0
      %v7692 = vadd.f32 %v7690, %v7691
      %v7693 = vsel %vm7687, %v7682, 0.0
      %v7694 = vadd.f32 %v7692, %v7693
      %v7695 = vsel %vm7687, %v7683, 0.0
      %v7696 = vadd.f32 %v7694, %v7695
      %v7697 = vsel %vm7687, %v7684, 0.0
      %v7698 = vadd.f32 %v7696, %v7697
      %v7699 = vsel %vm7687, %v7685, 0.0
      %v7700 = vadd.f32 %v7698, %v7699
      %v7701 = vsel %vm7687, %v7686, 0.0
      %v7702 = vadd.f32 %v7700, %v7701
      %7703 = vadd.xlane.f32.xlu0 %v7702
      %v7704 = vpop.xlane.xlu0 %7703
      %v7705 = vrot.slane %v7704, 4
      %v7706 = vadd.f32 %v7704, %v7705
      %v7707 = vrot.slane %v7706, 2
      %v7708 = vadd.f32 %v7706, %v7707
      %v7709 = vrot.slane %v7708, 1
      %v7710 = vadd.f32 %v7708, %v7709
      %s7711 = vtos %v7710
      %s7712 = smul.f32 %s7711, 3.0517578e-05
      %s7713 = sadd.f32 %s6002, %s7712
      %7714 = vst.msk [vmem:[#allocation12] sm:$0xff] %vm7687, %v7655
      %7715 = vst.msk [vmem:[#allocation12 + $0x8] sm:$0xff] %vm7687, %v7656
      %7716 = vst.msk [vmem:[#allocation12 + $0x10] sm:$0xff] %vm7687, %v7657
      %7717 = vst.msk [vmem:[#allocation12 + $0x18] sm:$0xff] %vm7687, %v7658
      %7718 = vst.msk [vmem:[#allocation12 + $0x20] sm:$0xff] %vm7687, %v7659
      %7719 = vst.msk [vmem:[#allocation12 + $0x28] sm:$0xff] %vm7687, %v7660
      %7720 = vst.msk [vmem:[#allocation12 + $0x30] sm:$0xff] %vm7687, %v7661
      %7721 = vst.msk [vmem:[#allocation12 + $0x38] sm:$0xff] %vm7687, %v7662
      %7722 = vst.msk [vmem:[#allocation12 + $0x40] sm:$0xff] %vm7687, %v7663
      %7723 = vst.msk [vmem:[#allocation12 + $0x48] sm:$0xff] %vm7687, %v7664
      %7724 = vst.msk [vmem:[#allocation12 + $0x50] sm:$0xff] %vm7687, %v7665
      %7725 = vst.msk [vmem:[#allocation12 + $0x58] sm:$0xff] %vm7687, %v7666
      %7726 = vst.msk [vmem:[#allocation12 + $0x60] sm:$0xff] %vm7687, %v7667
      %7727 = vst.msk [vmem:[#allocation12 + $0x68] sm:$0xff] %vm7687, %v7668
      %7728 = vst.msk [vmem:[#allocation12 + $0x70] sm:$0xff] %vm7687, %v7669
      %7729 = vst.msk [vmem:[#allocation12 + $0x78] sm:$0xff] %vm7687, %v7670
      %v7730 = vld [vmem:[#allocation12] ss:$2 sm:$0xff]
      %v7731 = vld [vmem:[%s6068] ss:$2 sm:$0xff]
      %v7732 = vld [vmem:[%s6070] ss:$2 sm:$0xff]
      %v7733 = vld [vmem:[%s6072] ss:$2 sm:$0xff]
      %v7734 = vld [vmem:[%s6074] ss:$2 sm:$0xff]
      %v7735 = vld [vmem:[%s6076] ss:$2 sm:$0xff]
      %v7736 = vld [vmem:[%s6078] ss:$2 sm:$0xff]
      %v7737 = vld [vmem:[%s6080] ss:$2 sm:$0xff]
      %v7738 = vld [vmem:[%s6130] ss:$2 sm:$0xff]
      %v7739 = vld [vmem:[%s6132] ss:$2 sm:$0xff]
      %v7740 = vld [vmem:[%s6134] ss:$2 sm:$0xff]
      %v7741 = vld [vmem:[%s6136] ss:$2 sm:$0xff]
      %v7742 = vld [vmem:[%s6138] ss:$2 sm:$0xff]
      %v7743 = vld [vmem:[%s6140] ss:$2 sm:$0xff]
      %v7744 = vld [vmem:[%s6142] ss:$2 sm:$0xff]
      %v7745 = vld [vmem:[%s6144] ss:$2 sm:$0xff]
      %v7746 = vmax.f32 %v7730, %v7738
      %v7747 = vmax.f32 %v7731, %v7739
      %v7748 = vmax.f32 %v7732, %v7740
      %v7749 = vmax.f32 %v7733, %v7741
      %v7750 = vmax.f32 %v7734, %v7742
      %v7751 = vmax.f32 %v7735, %v7743
      %v7752 = vmax.f32 %v7736, %v7744
      %v7753 = vmax.f32 %v7737, %v7745
      %v7762 = vcombine.high %v7746, %v7746
      %v7763 = vcombine.high %v7747, %v7747
      %v7764 = vcombine.high %v7748, %v7748
      %v7765 = vcombine.high %v7749, %v7749
      %v7766 = vcombine.high %v7750, %v7750
      %v7767 = vcombine.high %v7751, %v7751
      %v7768 = vcombine.high %v7752, %v7752
      %v7769 = vcombine.high %v7753, %v7753
      %v7778 = vmax.f32 %v7746, %v7762
      %v7779 = vmax.f32 %v7747, %v7763
      %v7780 = vmax.f32 %v7748, %v7764
      %v7781 = vmax.f32 %v7749, %v7765
      %v7782 = vmax.f32 %v7750, %v7766
      %v7783 = vmax.f32 %v7751, %v7767
      %v7784 = vmax.f32 %v7752, %v7768
      %v7785 = vmax.f32 %v7753, %v7769
      %vm7786 = vcmask 128000
      %7787 = vst.msk [vmem:[#allocation4] sm:$0x3f] %vm7786, 0.0
      %7788 = vst.msk [vmem:[#allocation4 + $0x8] sm:$0x3f] %vm7786, 0.0
      %7789 = vst.msk [vmem:[#allocation4 + $0x10] sm:$0x3f] %vm7786, 0.0
      %7790 = vst.msk [vmem:[#allocation4 + $0x18] sm:$0x3f] %vm7786, 0.0
      %7791 = vst.msk [vmem:[#allocation4 + $0x20] sm:$0x3f] %vm7786, 0.0
      %7792 = vst.msk [vmem:[#allocation4 + $0x28] sm:$0x3f] %vm7786, 0.0
      %7793 = vst.msk [vmem:[#allocation4 + $0x30] sm:$0x3f] %vm7786, 0.0
      %7794 = vst.msk [vmem:[#allocation4 + $0x38] sm:$0x3f] %vm7786, 0.0
      %7795 = vst.msk [vmem:[#allocation4 + $0x40] sm:$0x3f] %vm7786, 0.0
      %7796 = vst.msk [vmem:[#allocation4 + $0x48] sm:$0x3f] %vm7786, 0.0
      %7797 = vst.msk [vmem:[#allocation4 + $0x50] sm:$0x3f] %vm7786, 0.0
      %7798 = vst.msk [vmem:[#allocation4 + $0x58] sm:$0x3f] %vm7786, 0.0
      %s7799 = scalar_lea.vmem [#allocation4], 8
      %vm7800 = vcmask 125952
      %7801 = vst.msk [vmem:[%s7799 + $0x1] sm:$0xf] %vm7800, %v7778
      %7802 = vst.msk [vmem:[%s7799 + $0x9] sm:$0xf] %vm7800, %v7779
      %7803 = vst.msk [vmem:[%s7799 + $0x11] sm:$0xf] %vm7800, %v7780
      %7804 = vst.msk [vmem:[%s7799 + $0x19] sm:$0xf] %vm7800, %v7781
      %7805 = vst.msk [vmem:[%s7799 + $0x31] sm:$0xf] %vm7800, %v7782
      %7806 = vst.msk [vmem:[%s7799 + $0x39] sm:$0xf] %vm7800, %v7783
      %7807 = vst.msk [vmem:[%s7799 + $0x41] sm:$0xf] %vm7800, %v7784
      %7808 = vst.msk [vmem:[%s7799 + $0x49] sm:$0xf] %vm7800, %v7785
      %v7809 = vld [vmem:[#allocation4] sm:$0xf]
      %v7810 = vld [vmem:[#allocation4 + $0x8] sm:$0xf]
      %v7811 = vld [vmem:[#allocation4 + $0x10] sm:$0xf]
      %v7812 = vld [vmem:[#allocation4 + $0x18] sm:$0xf]
      %v7813 = vld [vmem:[#allocation4 + $0x30] sm:$0xf]
      %v7814 = vld [vmem:[#allocation4 + $0x38] sm:$0xf]
      %v7815 = vld [vmem:[#allocation4 + $0x40] sm:$0xf]
      %v7816 = vld [vmem:[#allocation4 + $0x48] sm:$0xf]
      %v7825 = vcombine.low %v7809, %v7810
      %v7826 = vcombine.low %v7811, %v7812
      %v7827 = vcombine.low %v7813, %v7814
      %v7828 = vcombine.low %v7815, %v7816
      %v7833 = vpack.c.bf16 %v7826, %v7825
      %v7834 = vpack.c.bf16 %v7828, %v7827
      %v7837 = vunpack.c.l.b16 %v7833
      %v7838 = vunpack.c.h.b16 %v7833
      %v7839 = vunpack.c.l.b16 %v7834
      %v7840 = vunpack.c.h.b16 %v7834
      %v7841 = vpack.c.b16 %v7837, %v7837
      %v7842 = vpack.c.b16 %v7838, %v7838
      %v7843 = vpack.c.b16 %v7839, %v7839
      %v7844 = vpack.c.b16 %v7840, %v7840
      %7849 = vst.msk [vmem:[#allocation9] sm:$0xf] %vm7800, %v7841
      %7850 = vst.msk [vmem:[#allocation9 + $0x8] sm:$0xf] %vm7800, %v7842
      %7851 = vst.msk [vmem:[#allocation9 + $0x10] sm:$0xf] %vm7800, %v7843
      %7852 = vst.msk [vmem:[#allocation9 + $0x18] sm:$0xf] %vm7800, %v7844
      %v7853 = vld [vmem:[#allocation4 + $0x1] sm:$0xf]
      %v7854 = vld [vmem:[#allocation4 + $0x9] sm:$0xf]
      %v7855 = vld [vmem:[#allocation4 + $0x11] sm:$0xf]
      %v7856 = vld [vmem:[#allocation4 + $0x19] sm:$0xf]
      %v7857 = vld [vmem:[#allocation4 + $0x31] sm:$0xf]
      %v7858 = vld [vmem:[#allocation4 + $0x39] sm:$0xf]
      %v7859 = vld [vmem:[#allocation4 + $0x41] sm:$0xf]
      %v7860 = vld [vmem:[#allocation4 + $0x49] sm:$0xf]
      %v7869 = vcombine.low %v7853, %v7854
      %v7870 = vcombine.low %v7855, %v7856
      %v7871 = vcombine.low %v7857, %v7858
      %v7872 = vcombine.low %v7859, %v7860
      %v7877 = vpack.c.bf16 %v7870, %v7869
      %v7878 = vpack.c.bf16 %v7872, %v7871
      %v7881 = vunpack.c.l.b16 %v7877
      %v7882 = vunpack.c.h.b16 %v7877
      %v7883 = vunpack.c.l.b16 %v7878
      %v7884 = vunpack.c.h.b16 %v7878
      %v7885 = vpack.c.b16 %v7881, %v7881
      %v7886 = vpack.c.b16 %v7882, %v7882
      %v7887 = vpack.c.b16 %v7883, %v7883
      %v7888 = vpack.c.b16 %v7884, %v7884
      %7889 = vrot.lane.b32.xlu0 %v7885, 16
      %v7890 = vpop.permute.xlu0 %7889
      %7891 = vrot.lane.b32.xlu0 %v7886, 16
      %v7892 = vpop.permute.xlu0 %7891
      %7893 = vrot.lane.b32.xlu0 %v7887, 16
      %v7894 = vpop.permute.xlu0 %7893
      %7895 = vrot.lane.b32.xlu0 %v7888, 16
      %v7896 = vpop.permute.xlu0 %7895
      %vm7901 = vcmask 257152
      %7902 = vst.msk [vmem:[#allocation9] sm:$0xf] %vm7901, %v7890
      %7903 = vst.msk [vmem:[#allocation9 + $0x8] sm:$0xf] %vm7901, %v7892
      %7904 = vst.msk [vmem:[#allocation9 + $0x10] sm:$0xf] %vm7901, %v7894
      %7905 = vst.msk [vmem:[#allocation9 + $0x18] sm:$0xf] %vm7901, %v7896
      %v7906 = vld [vmem:[#allocation4 + $0x2] sm:$0xf]
      %v7907 = vld [vmem:[#allocation4 + $0xa] sm:$0xf]
      %v7908 = vld [vmem:[#allocation4 + $0x12] sm:$0xf]
      %v7909 = vld [vmem:[#allocation4 + $0x1a] sm:$0xf]
      %v7910 = vld [vmem:[#allocation4 + $0x32] sm:$0xf]
      %v7911 = vld [vmem:[#allocation4 + $0x3a] sm:$0xf]
      %v7912 = vld [vmem:[#allocation4 + $0x42] sm:$0xf]
      %v7913 = vld [vmem:[#allocation4 + $0x4a] sm:$0xf]
      %v7922 = vcombine.low %v7906, %v7907
      %v7923 = vcombine.low %v7908, %v7909
      %v7924 = vcombine.low %v7910, %v7911
      %v7925 = vcombine.low %v7912, %v7913
      %v7930 = vpack.c.bf16 %v7923, %v7922
      %v7931 = vpack.c.bf16 %v7925, %v7924
      %v7934 = vunpack.c.l.b16 %v7930
      %v7935 = vunpack.c.h.b16 %v7930
      %v7936 = vunpack.c.l.b16 %v7931
      %v7937 = vunpack.c.h.b16 %v7931
      %v7938 = vpack.c.b16 %v7934, %v7934
      %v7939 = vpack.c.b16 %v7935, %v7935
      %v7940 = vpack.c.b16 %v7936, %v7936
      %v7941 = vpack.c.b16 %v7937, %v7937
      %7942 = vrot.lane.b32.xlu0 %v7938, 32
      %v7943 = vpop.permute.xlu0 %7942
      %7944 = vrot.lane.b32.xlu0 %v7939, 32
      %v7945 = vpop.permute.xlu0 %7944
      %7946 = vrot.lane.b32.xlu0 %v7940, 32
      %v7947 = vpop.permute.xlu0 %7946
      %7948 = vrot.lane.b32.xlu0 %v7941, 32
      %v7949 = vpop.permute.xlu0 %7948
      %vm7954 = vcmask 388352
      %7955 = vst.msk [vmem:[#allocation9] sm:$0xf] %vm7954, %v7943
      %7956 = vst.msk [vmem:[#allocation9 + $0x8] sm:$0xf] %vm7954, %v7945
      %7957 = vst.msk [vmem:[#allocation9 + $0x10] sm:$0xf] %vm7954, %v7947
      %7958 = vst.msk [vmem:[#allocation9 + $0x18] sm:$0xf] %vm7954, %v7949
      %v7959 = vld [vmem:[%s7799] sm:$0xf]
      %v7960 = vld [vmem:[%s7799 + $0x8] sm:$0xf]
      %v7961 = vld [vmem:[%s7799 + $0x10] sm:$0xf]
      %v7962 = vld [vmem:[%s7799 + $0x18] sm:$0xf]
      %v7963 = vld [vmem:[%s7799 + $0x30] sm:$0xf]
      %v7964 = vld [vmem:[%s7799 + $0x38] sm:$0xf]
      %v7965 = vld [vmem:[%s7799 + $0x40] sm:$0xf]
      %v7966 = vld [vmem:[%s7799 + $0x48] sm:$0xf]
      %v7975 = vcombine.low %v7959, %v7960
      %v7976 = vcombine.low %v7961, %v7962
      %v7977 = vcombine.low %v7963, %v7964
      %v7978 = vcombine.low %v7965, %v7966
      %v7983 = vpack.c.bf16 %v7976, %v7975
      %v7984 = vpack.c.bf16 %v7978, %v7977
      %v7987 = vunpack.c.l.b16 %v7983
      %v7988 = vunpack.c.h.b16 %v7983
      %v7989 = vunpack.c.l.b16 %v7984
      %v7990 = vunpack.c.h.b16 %v7984
      %v7991 = vpack.c.b16 %v7987, %v7987
      %v7992 = vpack.c.b16 %v7988, %v7988
      %v7993 = vpack.c.b16 %v7989, %v7989
      %v7994 = vpack.c.b16 %v7990, %v7990
      %7995 = vrot.lane.b32.xlu0 %v7991, 48
      %v7996 = vpop.permute.xlu0 %7995
      %7997 = vrot.lane.b32.xlu0 %v7992, 48
      %v7998 = vpop.permute.xlu0 %7997
      %7999 = vrot.lane.b32.xlu0 %v7993, 48
      %v8000 = vpop.permute.xlu0 %7999
      %8001 = vrot.lane.b32.xlu0 %v7994, 48
      %v8002 = vpop.permute.xlu0 %8001
      %vm8007 = vcmask 519552
      %8008 = vst.msk [vmem:[#allocation9] sm:$0xf] %vm8007, %v7996
      %8009 = vst.msk [vmem:[#allocation9 + $0x8] sm:$0xf] %vm8007, %v7998
      %8010 = vst.msk [vmem:[#allocation9 + $0x10] sm:$0xf] %vm8007, %v8000
      %8011 = vst.msk [vmem:[#allocation9 + $0x18] sm:$0xf] %vm8007, %v8002
      %v8012 = vld [vmem:[%s7799 + $0x1] sm:$0xf]
      %v8013 = vld [vmem:[%s7799 + $0x9] sm:$0xf]
      %v8014 = vld [vmem:[%s7799 + $0x11] sm:$0xf]
      %v8015 = vld [vmem:[%s7799 + $0x19] sm:$0xf]
      %v8016 = vld [vmem:[%s7799 + $0x31] sm:$0xf]
      %v8017 = vld [vmem:[%s7799 + $0x39] sm:$0xf]
      %v8018 = vld [vmem:[%s7799 + $0x41] sm:$0xf]
      %v8019 = vld [vmem:[%s7799 + $0x49] sm:$0xf]
      %v8028 = vcombine.low %v8012, %v8013
      %v8029 = vcombine.low %v8014, %v8015
      %v8030 = vcombine.low %v8016, %v8017
      %v8031 = vcombine.low %v8018, %v8019
      %v8036 = vpack.c.bf16 %v8029, %v8028
      %v8037 = vpack.c.bf16 %v8031, %v8030
      %v8040 = vunpack.c.l.b16 %v8036
      %v8041 = vunpack.c.h.b16 %v8036
      %v8042 = vunpack.c.l.b16 %v8037
      %v8043 = vunpack.c.h.b16 %v8037
      %v8044 = vpack.c.b16 %v8040, %v8040
      %v8045 = vpack.c.b16 %v8041, %v8041
      %v8046 = vpack.c.b16 %v8042, %v8042
      %v8047 = vpack.c.b16 %v8043, %v8043
      %8048 = vrot.lane.b32.xlu0 %v8044, 64
      %v8049 = vpop.permute.xlu0 %8048
      %8050 = vrot.lane.b32.xlu0 %v8045, 64
      %v8051 = vpop.permute.xlu0 %8050
      %8052 = vrot.lane.b32.xlu0 %v8046, 64
      %v8053 = vpop.permute.xlu0 %8052
      %8054 = vrot.lane.b32.xlu0 %v8047, 64
      %v8055 = vpop.permute.xlu0 %8054
      %vm8060 = vcmask 650752
      %8061 = vst.msk [vmem:[#allocation9] sm:$0xf] %vm8060, %v8049
      %8062 = vst.msk [vmem:[#allocation9 + $0x8] sm:$0xf] %vm8060, %v8051
      %8063 = vst.msk [vmem:[#allocation9 + $0x10] sm:$0xf] %vm8060, %v8053
      %8064 = vst.msk [vmem:[#allocation9 + $0x18] sm:$0xf] %vm8060, %v8055
      %v8065 = vld [vmem:[%s7799 + $0x2] sm:$0xf]
      %v8066 = vld [vmem:[%s7799 + $0xa] sm:$0xf]
      %v8067 = vld [vmem:[%s7799 + $0x12] sm:$0xf]
      %v8068 = vld [vmem:[%s7799 + $0x1a] sm:$0xf]
      %v8069 = vld [vmem:[%s7799 + $0x32] sm:$0xf]
      %v8070 = vld [vmem:[%s7799 + $0x3a] sm:$0xf]
      %v8071 = vld [vmem:[%s7799 + $0x42] sm:$0xf]
      %v8072 = vld [vmem:[%s7799 + $0x4a] sm:$0xf]
      %v8081 = vcombine.low %v8065, %v8066
      %v8082 = vcombine.low %v8067, %v8068
      %v8083 = vcombine.low %v8069, %v8070
      %v8084 = vcombine.low %v8071, %v8072
      %v8089 = vpack.c.bf16 %v8082, %v8081
      %v8090 = vpack.c.bf16 %v8084, %v8083
      %v8093 = vunpack.c.l.b16 %v8089
      %v8094 = vunpack.c.h.b16 %v8089
      %v8095 = vunpack.c.l.b16 %v8090
      %v8096 = vunpack.c.h.b16 %v8090
      %v8097 = vpack.c.b16 %v8093, %v8093
      %v8098 = vpack.c.b16 %v8094, %v8094
      %v8099 = vpack.c.b16 %v8095, %v8095
      %v8100 = vpack.c.b16 %v8096, %v8096
      %8101 = vrot.lane.b32.xlu0 %v8097, 80
      %v8102 = vpop.permute.xlu0 %8101
      %8103 = vrot.lane.b32.xlu0 %v8098, 80
      %v8104 = vpop.permute.xlu0 %8103
      %8105 = vrot.lane.b32.xlu0 %v8099, 80
      %v8106 = vpop.permute.xlu0 %8105
      %8107 = vrot.lane.b32.xlu0 %v8100, 80
      %v8108 = vpop.permute.xlu0 %8107
      %vm8113 = vcmask 781952
      %8114 = vst.msk [vmem:[#allocation9] sm:$0xf] %vm8113, %v8102
      %8115 = vst.msk [vmem:[#allocation9 + $0x8] sm:$0xf] %vm8113, %v8104
      %8116 = vst.msk [vmem:[#allocation9 + $0x10] sm:$0xf] %vm8113, %v8106
      %8117 = vst.msk [vmem:[#allocation9 + $0x18] sm:$0xf] %vm8113, %v8108
      %s8118 = scalar_lea.vmem [#allocation4], 16
      %v8119 = vld [vmem:[%s8118] sm:$0xf]
      %v8120 = vld [vmem:[%s8118 + $0x8] sm:$0xf]
      %v8121 = vld [vmem:[%s8118 + $0x10] sm:$0xf]
      %v8122 = vld [vmem:[%s8118 + $0x18] sm:$0xf]
      %v8123 = vld [vmem:[%s8118 + $0x30] sm:$0xf]
      %v8124 = vld [vmem:[%s8118 + $0x38] sm:$0xf]
      %v8125 = vld [vmem:[%s8118 + $0x40] sm:$0xf]
      %v8126 = vld [vmem:[%s8118 + $0x48] sm:$0xf]
      %v8135 = vcombine.low %v8119, %v8120
      %v8136 = vcombine.low %v8121, %v8122
      %v8137 = vcombine.low %v8123, %v8124
      %v8138 = vcombine.low %v8125, %v8126
      %v8143 = vpack.c.bf16 %v8136, %v8135
      %v8144 = vpack.c.bf16 %v8138, %v8137
      %v8147 = vunpack.c.l.b16 %v8143
      %v8148 = vunpack.c.h.b16 %v8143
      %v8149 = vunpack.c.l.b16 %v8144
      %v8150 = vunpack.c.h.b16 %v8144
      %v8151 = vpack.c.b16 %v8147, %v8147
      %v8152 = vpack.c.b16 %v8148, %v8148
      %v8153 = vpack.c.b16 %v8149, %v8149
      %v8154 = vpack.c.b16 %v8150, %v8150
      %8155 = vrot.lane.b32.xlu0 %v8151, 96
      %v8156 = vpop.permute.xlu0 %8155
      %8157 = vrot.lane.b32.xlu0 %v8152, 96
      %v8158 = vpop.permute.xlu0 %8157
      %8159 = vrot.lane.b32.xlu0 %v8153, 96
      %v8160 = vpop.permute.xlu0 %8159
      %8161 = vrot.lane.b32.xlu0 %v8154, 96
      %v8162 = vpop.permute.xlu0 %8161
      %vm8167 = vcmask 913152
      %8168 = vst.msk [vmem:[#allocation9] sm:$0xf] %vm8167, %v8156
      %8169 = vst.msk [vmem:[#allocation9 + $0x8] sm:$0xf] %vm8167, %v8158
      %8170 = vst.msk [vmem:[#allocation9 + $0x10] sm:$0xf] %vm8167, %v8160
      %8171 = vst.msk [vmem:[#allocation9 + $0x18] sm:$0xf] %vm8167, %v8162
      %v8172 = vld [vmem:[%s8118 + $0x1] sm:$0xf]
      %v8173 = vld [vmem:[%s8118 + $0x9] sm:$0xf]
      %v8174 = vld [vmem:[%s8118 + $0x11] sm:$0xf]
      %v8175 = vld [vmem:[%s8118 + $0x19] sm:$0xf]
      %v8176 = vld [vmem:[%s8118 + $0x31] sm:$0xf]
      %v8177 = vld [vmem:[%s8118 + $0x39] sm:$0xf]
      %v8178 = vld [vmem:[%s8118 + $0x41] sm:$0xf]
      %v8179 = vld [vmem:[%s8118 + $0x49] sm:$0xf]
      %v8188 = vcombine.low %v8172, %v8173
      %v8189 = vcombine.low %v8174, %v8175
      %v8190 = vcombine.low %v8176, %v8177
      %v8191 = vcombine.low %v8178, %v8179
      %v8196 = vpack.c.bf16 %v8189, %v8188
      %v8197 = vpack.c.bf16 %v8191, %v8190
      %v8200 = vunpack.c.l.b16 %v8196
      %v8201 = vunpack.c.h.b16 %v8196
      %v8202 = vunpack.c.l.b16 %v8197
      %v8203 = vunpack.c.h.b16 %v8197
      %v8204 = vpack.c.b16 %v8200, %v8200
      %v8205 = vpack.c.b16 %v8201, %v8201
      %v8206 = vpack.c.b16 %v8202, %v8202
      %v8207 = vpack.c.b16 %v8203, %v8203
      %8208 = vrot.lane.b32.xlu0 %v8204, 112
      %v8209 = vpop.permute.xlu0 %8208
      %8210 = vrot.lane.b32.xlu0 %v8205, 112
      %v8211 = vpop.permute.xlu0 %8210
      %8212 = vrot.lane.b32.xlu0 %v8206, 112
      %v8213 = vpop.permute.xlu0 %8212
      %8214 = vrot.lane.b32.xlu0 %v8207, 112
      %v8215 = vpop.permute.xlu0 %8214
      %vm8220 = vcmask 1044352
      %8221 = vst.msk [vmem:[#allocation9] sm:$0xf] %vm8220, %v8209
      %8222 = vst.msk [vmem:[#allocation9 + $0x8] sm:$0xf] %vm8220, %v8211
      %8223 = vst.msk [vmem:[#allocation9 + $0x10] sm:$0xf] %vm8220, %v8213
      %8224 = vst.msk [vmem:[#allocation9 + $0x18] sm:$0xf] %vm8220, %v8215
      %v8225 = vld [vmem:[%s8118 + $0x2] sm:$0xf]
      %v8226 = vld [vmem:[%s8118 + $0xa] sm:$0xf]
      %v8227 = vld [vmem:[%s8118 + $0x12] sm:$0xf]
      %v8228 = vld [vmem:[%s8118 + $0x1a] sm:$0xf]
      %v8229 = vld [vmem:[%s8118 + $0x32] sm:$0xf]
      %v8230 = vld [vmem:[%s8118 + $0x3a] sm:$0xf]
      %v8231 = vld [vmem:[%s8118 + $0x42] sm:$0xf]
      %v8232 = vld [vmem:[%s8118 + $0x4a] sm:$0xf]
      %v8241 = vcombine.low %v8225, %v8226
      %v8242 = vcombine.low %v8227, %v8228
      %v8243 = vcombine.low %v8229, %v8230
      %v8244 = vcombine.low %v8231, %v8232
      %v8249 = vpack.c.bf16 %v8242, %v8241
      %v8250 = vpack.c.bf16 %v8244, %v8243
      %v8253 = vunpack.c.l.b16 %v8249
      %v8254 = vunpack.c.h.b16 %v8249
      %v8255 = vunpack.c.l.b16 %v8250
      %v8256 = vunpack.c.h.b16 %v8250
      %v8257 = vpack.c.b16 %v8253, %v8253
      %v8258 = vpack.c.b16 %v8254, %v8254
      %v8259 = vpack.c.b16 %v8255, %v8255
      %v8260 = vpack.c.b16 %v8256, %v8256
      %8265 = vst.msk [vmem:[#allocation9 + $0x4] sm:$0xf] %vm7800, %v8257
      %8266 = vst.msk [vmem:[#allocation9 + $0xc] sm:$0xf] %vm7800, %v8258
      %8267 = vst.msk [vmem:[#allocation9 + $0x14] sm:$0xf] %vm7800, %v8259
      %8268 = vst.msk [vmem:[#allocation9 + $0x1c] sm:$0xf] %vm7800, %v8260
      %v8269 = vld [vmem:[#allocation9] sm:$0xff]
      %v8270 = vld [vmem:[#allocation9 + $0x8] sm:$0xff]
      %v8271 = vld [vmem:[#allocation9 + $0x10] sm:$0xff]
      %v8272 = vld [vmem:[#allocation9 + $0x18] sm:$0xff]
      %v8273 = vld [vmem:[%s6] sm:$0xf]
      %v8274 = vld [vmem:[%s6 + $0x4] sm:$0xf]
      %v8275 = vld [vmem:[%s6 + $0x8] sm:$0xf]
      %v8276 = vld [vmem:[%s6 + $0xc] sm:$0xf]
      %v8277 = vld [vmem:[%s6 + $0x10] sm:$0xf]
      %v8278 = vld [vmem:[%s6 + $0x14] sm:$0xf]
      %v8279 = vld [vmem:[%s6 + $0x18] sm:$0xf]
      %v8280 = vld [vmem:[%s6 + $0x1c] sm:$0xf]
      %v8281 = vld [vmem:[%s6 + $0x20] sm:$0xf]
      %v8282 = vld [vmem:[%s6 + $0x24] sm:$0xf]
      %v8283 = vld [vmem:[%s6 + $0x28] sm:$0xf]
      %v8284 = vld [vmem:[%s6 + $0x2c] sm:$0xf]
      %v8285 = vld [vmem:[%s6 + $0x30] sm:$0xf]
      %v8286 = vld [vmem:[%s6 + $0x34] sm:$0xf]
      %v8287 = vld [vmem:[%s6 + $0x38] sm:$0xf]
      %v8288 = vld [vmem:[%s6 + $0x3c] sm:$0xf]
      %v8289 = vld [vmem:[%s6 + $0x40] sm:$0xf]
      %v8290 = vld [vmem:[%s6 + $0x44] sm:$0xf]
      %v8291 = vld [vmem:[%s7] sm:$0x1]
      %v8293 = vlaneseq
      %v8294 = vshrl.u32 %v8293, 7
      %v8295 = vsub.s32 0, %v8294
      %v8296 = vrot.slane %v8291, %v8295
      %v8302 = vunpack.c.l.b16 %v8269
      %v8303 = vunpack.c.h.b16 %v8269
      %v8304 = vunpack.c.l.b16 %v8270
      %v8305 = vunpack.c.h.b16 %v8270
      %v8306 = vunpack.c.l.b16 %v8271
      %v8307 = vunpack.c.h.b16 %v8271
      %v8308 = vunpack.c.l.b16 %v8272
      %v8309 = vunpack.c.h.b16 %v8272
      %v8310 = vpack.c.b16 %v8304, %v8302
      %v8311 = vpack.c.b16 %v8305, %v8303
      %v8312 = vpack.c.b16 %v8308, %v8306
      %v8313 = vpack.c.b16 %v8309, %v8307
      %v8334 = vunpack.c.l.b16 %v8273
      %v8335 = vunpack.c.l.b16 %v8274
      %v8336 = vunpack.c.l.b16 %v8275
      %v8337 = vunpack.c.l.b16 %v8276
      %v8338 = vunpack.c.l.b16 %v8277
      %v8339 = vunpack.c.l.b16 %v8278
      %v8340 = vunpack.c.l.b16 %v8279
      %v8341 = vunpack.c.l.b16 %v8280
      %v8342 = vunpack.c.l.b16 %v8281
      %v8343 = vunpack.c.l.b16 %v8282
      %v8344 = vunpack.c.l.b16 %v8283
      %v8345 = vunpack.c.l.b16 %v8284
      %v8346 = vunpack.c.l.b16 %v8285
      %v8347 = vunpack.c.l.b16 %v8286
      %v8348 = vunpack.c.l.b16 %v8287
      %v8349 = vunpack.c.l.b16 %v8288
      %v8350 = vunpack.c.l.b16 %v8289
      %v8351 = vunpack.c.l.b16 %v8290
      %v8352 = vpack.c.b16 %v8335, %v8334
      %v8353 = vpack.c.b16 %v8337, %v8336
      %v8354 = vpack.c.b16 %v8339, %v8338
      %v8355 = vpack.c.b16 %v8341, %v8340
      %v8356 = vpack.c.b16 %v8343, %v8342
      %v8357 = vpack.c.b16 %v8345, %v8344
      %v8358 = vpack.c.b16 %v8347, %v8346
      %v8359 = vpack.c.b16 %v8349, %v8348
      %v8360 = vpack.c.b16 %v8351, %v8350
      %v8371 = vsel %vm7687, %v8311, 0
      %v8374 = vsel %vm7687, %v8313, 0
      %8376 = vmatprep.subr.bf16.mxu0 0
      %8377 = vmatpush1.bf16.msra.mxu0 %v8359
      %8378 = vmatprep.subr.bf16.mxu0 0
      %8379 = vmatpush1.bf16.msra.mxu0 %v8358
      %8380 = vmatprep.subr.bf16.mxu0 0
      %8381 = vmatpush1.bf16.msra.mxu0 %v8357
      %8382 = vmatprep.subr.bf16.mxu0 0
      %8383 = vmatpush1.bf16.msra.mxu0 %v8356
      %8384 = vmatprep.subr.bf16.mxu0 0
      %8385 = vmatpush1.bf16.msra.mxu0 %v8355
      %8386 = vmatprep.subr.bf16.mxu0 0
      %8387 = vmatpush1.bf16.msra.mxu0 %v8354
      %8388 = vmatprep.subr.bf16.mxu0 0
      %8389 = vmatpush1.bf16.msra.mxu0 %v8353
      %8390 = vmatprep.subr.bf16.mxu0 0
      %8391 = vmatpush1.bf16.msra.mxu0 %v8352
      %8392 = vmatprep.subr.bf16.mxu0 0
      %8393 = vmatpush2.bf16.msra.mxu0 0
      %8394 = vmatprep.subr.bf16.mxu0 0
      %8395 = vmatpush2.bf16.msra.mxu0 0
      %8396 = vmatprep.subr.bf16.mxu0 0
      %8397 = vmatpush2.bf16.msra.mxu0 0
      %8398 = vmatprep.subr.bf16.mxu0 0
      %8399 = vmatpush2.bf16.msra.mxu0 0
      %8400 = vmatprep.subr.bf16.mxu0 0
      %8401 = vmatpush2.bf16.msra.mxu0 0
      %8402 = vmatprep.subr.bf16.mxu0 0
      %8403 = vmatpush2.bf16.msra.mxu0 0
      %8404 = vmatprep.subr.bf16.mxu0 0
      %8405 = vmatpush2.bf16.msra.mxu0 0
      %8406 = vmatprep.subr.bf16.mxu0 0
      %8407 = vmatpush2.bf16.msra.mxu0 %v8360
      %8408 = vmatprep.mubr.bf16.mxu0 %v8371
      %8409 = vmatmul.mubr.bf16.gmra.mxu0 %v8310
      %v8410 = vpop.f32.mrf.mxu0
      %v8411 = vadd.f32 %v8296, %v8410
      %v8412 = vpop.f32.mrf.mxu0
      %v8413 = vpop.f32.mrf.mxu0
      %v8414 = vadd.f32 %v8296, %v8413
      %v8415 = vpop.f32.mrf.mxu0
      %8416 = vmatprep.mubr.bf16.mxu0 %v8374
      %8417 = vmatmul.mubr.bf16.gmra.mxu0 %v8312
      %v8418 = vpop.f32.mrf.mxu0
      %v8419 = vadd.f32 %v8296, %v8418
      %v8420 = vpop.f32.mrf.mxu0
      %v8421 = vpop.f32.mrf.mxu0
      %v8422 = vadd.f32 %v8296, %v8421
      %v8423 = vpop.f32.mrf.mxu0
      %8424 = vdwg.mxu0
      %v8425 = vmax.f32 %v8411, 0.0
      %v8426 = vmax.f32 %v8414, 0.0
      %v8427 = vmax.f32 %v8419, 0.0
      %v8428 = vmax.f32 %v8422, 0.0
      %v8429 = vsub.f32 %v8425, %v8427
      %v8430 = vsub.f32 %v8426, %v8428
      %v8431 = vand.u32 2147483647, %v8429
      %v8432 = vand.u32 2147483647, %v8430
      %vm8433 = vcmask 261120
      %v8434 = vsel %vm8433, %v8431, 0.0
      %v8435 = vsel %vm8433, %v8432, 0.0
      %v8436 = vadd.f32 %v8434, %v8435
      %8437 = vadd.xlane.f32.xlu0 %v8436
      %v8438 = vpop.xlane.xlu0 %8437
      %v8439 = vrot.slane %v8438, 4
      %v8440 = vadd.f32 %v8438, %v8439
      %v8441 = vrot.slane %v8440, 2
      %v8442 = vadd.f32 %v8440, %v8441
      %v8443 = vrot.slane %v8442, 1
      %v8444 = vadd.f32 %v8442, %v8443
      %s8445 = vtos %v8444
      %s8446 = smul.f32 %s8445, 0.00012207031
      %s8447 = sadd.f32 %s7713, %s8446
      %8448 = vst.msk [vmem:[#allocation12] sm:$0xff] %vm8433, %v8425
      %8449 = vst.msk [vmem:[#allocation12 + $0x8] sm:$0xff] %vm8433, %v8426
      %8450 = vst.msk [vmem:[#allocation12 + $0x10] sm:$0xff] %vm8433, %v8427
      %8451 = vst.msk [vmem:[#allocation12 + $0x18] sm:$0xff] %vm8433, %v8428
      %v8452 = vld [vmem:[#allocation12] ss:$2 sm:$0xff]
      %v8453 = vld [vmem:[%s6068] ss:$2 sm:$0xff]
      %v8454 = vld [vmem:[%s6130] ss:$2 sm:$0xff]
      %v8455 = vld [vmem:[%s6132] ss:$2 sm:$0xff]
      %v8456 = vmax.f32 %v8452, %v8454
      %v8457 = vmax.f32 %v8453, %v8455
      %v8460 = vcombine.high %v8456, %v8456
      %v8462 = vunpack.c.l.s4 1983009808
      %v8463 = vunpack.c.0.s8 %v8462
      %v8464 = vlaneseq
      %v8465 = vshrl.u32 %v8464, 7
      %v8466 = vsub.s32 %v8463, %v8465
      %v8467 = vrot.slane %v8456, %v8466
      %v8469 = vunpack.c.l.s4 1983009808
      %v8470 = vunpack.c.0.s8 %v8469
      %v8471 = vlaneseq
      %v8472 = vshrl.u32 %v8471, 7
      %v8473 = vsub.s32 %v8470, %v8472
      %v8474 = vrot.slane %v8460, %v8473
      %v8475 = vcombine.high %v8467, %v8467
      %v8476 = vcombine.high %v8474, %v8474
      %v8477 = vcombine.high %v8457, %v8457
      %v8479 = vunpack.c.l.s4 1983009808
      %v8480 = vunpack.c.0.s8 %v8479
      %v8481 = vlaneseq
      %v8482 = vshrl.u32 %v8481, 7
      %v8483 = vsub.s32 %v8480, %v8482
      %v8484 = vrot.slane %v8457, %v8483
      %v8486 = vunpack.c.l.s4 1983009808
      %v8487 = vunpack.c.0.s8 %v8486
      %v8488 = vlaneseq
      %v8489 = vshrl.u32 %v8488, 7
      %v8490 = vsub.s32 %v8487, %v8489
      %v8491 = vrot.slane %v8477, %v8490
      %v8492 = vcombine.high %v8484, %v8484
      %v8493 = vcombine.high %v8491, %v8491
      %v8502 = vmax.f32 %v8467, %v8475
      %v8503 = vmax.f32 %v8474, %v8476
      %v8504 = vmax.f32 %v8484, %v8492
      %v8505 = vmax.f32 %v8491, %v8493
      %vm8506 = vcmask 257024
      %8507 = vst.msk [vmem:[#allocation5] sm:$0xf] %vm8506, 0.0
      %8508 = vst.msk [vmem:[#allocation5 + $0x4] sm:$0xf] %vm8506, 0.0
      %8509 = vst.msk [vmem:[#allocation5 + $0x8] sm:$0xf] %vm8506, 0.0
      %8510 = vst.msk [vmem:[#allocation5 + $0xc] sm:$0xf] %vm8506, 0.0
      %8511 = vst.msk [vmem:[#allocation5 + $0x10] sm:$0xf] %vm8506, 0.0
      %8512 = vst.msk [vmem:[#allocation5 + $0x14] sm:$0xf] %vm8506, 0.0
      %8513 = vst.msk [vmem:[#allocation5 + $0x18] sm:$0xf] %vm8506, 0.0
      %8514 = vst.msk [vmem:[#allocation5 + $0x1c] sm:$0xf] %vm8506, 0.0
      %s8515 = scalar_lea.vmem [#allocation5], 4
      %vm8516 = vcmask 254976
      %8517 = vst.msk [vmem:[%s8515 + $0x1] sm:$0x3] %vm8516, %v8502
      %8518 = vst.msk [vmem:[%s8515 + $0x5] sm:$0x3] %vm8516, %v8503
      %8519 = vst.msk [vmem:[%s8515 + $0x11] sm:$0x3] %vm8516, %v8504
      %8520 = vst.msk [vmem:[%s8515 + $0x15] sm:$0x3] %vm8516, %v8505
      %v8521 = vld [vmem:[#allocation5] sm:$0x3]
      %v8522 = vld [vmem:[#allocation5 + $0x4] sm:$0x3]
      %v8523 = vld [vmem:[#allocation5 + $0x10] sm:$0x3]
      %v8524 = vld [vmem:[#allocation5 + $0x14] sm:$0x3]
      %v8529 = vcombine.low %v8521, %v8522
      %v8530 = vcombine.low %v8523, %v8524
      %v8532 = vunpack.c.l.s4 1983009808
      %v8533 = vunpack.c.0.s8 %v8532
      %v8534 = vlaneseq
      %v8535 = vshrl.u32 %v8534, 7
      %v8536 = vsub.s32 %v8533, %v8535
      %v8537 = vrot.slane %v8529, %v8536
      %v8539 = vunpack.c.l.s4 1983009808
      %v8540 = vunpack.c.0.s8 %v8539
      %v8541 = vlaneseq
      %v8542 = vshrl.u32 %v8541, 7
      %v8543 = vsub.s32 %v8540, %v8542
      %v8544 = vrot.slane %v8530, %v8543
      %v8545 = vcombine.low %v8537, %v8544
      %v8547 = vpack.c.bf16 %v8545, %v8545
      %8548 = vst.msk [vmem:[#allocation10] sm:$0xf] %vm8506, %v8547
      %v8549 = vld [vmem:[#allocation5 + $0x1] sm:$0x3]
      %v8550 = vld [vmem:[#allocation5 + $0x5] sm:$0x3]
      %v8551 = vld [vmem:[#allocation5 + $0x11] sm:$0x3]
      %v8552 = vld [vmem:[#allocation5 + $0x15] sm:$0x3]
      %v8557 = vcombine.low %v8549, %v8550
      %v8558 = vcombine.low %v8551, %v8552
      %v8560 = vunpack.c.l.s4 1983009808
      %v8561 = vunpack.c.0.s8 %v8560
      %v8562 = vlaneseq
      %v8563 = vshrl.u32 %v8562, 7
      %v8564 = vsub.s32 %v8561, %v8563
      %v8565 = vrot.slane %v8557, %v8564
      %v8567 = vunpack.c.l.s4 1983009808
      %v8568 = vunpack.c.0.s8 %v8567
      %v8569 = vlaneseq
      %v8570 = vshrl.u32 %v8569, 7
      %v8571 = vsub.s32 %v8568, %v8570
      %v8572 = vrot.slane %v8558, %v8571
      %v8573 = vcombine.low %v8565, %v8572
      %v8575 = vpack.c.bf16 %v8573, %v8573
      %v8577 = vunpack.c.l.b16 %v8575
      %v8578 = vpack.c.b16 %v8577, %v8577
      %8579 = vrot.lane.b32.xlu0 %v8578, 32
      %v8580 = vpop.permute.xlu0 %8579
      %vm8582 = vcmask 519424
      %8583 = vst.msk [vmem:[#allocation10] sm:$0xf] %vm8582, %v8580
      %v8584 = vld [vmem:[#allocation5 + $0x2] sm:$0x3]
      %v8585 = vld [vmem:[#allocation5 + $0x6] sm:$0x3]
      %v8586 = vld [vmem:[#allocation5 + $0x12] sm:$0x3]
      %v8587 = vld [vmem:[#allocation5 + $0x16] sm:$0x3]
      %v8592 = vcombine.low %v8584, %v8585
      %v8593 = vcombine.low %v8586, %v8587
      %v8595 = vunpack.c.l.s4 1983009808
      %v8596 = vunpack.c.0.s8 %v8595
      %v8597 = vlaneseq
      %v8598 = vshrl.u32 %v8597, 7
      %v8599 = vsub.s32 %v8596, %v8598
      %v8600 = vrot.slane %v8592, %v8599
      %v8602 = vunpack.c.l.s4 1983009808
      %v8603 = vunpack.c.0.s8 %v8602
      %v8604 = vlaneseq
      %v8605 = vshrl.u32 %v8604, 7
      %v8606 = vsub.s32 %v8603, %v8605
      %v8607 = vrot.slane %v8593, %v8606
      %v8608 = vcombine.low %v8600, %v8607
      %v8610 = vpack.c.bf16 %v8608, %v8608
      %v8612 = vunpack.c.l.b16 %v8610
      %v8613 = vpack.c.b16 %v8612, %v8612
      %8614 = vrot.lane.b32.xlu0 %v8613, 64
      %v8615 = vpop.permute.xlu0 %8614
      %vm8617 = vcmask 781824
      %8618 = vst.msk [vmem:[#allocation10] sm:$0xf] %vm8617, %v8615
      %v8619 = vld [vmem:[%s8515] sm:$0x3]
      %v8620 = vld [vmem:[%s8515 + $0x4] sm:$0x3]
      %v8621 = vld [vmem:[%s8515 + $0x10] sm:$0x3]
      %v8622 = vld [vmem:[%s8515 + $0x14] sm:$0x3]
      %v8627 = vcombine.low %v8619, %v8620
      %v8628 = vcombine.low %v8621, %v8622
      %v8630 = vunpack.c.l.s4 1983009808
      %v8631 = vunpack.c.0.s8 %v8630
      %v8632 = vlaneseq
      %v8633 = vshrl.u32 %v8632, 7
      %v8634 = vsub.s32 %v8631, %v8633
      %v8635 = vrot.slane %v8627, %v8634
      %v8637 = vunpack.c.l.s4 1983009808
      %v8638 = vunpack.c.0.s8 %v8637
      %v8639 = vlaneseq
      %v8640 = vshrl.u32 %v8639, 7
      %v8641 = vsub.s32 %v8638, %v8640
      %v8642 = vrot.slane %v8628, %v8641
      %v8643 = vcombine.low %v8635, %v8642
      %v8645 = vpack.c.bf16 %v8643, %v8643
      %v8647 = vunpack.c.l.b16 %v8645
      %v8648 = vpack.c.b16 %v8647, %v8647
      %8649 = vrot.lane.b32.xlu0 %v8648, 96
      %v8650 = vpop.permute.xlu0 %8649
      %vm8652 = vcmask 1044224
      %8653 = vst.msk [vmem:[#allocation10] sm:$0xf] %vm8652, %v8650
      %v8654 = vld [vmem:[%s8515 + $0x1] sm:$0x3]
      %v8655 = vld [vmem:[%s8515 + $0x5] sm:$0x3]
      %v8656 = vld [vmem:[%s8515 + $0x11] sm:$0x3]
      %v8657 = vld [vmem:[%s8515 + $0x15] sm:$0x3]
      %v8662 = vcombine.low %v8654, %v8655
      %v8663 = vcombine.low %v8656, %v8657
      %v8665 = vunpack.c.l.s4 1983009808
      %v8666 = vunpack.c.0.s8 %v8665
      %v8667 = vlaneseq
      %v8668 = vshrl.u32 %v8667, 7
      %v8669 = vsub.s32 %v8666, %v8668
      %v8670 = vrot.slane %v8662, %v8669
      %v8672 = vunpack.c.l.s4 1983009808
      %v8673 = vunpack.c.0.s8 %v8672
      %v8674 = vlaneseq
      %v8675 = vshrl.u32 %v8674, 7
      %v8676 = vsub.s32 %v8673, %v8675
      %v8677 = vrot.slane %v8663, %v8676
      %v8678 = vcombine.low %v8670, %v8677
      %v8680 = vpack.c.bf16 %v8678, %v8678
      %8681 = vst.msk [vmem:[#allocation10 + $0x4] sm:$0xf] %vm8506, %v8680
      %v8682 = vld [vmem:[%s8515 + $0x2] sm:$0x3]
      %v8683 = vld [vmem:[%s8515 + $0x6] sm:$0x3]
      %v8684 = vld [vmem:[%s8515 + $0x12] sm:$0x3]
      %v8685 = vld [vmem:[%s8515 + $0x16] sm:$0x3]
      %v8690 = vcombine.low %v8682, %v8683
      %v8691 = vcombine.low %v8684, %v8685
      %v8693 = vunpack.c.l.s4 1983009808
      %v8694 = vunpack.c.0.s8 %v8693
      %v8695 = vlaneseq
      %v8696 = vshrl.u32 %v8695, 7
      %v8697 = vsub.s32 %v8694, %v8696
      %v8698 = vrot.slane %v8690, %v8697
      %v8700 = vunpack.c.l.s4 1983009808
      %v8701 = vunpack.c.0.s8 %v8700
      %v8702 = vlaneseq
      %v8703 = vshrl.u32 %v8702, 7
      %v8704 = vsub.s32 %v8701, %v8703
      %v8705 = vrot.slane %v8691, %v8704
      %v8706 = vcombine.low %v8698, %v8705
      %v8708 = vpack.c.bf16 %v8706, %v8706
      %v8710 = vunpack.c.l.b16 %v8708
      %v8711 = vpack.c.b16 %v8710, %v8710
      %8712 = vrot.lane.b32.xlu0 %v8711, 32
      %v8713 = vpop.permute.xlu0 %8712
      %8715 = vst.msk [vmem:[#allocation10 + $0x4] sm:$0xf] %vm8582, %v8713
      %s8716 = scalar_lea.vmem [#allocation5], 8
      %v8717 = vld [vmem:[%s8716] sm:$0x3]
      %v8718 = vld [vmem:[%s8716 + $0x4] sm:$0x3]
      %v8719 = vld [vmem:[%s8716 + $0x10] sm:$0x3]
      %v8720 = vld [vmem:[%s8716 + $0x14] sm:$0x3]
      %v8725 = vcombine.low %v8717, %v8718
      %v8726 = vcombine.low %v8719, %v8720
      %v8728 = vunpack.c.l.s4 1983009808
      %v8729 = vunpack.c.0.s8 %v8728
      %v8730 = vlaneseq
      %v8731 = vshrl.u32 %v8730, 7
      %v8732 = vsub.s32 %v8729, %v8731
      %v8733 = vrot.slane %v8725, %v8732
      %v8735 = vunpack.c.l.s4 1983009808
      %v8736 = vunpack.c.0.s8 %v8735
      %v8737 = vlaneseq
      %v8738 = vshrl.u32 %v8737, 7
      %v8739 = vsub.s32 %v8736, %v8738
      %v8740 = vrot.slane %v8726, %v8739
      %v8741 = vcombine.low %v8733, %v8740
      %v8743 = vpack.c.bf16 %v8741, %v8741
      %v8745 = vunpack.c.l.b16 %v8743
      %v8746 = vpack.c.b16 %v8745, %v8745
      %8747 = vrot.lane.b32.xlu0 %v8746, 64
      %v8748 = vpop.permute.xlu0 %8747
      %8750 = vst.msk [vmem:[#allocation10 + $0x4] sm:$0xf] %vm8617, %v8748
      %v8751 = vld [vmem:[%s8716 + $0x1] sm:$0x3]
      %v8752 = vld [vmem:[%s8716 + $0x5] sm:$0x3]
      %v8753 = vld [vmem:[%s8716 + $0x11] sm:$0x3]
      %v8754 = vld [vmem:[%s8716 + $0x15] sm:$0x3]
      %v8759 = vcombine.low %v8751, %v8752
      %v8760 = vcombine.low %v8753, %v8754
      %v8762 = vunpack.c.l.s4 1983009808
      %v8763 = vunpack.c.0.s8 %v8762
      %v8764 = vlaneseq
      %v8765 = vshrl.u32 %v8764, 7
      %v8766 = vsub.s32 %v8763, %v8765
      %v8767 = vrot.slane %v8759, %v8766
      %v8769 = vunpack.c.l.s4 1983009808
      %v8770 = vunpack.c.0.s8 %v8769
      %v8771 = vlaneseq
      %v8772 = vshrl.u32 %v8771, 7
      %v8773 = vsub.s32 %v8770, %v8772
      %v8774 = vrot.slane %v8760, %v8773
      %v8775 = vcombine.low %v8767, %v8774
      %v8777 = vpack.c.bf16 %v8775, %v8775
      %v8779 = vunpack.c.l.b16 %v8777
      %v8780 = vpack.c.b16 %v8779, %v8779
      %8781 = vrot.lane.b32.xlu0 %v8780, 96
      %v8782 = vpop.permute.xlu0 %8781
      %8784 = vst.msk [vmem:[#allocation10 + $0x4] sm:$0xf] %vm8652, %v8782
      %v8785 = vld [vmem:[%s8716 + $0x2] sm:$0x3]
      %v8786 = vld [vmem:[%s8716 + $0x6] sm:$0x3]
      %v8787 = vld [vmem:[%s8716 + $0x12] sm:$0x3]
      %v8788 = vld [vmem:[%s8716 + $0x16] sm:$0x3]
      %v8793 = vcombine.low %v8785, %v8786
      %v8794 = vcombine.low %v8787, %v8788
      %v8796 = vunpack.c.l.s4 1983009808
      %v8797 = vunpack.c.0.s8 %v8796
      %v8798 = vlaneseq
      %v8799 = vshrl.u32 %v8798, 7
      %v8800 = vsub.s32 %v8797, %v8799
      %v8801 = vrot.slane %v8793, %v8800
      %v8803 = vunpack.c.l.s4 1983009808
      %v8804 = vunpack.c.0.s8 %v8803
      %v8805 = vlaneseq
      %v8806 = vshrl.u32 %v8805, 7
      %v8807 = vsub.s32 %v8804, %v8806
      %v8808 = vrot.slane %v8794, %v8807
      %v8809 = vcombine.low %v8801, %v8808
      %v8811 = vpack.c.bf16 %v8809, %v8809
      %8812 = vst.msk [vmem:[#allocation10 + $0x8] sm:$0xf] %vm8506, %v8811
      %v8813 = vld [vmem:[#allocation10] sm:$0xff]
      %v8814 = vld [vmem:[#allocation10 + $0x8] sm:$0xf]
      %v8815 = vld [vmem:[%s8] sm:$0xf]
      %v8816 = vld [vmem:[%s8 + $0x4] sm:$0xf]
      %v8817 = vld [vmem:[%s8 + $0x8] sm:$0xf]
      %v8818 = vld [vmem:[%s8 + $0xc] sm:$0xf]
      %v8819 = vld [vmem:[%s8 + $0x10] sm:$0xf]
      %v8820 = vld [vmem:[%s8 + $0x14] sm:$0xf]
      %v8821 = vld [vmem:[%s8 + $0x18] sm:$0xf]
      %v8822 = vld [vmem:[%s8 + $0x1c] sm:$0xf]
      %v8823 = vld [vmem:[%s8 + $0x20] sm:$0xf]
      %v8824 = vld [vmem:[%s8 + $0x24] sm:$0xf]
      %v8825 = vld [vmem:[%s8 + $0x28] sm:$0xf]
      %v8826 = vld [vmem:[%s8 + $0x2c] sm:$0xf]
      %v8827 = vld [vmem:[%s8 + $0x30] sm:$0xf]
      %v8828 = vld [vmem:[%s8 + $0x34] sm:$0xf]
      %v8829 = vld [vmem:[%s8 + $0x38] sm:$0xf]
      %v8830 = vld [vmem:[%s8 + $0x3c] sm:$0xf]
      %v8831 = vld [vmem:[%s8 + $0x40] sm:$0xf]
      %v8832 = vld [vmem:[%s8 + $0x44] sm:$0xf]
      %v8833 = vld [vmem:[%s8 + $0x48] sm:$0xf]
      %v8834 = vld [vmem:[%s8 + $0x4c] sm:$0xf]
      %v8835 = vld [vmem:[%s8 + $0x50] sm:$0xf]
      %v8836 = vld [vmem:[%s8 + $0x54] sm:$0xf]
      %v8837 = vld [vmem:[%s8 + $0x58] sm:$0xf]
      %v8838 = vld [vmem:[%s8 + $0x5c] sm:$0xf]
      %v8839 = vld [vmem:[%s8 + $0x60] sm:$0xf]
      %v8840 = vld [vmem:[%s8 + $0x64] sm:$0xf]
      %v8841 = vld [vmem:[%s8 + $0x68] sm:$0xf]
      %v8842 = vld [vmem:[%s8 + $0x6c] sm:$0xf]
      %v8843 = vld [vmem:[%s8 + $0x70] sm:$0xf]
      %v8844 = vld [vmem:[%s8 + $0x74] sm:$0xf]
      %v8845 = vld [vmem:[%s8 + $0x78] sm:$0xf]
      %v8846 = vld [vmem:[%s8 + $0x7c] sm:$0xf]
      %v8847 = vld [vmem:[%s8 + $0x80] sm:$0xf]
      %v8848 = vld [vmem:[%s8 + $0x84] sm:$0xf]
      %v8849 = vld [vmem:[%s8 + $0x88] sm:$0xf]
      %v8850 = vld [vmem:[%s8 + $0x8c] sm:$0xf]
      %v8851 = vld [vmem:[%s9] sm:$0x1]
      %v8853 = vlaneseq
      %v8854 = vshrl.u32 %v8853, 7
      %v8855 = vsub.s32 0, %v8854
      %v8856 = vrot.slane %v8851, %v8855
      %v8860 = vunpack.c.l.b16 %v8813
      %v8861 = vunpack.c.h.b16 %v8813
      %v8862 = vunpack.c.l.b16 %v8814
      %v8863 = vpack.c.b16 %v8860, %v8860
      %v8864 = vpack.c.b16 %v8861, %v8861
      %v8865 = vpack.c.b16 %v8862, %v8862
      %v8904 = vunpack.c.l.b16 %v8815
      %v8905 = vunpack.c.l.b16 %v8816
      %v8906 = vunpack.c.l.b16 %v8817
      %v8907 = vunpack.c.l.b16 %v8818
      %v8908 = vunpack.c.l.b16 %v8819
      %v8909 = vunpack.c.l.b16 %v8820
      %v8910 = vunpack.c.l.b16 %v8821
      %v8911 = vunpack.c.l.b16 %v8822
      %v8912 = vunpack.c.l.b16 %v8823
      %v8913 = vunpack.c.l.b16 %v8824
      %v8914 = vunpack.c.l.b16 %v8825
      %v8915 = vunpack.c.l.b16 %v8826
      %v8916 = vunpack.c.l.b16 %v8827
      %v8917 = vunpack.c.l.b16 %v8828
      %v8918 = vunpack.c.l.b16 %v8829
      %v8919 = vunpack.c.l.b16 %v8830
      %v8920 = vunpack.c.l.b16 %v8831
      %v8921 = vunpack.c.l.b16 %v8832
      %v8922 = vunpack.c.l.b16 %v8833
      %v8923 = vunpack.c.l.b16 %v8834
      %v8924 = vunpack.c.l.b16 %v8835
      %v8925 = vunpack.c.l.b16 %v8836
      %v8926 = vunpack.c.l.b16 %v8837
      %v8927 = vunpack.c.l.b16 %v8838
      %v8928 = vunpack.c.l.b16 %v8839
      %v8929 = vunpack.c.l.b16 %v8840
      %v8930 = vunpack.c.l.b16 %v8841
      %v8931 = vunpack.c.l.b16 %v8842
      %v8932 = vunpack.c.l.b16 %v8843
      %v8933 = vunpack.c.l.b16 %v8844
      %v8934 = vunpack.c.l.b16 %v8845
      %v8935 = vunpack.c.l.b16 %v8846
      %v8936 = vunpack.c.l.b16 %v8847
      %v8937 = vunpack.c.l.b16 %v8848
      %v8938 = vunpack.c.l.b16 %v8849
      %v8939 = vunpack.c.l.b16 %v8850
      %v8940 = vpack.c.b16 %v8905, %v8904
      %v8941 = vpack.c.b16 %v8907, %v8906
      %v8942 = vpack.c.b16 %v8909, %v8908
      %v8943 = vpack.c.b16 %v8911, %v8910
      %v8944 = vpack.c.b16 %v8913, %v8912
      %v8945 = vpack.c.b16 %v8915, %v8914
      %v8946 = vpack.c.b16 %v8917, %v8916
      %v8947 = vpack.c.b16 %v8919, %v8918
      %v8948 = vpack.c.b16 %v8921, %v8920
      %v8949 = vpack.c.b16 %v8923, %v8922
      %v8950 = vpack.c.b16 %v8925, %v8924
      %v8951 = vpack.c.b16 %v8927, %v8926
      %v8952 = vpack.c.b16 %v8929, %v8928
      %v8953 = vpack.c.b16 %v8931, %v8930
      %v8954 = vpack.c.b16 %v8933, %v8932
      %v8955 = vpack.c.b16 %v8935, %v8934
      %v8956 = vpack.c.b16 %v8937, %v8936
      %v8957 = vpack.c.b16 %v8939, %v8938
      %v8977 = vsel %vm8433, %v8865, 0
      %8979 = vmatprep.subr.bf16.mxu0 0
      %8980 = vmatpush1.bf16.msra.mxu0 %v8947
      %8981 = vmatprep.subr.bf16.mxu0 0
      %8982 = vmatpush1.bf16.msra.mxu0 %v8946
      %8983 = vmatprep.subr.bf16.mxu0 0
      %8984 = vmatpush1.bf16.msra.mxu0 %v8945
      %8985 = vmatprep.subr.bf16.mxu0 0
      %8986 = vmatpush1.bf16.msra.mxu0 %v8944
      %8987 = vmatprep.subr.bf16.mxu0 0
      %8988 = vmatpush1.bf16.msra.mxu0 %v8943
      %8989 = vmatprep.subr.bf16.mxu0 0
      %8990 = vmatpush1.bf16.msra.mxu0 %v8942
      %8991 = vmatprep.subr.bf16.mxu0 0
      %8992 = vmatpush1.bf16.msra.mxu0 %v8941
      %8993 = vmatprep.subr.bf16.mxu0 0
      %8994 = vmatpush1.bf16.msra.mxu0 %v8940
      %8995 = vmatprep.subr.bf16.mxu0 0
      %8996 = vmatpush2.bf16.msra.mxu0 %v8955
      %8997 = vmatprep.subr.bf16.mxu0 0
      %8998 = vmatpush2.bf16.msra.mxu0 %v8954
      %8999 = vmatprep.subr.bf16.mxu0 0
      %9000 = vmatpush2.bf16.msra.mxu0 %v8953
      %9001 = vmatprep.subr.bf16.mxu0 0
      %9002 = vmatpush2.bf16.msra.mxu0 %v8952
      %9003 = vmatprep.subr.bf16.mxu0 0
      %9004 = vmatpush2.bf16.msra.mxu0 %v8951
      %9005 = vmatprep.subr.bf16.mxu0 0
      %9006 = vmatpush2.bf16.msra.mxu0 %v8950
      %9007 = vmatprep.subr.bf16.mxu0 0
      %9008 = vmatpush2.bf16.msra.mxu0 %v8949
      %9009 = vmatprep.subr.bf16.mxu0 0
      %9010 = vmatpush2.bf16.msra.mxu0 %v8948
      %9011 = vmatprep.mubr.bf16.mxu0 %v8864
      %9012 = vmatmul.mubr.bf16.gmra.mxu0 %v8863
      %v9013 = vpop.f32.mrf.mxu0
      %v9014 = vadd.f32 %v8856, %v9013
      %v9015 = vpop.f32.mrf.mxu0
      %v9016 = vpop.f32.mrf.mxu0
      %v9017 = vpop.f32.mrf.mxu0
      %9018 = vdwg.mxu0
      %9019 = vmatprep.subr.bf16.mxu0 0
      %9020 = vmatpush1.bf16.msra.mxu0 0
      %9021 = vmatprep.subr.bf16.mxu0 0
      %9022 = vmatpush1.bf16.msra.mxu0 0
      %9023 = vmatprep.subr.bf16.mxu0 0
      %9024 = vmatpush1.bf16.msra.mxu0 0
      %9025 = vmatprep.subr.bf16.mxu0 0
      %9026 = vmatpush1.bf16.msra.mxu0 0
      %9027 = vmatprep.subr.bf16.mxu0 0
      %9028 = vmatpush1.bf16.msra.mxu0 0
      %9029 = vmatprep.subr.bf16.mxu0 0
      %9030 = vmatpush1.bf16.msra.mxu0 0
      %9031 = vmatprep.subr.bf16.mxu0 0
      %9032 = vmatpush1.bf16.msra.mxu0 %v8957
      %9033 = vmatprep.subr.bf16.mxu0 0
      %9034 = vmatpush1.bf16.msra.mxu0 %v8956
      %9035 = vmatprep.subr.bf16.mxu0 0
      %9036 = vmatpush2.bf16.msra.mxu0 0
      %9037 = vmatprep.subr.bf16.mxu0 0
      %9038 = vmatpush2.bf16.msra.mxu0 0
      %9039 = vmatprep.subr.bf16.mxu0 0
      %9040 = vmatpush2.bf16.msra.mxu0 0
      %9041 = vmatprep.subr.bf16.mxu0 0
      %9042 = vmatpush2.bf16.msra.mxu0 0
      %9043 = vmatprep.subr.bf16.mxu0 0
      %9044 = vmatpush2.bf16.msra.mxu0 0
      %9045 = vmatprep.subr.bf16.mxu0 0
      %9046 = vmatpush2.bf16.msra.mxu0 0
      %9047 = vmatprep.subr.bf16.mxu0 0
      %9048 = vmatpush2.bf16.msra.mxu0 0
      %9049 = vmatprep.subr.bf16.mxu0 0
      %9050 = vmatpush2.bf16.msra.mxu0 0
      %9051 = vmatprep.mubr.bf16.mxu0 0
      %9052 = vmatmul.mubr.bf16.gmra.mxu0 %v8977
      %v9053 = vpop.f32.mrf.mxu0
      %v9054 = vadd.f32 %v9014, %v9053
      %v9055 = vpop.f32.mrf.mxu0
      %v9056 = vpop.f32.mrf.mxu0
      %v9057 = vpop.f32.mrf.mxu0
      %9058 = vdwg.mxu0
      %v9059 = vmax.f32 %v9054, 0.0
      %v9061 = vcombine.high %v9059, %v9059
      %v9063 = vsub.f32 %v9059, %v9061
      %v9064 = vand.u32 2147483647, %v9063
      %v9065 = vsel %vm8506, %v9064, 0.0
      %9066 = vadd.xlane.f32.xlu0 %v9065
      %v9067 = vpop.xlane.xlu0 %9066
      %v9068 = vrot.slane %v9067, 4
      %v9069 = vadd.f32 %v9067, %v9068
      %v9070 = vrot.slane %v9069, 2
      %v9071 = vadd.f32 %v9069, %v9070
      %v9072 = vrot.slane %v9071, 1
      %v9073 = vadd.f32 %v9071, %v9072
      %s9074 = vtos %v9073
      %s9075 = smul.f32 %s9074, 0.0009765625
      %s9076 = sadd.f32 %s8447, %s9075
      %9077 = vst.msk [vmem:[#allocation12] sm:$0xff] %vm8433, %v9059
      %v9078 = vld [vmem:[#allocation12] ss:$2 sm:$0xf]
      %v9079 = vld [vmem:[%s6130] ss:$2 sm:$0xf]
      %v9080 = vmax.f32 %v9078, %v9079
      %v9083 = vunpack.c.l.s4 1966171168
      %v9084 = vunpack.c.0.s8 %v9083
      %v9085 = vlaneseq
      %v9086 = vshrl.u32 %v9085, 7
      %v9087 = vsub.s32 %v9084, %v9086
      %v9088 = vrot.slane %v9080, %v9087
      %v9089 = vcombine.high %v9088, %v9088
      %v9091 = vunpack.c.l.s4 1966171168
      %v9092 = vunpack.c.0.s8 %v9091
      %v9093 = vlaneseq
      %v9094 = vshrl.u32 %v9093, 7
      %v9095 = vsub.s32 %v9092, %v9094
      %v9096 = vrot.slane %v9088, %v9095
      %v9098 = vunpack.c.l.s4 1966171168
      %v9099 = vunpack.c.0.s8 %v9098
      %v9100 = vlaneseq
      %v9101 = vshrl.u32 %v9100, 7
      %v9102 = vsub.s32 %v9099, %v9101
      %v9103 = vrot.slane %v9089, %v9102
      %v9104 = vcombine.high %v9096, %v9096
      %v9105 = vcombine.high %v9103, %v9103
      %v9110 = vmax.f32 %v9096, %v9103
      %v9111 = vmax.f32 %v9104, %v9105
      %vm9112 = vcmask 256000
      %9113 = vst.msk [vmem:[#allocation6] sm:$0x7] %vm9112, 0.0
      %9114 = vst.msk [vmem:[#allocation6 + $0x4] sm:$0x7] %vm9112, 0.0
      %9115 = vst.msk [vmem:[#allocation6 + $0x8] sm:$0x7] %vm9112, 0.0
      %9116 = vst.msk [vmem:[#allocation6 + $0xc] sm:$0x7] %vm9112, 0.0
      %9117 = vst.msk [vmem:[#allocation6 + $0x10] sm:$0x7] %vm9112, 0.0
      %9118 = vst.msk [vmem:[#allocation6 + $0x14] sm:$0x7] %vm9112, 0.0
      %s9119 = scalar_lea.vmem [#allocation6], 4
      %vm9120 = vcmask 253952
      %9121 = vst.msk [vmem:[%s9119 + $0x1] sm:$0x1] %vm9120, %v9110
      %9122 = vst.msk [vmem:[%s9119 + $0xd] sm:$0x1] %vm9120, %v9111
      %v9123 = vld [vmem:[#allocation6] sm:$0x1]
      %v9124 = vld [vmem:[#allocation6 + $0xc] sm:$0x1]
      %v9125 = vpack.c.bf16 %v9123, %v9123
      %v9126 = vpack.c.bf16 %v9124, %v9124
      %v9130 = vunpack.c.l.s4 1966171168
      %v9131 = vunpack.c.0.s8 %v9130
      %v9132 = vlaneseq
      %v9133 = vshrl.u32 %v9132, 7
      %v9134 = vsub.s32 %v9131, %v9133
      %v9135 = vrot.slane %v9125, %v9134
      %v9137 = vunpack.c.l.s4 1966171168
      %v9138 = vunpack.c.0.s8 %v9137
      %v9139 = vlaneseq
      %v9140 = vshrl.u32 %v9139, 7
      %v9141 = vsub.s32 %v9138, %v9140
      %v9142 = vrot.slane %v9135, %v9141
      %v9144 = vunpack.c.l.s4 1966171168
      %v9145 = vunpack.c.0.s8 %v9144
      %v9146 = vlaneseq
      %v9147 = vshrl.u32 %v9146, 7
      %v9148 = vsub.s32 %v9145, %v9147
      %v9149 = vrot.slane %v9126, %v9148
      %v9151 = vunpack.c.l.s4 1966171168
      %v9152 = vunpack.c.0.s8 %v9151
      %v9153 = vlaneseq
      %v9154 = vshrl.u32 %v9153, 7
      %v9155 = vsub.s32 %v9152, %v9154
      %v9156 = vrot.slane %v9149, %v9155
      %v9158 = vunpack.c.l.s4 1935823168
      %v9159 = vunpack.c.0.s8 %v9158
      %v9160 = vlaneseq
      %v9161 = vshrl.u32 %v9160, 7
      %v9162 = vsub.s32 %v9159, %v9161
      %v9163 = vrot.slane %v9142, %v9162
      %v9165 = vunpack.c.l.s4 1935823168
      %v9166 = vunpack.c.0.s8 %v9165
      %v9167 = vlaneseq
      %v9168 = vshrl.u32 %v9167, 7
      %v9169 = vsub.s32 %v9166, %v9168
      %v9170 = vrot.slane %v9163, %v9169
      %v9172 = vunpack.c.l.s4 1935823168
      %v9173 = vunpack.c.0.s8 %v9172
      %v9174 = vlaneseq
      %v9175 = vshrl.u32 %v9174, 7
      %v9176 = vsub.s32 %v9173, %v9175
      %v9177 = vrot.slane %v9156, %v9176
      %v9179 = vunpack.c.l.s4 1935823168
      %v9180 = vunpack.c.0.s8 %v9179
      %v9181 = vlaneseq
      %v9182 = vshrl.u32 %v9181, 7
      %v9183 = vsub.s32 %v9180, %v9182
      %v9184 = vrot.slane %v9177, %v9183
      %v9185 = vunpack.c.l.b16 %v9170
      %v9186 = vunpack.c.l.b16 %v9184
      %v9187 = vrot.slane %v9186, 7
      %vm9188 = vcmask 1041409
      %v9189 = vsel %vm9188, %v9187, %v9185
      %v9190 = vpack.c.b16 %v9189, %v9189
      %v9192 = vunpack.c.l.s4 1966171168
      %v9193 = vunpack.c.0.s8 %v9192
      %v9194 = vlaneseq
      %v9195 = vshrl.u32 %v9194, 7
      %v9196 = vsub.s32 %v9193, %v9195
      %v9197 = vrot.slane %v9190, %v9196
      %v9199 = vunpack.c.l.s4 1966171168
      %v9200 = vunpack.c.0.s8 %v9199
      %v9201 = vlaneseq
      %v9202 = vshrl.u32 %v9201, 7
      %v9203 = vsub.s32 %v9200, %v9202
      %v9204 = vrot.slane %v9197, %v9203
      %9206 = vst.msk [vmem:[#allocation11] sm:$0x1] %vm9120, %v9204
      %v9207 = vld [vmem:[#allocation6 + $0x1] sm:$0x1]
      %v9208 = vld [vmem:[#allocation6 + $0xd] sm:$0x1]
      %v9209 = vpack.c.bf16 %v9207, %v9207
      %v9210 = vpack.c.bf16 %v9208, %v9208
      %v9214 = vunpack.c.l.s4 1966171168
      %v9215 = vunpack.c.0.s8 %v9214
      %v9216 = vlaneseq
      %v9217 = vshrl.u32 %v9216, 7
      %v9218 = vsub.s32 %v9215, %v9217
      %v9219 = vrot.slane %v9209, %v9218
      %v9221 = vunpack.c.l.s4 1966171168
      %v9222 = vunpack.c.0.s8 %v9221
      %v9223 = vlaneseq
      %v9224 = vshrl.u32 %v9223, 7
      %v9225 = vsub.s32 %v9222, %v9224
      %v9226 = vrot.slane %v9219, %v9225
      %v9228 = vunpack.c.l.s4 1966171168
      %v9229 = vunpack.c.0.s8 %v9228
      %v9230 = vlaneseq
      %v9231 = vshrl.u32 %v9230, 7
      %v9232 = vsub.s32 %v9229, %v9231
      %v9233 = vrot.slane %v9210, %v9232
      %v9235 = vunpack.c.l.s4 1966171168
      %v9236 = vunpack.c.0.s8 %v9235
      %v9237 = vlaneseq
      %v9238 = vshrl.u32 %v9237, 7
      %v9239 = vsub.s32 %v9236, %v9238
      %v9240 = vrot.slane %v9233, %v9239
      %v9242 = vunpack.c.l.s4 1935823168
      %v9243 = vunpack.c.0.s8 %v9242
      %v9244 = vlaneseq
      %v9245 = vshrl.u32 %v9244, 7
      %v9246 = vsub.s32 %v9243, %v9245
      %v9247 = vrot.slane %v9226, %v9246
      %v9249 = vunpack.c.l.s4 1935823168
      %v9250 = vunpack.c.0.s8 %v9249
      %v9251 = vlaneseq
      %v9252 = vshrl.u32 %v9251, 7
      %v9253 = vsub.s32 %v9250, %v9252
      %v9254 = vrot.slane %v9247, %v9253
      %v9256 = vunpack.c.l.s4 1935823168
      %v9257 = vunpack.c.0.s8 %v9256
      %v9258 = vlaneseq
      %v9259 = vshrl.u32 %v9258, 7
      %v9260 = vsub.s32 %v9257, %v9259
      %v9261 = vrot.slane %v9240, %v9260
      %v9263 = vunpack.c.l.s4 1935823168
      %v9264 = vunpack.c.0.s8 %v9263
      %v9265 = vlaneseq
      %v9266 = vshrl.u32 %v9265, 7
      %v9267 = vsub.s32 %v9264, %v9266
      %v9268 = vrot.slane %v9261, %v9267
      %v9269 = vunpack.c.l.b16 %v9254
      %v9270 = vunpack.c.l.b16 %v9268
      %v9271 = vrot.slane %v9270, 7
      %v9272 = vsel %vm9188, %v9271, %v9269
      %v9273 = vpack.c.b16 %v9272, %v9272
      %v9275 = vunpack.c.l.s4 1966171168
      %v9276 = vunpack.c.0.s8 %v9275
      %v9277 = vlaneseq
      %v9278 = vshrl.u32 %v9277, 7
      %v9279 = vsub.s32 %v9276, %v9278
      %v9280 = vrot.slane %v9273, %v9279
      %v9282 = vunpack.c.l.s4 1966171168
      %v9283 = vunpack.c.0.s8 %v9282
      %v9284 = vlaneseq
      %v9285 = vshrl.u32 %v9284, 7
      %v9286 = vsub.s32 %v9283, %v9285
      %v9287 = vrot.slane %v9280, %v9286
      %9288 = vrot.lane.b32.xlu0 %v9287, 32
      %v9289 = vpop.permute.xlu0 %9288
      %vm9291 = vcmask 516352
      %9292 = vst.msk [vmem:[#allocation11] sm:$0x1] %vm9291, %v9289
      %v9293 = vld [vmem:[#allocation6 + $0x2] sm:$0x1]
      %v9294 = vld [vmem:[#allocation6 + $0xe] sm:$0x1]
      %v9295 = vpack.c.bf16 %v9293, %v9293
      %v9296 = vpack.c.bf16 %v9294, %v9294
      %v9300 = vunpack.c.l.s4 1966171168
      %v9301 = vunpack.c.0.s8 %v9300
      %v9302 = vlaneseq
      %v9303 = vshrl.u32 %v9302, 7
      %v9304 = vsub.s32 %v9301, %v9303
      %v9305 = vrot.slane %v9295, %v9304
      %v9307 = vunpack.c.l.s4 1966171168
      %v9308 = vunpack.c.0.s8 %v9307
      %v9309 = vlaneseq
      %v9310 = vshrl.u32 %v9309, 7
      %v9311 = vsub.s32 %v9308, %v9310
      %v9312 = vrot.slane %v9305, %v9311
      %v9314 = vunpack.c.l.s4 1966171168
      %v9315 = vunpack.c.0.s8 %v9314
      %v9316 = vlaneseq
      %v9317 = vshrl.u32 %v9316, 7
      %v9318 = vsub.s32 %v9315, %v9317
      %v9319 = vrot.slane %v9296, %v9318
      %v9321 = vunpack.c.l.s4 1966171168
      %v9322 = vunpack.c.0.s8 %v9321
      %v9323 = vlaneseq
      %v9324 = vshrl.u32 %v9323, 7
      %v9325 = vsub.s32 %v9322, %v9324
      %v9326 = vrot.slane %v9319, %v9325
      %v9328 = vunpack.c.l.s4 1935823168
      %v9329 = vunpack.c.0.s8 %v9328
      %v9330 = vlaneseq
      %v9331 = vshrl.u32 %v9330, 7
      %v9332 = vsub.s32 %v9329, %v9331
      %v9333 = vrot.slane %v9312, %v9332
      %v9335 = vunpack.c.l.s4 1935823168
      %v9336 = vunpack.c.0.s8 %v9335
      %v9337 = vlaneseq
      %v9338 = vshrl.u32 %v9337, 7
      %v9339 = vsub.s32 %v9336, %v9338
      %v9340 = vrot.slane %v9333, %v9339
      %v9342 = vunpack.c.l.s4 1935823168
      %v9343 = vunpack.c.0.s8 %v9342
      %v9344 = vlaneseq
      %v9345 = vshrl.u32 %v9344, 7
      %v9346 = vsub.s32 %v9343, %v9345
      %v9347 = vrot.slane %v9326, %v9346
      %v9349 = vunpack.c.l.s4 1935823168
      %v9350 = vunpack.c.0.s8 %v9349
      %v9351 = vlaneseq
      %v9352 = vshrl.u32 %v9351, 7
      %v9353 = vsub.s32 %v9350, %v9352
      %v9354 = vrot.slane %v9347, %v9353
      %v9355 = vunpack.c.l.b16 %v9340
      %v9356 = vunpack.c.l.b16 %v9354
      %v9357 = vrot.slane %v9356, 7
      %v9358 = vsel %vm9188, %v9357, %v9355
      %v9359 = vpack.c.b16 %v9358, %v9358
      %v9361 = vunpack.c.l.s4 1966171168
      %v9362 = vunpack.c.0.s8 %v9361
      %v9363 = vlaneseq
      %v9364 = vshrl.u32 %v9363, 7
      %v9365 = vsub.s32 %v9362, %v9364
      %v9366 = vrot.slane %v9359, %v9365
      %v9368 = vunpack.c.l.s4 1966171168
      %v9369 = vunpack.c.0.s8 %v9368
      %v9370 = vlaneseq
      %v9371 = vshrl.u32 %v9370, 7
      %v9372 = vsub.s32 %v9369, %v9371
      %v9373 = vrot.slane %v9366, %v9372
      %9374 = vrot.lane.b32.xlu0 %v9373, 64
      %v9375 = vpop.permute.xlu0 %9374
      %vm9377 = vcmask 778752
      %9378 = vst.msk [vmem:[#allocation11] sm:$0x1] %vm9377, %v9375
      %v9379 = vld [vmem:[%s9119] sm:$0x1]
      %v9380 = vld [vmem:[%s9119 + $0xc] sm:$0x1]
      %v9381 = vpack.c.bf16 %v9379, %v9379
      %v9382 = vpack.c.bf16 %v9380, %v9380
      %v9386 = vunpack.c.l.s4 1966171168
      %v9387 = vunpack.c.0.s8 %v9386
      %v9388 = vlaneseq
      %v9389 = vshrl.u32 %v9388, 7
      %v9390 = vsub.s32 %v9387, %v9389
      %v9391 = vrot.slane %v9381, %v9390
      %v9393 = vunpack.c.l.s4 1966171168
      %v9394 = vunpack.c.0.s8 %v9393
      %v9395 = vlaneseq
      %v9396 = vshrl.u32 %v9395, 7
      %v9397 = vsub.s32 %v9394, %v9396
      %v9398 = vrot.slane %v9391, %v9397
      %v9400 = vunpack.c.l.s4 1966171168
      %v9401 = vunpack.c.0.s8 %v9400
      %v9402 = vlaneseq
      %v9403 = vshrl.u32 %v9402, 7
      %v9404 = vsub.s32 %v9401, %v9403
      %v9405 = vrot.slane %v9382, %v9404
      %v9407 = vunpack.c.l.s4 1966171168
      %v9408 = vunpack.c.0.s8 %v9407
      %v9409 = vlaneseq
      %v9410 = vshrl.u32 %v9409, 7
      %v9411 = vsub.s32 %v9408, %v9410
      %v9412 = vrot.slane %v9405, %v9411
      %v9414 = vunpack.c.l.s4 1935823168
      %v9415 = vunpack.c.0.s8 %v9414
      %v9416 = vlaneseq
      %v9417 = vshrl.u32 %v9416, 7
      %v9418 = vsub.s32 %v9415, %v9417
      %v9419 = vrot.slane %v9398, %v9418
      %v9421 = vunpack.c.l.s4 1935823168
      %v9422 = vunpack.c.0.s8 %v9421
      %v9423 = vlaneseq
      %v9424 = vshrl.u32 %v9423, 7
      %v9425 = vsub.s32 %v9422, %v9424
      %v9426 = vrot.slane %v9419, %v9425
      %v9428 = vunpack.c.l.s4 1935823168
      %v9429 = vunpack.c.0.s8 %v9428
      %v9430 = vlaneseq
      %v9431 = vshrl.u32 %v9430, 7
      %v9432 = vsub.s32 %v9429, %v9431
      %v9433 = vrot.slane %v9412, %v9432
      %v9435 = vunpack.c.l.s4 1935823168
      %v9436 = vunpack.c.0.s8 %v9435
      %v9437 = vlaneseq
      %v9438 = vshrl.u32 %v9437, 7
      %v9439 = vsub.s32 %v9436, %v9438
      %v9440 = vrot.slane %v9433, %v9439
      %v9441 = vunpack.c.l.b16 %v9426
      %v9442 = vunpack.c.l.b16 %v9440
      %v9443 = vrot.slane %v9442, 7
      %v9444 = vsel %vm9188, %v9443, %v9441
      %v9445 = vpack.c.b16 %v9444, %v9444
      %v9447 = vunpack.c.l.s4 1966171168
      %v9448 = vunpack.c.0.s8 %v9447
      %v9449 = vlaneseq
      %v9450 = vshrl.u32 %v9449, 7
      %v9451 = vsub.s32 %v9448, %v9450
      %v9452 = vrot.slane %v9445, %v9451
      %v9454 = vunpack.c.l.s4 1966171168
      %v9455 = vunpack.c.0.s8 %v9454
      %v9456 = vlaneseq
      %v9457 = vshrl.u32 %v9456, 7
      %v9458 = vsub.s32 %v9455, %v9457
      %v9459 = vrot.slane %v9452, %v9458
      %9460 = vrot.lane.b32.xlu0 %v9459, 96
      %v9461 = vpop.permute.xlu0 %9460
      %vm9463 = vcmask 1041152
      %9464 = vst.msk [vmem:[#allocation11] sm:$0x1] %vm9463, %v9461
      %v9465 = vld [vmem:[%s9119 + $0x1] sm:$0x1]
      %v9466 = vld [vmem:[%s9119 + $0xd] sm:$0x1]
      %v9467 = vpack.c.bf16 %v9465, %v9465
      %v9468 = vpack.c.bf16 %v9466, %v9466
      %v9472 = vunpack.c.l.s4 1966171168
      %v9473 = vunpack.c.0.s8 %v9472
      %v9474 = vlaneseq
      %v9475 = vshrl.u32 %v9474, 7
      %v9476 = vsub.s32 %v9473, %v9475
      %v9477 = vrot.slane %v9467, %v9476
      %v9479 = vunpack.c.l.s4 1966171168
      %v9480 = vunpack.c.0.s8 %v9479
      %v9481 = vlaneseq
      %v9482 = vshrl.u32 %v9481, 7
      %v9483 = vsub.s32 %v9480, %v9482
      %v9484 = vrot.slane %v9477, %v9483
      %v9486 = vunpack.c.l.s4 1966171168
      %v9487 = vunpack.c.0.s8 %v9486
      %v9488 = vlaneseq
      %v9489 = vshrl.u32 %v9488, 7
      %v9490 = vsub.s32 %v9487, %v9489
      %v9491 = vrot.slane %v9468, %v9490
      %v9493 = vunpack.c.l.s4 1966171168
      %v9494 = vunpack.c.0.s8 %v9493
      %v9495 = vlaneseq
      %v9496 = vshrl.u32 %v9495, 7
      %v9497 = vsub.s32 %v9494, %v9496
      %v9498 = vrot.slane %v9491, %v9497
      %v9500 = vunpack.c.l.s4 1935823168
      %v9501 = vunpack.c.0.s8 %v9500
      %v9502 = vlaneseq
      %v9503 = vshrl.u32 %v9502, 7
      %v9504 = vsub.s32 %v9501, %v9503
      %v9505 = vrot.slane %v9484, %v9504
      %v9507 = vunpack.c.l.s4 1935823168
      %v9508 = vunpack.c.0.s8 %v9507
      %v9509 = vlaneseq
      %v9510 = vshrl.u32 %v9509, 7
      %v9511 = vsub.s32 %v9508, %v9510
      %v9512 = vrot.slane %v9505, %v9511
      %v9514 = vunpack.c.l.s4 1935823168
      %v9515 = vunpack.c.0.s8 %v9514
      %v9516 = vlaneseq
      %v9517 = vshrl.u32 %v9516, 7
      %v9518 = vsub.s32 %v9515, %v9517
      %v9519 = vrot.slane %v9498, %v9518
      %v9521 = vunpack.c.l.s4 1935823168
      %v9522 = vunpack.c.0.s8 %v9521
      %v9523 = vlaneseq
      %v9524 = vshrl.u32 %v9523, 7
      %v9525 = vsub.s32 %v9522, %v9524
      %v9526 = vrot.slane %v9519, %v9525
      %v9527 = vunpack.c.l.b16 %v9512
      %v9528 = vunpack.c.l.b16 %v9526
      %v9529 = vrot.slane %v9528, 7
      %v9530 = vsel %vm9188, %v9529, %v9527
      %v9531 = vpack.c.b16 %v9530, %v9530
      %v9533 = vunpack.c.l.s4 1966171168
      %v9534 = vunpack.c.0.s8 %v9533
      %v9535 = vlaneseq
      %v9536 = vshrl.u32 %v9535, 7
      %v9537 = vsub.s32 %v9534, %v9536
      %v9538 = vrot.slane %v9531, %v9537
      %v9540 = vunpack.c.l.s4 1966171168
      %v9541 = vunpack.c.0.s8 %v9540
      %v9542 = vlaneseq
      %v9543 = vshrl.u32 %v9542, 7
      %v9544 = vsub.s32 %v9541, %v9543
      %v9545 = vrot.slane %v9538, %v9544
      %9547 = vst.msk [vmem:[#allocation11 + $0x1] sm:$0x1] %vm9120, %v9545
      %v9548 = vld [vmem:[%s9119 + $0x2] sm:$0x1]
      %v9549 = vld [vmem:[%s9119 + $0xe] sm:$0x1]
      %v9550 = vpack.c.bf16 %v9548, %v9548
      %v9551 = vpack.c.bf16 %v9549, %v9549
      %v9555 = vunpack.c.l.s4 1966171168
      %v9556 = vunpack.c.0.s8 %v9555
      %v9557 = vlaneseq
      %v9558 = vshrl.u32 %v9557, 7
      %v9559 = vsub.s32 %v9556, %v9558
      %v9560 = vrot.slane %v9550, %v9559
      %v9562 = vunpack.c.l.s4 1966171168
      %v9563 = vunpack.c.0.s8 %v9562
      %v9564 = vlaneseq
      %v9565 = vshrl.u32 %v9564, 7
      %v9566 = vsub.s32 %v9563, %v9565
      %v9567 = vrot.slane %v9560, %v9566
      %v9569 = vunpack.c.l.s4 1966171168
      %v9570 = vunpack.c.0.s8 %v9569
      %v9571 = vlaneseq
      %v9572 = vshrl.u32 %v9571, 7
      %v9573 = vsub.s32 %v9570, %v9572
      %v9574 = vrot.slane %v9551, %v9573
      %v9576 = vunpack.c.l.s4 1966171168
      %v9577 = vunpack.c.0.s8 %v9576
      %v9578 = vlaneseq
      %v9579 = vshrl.u32 %v9578, 7
      %v9580 = vsub.s32 %v9577, %v9579
      %v9581 = vrot.slane %v9574, %v9580
      %v9583 = vunpack.c.l.s4 1935823168
      %v9584 = vunpack.c.0.s8 %v9583
      %v9585 = vlaneseq
      %v9586 = vshrl.u32 %v9585, 7
      %v9587 = vsub.s32 %v9584, %v9586
      %v9588 = vrot.slane %v9567, %v9587
      %v9590 = vunpack.c.l.s4 1935823168
      %v9591 = vunpack.c.0.s8 %v9590
      %v9592 = vlaneseq
      %v9593 = vshrl.u32 %v9592, 7
      %v9594 = vsub.s32 %v9591, %v9593
      %v9595 = vrot.slane %v9588, %v9594
      %v9597 = vunpack.c.l.s4 1935823168
      %v9598 = vunpack.c.0.s8 %v9597
      %v9599 = vlaneseq
      %v9600 = vshrl.u32 %v9599, 7
      %v9601 = vsub.s32 %v9598, %v9600
      %v9602 = vrot.slane %v9581, %v9601
      %v9604 = vunpack.c.l.s4 1935823168
      %v9605 = vunpack.c.0.s8 %v9604
      %v9606 = vlaneseq
      %v9607 = vshrl.u32 %v9606, 7
      %v9608 = vsub.s32 %v9605, %v9607
      %v9609 = vrot.slane %v9602, %v9608
      %v9610 = vunpack.c.l.b16 %v9595
      %v9611 = vunpack.c.l.b16 %v9609
      %v9612 = vrot.slane %v9611, 7
      %v9613 = vsel %vm9188, %v9612, %v9610
      %v9614 = vpack.c.b16 %v9613, %v9613
      %v9616 = vunpack.c.l.s4 1966171168
      %v9617 = vunpack.c.0.s8 %v9616
      %v9618 = vlaneseq
      %v9619 = vshrl.u32 %v9618, 7
      %v9620 = vsub.s32 %v9617, %v9619
      %v9621 = vrot.slane %v9614, %v9620
      %v9623 = vunpack.c.l.s4 1966171168
      %v9624 = vunpack.c.0.s8 %v9623
      %v9625 = vlaneseq
      %v9626 = vshrl.u32 %v9625, 7
      %v9627 = vsub.s32 %v9624, %v9626
      %v9628 = vrot.slane %v9621, %v9627
      %9629 = vrot.lane.b32.xlu0 %v9628, 32
      %v9630 = vpop.permute.xlu0 %9629
      %9632 = vst.msk [vmem:[#allocation11 + $0x1] sm:$0x1] %vm9291, %v9630
      %s9633 = scalar_lea.vmem [#allocation6], 8
      %v9634 = vld [vmem:[%s9633] sm:$0x1]
      %v9635 = vld [vmem:[%s9633 + $0xc] sm:$0x1]
      %v9636 = vpack.c.bf16 %v9634, %v9634
      %v9637 = vpack.c.bf16 %v9635, %v9635
      %v9641 = vunpack.c.l.s4 1966171168
      %v9642 = vunpack.c.0.s8 %v9641
      %v9643 = vlaneseq
      %v9644 = vshrl.u32 %v9643, 7
      %v9645 = vsub.s32 %v9642, %v9644
      %v9646 = vrot.slane %v9636, %v9645
      %v9648 = vunpack.c.l.s4 1966171168
      %v9649 = vunpack.c.0.s8 %v9648
      %v9650 = vlaneseq
      %v9651 = vshrl.u32 %v9650, 7
      %v9652 = vsub.s32 %v9649, %v9651
      %v9653 = vrot.slane %v9646, %v9652
      %v9655 = vunpack.c.l.s4 1966171168
      %v9656 = vunpack.c.0.s8 %v9655
      %v9657 = vlaneseq
      %v9658 = vshrl.u32 %v9657, 7
      %v9659 = vsub.s32 %v9656, %v9658
      %v9660 = vrot.slane %v9637, %v9659
      %v9662 = vunpack.c.l.s4 1966171168
      %v9663 = vunpack.c.0.s8 %v9662
      %v9664 = vlaneseq
      %v9665 = vshrl.u32 %v9664, 7
      %v9666 = vsub.s32 %v9663, %v9665
      %v9667 = vrot.slane %v9660, %v9666
      %v9669 = vunpack.c.l.s4 1935823168
      %v9670 = vunpack.c.0.s8 %v9669
      %v9671 = vlaneseq
      %v9672 = vshrl.u32 %v9671, 7
      %v9673 = vsub.s32 %v9670, %v9672
      %v9674 = vrot.slane %v9653, %v9673
      %v9676 = vunpack.c.l.s4 1935823168
      %v9677 = vunpack.c.0.s8 %v9676
      %v9678 = vlaneseq
      %v9679 = vshrl.u32 %v9678, 7
      %v9680 = vsub.s32 %v9677, %v9679
      %v9681 = vrot.slane %v9674, %v9680
      %v9683 = vunpack.c.l.s4 1935823168
      %v9684 = vunpack.c.0.s8 %v9683
      %v9685 = vlaneseq
      %v9686 = vshrl.u32 %v9685, 7
      %v9687 = vsub.s32 %v9684, %v9686
      %v9688 = vrot.slane %v9667, %v9687
      %v9690 = vunpack.c.l.s4 1935823168
      %v9691 = vunpack.c.0.s8 %v9690
      %v9692 = vlaneseq
      %v9693 = vshrl.u32 %v9692, 7
      %v9694 = vsub.s32 %v9691, %v9693
      %v9695 = vrot.slane %v9688, %v9694
      %v9696 = vunpack.c.l.b16 %v9681
      %v9697 = vunpack.c.l.b16 %v9695
      %v9698 = vrot.slane %v9697, 7
      %v9699 = vsel %vm9188, %v9698, %v9696
      %v9700 = vpack.c.b16 %v9699, %v9699
      %v9702 = vunpack.c.l.s4 1966171168
      %v9703 = vunpack.c.0.s8 %v9702
      %v9704 = vlaneseq
      %v9705 = vshrl.u32 %v9704, 7
      %v9706 = vsub.s32 %v9703, %v9705
      %v9707 = vrot.slane %v9700, %v9706
      %v9709 = vunpack.c.l.s4 1966171168
      %v9710 = vunpack.c.0.s8 %v9709
      %v9711 = vlaneseq
      %v9712 = vshrl.u32 %v9711, 7
      %v9713 = vsub.s32 %v9710, %v9712
      %v9714 = vrot.slane %v9707, %v9713
      %9715 = vrot.lane.b32.xlu0 %v9714, 64
      %v9716 = vpop.permute.xlu0 %9715
      %9718 = vst.msk [vmem:[#allocation11 + $0x1] sm:$0x1] %vm9377, %v9716
      %v9719 = vld [vmem:[%s9633 + $0x1] sm:$0x1]
      %v9720 = vld [vmem:[%s9633 + $0xd] sm:$0x1]
      %v9721 = vpack.c.bf16 %v9719, %v9719
      %v9722 = vpack.c.bf16 %v9720, %v9720
      %v9726 = vunpack.c.l.s4 1966171168
      %v9727 = vunpack.c.0.s8 %v9726
      %v9728 = vlaneseq
      %v9729 = vshrl.u32 %v9728, 7
      %v9730 = vsub.s32 %v9727, %v9729
      %v9731 = vrot.slane %v9721, %v9730
      %v9733 = vunpack.c.l.s4 1966171168
      %v9734 = vunpack.c.0.s8 %v9733
      %v9735 = vlaneseq
      %v9736 = vshrl.u32 %v9735, 7
      %v9737 = vsub.s32 %v9734, %v9736
      %v9738 = vrot.slane %v9731, %v9737
      %v9740 = vunpack.c.l.s4 1966171168
      %v9741 = vunpack.c.0.s8 %v9740
      %v9742 = vlaneseq
      %v9743 = vshrl.u32 %v9742, 7
      %v9744 = vsub.s32 %v9741, %v9743
      %v9745 = vrot.slane %v9722, %v9744
      %v9747 = vunpack.c.l.s4 1966171168
      %v9748 = vunpack.c.0.s8 %v9747
      %v9749 = vlaneseq
      %v9750 = vshrl.u32 %v9749, 7
      %v9751 = vsub.s32 %v9748, %v9750
      %v9752 = vrot.slane %v9745, %v9751
      %v9754 = vunpack.c.l.s4 1935823168
      %v9755 = vunpack.c.0.s8 %v9754
      %v9756 = vlaneseq
      %v9757 = vshrl.u32 %v9756, 7
      %v9758 = vsub.s32 %v9755, %v9757
      %v9759 = vrot.slane %v9738, %v9758
      %v9761 = vunpack.c.l.s4 1935823168
      %v9762 = vunpack.c.0.s8 %v9761
      %v9763 = vlaneseq
      %v9764 = vshrl.u32 %v9763, 7
      %v9765 = vsub.s32 %v9762, %v9764
      %v9766 = vrot.slane %v9759, %v9765
      %v9768 = vunpack.c.l.s4 1935823168
      %v9769 = vunpack.c.0.s8 %v9768
      %v9770 = vlaneseq
      %v9771 = vshrl.u32 %v9770, 7
      %v9772 = vsub.s32 %v9769, %v9771
      %v9773 = vrot.slane %v9752, %v9772
      %v9775 = vunpack.c.l.s4 1935823168
      %v9776 = vunpack.c.0.s8 %v9775
      %v9777 = vlaneseq
      %v9778 = vshrl.u32 %v9777, 7
      %v9779 = vsub.s32 %v9776, %v9778
      %v9780 = vrot.slane %v9773, %v9779
      %v9781 = vunpack.c.l.b16 %v9766
      %v9782 = vunpack.c.l.b16 %v9780
      %v9783 = vrot.slane %v9782, 7
      %v9784 = vsel %vm9188, %v9783, %v9781
      %v9785 = vpack.c.b16 %v9784, %v9784
      %v9787 = vunpack.c.l.s4 1966171168
      %v9788 = vunpack.c.0.s8 %v9787
      %v9789 = vlaneseq
      %v9790 = vshrl.u32 %v9789, 7
      %v9791 = vsub.s32 %v9788, %v9790
      %v9792 = vrot.slane %v9785, %v9791
      %v9794 = vunpack.c.l.s4 1966171168
      %v9795 = vunpack.c.0.s8 %v9794
      %v9796 = vlaneseq
      %v9797 = vshrl.u32 %v9796, 7
      %v9798 = vsub.s32 %v9795, %v9797
      %v9799 = vrot.slane %v9792, %v9798
      %9800 = vrot.lane.b32.xlu0 %v9799, 96
      %v9801 = vpop.permute.xlu0 %9800
      %9803 = vst.msk [vmem:[#allocation11 + $0x1] sm:$0x1] %vm9463, %v9801
      %v9804 = vld [vmem:[%s9633 + $0x2] sm:$0x1]
      %v9805 = vld [vmem:[%s9633 + $0xe] sm:$0x1]
      %v9806 = vpack.c.bf16 %v9804, %v9804
      %v9807 = vpack.c.bf16 %v9805, %v9805
      %v9811 = vunpack.c.l.s4 1966171168
      %v9812 = vunpack.c.0.s8 %v9811
      %v9813 = vlaneseq
      %v9814 = vshrl.u32 %v9813, 7
      %v9815 = vsub.s32 %v9812, %v9814
      %v9816 = vrot.slane %v9806, %v9815
      %v9818 = vunpack.c.l.s4 1966171168
      %v9819 = vunpack.c.0.s8 %v9818
      %v9820 = vlaneseq
      %v9821 = vshrl.u32 %v9820, 7
      %v9822 = vsub.s32 %v9819, %v9821
      %v9823 = vrot.slane %v9816, %v9822
      %v9825 = vunpack.c.l.s4 1966171168
      %v9826 = vunpack.c.0.s8 %v9825
      %v9827 = vlaneseq
      %v9828 = vshrl.u32 %v9827, 7
      %v9829 = vsub.s32 %v9826, %v9828
      %v9830 = vrot.slane %v9807, %v9829
      %v9832 = vunpack.c.l.s4 1966171168
      %v9833 = vunpack.c.0.s8 %v9832
      %v9834 = vlaneseq
      %v9835 = vshrl.u32 %v9834, 7
      %v9836 = vsub.s32 %v9833, %v9835
      %v9837 = vrot.slane %v9830, %v9836
      %v9839 = vunpack.c.l.s4 1935823168
      %v9840 = vunpack.c.0.s8 %v9839
      %v9841 = vlaneseq
      %v9842 = vshrl.u32 %v9841, 7
      %v9843 = vsub.s32 %v9840, %v9842
      %v9844 = vrot.slane %v9823, %v9843
      %v9846 = vunpack.c.l.s4 1935823168
      %v9847 = vunpack.c.0.s8 %v9846
      %v9848 = vlaneseq
      %v9849 = vshrl.u32 %v9848, 7
      %v9850 = vsub.s32 %v9847, %v9849
      %v9851 = vrot.slane %v9844, %v9850
      %v9853 = vunpack.c.l.s4 1935823168
      %v9854 = vunpack.c.0.s8 %v9853
      %v9855 = vlaneseq
      %v9856 = vshrl.u32 %v9855, 7
      %v9857 = vsub.s32 %v9854, %v9856
      %v9858 = vrot.slane %v9837, %v9857
      %v9860 = vunpack.c.l.s4 1935823168
      %v9861 = vunpack.c.0.s8 %v9860
      %v9862 = vlaneseq
      %v9863 = vshrl.u32 %v9862, 7
      %v9864 = vsub.s32 %v9861, %v9863
      %v9865 = vrot.slane %v9858, %v9864
      %v9866 = vunpack.c.l.b16 %v9851
      %v9867 = vunpack.c.l.b16 %v9865
      %v9868 = vrot.slane %v9867, 7
      %v9869 = vsel %vm9188, %v9868, %v9866
      %v9870 = vpack.c.b16 %v9869, %v9869
      %v9872 = vunpack.c.l.s4 1966171168
      %v9873 = vunpack.c.0.s8 %v9872
      %v9874 = vlaneseq
      %v9875 = vshrl.u32 %v9874, 7
      %v9876 = vsub.s32 %v9873, %v9875
      %v9877 = vrot.slane %v9870, %v9876
      %v9879 = vunpack.c.l.s4 1966171168
      %v9880 = vunpack.c.0.s8 %v9879
      %v9881 = vlaneseq
      %v9882 = vshrl.u32 %v9881, 7
      %v9883 = vsub.s32 %v9880, %v9882
      %v9884 = vrot.slane %v9877, %v9883
      %9886 = vst.msk [vmem:[#allocation11 + $0x2] sm:$0x1] %vm9120, %v9884
      %v9887 = vld [vmem:[#allocation11] sm:$0x7]
      %v9888 = vld [vmem:[%s10] sm:$0xf]
      %v9889 = vld [vmem:[%s10 + $0x4] sm:$0xf]
      %v9890 = vld [vmem:[%s10 + $0x8] sm:$0xf]
      %v9891 = vld [vmem:[%s10 + $0xc] sm:$0xf]
      %v9892 = vld [vmem:[%s10 + $0x10] sm:$0xf]
      %v9893 = vld [vmem:[%s10 + $0x14] sm:$0xf]
      %v9894 = vld [vmem:[%s10 + $0x18] sm:$0xf]
      %v9895 = vld [vmem:[%s10 + $0x1c] sm:$0xf]
      %v9896 = vld [vmem:[%s10 + $0x20] sm:$0xf]
      %v9897 = vld [vmem:[%s10 + $0x24] sm:$0xf]
      %v9898 = vld [vmem:[%s10 + $0x28] sm:$0xf]
      %v9899 = vld [vmem:[%s10 + $0x2c] sm:$0xf]
      %v9900 = vld [vmem:[%s10 + $0x30] sm:$0xf]
      %v9901 = vld [vmem:[%s10 + $0x34] sm:$0xf]
      %v9902 = vld [vmem:[%s10 + $0x38] sm:$0xf]
      %v9903 = vld [vmem:[%s10 + $0x3c] sm:$0xf]
      %v9904 = vld [vmem:[%s10 + $0x40] sm:$0xf]
      %v9905 = vld [vmem:[%s10 + $0x44] sm:$0xf]
      %v9906 = vld [vmem:[%s10 + $0x48] sm:$0xf]
      %v9907 = vld [vmem:[%s10 + $0x4c] sm:$0xf]
      %v9908 = vld [vmem:[%s10 + $0x50] sm:$0xf]
      %v9909 = vld [vmem:[%s10 + $0x54] sm:$0xf]
      %v9910 = vld [vmem:[%s10 + $0x58] sm:$0xf]
      %v9911 = vld [vmem:[%s10 + $0x5c] sm:$0xf]
      %v9912 = vld [vmem:[%s10 + $0x60] sm:$0xf]
      %v9913 = vld [vmem:[%s10 + $0x64] sm:$0xf]
      %v9914 = vld [vmem:[%s10 + $0x68] sm:$0xf]
      %v9915 = vld [vmem:[%s10 + $0x6c] sm:$0xf]
      %v9916 = vld [vmem:[%s10 + $0x70] sm:$0xf]
      %v9917 = vld [vmem:[%s10 + $0x74] sm:$0xf]
      %v9918 = vld [vmem:[%s10 + $0x78] sm:$0xf]
      %v9919 = vld [vmem:[%s10 + $0x7c] sm:$0xf]
      %v9920 = vld [vmem:[%s10 + $0x80] sm:$0xf]
      %v9921 = vld [vmem:[%s10 + $0x84] sm:$0xf]
      %v9922 = vld [vmem:[%s10 + $0x88] sm:$0xf]
      %v9923 = vld [vmem:[%s10 + $0x8c] sm:$0xf]
      %v9924 = vld [vmem:[%s11] sm:$0x1]
      %v9926 = vlaneseq
      %v9927 = vshrl.u32 %v9926, 7
      %v9928 = vsub.s32 0, %v9927
      %v9929 = vrot.slane %v9924, %v9928
      %v9933 = vunpack.c.l.s4 1966171168
      %v9934 = vunpack.c.0.s8 %v9933
      %v9935 = vlaneseq
      %v9936 = vshrl.u32 %v9935, 7
      %v9937 = vsub.s32 %v9934, %v9936
      %v9938 = vrot.slane %v9887, %v9937
      %v9939 = vcombine.high %v9938, %v9938
      %v9941 = vunpack.c.l.s4 1966171168
      %v9942 = vunpack.c.0.s8 %v9941
      %v9943 = vlaneseq
      %v9944 = vshrl.u32 %v9943, 7
      %v9945 = vsub.s32 %v9942, %v9944
      %v9946 = vrot.slane %v9938, %v9945
      %v9948 = vunpack.c.l.s4 1966171168
      %v9949 = vunpack.c.0.s8 %v9948
      %v9950 = vlaneseq
      %v9951 = vshrl.u32 %v9950, 7
      %v9952 = vsub.s32 %v9949, %v9951
      %v9953 = vrot.slane %v9939, %v9952
      %v9954 = vcombine.high %v9946, %v9946
      %v9993 = vunpack.c.l.b16 %v9888
      %v9994 = vunpack.c.l.b16 %v9889
      %v9995 = vunpack.c.l.b16 %v9890
      %v9996 = vunpack.c.l.b16 %v9891
      %v9997 = vunpack.c.l.b16 %v9892
      %v9998 = vunpack.c.l.b16 %v9893
      %v9999 = vunpack.c.l.b16 %v9894
      %v10000 = vunpack.c.l.b16 %v9895
      %v10001 = vunpack.c.l.b16 %v9896
      %v10002 = vunpack.c.l.b16 %v9897
      %v10003 = vunpack.c.l.b16 %v9898
      %v10004 = vunpack.c.l.b16 %v9899
      %v10005 = vunpack.c.l.b16 %v9900
      %v10006 = vunpack.c.l.b16 %v9901
      %v10007 = vunpack.c.l.b16 %v9902
      %v10008 = vunpack.c.l.b16 %v9903
      %v10009 = vunpack.c.l.b16 %v9904
      %v10010 = vunpack.c.l.b16 %v9905
      %v10011 = vunpack.c.l.b16 %v9906
      %v10012 = vunpack.c.l.b16 %v9907
      %v10013 = vunpack.c.l.b16 %v9908
      %v10014 = vunpack.c.l.b16 %v9909
      %v10015 = vunpack.c.l.b16 %v9910
      %v10016 = vunpack.c.l.b16 %v9911
      %v10017 = vunpack.c.l.b16 %v9912
      %v10018 = vunpack.c.l.b16 %v9913
      %v10019 = vunpack.c.l.b16 %v9914
      %v10020 = vunpack.c.l.b16 %v9915
      %v10021 = vunpack.c.l.b16 %v9916
      %v10022 = vunpack.c.l.b16 %v9917
      %v10023 = vunpack.c.l.b16 %v9918
      %v10024 = vunpack.c.l.b16 %v9919
      %v10025 = vunpack.c.l.b16 %v9920
      %v10026 = vunpack.c.l.b16 %v9921
      %v10027 = vunpack.c.l.b16 %v9922
      %v10028 = vunpack.c.l.b16 %v9923
      %v10029 = vpack.c.b16 %v9994, %v9993
      %v10030 = vpack.c.b16 %v9996, %v9995
      %v10031 = vpack.c.b16 %v9998, %v9997
      %v10032 = vpack.c.b16 %v10000, %v9999
      %v10033 = vpack.c.b16 %v10002, %v10001
      %v10034 = vpack.c.b16 %v10004, %v10003
      %v10035 = vpack.c.b16 %v10006, %v10005
      %v10036 = vpack.c.b16 %v10008, %v10007
      %v10037 = vpack.c.b16 %v10010, %v10009
      %v10038 = vpack.c.b16 %v10012, %v10011
      %v10039 = vpack.c.b16 %v10014, %v10013
      %v10040 = vpack.c.b16 %v10016, %v10015
      %v10041 = vpack.c.b16 %v10018, %v10017
      %v10042 = vpack.c.b16 %v10020, %v10019
      %v10043 = vpack.c.b16 %v10022, %v10021
      %v10044 = vpack.c.b16 %v10024, %v10023
      %v10045 = vpack.c.b16 %v10026, %v10025
      %v10046 = vpack.c.b16 %v10028, %v10027
      %v10066 = vsel %vm8433, %v9954, 0
      %10068 = vmatprep.subr.bf16.mxu0 0
      %10069 = vmatpush1.bf16.msra.mxu0 %v10036
      %10070 = vmatprep.subr.bf16.mxu0 0
      %10071 = vmatpush1.bf16.msra.mxu0 %v10035
      %10072 = vmatprep.subr.bf16.mxu0 0
      %10073 = vmatpush1.bf16.msra.mxu0 %v10034
      %10074 = vmatprep.subr.bf16.mxu0 0
      %10075 = vmatpush1.bf16.msra.mxu0 %v10033
      %10076 = vmatprep.subr.bf16.mxu0 0
      %10077 = vmatpush1.bf16.msra.mxu0 %v10032
      %10078 = vmatprep.subr.bf16.mxu0 0
      %10079 = vmatpush1.bf16.msra.mxu0 %v10031
      %10080 = vmatprep.subr.bf16.mxu0 0
      %10081 = vmatpush1.bf16.msra.mxu0 %v10030
      %10082 = vmatprep.subr.bf16.mxu0 0
      %10083 = vmatpush1.bf16.msra.mxu0 %v10029
      %10084 = vmatprep.subr.bf16.mxu0 0
      %10085 = vmatpush2.bf16.msra.mxu0 %v10044
      %10086 = vmatprep.subr.bf16.mxu0 0
      %10087 = vmatpush2.bf16.msra.mxu0 %v10043
      %10088 = vmatprep.subr.bf16.mxu0 0
      %10089 = vmatpush2.bf16.msra.mxu0 %v10042
      %10090 = vmatprep.subr.bf16.mxu0 0
      %10091 = vmatpush2.bf16.msra.mxu0 %v10041
      %10092 = vmatprep.subr.bf16.mxu0 0
      %10093 = vmatpush2.bf16.msra.mxu0 %v10040
      %10094 = vmatprep.subr.bf16.mxu0 0
      %10095 = vmatpush2.bf16.msra.mxu0 %v10039
      %10096 = vmatprep.subr.bf16.mxu0 0
      %10097 = vmatpush2.bf16.msra.mxu0 %v10038
      %10098 = vmatprep.subr.bf16.mxu0 0
      %10099 = vmatpush2.bf16.msra.mxu0 %v10037
      %10100 = vmatprep.mubr.bf16.mxu0 %v9953
      %10101 = vmatmul.mubr.bf16.gmra.mxu0 %v9946
      %v10102 = vpop.f32.mrf.mxu0
      %v10103 = vadd.f32 %v9929, %v10102
      %v10104 = vpop.f32.mrf.mxu0
      %v10105 = vpop.f32.mrf.mxu0
      %v10106 = vpop.f32.mrf.mxu0
      %10107 = vdwg.mxu0
      %10108 = vmatprep.subr.bf16.mxu0 0
      %10109 = vmatpush1.bf16.msra.mxu0 0
      %10110 = vmatprep.subr.bf16.mxu0 0
      %10111 = vmatpush1.bf16.msra.mxu0 0
      %10112 = vmatprep.subr.bf16.mxu0 0
      %10113 = vmatpush1.bf16.msra.mxu0 0
      %10114 = vmatprep.subr.bf16.mxu0 0
      %10115 = vmatpush1.bf16.msra.mxu0 0
      %10116 = vmatprep.subr.bf16.mxu0 0
      %10117 = vmatpush1.bf16.msra.mxu0 0
      %10118 = vmatprep.subr.bf16.mxu0 0
      %10119 = vmatpush1.bf16.msra.mxu0 0
      %10120 = vmatprep.subr.bf16.mxu0 0
      %10121 = vmatpush1.bf16.msra.mxu0 %v10046
      %10122 = vmatprep.subr.bf16.mxu0 0
      %10123 = vmatpush1.bf16.msra.mxu0 %v10045
      %10124 = vmatprep.subr.bf16.mxu0 0
      %10125 = vmatpush2.bf16.msra.mxu0 0
      %10126 = vmatprep.subr.bf16.mxu0 0
      %10127 = vmatpush2.bf16.msra.mxu0 0
      %10128 = vmatprep.subr.bf16.mxu0 0
      %10129 = vmatpush2.bf16.msra.mxu0 0
      %10130 = vmatprep.subr.bf16.mxu0 0
      %10131 = vmatpush2.bf16.msra.mxu0 0
      %10132 = vmatprep.subr.bf16.mxu0 0
      %10133 = vmatpush2.bf16.msra.mxu0 0
      %10134 = vmatprep.subr.bf16.mxu0 0
      %10135 = vmatpush2.bf16.msra.mxu0 0
      %10136 = vmatprep.subr.bf16.mxu0 0
      %10137 = vmatpush2.bf16.msra.mxu0 0
      %10138 = vmatprep.subr.bf16.mxu0 0
      %10139 = vmatpush2.bf16.msra.mxu0 0
      %10140 = vmatprep.mubr.bf16.mxu0 0
      %10141 = vmatmul.mubr.bf16.gmra.mxu0 %v10066
      %v10142 = vpop.f32.mrf.mxu0
      %v10143 = vadd.f32 %v10103, %v10142
      %v10144 = vpop.f32.mrf.mxu0
      %v10145 = vpop.f32.mrf.mxu0
      %v10146 = vpop.f32.mrf.mxu0
      %10147 = vdwg.mxu0
      %v10148 = vmax.f32 %v10143, 0.0
      %v10150 = vrot.slane %v10148, 1
      %v10152 = vsub.f32 %v10148, %v10150
      %v10153 = vand.u32 2147483647, %v10152
      %v10154 = vsel %vm9120, %v10153, 0.0
      %10155 = vadd.xlane.f32.xlu0 %v10154
      %v10156 = vpop.xlane.xlu0 %10155
      %v10157 = vrot.slane %v10156, 4
      %v10158 = vadd.f32 %v10156, %v10157
      %v10159 = vrot.slane %v10158, 2
      %v10160 = vadd.f32 %v10158, %v10159
      %v10161 = vrot.slane %v10160, 1
      %v10162 = vadd.f32 %v10160, %v10161
      %s10163 = vtos %v10162
      %s10164 = smul.f32 %s10163, 0.015625
      %s10165 = sadd.f32 %s9076, %s10164
      %v10166 = vstv %s10165
      %10167 = vst [vmem:[%s429] sm:$0x1] %v10166
      %p10168 = scmp.lt.s32.totalorder %s23, 1
      %s10169 = scalar_select %p10168, %s23, 1
      %s10170 = scalar_lea.vmem %s12, %s10169
      // Predicated region
      $region69: #{vgg_loss.1} parent=67 // pred_check
        %p10171 = pneg %p303
      $region70: #{vgg_loss.1} parent=67 // pred_check_branch
        %10173 = sbr.rel (%p10171) target = $region72
      $region71: #{vgg_loss.1} parent=67 // pred_region
        _
      $region72: #{vgg_loss.1} parent=67 // pred_fallthru
        _
    $region68: #{vgg_loss.1} parent=5 // pred_fallthru
      _
    %p10174 = scmp.le.s32.totalorder 2, %s18
    // Predicated region
    $region73: #{vgg_loss.1} parent=5 // pred_check
      %p10175 = pneg %p10174
    $region74: #{vgg_loss.1} parent=5 // pred_check_branch
      %10177 = sbr.rel (%p10175) target = $region76
    $region75: #{vgg_loss.1} parent=5 // pred_region
      %s10178 = ssub.s32 %s18, 2
      // Predicated region
      $region77: #{vgg_loss.1} parent=75 // pred_check
        %p10179 = pneg %p309
      $region78: #{vgg_loss.1} parent=75 // pred_check_branch
        %10181 = sbr.rel (%p10179) target = $region80
      $region79: #{vgg_loss.1} parent=75 // pred_region
        %p10182 = scmp.lt.s32.totalorder %s24, 1
        %s10183 = scalar_select %p10182, %s24, 1
        %s10184 = scalar_lea.vmem %s12, %s10183
      $region80: #{vgg_loss.1} parent=75 // pred_fallthru
        _
    $region76: #{vgg_loss.1} parent=5 // pred_fallthru
      _
  $region6: #{vgg_loss.1} parent=0 // loop_footer
    %s22 = sadd.s32 1, %s18
  $region7: #{vgg_loss.1} parent=0 // loop_footer_branch
    %17 = sbr.rel target = $region3
  $region8: #{vgg_loss.1} parent=0 // loop_exit
    _

</llo_original>
